<compile_context>
chip_gen: v7x
topology: tpu7x:2x2x1
jax: 0.10.0
libtpu: 0.0.40
codegen_flags: <defaults>
</compile_context>

<pallas_src>
import math

import jax
import jax.numpy as jnp
from jax import lax
from jax.experimental import pallas as pl
from jax.experimental.pallas import tpu as pltpu

EPS = 1e-5  # torch.nn.BatchNorm1d default eps
F32 = jnp.float32


# ----------------------------- in-kernel helpers -----------------------------


def _shift_mats(length, dtype):
    """(L, L) one-hot matrices selecting x[l-1] / x[l+1] with zero padding."""
    r = lax.broadcasted_iota(jnp.int32, (length, length), 0)
    c = lax.broadcasted_iota(jnp.int32, (length, length), 1)
    sm = (c == r - 1).astype(dtype)  # row l -> x[l-1]; row 0 is all zero (pad)
    sp = (c == r + 1).astype(dtype)  # row l -> x[l+1]; last row all zero (pad)
    return sm, sp


def _pool_mats(length, dtype):
    """(L//2, L) one-hot matrices selecting even / odd positions."""
    r = lax.broadcasted_iota(jnp.int32, (length // 2, length), 0)
    c = lax.broadcasted_iota(jnp.int32, (length // 2, length), 1)
    ev = (c == 2 * r).astype(dtype)
    od = (c == 2 * r + 1).astype(dtype)
    return ev, od


def _conv3_bn_relu(x, sm, sp, w_ref, scale, shift):
    """Conv1d(k=3, p=1) + folded BN + ReLU.  x: (L, Cin); w_ref: (3*Cin, Cout)."""
    cin = x.shape[1]
    xm = jnp.dot(sm, x, preferred_element_type=F32)  # x[l-1] (zero padded)
    xp = jnp.dot(sp, x, preferred_element_type=F32)  # x[l+1] (zero padded)
    acc = jnp.dot(xm, w_ref[0 * cin:1 * cin, :], preferred_element_type=F32)
    acc = acc + jnp.dot(x, w_ref[1 * cin:2 * cin, :], preferred_element_type=F32)
    acc = acc + jnp.dot(xp, w_ref[2 * cin:3 * cin, :], preferred_element_type=F32)
    return jnp.maximum(acc * scale + shift, 0.0)


def _maxpool2(x, ev, od):
    a = jnp.dot(ev, x, preferred_element_type=F32)
    b = jnp.dot(od, x, preferred_element_type=F32)
    return jnp.maximum(a, b)


def _avgpool2(x, ev, od):
    a = jnp.dot(ev, x, preferred_element_type=F32)
    b = jnp.dot(od, x, preferred_element_type=F32)
    return 0.5 * (a + b)


# --------------------------------- kernel ------------------------------------


def _encoder_kernel(x_ref, w1_ref, s1_ref, b1_ref,
                    w21_ref, s21_ref, b21_ref,
                    w22_ref, s22_ref, b22_ref,
                    w3_ref, s3_ref, b3_ref,
                    w4_ref, s4_ref, b4_ref,
                    wfc_ref, bfc_ref, out_ref):
    length = x_ref.shape[0]                # full sequence length (e.g. 128)
    x = x_ref[...].astype(F32)             # (L, 1) : position x channel layout

    # ---- conv1 (1 -> 32): Cin == 1, so the taps are cheap VPU broadcasts ----
    sm1, sp1 = _shift_mats(length, F32)
    xm = jnp.dot(sm1, x, preferred_element_type=F32)
    xp = jnp.dot(sp1, x, preferred_element_type=F32)
    w1 = w1_ref[...]                       # (3, 32), tap-major
    y = xm * w1[0:1, :] + x * w1[1:2, :] + xp * w1[2:3, :]        # (L, 32)
    y = jnp.maximum(y * s1_ref[...] + b1_ref[...], 0.0)

    # ---- pool1: MaxPool1d(2, 2) ---------------------------------------------
    ev1, od1 = _pool_mats(length, F32)
    y = _maxpool2(y, ev1, od1)                                    # (L/2, 32)

    # ---- conv2_1 / conv2_2 (32 -> 64 -> 64) ----------------------------------
    l2 = length // 2
    sm2, sp2 = _shift_mats(l2, F32)
    y = _conv3_bn_relu(y, sm2, sp2, w21_ref, s21_ref[...], b21_ref[...])
    y = _conv3_bn_relu(y, sm2, sp2, w22_ref, s22_ref[...], b22_ref[...])

    # ---- pool2: MaxPool1d(2, 2) ---------------------------------------------
    ev2, od2 = _pool_mats(l2, F32)
    y = _maxpool2(y, ev2, od2)                                    # (L/4, 64)

    # ---- conv3 / conv4 (64 -> 128 -> 128) ------------------------------------
    l3 = length // 4
    sm3, sp3 = _shift_mats(l3, F32)
    y = _conv3_bn_relu(y, sm3, sp3, w3_ref, s3_ref[...], b3_ref[...])
    y = _conv3_bn_relu(y, sm3, sp3, w4_ref, s4_ref[...], b4_ref[...])

    # ---- pool3: AvgPool1d(2) -------------------------------------------------
    ev3, od3 = _pool_mats(l3, F32)
    y = _avgpool2(y, ev3, od3)                                    # (L/8, 128)

    # ---- fc: out = bias + sum_l y[l] @ Wfc[l]   (Wfc pre-permuted to
    #      (L/8, C, O) which encodes PyTorch's channel-major flatten order) ---
    acc = bfc_ref[...].astype(F32)                                # (1, 128)
    for l in range(y.shape[0]):            # static, fully unrolled (L/8 = 16)
        acc = acc + jnp.dot(y[l:l + 1, :], wfc_ref[l],
                            preferred_element_type=F32)
    out_ref[...] = acc.astype(out_ref.dtype)


# ------------------------------ JAX wrapper -----------------------------------


def _fold_bn(conv_bias, bn):
    gamma, beta, mean, var = bn
    scale = gamma / jnp.sqrt(var + EPS)
    shift = beta + (conv_bias - mean) * scale
    return scale.reshape(1, -1).astype(F32), shift.reshape(1, -1).astype(F32)


def _tap_major(w):
    """PyTorch Conv1d weight (O, I, 3) -> (3*I, O), tap-major rows."""
    o, i, k = w.shape
    return jnp.transpose(w, (2, 1, 0)).reshape(k * i, o).astype(F32)


def _full_spec(a):
    return pl.BlockSpec(a.shape, lambda n, _nd=a.ndim: (0,) * _nd)


def shallow_1dcnn_encoder_forward(x, p):
    """x: (N, 1, L) float32 -> (N, 128) float32 (eval-mode BatchNorm)."""
    n, cin, length = x.shape
    assert cin == 1 and length % 8 == 0
    x_lc = jnp.transpose(x, (0, 2, 1)).astype(F32)       # (N, L, 1)

    w1 = jnp.transpose(p["w1"], (2, 1, 0)).reshape(3, -1).astype(F32)  # (3, 32)
    s1, b1 = _fold_bn(p["b1"], p["bn1"])
    w21 = _tap_major(p["w21"]); s21, b21 = _fold_bn(p["b21"], p["bn21"])
    w22 = _tap_major(p["w22"]); s22, b22 = _fold_bn(p["b22"], p["bn22"])
    w3 = _tap_major(p["w3"]);   s3, b3 = _fold_bn(p["b3"], p["bn3"])
    w4 = _tap_major(p["w4"]);   s4, b4 = _fold_bn(p["b4"], p["bn4"])

    out_f = p["wfc"].shape[0]                            # 128
    c_last = p["w4"].shape[0]                            # 128
    lf = length // 8
    # PyTorch flattens (N, C, L/8) channel-major; permute Wfc to (L/8, C, O).
    wfc = p["wfc"].reshape(out_f, c_last, lf).transpose(2, 1, 0).astype(F32)
    bfc = p["bfc"].reshape(1, -1).astype(F32)

    weights = (w1, s1, b1, w21, s21, b21, w22, s22, b22,
               w3, s3, b3, w4, s4, b4, wfc, bfc)

    out = pl.pallas_call(
        _encoder_kernel,
        out_shape=jax.ShapeDtypeStruct((n, 1, out_f), F32),
        grid=(n,),
        in_specs=[pl.BlockSpec((None, length, 1), lambda i: (i, 0, 0))]
                 + [_full_spec(a) for a in weights],
        out_specs=pl.BlockSpec((None, 1, out_f), lambda i: (i, 0, 0)),
        compiler_params=pltpu.CompilerParams(
            dimension_semantics=("parallel",)),
    )(x_lc, *weights)
    return out.reshape(n, out_f)


# --------------------------- pure-JAX reference -------------------------------


def _ref_conv_bn_relu(x, w, b, bn):
    y = lax.conv_general_dilated(
        x, w, window_strides=(1,), padding=[(1, 1)],
        dimension_numbers=("NCH", "OIH", "NCH"),
        precision=lax.Precision.HIGHEST)
    y = y + b.reshape(1, -1, 1)
    g, be, m, v = bn
    y = (y - m.reshape(1, -1, 1)) / jnp.sqrt(v.reshape(1, -1, 1) + EPS)
    y = y * g.reshape(1, -1, 1) + be.reshape(1, -1, 1)
    return jnp.maximum(y, 0.0)


def _ref_maxpool2(x):
    n, c, l = x.shape
    return x.reshape(n, c, l // 2, 2).max(axis=-1)


def _ref_avgpool2(x):
    n, c, l = x.shape
    return x.reshape(n, c, l // 2, 2).mean(axis=-1)


def reference_forward(x, p):
    y = _ref_maxpool2(_ref_conv_bn_relu(x, p["w1"], p["b1"], p["bn1"]))
    y = _ref_conv_bn_relu(y, p["w21"], p["b21"], p["bn21"])
    y = _ref_maxpool2(_ref_conv_bn_relu(y, p["w22"], p["b22"], p["bn22"]))
    y = _ref_conv_bn_relu(y, p["w3"], p["b3"], p["bn3"])
    y = _ref_avgpool2(_ref_conv_bn_relu(y, p["w4"], p["b4"], p["bn4"]))
    y = y.reshape(y.shape[0], -1)
    return jnp.dot(y, p["wfc"].T, precision=lax.Precision.HIGHEST) + p["bfc"]


# ----------------------------------- main -------------------------------------

if __name__ == "__main__":
    N, L = 2, 128  # batch=2, in_shape=(128,), 1 input channel
    key = jax.random.PRNGKey(0)
    keys = iter(jax.random.split(key, 48))

    def conv_p(cout, cin, k=3):
        w = jax.random.normal(next(keys), (cout, cin, k), F32) / math.sqrt(cin * k)
        b = 0.1 * jax.random.normal(next(keys), (cout,), F32)
        return w, b

    def bn_p(c):
        g = 1.0 + 0.1 * jax.random.normal(next(keys), (c,), F32)
        be = 0.1 * jax.random.normal(next(keys), (c,), F32)
        m = 0.1 * jax.random.normal(next(keys), (c,), F32)
        v = jax.random.uniform(next(keys), (c,), F32, minval=0.5, maxval=1.5)
        return (g, be, m, v)

    x = jax.random.normal(next(keys), (N, 1, L), F32)

    w1, b1 = conv_p(32, 1)
    w21, b21 = conv_p(64, 32)
    w22, b22 = conv_p(64, 64)
    w3, b3 = conv_p(128, 64)
    w4, b4 = conv_p(128, 128)
    in_feature = (L // 8) * 128
    wfc = jax.random.normal(next(keys), (128, in_feature), F32) / math.sqrt(in_feature)
    bfc = 0.1 * jax.random.normal(next(keys), (128,), F32)

    params = dict(w1=w1, b1=b1, bn1=bn_p(32),
                  w21=w21, b21=b21, bn21=bn_p(64),
                  w22=w22, b22=b22, bn22=bn_p(64),
                  w3=w3, b3=b3, bn3=bn_p(128),
                  w4=w4, b4=b4, bn4=bn_p(128),
                  wfc=wfc, bfc=bfc)

    fwd = jax.jit(shallow_1dcnn_encoder_forward)
    out = jax.block_until_ready(fwd(x, params))
    ref = jax.block_until_ready(reference_forward(x, params))

    assert out.shape == ref.shape == (N, 128)
    err = float(jnp.max(jnp.abs(out - ref)))
    denom = max(1.0, float(jnp.max(jnp.abs(ref))))
    if err > 1e-2 * denom:
        raise AssertionError(f"Pallas vs reference mismatch: max abs err = {err}")
    print("KERNEL_OK")
</pallas_src>

<mosaic_0001>
module attributes {stable_mosaic.version = 11 : i64} {
  func.func @_encoder_kernel(%arg0: i32, %arg1: memref<1x128x1xf32, #tpu.memory_space<vmem>>, %arg2: memref<3x32xf32, #tpu.memory_space<vmem>>, %arg3: memref<1x32xf32, #tpu.memory_space<vmem>>, %arg4: memref<1x32xf32, #tpu.memory_space<vmem>>, %arg5: memref<96x64xf32, #tpu.memory_space<vmem>>, %arg6: memref<1x64xf32, #tpu.memory_space<vmem>>, %arg7: memref<1x64xf32, #tpu.memory_space<vmem>>, %arg8: memref<192x64xf32, #tpu.memory_space<vmem>>, %arg9: memref<1x64xf32, #tpu.memory_space<vmem>>, %arg10: memref<1x64xf32, #tpu.memory_space<vmem>>, %arg11: memref<192x128xf32, #tpu.memory_space<vmem>>, %arg12: memref<1x128xf32, #tpu.memory_space<vmem>>, %arg13: memref<1x128xf32, #tpu.memory_space<vmem>>, %arg14: memref<384x128xf32, #tpu.memory_space<vmem>>, %arg15: memref<1x128xf32, #tpu.memory_space<vmem>>, %arg16: memref<1x128xf32, #tpu.memory_space<vmem>>, %arg17: memref<16x128x128xf32, #tpu.memory_space<vmem>>, %arg18: memref<1x128xf32, #tpu.memory_space<vmem>>, %arg19: memref<1x1x128xf32, #tpu.memory_space<vmem>>) attributes {dimension_semantics = [#tpu.dimension_semantics<parallel>], iteration_bounds = array<i64: 2>, scalar_prefetch = 0 : i64, scratch_operands = 0 : i64, tpu.core_type = #tpu.core_type<tc>, window_params = [{transform_indices = @transform_0, window_bounds = array<i64: 1, 128, 1>}, {pipeline_mode = #tpu.pipeline_mode<synchronous>, transform_indices = @transform_1, window_bounds = array<i64: 3, 32>}, {pipeline_mode = #tpu.pipeline_mode<synchronous>, transform_indices = @transform_2, window_bounds = array<i64: 1, 32>}, {pipeline_mode = #tpu.pipeline_mode<synchronous>, transform_indices = @transform_3, window_bounds = array<i64: 1, 32>}, {pipeline_mode = #tpu.pipeline_mode<synchronous>, transform_indices = @transform_4, window_bounds = array<i64: 96, 64>}, {pipeline_mode = #tpu.pipeline_mode<synchronous>, transform_indices = @transform_5, window_bounds = array<i64: 1, 64>}, {pipeline_mode = #tpu.pipeline_mode<synchronous>, transform_indices = @transform_6, window_bounds = array<i64: 1, 64>}, {pipeline_mode = #tpu.pipeline_mode<synchronous>, transform_indices = @transform_7, window_bounds = array<i64: 192, 64>}, {pipeline_mode = #tpu.pipeline_mode<synchronous>, transform_indices = @transform_8, window_bounds = array<i64: 1, 64>}, {pipeline_mode = #tpu.pipeline_mode<synchronous>, transform_indices = @transform_9, window_bounds = array<i64: 1, 64>}, {pipeline_mode = #tpu.pipeline_mode<synchronous>, transform_indices = @transform_10, window_bounds = array<i64: 192, 128>}, {pipeline_mode = #tpu.pipeline_mode<synchronous>, transform_indices = @transform_11, window_bounds = array<i64: 1, 128>}, {pipeline_mode = #tpu.pipeline_mode<synchronous>, transform_indices = @transform_12, window_bounds = array<i64: 1, 128>}, {pipeline_mode = #tpu.pipeline_mode<synchronous>, transform_indices = @transform_13, window_bounds = array<i64: 384, 128>}, {pipeline_mode = #tpu.pipeline_mode<synchronous>, transform_indices = @transform_14, window_bounds = array<i64: 1, 128>}, {pipeline_mode = #tpu.pipeline_mode<synchronous>, transform_indices = @transform_15, window_bounds = array<i64: 1, 128>}, {pipeline_mode = #tpu.pipeline_mode<synchronous>, transform_indices = @transform_16, window_bounds = array<i64: 16, 128, 128>}, {pipeline_mode = #tpu.pipeline_mode<synchronous>, transform_indices = @transform_17, window_bounds = array<i64: 1, 128>}, {transform_indices = @transform_18, window_bounds = array<i64: 1, 1, 128>}]} {
    %c0 = arith.constant 0 : index
    %c0_0 = arith.constant 0 : index
    %c0_1 = arith.constant 0 : index
    %0 = vector.load %arg1[%c0, %c0_0, %c0_1] : memref<1x128x1xf32, #tpu.memory_space<vmem>>, vector<1x128x1xf32>
    %1 = vector.shape_cast %0 : vector<1x128x1xf32> to vector<128x1xf32>
    %2 = tpu.iota {dimensions = array<i32: 0>} : vector<128x128xi32>
    %3 = tpu.iota {dimensions = array<i32: 1>} : vector<128x128xi32>
    %c1_i32 = arith.constant 1 : i32
    %4 = vector.broadcast %c1_i32 : i32 to vector<128x128xi32>
    %5 = arith.subi %2, %4 : vector<128x128xi32>
    %6 = arith.cmpi eq, %3, %5 : vector<128x128xi32>
    %7 = arith.extui %6 : vector<128x128xi1> to vector<128x128xi32>
    %8 = arith.sitofp %7 : vector<128x128xi32> to vector<128x128xf32>
    %c1_i32_2 = arith.constant 1 : i32
    %9 = vector.broadcast %c1_i32_2 : i32 to vector<128x128xi32>
    %10 = arith.addi %2, %9 : vector<128x128xi32>
    %11 = arith.cmpi eq, %3, %10 : vector<128x128xi32>
    %12 = arith.extui %11 : vector<128x128xi1> to vector<128x128xi32>
    %13 = arith.sitofp %12 : vector<128x128xi32> to vector<128x128xf32>
    %cst = arith.constant dense<0.000000e+00> : vector<128x1xf32>
    %14 = tpu.matmul %8, %1, %cst {dimension_numbers = #tpu.dot_dimension_numbers<[1], [0], [0], [1], [0, 0, 1, 1], [], []>} : vector<128x128xf32>, vector<128x1xf32>, vector<128x1xf32> -> vector<128x1xf32>
    %cst_3 = arith.constant dense<0.000000e+00> : vector<128x1xf32>
    %15 = tpu.matmul %13, %1, %cst_3 {dimension_numbers = #tpu.dot_dimension_numbers<[1], [0], [0], [1], [0, 0, 1, 1], [], []>} : vector<128x128xf32>, vector<128x1xf32>, vector<128x1xf32> -> vector<128x1xf32>
    %c0_4 = arith.constant 0 : index
    %c0_5 = arith.constant 0 : index
    %16 = vector.load %arg2[%c0_4, %c0_5] : memref<3x32xf32, #tpu.memory_space<vmem>>, vector<3x32xf32>
    %17 = vector.extract_strided_slice %16 {offsets = [0, 0], sizes = [1, 32], strides = [1, 1]} : vector<3x32xf32> to vector<1x32xf32>
    %18 = vector.broadcast %14 : vector<128x1xf32> to vector<128x32xf32>
    %19 = vector.broadcast %17 : vector<1x32xf32> to vector<128x32xf32>
    %20 = arith.mulf %18, %19 : vector<128x32xf32>
    %21 = vector.extract_strided_slice %16 {offsets = [1, 0], sizes = [1, 32], strides = [1, 1]} : vector<3x32xf32> to vector<1x32xf32>
    %22 = vector.broadcast %1 : vector<128x1xf32> to vector<128x32xf32>
    %23 = vector.broadcast %21 : vector<1x32xf32> to vector<128x32xf32>
    %24 = arith.mulf %22, %23 : vector<128x32xf32>
    %25 = arith.addf %20, %24 : vector<128x32xf32>
    %26 = vector.extract_strided_slice %16 {offsets = [2, 0], sizes = [1, 32], strides = [1, 1]} : vector<3x32xf32> to vector<1x32xf32>
    %27 = vector.broadcast %15 : vector<128x1xf32> to vector<128x32xf32>
    %28 = vector.broadcast %26 : vector<1x32xf32> to vector<128x32xf32>
    %29 = arith.mulf %27, %28 : vector<128x32xf32>
    %30 = arith.addf %25, %29 : vector<128x32xf32>
    %c0_6 = arith.constant 0 : index
    %c0_7 = arith.constant 0 : index
    %31 = vector.load %arg3[%c0_6, %c0_7] : memref<1x32xf32, #tpu.memory_space<vmem>>, vector<1x32xf32>
    %32 = vector.broadcast %31 : vector<1x32xf32> to vector<128x32xf32>
    %33 = arith.mulf %30, %32 : vector<128x32xf32>
    %c0_8 = arith.constant 0 : index
    %c0_9 = arith.constant 0 : index
    %34 = vector.load %arg4[%c0_8, %c0_9] : memref<1x32xf32, #tpu.memory_space<vmem>>, vector<1x32xf32>
    %35 = vector.broadcast %34 : vector<1x32xf32> to vector<128x32xf32>
    %36 = arith.addf %33, %35 : vector<128x32xf32>
    %cst_10 = arith.constant 0.000000e+00 : f32
    %37 = vector.broadcast %cst_10 : f32 to vector<128x32xf32>
    %38 = arith.maximumf %36, %37 : vector<128x32xf32>
    %39 = tpu.iota {dimensions = array<i32: 0>} : vector<64x128xi32>
    %40 = tpu.iota {dimensions = array<i32: 1>} : vector<64x128xi32>
    %c2_i32 = arith.constant 2 : i32
    %41 = vector.broadcast %c2_i32 : i32 to vector<64x128xi32>
    %42 = arith.muli %41, %39 : vector<64x128xi32>
    %43 = arith.cmpi eq, %40, %42 : vector<64x128xi32>
    %44 = arith.extui %43 : vector<64x128xi1> to vector<64x128xi32>
    %45 = arith.sitofp %44 : vector<64x128xi32> to vector<64x128xf32>
    %c2_i32_11 = arith.constant 2 : i32
    %46 = vector.broadcast %c2_i32_11 : i32 to vector<64x128xi32>
    %47 = arith.muli %46, %39 : vector<64x128xi32>
    %c1_i32_12 = arith.constant 1 : i32
    %48 = vector.broadcast %c1_i32_12 : i32 to vector<64x128xi32>
    %49 = arith.addi %47, %48 : vector<64x128xi32>
    %50 = arith.cmpi eq, %40, %49 : vector<64x128xi32>
    %51 = arith.extui %50 : vector<64x128xi1> to vector<64x128xi32>
    %52 = arith.sitofp %51 : vector<64x128xi32> to vector<64x128xf32>
    %cst_13 = arith.constant dense<0.000000e+00> : vector<64x32xf32>
    %53 = tpu.matmul %45, %38, %cst_13 {dimension_numbers = #tpu.dot_dimension_numbers<[1], [0], [0], [1], [0, 0, 1, 1], [], []>} : vector<64x128xf32>, vector<128x32xf32>, vector<64x32xf32> -> vector<64x32xf32>
    %cst_14 = arith.constant dense<0.000000e+00> : vector<64x32xf32>
    %54 = tpu.matmul %52, %38, %cst_14 {dimension_numbers = #tpu.dot_dimension_numbers<[1], [0], [0], [1], [0, 0, 1, 1], [], []>} : vector<64x128xf32>, vector<128x32xf32>, vector<64x32xf32> -> vector<64x32xf32>
    %55 = arith.maximumf %53, %54 : vector<64x32xf32>
    %56 = tpu.iota {dimensions = array<i32: 0>} : vector<64x64xi32>
    %57 = tpu.iota {dimensions = array<i32: 1>} : vector<64x64xi32>
    %c1_i32_15 = arith.constant 1 : i32
    %58 = vector.broadcast %c1_i32_15 : i32 to vector<64x64xi32>
    %59 = arith.subi %56, %58 : vector<64x64xi32>
    %60 = arith.cmpi eq, %57, %59 : vector<64x64xi32>
    %61 = arith.extui %60 : vector<64x64xi1> to vector<64x64xi32>
    %62 = arith.sitofp %61 : vector<64x64xi32> to vector<64x64xf32>
    %c1_i32_16 = arith.constant 1 : i32
    %63 = vector.broadcast %c1_i32_16 : i32 to vector<64x64xi32>
    %64 = arith.addi %56, %63 : vector<64x64xi32>
    %65 = arith.cmpi eq, %57, %64 : vector<64x64xi32>
    %66 = arith.extui %65 : vector<64x64xi1> to vector<64x64xi32>
    %67 = arith.sitofp %66 : vector<64x64xi32> to vector<64x64xf32>
    %c0_17 = arith.constant 0 : index
    %c0_18 = arith.constant 0 : index
    %68 = vector.load %arg6[%c0_17, %c0_18] : memref<1x64xf32, #tpu.memory_space<vmem>>, vector<1x64xf32>
    %c0_19 = arith.constant 0 : index
    %c0_20 = arith.constant 0 : index
    %69 = vector.load %arg7[%c0_19, %c0_20] : memref<1x64xf32, #tpu.memory_space<vmem>>, vector<1x64xf32>
    %cst_21 = arith.constant dense<0.000000e+00> : vector<64x32xf32>
    %70 = tpu.matmul %62, %55, %cst_21 {dimension_numbers = #tpu.dot_dimension_numbers<[1], [0], [0], [1], [0, 0, 1, 1], [], []>} : vector<64x64xf32>, vector<64x32xf32>, vector<64x32xf32> -> vector<64x32xf32>
    %cst_22 = arith.constant dense<0.000000e+00> : vector<64x32xf32>
    %71 = tpu.matmul %67, %55, %cst_22 {dimension_numbers = #tpu.dot_dimension_numbers<[1], [0], [0], [1], [0, 0, 1, 1], [], []>} : vector<64x64xf32>, vector<64x32xf32>, vector<64x32xf32> -> vector<64x32xf32>
    %c0_23 = arith.constant 0 : index
    %c0_24 = arith.constant 0 : index
    %72 = vector.load %arg5[%c0_23, %c0_24] : memref<96x64xf32, #tpu.memory_space<vmem>>, vector<32x64xf32>
    %cst_25 = arith.constant dense<0.000000e+00> : vector<64x64xf32>
    %73 = tpu.matmul %70, %72, %cst_25 {dimension_numbers = #tpu.dot_dimension_numbers<[1], [0], [0], [1], [0, 0, 1, 1], [], []>} : vector<64x32xf32>, vector<32x64xf32>, vector<64x64xf32> -> vector<64x64xf32>
    %c32 = arith.constant 32 : index
    %c0_26 = arith.constant 0 : index
    %74 = vector.load %arg5[%c32, %c0_26] : memref<96x64xf32, #tpu.memory_space<vmem>>, vector<32x64xf32>
    %cst_27 = arith.constant dense<0.000000e+00> : vector<64x64xf32>
    %75 = tpu.matmul %55, %74, %cst_27 {dimension_numbers = #tpu.dot_dimension_numbers<[1], [0], [0], [1], [0, 0, 1, 1], [], []>} : vector<64x32xf32>, vector<32x64xf32>, vector<64x64xf32> -> vector<64x64xf32>
    %76 = arith.addf %73, %75 : vector<64x64xf32>
    %c64 = arith.constant 64 : index
    %c0_28 = arith.constant 0 : index
    %77 = vector.load %arg5[%c64, %c0_28] : memref<96x64xf32, #tpu.memory_space<vmem>>, vector<32x64xf32>
    %cst_29 = arith.constant dense<0.000000e+00> : vector<64x64xf32>
    %78 = tpu.matmul %71, %77, %cst_29 {dimension_numbers = #tpu.dot_dimension_numbers<[1], [0], [0], [1], [0, 0, 1, 1], [], []>} : vector<64x32xf32>, vector<32x64xf32>, vector<64x64xf32> -> vector<64x64xf32>
    %79 = arith.addf %76, %78 : vector<64x64xf32>
    %80 = vector.broadcast %68 : vector<1x64xf32> to vector<64x64xf32>
    %81 = arith.mulf %79, %80 : vector<64x64xf32>
    %82 = vector.broadcast %69 : vector<1x64xf32> to vector<64x64xf32>
    %83 = arith.addf %81, %82 : vector<64x64xf32>
    %cst_30 = arith.constant 0.000000e+00 : f32
    %84 = vector.broadcast %cst_30 : f32 to vector<64x64xf32>
    %85 = arith.maximumf %83, %84 : vector<64x64xf32>
    %c0_31 = arith.constant 0 : index
    %c0_32 = arith.constant 0 : index
    %86 = vector.load %arg9[%c0_31, %c0_32] : memref<1x64xf32, #tpu.memory_space<vmem>>, vector<1x64xf32>
    %c0_33 = arith.constant 0 : index
    %c0_34 = arith.constant 0 : index
    %87 = vector.load %arg10[%c0_33, %c0_34] : memref<1x64xf32, #tpu.memory_space<vmem>>, vector<1x64xf32>
    %cst_35 = arith.constant dense<0.000000e+00> : vector<64x64xf32>
    %88 = tpu.matmul %62, %85, %cst_35 {dimension_numbers = #tpu.dot_dimension_numbers<[1], [0], [0], [1], [0, 0, 1, 1], [], []>} : vector<64x64xf32>, vector<64x64xf32>, vector<64x64xf32> -> vector<64x64xf32>
    %cst_36 = arith.constant dense<0.000000e+00> : vector<64x64xf32>
    %89 = tpu.matmul %67, %85, %cst_36 {dimension_numbers = #tpu.dot_dimension_numbers<[1], [0], [0], [1], [0, 0, 1, 1], [], []>} : vector<64x64xf32>, vector<64x64xf32>, vector<64x64xf32> -> vector<64x64xf32>
    %c0_37 = arith.constant 0 : index
    %c0_38 = arith.constant 0 : index
    %90 = vector.load %arg8[%c0_37, %c0_38] : memref<192x64xf32, #tpu.memory_space<vmem>>, vector<64x64xf32>
    %cst_39 = arith.constant dense<0.000000e+00> : vector<64x64xf32>
    %91 = tpu.matmul %88, %90, %cst_39 {dimension_numbers = #tpu.dot_dimension_numbers<[1], [0], [0], [1], [0, 0, 1, 1], [], []>} : vector<64x64xf32>, vector<64x64xf32>, vector<64x64xf32> -> vector<64x64xf32>
    %c64_40 = arith.constant 64 : index
    %c0_41 = arith.constant 0 : index
    %92 = vector.load %arg8[%c64_40, %c0_41] : memref<192x64xf32, #tpu.memory_space<vmem>>, vector<64x64xf32>
    %cst_42 = arith.constant dense<0.000000e+00> : vector<64x64xf32>
    %93 = tpu.matmul %85, %92, %cst_42 {dimension_numbers = #tpu.dot_dimension_numbers<[1], [0], [0], [1], [0, 0, 1, 1], [], []>} : vector<64x64xf32>, vector<64x64xf32>, vector<64x64xf32> -> vector<64x64xf32>
    %94 = arith.addf %91, %93 : vector<64x64xf32>
    %c128 = arith.constant 128 : index
    %c0_43 = arith.constant 0 : index
    %95 = vector.load %arg8[%c128, %c0_43] : memref<192x64xf32, #tpu.memory_space<vmem>>, vector<64x64xf32>
    %cst_44 = arith.constant dense<0.000000e+00> : vector<64x64xf32>
    %96 = tpu.matmul %89, %95, %cst_44 {dimension_numbers = #tpu.dot_dimension_numbers<[1], [0], [0], [1], [0, 0, 1, 1], [], []>} : vector<64x64xf32>, vector<64x64xf32>, vector<64x64xf32> -> vector<64x64xf32>
    %97 = arith.addf %94, %96 : vector<64x64xf32>
    %98 = vector.broadcast %86 : vector<1x64xf32> to vector<64x64xf32>
    %99 = arith.mulf %97, %98 : vector<64x64xf32>
    %100 = vector.broadcast %87 : vector<1x64xf32> to vector<64x64xf32>
    %101 = arith.addf %99, %100 : vector<64x64xf32>
    %cst_45 = arith.constant 0.000000e+00 : f32
    %102 = vector.broadcast %cst_45 : f32 to vector<64x64xf32>
    %103 = arith.maximumf %101, %102 : vector<64x64xf32>
    %104 = tpu.iota {dimensions = array<i32: 0>} : vector<32x64xi32>
    %105 = tpu.iota {dimensions = array<i32: 1>} : vector<32x64xi32>
    %c2_i32_46 = arith.constant 2 : i32
    %106 = vector.broadcast %c2_i32_46 : i32 to vector<32x64xi32>
    %107 = arith.muli %106, %104 : vector<32x64xi32>
    %108 = arith.cmpi eq, %105, %107 : vector<32x64xi32>
    %109 = arith.extui %108 : vector<32x64xi1> to vector<32x64xi32>
    %110 = arith.sitofp %109 : vector<32x64xi32> to vector<32x64xf32>
    %c2_i32_47 = arith.constant 2 : i32
    %111 = vector.broadcast %c2_i32_47 : i32 to vector<32x64xi32>
    %112 = arith.muli %111, %104 : vector<32x64xi32>
    %c1_i32_48 = arith.constant 1 : i32
    %113 = vector.broadcast %c1_i32_48 : i32 to vector<32x64xi32>
    %114 = arith.addi %112, %113 : vector<32x64xi32>
    %115 = arith.cmpi eq, %105, %114 : vector<32x64xi32>
    %116 = arith.extui %115 : vector<32x64xi1> to vector<32x64xi32>
    %117 = arith.sitofp %116 : vector<32x64xi32> to vector<32x64xf32>
    %cst_49 = arith.constant dense<0.000000e+00> : vector<32x64xf32>
    %118 = tpu.matmul %110, %103, %cst_49 {dimension_numbers = #tpu.dot_dimension_numbers<[1], [0], [0], [1], [0, 0, 1, 1], [], []>} : vector<32x64xf32>, vector<64x64xf32>, vector<32x64xf32> -> vector<32x64xf32>
    %cst_50 = arith.constant dense<0.000000e+00> : vector<32x64xf32>
    %119 = tpu.matmul %117, %103, %cst_50 {dimension_numbers = #tpu.dot_dimension_numbers<[1], [0], [0], [1], [0, 0, 1, 1], [], []>} : vector<32x64xf32>, vector<64x64xf32>, vector<32x64xf32> -> vector<32x64xf32>
    %120 = arith.maximumf %118, %119 : vector<32x64xf32>
    %121 = tpu.iota {dimensions = array<i32: 0>} : vector<32x32xi32>
    %122 = tpu.iota {dimensions = array<i32: 1>} : vector<32x32xi32>
    %c1_i32_51 = arith.constant 1 : i32
    %123 = vector.broadcast %c1_i32_51 : i32 to vector<32x32xi32>
    %124 = arith.subi %121, %123 : vector<32x32xi32>
    %125 = arith.cmpi eq, %122, %124 : vector<32x32xi32>
    %126 = arith.extui %125 : vector<32x32xi1> to vector<32x32xi32>
    %127 = arith.sitofp %126 : vector<32x32xi32> to vector<32x32xf32>
    %c1_i32_52 = arith.constant 1 : i32
    %128 = vector.broadcast %c1_i32_52 : i32 to vector<32x32xi32>
    %129 = arith.addi %121, %128 : vector<32x32xi32>
    %130 = arith.cmpi eq, %122, %129 : vector<32x32xi32>
    %131 = arith.extui %130 : vector<32x32xi1> to vector<32x32xi32>
    %132 = arith.sitofp %131 : vector<32x32xi32> to vector<32x32xf32>
    %c0_53 = arith.constant 0 : index
    %c0_54 = arith.constant 0 : index
    %133 = vector.load %arg12[%c0_53, %c0_54] : memref<1x128xf32, #tpu.memory_space<vmem>>, vector<1x128xf32>
    %c0_55 = arith.constant 0 : index
    %c0_56 = arith.constant 0 : index
    %134 = vector.load %arg13[%c0_55, %c0_56] : memref<1x128xf32, #tpu.memory_space<vmem>>, vector<1x128xf32>
    %cst_57 = arith.constant dense<0.000000e+00> : vector<32x64xf32>
    %135 = tpu.matmul %127, %120, %cst_57 {dimension_numbers = #tpu.dot_dimension_numbers<[1], [0], [0], [1], [0, 0, 1, 1], [], []>} : vector<32x32xf32>, vector<32x64xf32>, vector<32x64xf32> -> vector<32x64xf32>
    %cst_58 = arith.constant dense<0.000000e+00> : vector<32x64xf32>
    %136 = tpu.matmul %132, %120, %cst_58 {dimension_numbers = #tpu.dot_dimension_numbers<[1], [0], [0], [1], [0, 0, 1, 1], [], []>} : vector<32x32xf32>, vector<32x64xf32>, vector<32x64xf32> -> vector<32x64xf32>
    %c0_59 = arith.constant 0 : index
    %c0_60 = arith.constant 0 : index
    %137 = vector.load %arg11[%c0_59, %c0_60] : memref<192x128xf32, #tpu.memory_space<vmem>>, vector<64x128xf32>
    %cst_61 = arith.constant dense<0.000000e+00> : vector<32x128xf32>
    %138 = tpu.matmul %135, %137, %cst_61 {dimension_numbers = #tpu.dot_dimension_numbers<[1], [0], [0], [1], [0, 0, 1, 1], [], []>} : vector<32x64xf32>, vector<64x128xf32>, vector<32x128xf32> -> vector<32x128xf32>
    %c64_62 = arith.constant 64 : index
    %c0_63 = arith.constant 0 : index
    %139 = vector.load %arg11[%c64_62, %c0_63] : memref<192x128xf32, #tpu.memory_space<vmem>>, vector<64x128xf32>
    %cst_64 = arith.constant dense<0.000000e+00> : vector<32x128xf32>
    %140 = tpu.matmul %120, %139, %cst_64 {dimension_numbers = #tpu.dot_dimension_numbers<[1], [0], [0], [1], [0, 0, 1, 1], [], []>} : vector<32x64xf32>, vector<64x128xf32>, vector<32x128xf32> -> vector<32x128xf32>
    %141 = arith.addf %138, %140 : vector<32x128xf32>
    %c128_65 = arith.constant 128 : index
    %c0_66 = arith.constant 0 : index
    %142 = vector.load %arg11[%c128_65, %c0_66] : memref<192x128xf32, #tpu.memory_space<vmem>>, vector<64x128xf32>
    %cst_67 = arith.constant dense<0.000000e+00> : vector<32x128xf32>
    %143 = tpu.matmul %136, %142, %cst_67 {dimension_numbers = #tpu.dot_dimension_numbers<[1], [0], [0], [1], [0, 0, 1, 1], [], []>} : vector<32x64xf32>, vector<64x128xf32>, vector<32x128xf32> -> vector<32x128xf32>
    %144 = arith.addf %141, %143 : vector<32x128xf32>
    %145 = vector.broadcast %133 : vector<1x128xf32> to vector<32x128xf32>
    %146 = arith.mulf %144, %145 : vector<32x128xf32>
    %147 = vector.broadcast %134 : vector<1x128xf32> to vector<32x128xf32>
    %148 = arith.addf %146, %147 : vector<32x128xf32>
    %cst_68 = arith.constant 0.000000e+00 : f32
    %149 = vector.broadcast %cst_68 : f32 to vector<32x128xf32>
    %150 = arith.maximumf %148, %149 : vector<32x128xf32>
    %c0_69 = arith.constant 0 : index
    %c0_70 = arith.constant 0 : index
    %151 = vector.load %arg15[%c0_69, %c0_70] : memref<1x128xf32, #tpu.memory_space<vmem>>, vector<1x128xf32>
    %c0_71 = arith.constant 0 : index
    %c0_72 = arith.constant 0 : index
    %152 = vector.load %arg16[%c0_71, %c0_72] : memref<1x128xf32, #tpu.memory_space<vmem>>, vector<1x128xf32>
    %cst_73 = arith.constant dense<0.000000e+00> : vector<32x128xf32>
    %153 = tpu.matmul %127, %150, %cst_73 {dimension_numbers = #tpu.dot_dimension_numbers<[1], [0], [0], [1], [0, 0, 1, 1], [], []>} : vector<32x32xf32>, vector<32x128xf32>, vector<32x128xf32> -> vector<32x128xf32>
    %cst_74 = arith.constant dense<0.000000e+00> : vector<32x128xf32>
    %154 = tpu.matmul %132, %150, %cst_74 {dimension_numbers = #tpu.dot_dimension_numbers<[1], [0], [0], [1], [0, 0, 1, 1], [], []>} : vector<32x32xf32>, vector<32x128xf32>, vector<32x128xf32> -> vector<32x128xf32>
    %c0_75 = arith.constant 0 : index
    %c0_76 = arith.constant 0 : index
    %155 = vector.load %arg14[%c0_75, %c0_76] : memref<384x128xf32, #tpu.memory_space<vmem>>, vector<128x128xf32>
    %cst_77 = arith.constant dense<0.000000e+00> : vector<32x128xf32>
    %156 = tpu.matmul %153, %155, %cst_77 {dimension_numbers = #tpu.dot_dimension_numbers<[1], [0], [0], [1], [0, 0, 1, 1], [], []>} : vector<32x128xf32>, vector<128x128xf32>, vector<32x128xf32> -> vector<32x128xf32>
    %c128_78 = arith.constant 128 : index
    %c0_79 = arith.constant 0 : index
    %157 = vector.load %arg14[%c128_78, %c0_79] : memref<384x128xf32, #tpu.memory_space<vmem>>, vector<128x128xf32>
    %cst_80 = arith.constant dense<0.000000e+00> : vector<32x128xf32>
    %158 = tpu.matmul %150, %157, %cst_80 {dimension_numbers = #tpu.dot_dimension_numbers<[1], [0], [0], [1], [0, 0, 1, 1], [], []>} : vector<32x128xf32>, vector<128x128xf32>, vector<32x128xf32> -> vector<32x128xf32>
    %159 = arith.addf %156, %158 : vector<32x128xf32>
    %c256 = arith.constant 256 : index
    %c0_81 = arith.constant 0 : index
    %160 = vector.load %arg14[%c256, %c0_81] : memref<384x128xf32, #tpu.memory_space<vmem>>, vector<128x128xf32>
    %cst_82 = arith.constant dense<0.000000e+00> : vector<32x128xf32>
    %161 = tpu.matmul %154, %160, %cst_82 {dimension_numbers = #tpu.dot_dimension_numbers<[1], [0], [0], [1], [0, 0, 1, 1], [], []>} : vector<32x128xf32>, vector<128x128xf32>, vector<32x128xf32> -> vector<32x128xf32>
    %162 = arith.addf %159, %161 : vector<32x128xf32>
    %163 = vector.broadcast %151 : vector<1x128xf32> to vector<32x128xf32>
    %164 = arith.mulf %162, %163 : vector<32x128xf32>
    %165 = vector.broadcast %152 : vector<1x128xf32> to vector<32x128xf32>
    %166 = arith.addf %164, %165 : vector<32x128xf32>
    %cst_83 = arith.constant 0.000000e+00 : f32
    %167 = vector.broadcast %cst_83 : f32 to vector<32x128xf32>
    %168 = arith.maximumf %166, %167 : vector<32x128xf32>
    %169 = tpu.iota {dimensions = array<i32: 0>} : vector<16x32xi32>
    %170 = tpu.iota {dimensions = array<i32: 1>} : vector<16x32xi32>
    %c2_i32_84 = arith.constant 2 : i32
    %171 = vector.broadcast %c2_i32_84 : i32 to vector<16x32xi32>
    %172 = arith.muli %171, %169 : vector<16x32xi32>
    %173 = arith.cmpi eq, %170, %172 : vector<16x32xi32>
    %174 = arith.extui %173 : vector<16x32xi1> to vector<16x32xi32>
    %175 = arith.sitofp %174 : vector<16x32xi32> to vector<16x32xf32>
    %c2_i32_85 = arith.constant 2 : i32
    %176 = vector.broadcast %c2_i32_85 : i32 to vector<16x32xi32>
    %177 = arith.muli %176, %169 : vector<16x32xi32>
    %c1_i32_86 = arith.constant 1 : i32
    %178 = vector.broadcast %c1_i32_86 : i32 to vector<16x32xi32>
    %179 = arith.addi %177, %178 : vector<16x32xi32>
    %180 = arith.cmpi eq, %170, %179 : vector<16x32xi32>
    %181 = arith.extui %180 : vector<16x32xi1> to vector<16x32xi32>
    %182 = arith.sitofp %181 : vector<16x32xi32> to vector<16x32xf32>
    %cst_87 = arith.constant dense<0.000000e+00> : vector<16x128xf32>
    %183 = tpu.matmul %175, %168, %cst_87 {dimension_numbers = #tpu.dot_dimension_numbers<[1], [0], [0], [1], [0, 0, 1, 1], [], []>} : vector<16x32xf32>, vector<32x128xf32>, vector<16x128xf32> -> vector<16x128xf32>
    %cst_88 = arith.constant dense<0.000000e+00> : vector<16x128xf32>
    %184 = tpu.matmul %182, %168, %cst_88 {dimension_numbers = #tpu.dot_dimension_numbers<[1], [0], [0], [1], [0, 0, 1, 1], [], []>} : vector<16x32xf32>, vector<32x128xf32>, vector<16x128xf32> -> vector<16x128xf32>
    %185 = arith.addf %183, %184 : vector<16x128xf32>
    %cst_89 = arith.constant 5.000000e-01 : f32
    %186 = vector.broadcast %cst_89 : f32 to vector<16x128xf32>
    %187 = arith.mulf %186, %185 : vector<16x128xf32>
    %c0_90 = arith.constant 0 : index
    %c0_91 = arith.constant 0 : index
    %188 = vector.load %arg18[%c0_90, %c0_91] : memref<1x128xf32, #tpu.memory_space<vmem>>, vector<1x128xf32>
    %189 = vector.extract_strided_slice %187 {offsets = [0, 0], sizes = [1, 128], strides = [1, 1]} : vector<16x128xf32> to vector<1x128xf32>
    %c0_92 = arith.constant 0 : index
    %c0_93 = arith.constant 0 : index
    %c0_94 = arith.constant 0 : index
    %190 = vector.load %arg17[%c0_92, %c0_93, %c0_94] : memref<16x128x128xf32, #tpu.memory_space<vmem>>, vector<1x128x128xf32>
    %191 = vector.shape_cast %190 : vector<1x128x128xf32> to vector<128x128xf32>
    %cst_95 = arith.constant dense<0.000000e+00> : vector<1x128xf32>
    %192 = tpu.matmul %189, %191, %cst_95 {dimension_numbers = #tpu.dot_dimension_numbers<[1], [0], [0], [1], [0, 0, 1, 1], [], []>} : vector<1x128xf32>, vector<128x128xf32>, vector<1x128xf32> -> vector<1x128xf32>
    %193 = arith.addf %188, %192 : vector<1x128xf32>
    %194 = vector.extract_strided_slice %187 {offsets = [1, 0], sizes = [1, 128], strides = [1, 1]} : vector<16x128xf32> to vector<1x128xf32>
    %c1 = arith.constant 1 : index
    %c0_96 = arith.constant 0 : index
    %c0_97 = arith.constant 0 : index
    %195 = vector.load %arg17[%c1, %c0_96, %c0_97] : memref<16x128x128xf32, #tpu.memory_space<vmem>>, vector<1x128x128xf32>
    %196 = vector.shape_cast %195 : vector<1x128x128xf32> to vector<128x128xf32>
    %cst_98 = arith.constant dense<0.000000e+00> : vector<1x128xf32>
    %197 = tpu.matmul %194, %196, %cst_98 {dimension_numbers = #tpu.dot_dimension_numbers<[1], [0], [0], [1], [0, 0, 1, 1], [], []>} : vector<1x128xf32>, vector<128x128xf32>, vector<1x128xf32> -> vector<1x128xf32>
    %198 = arith.addf %193, %197 : vector<1x128xf32>
    %199 = vector.extract_strided_slice %187 {offsets = [2, 0], sizes = [1, 128], strides = [1, 1]} : vector<16x128xf32> to vector<1x128xf32>
    %c2 = arith.constant 2 : index
    %c0_99 = arith.constant 0 : index
    %c0_100 = arith.constant 0 : index
    %200 = vector.load %arg17[%c2, %c0_99, %c0_100] : memref<16x128x128xf32, #tpu.memory_space<vmem>>, vector<1x128x128xf32>
    %201 = vector.shape_cast %200 : vector<1x128x128xf32> to vector<128x128xf32>
    %cst_101 = arith.constant dense<0.000000e+00> : vector<1x128xf32>
    %202 = tpu.matmul %199, %201, %cst_101 {dimension_numbers = #tpu.dot_dimension_numbers<[1], [0], [0], [1], [0, 0, 1, 1], [], []>} : vector<1x128xf32>, vector<128x128xf32>, vector<1x128xf32> -> vector<1x128xf32>
    %203 = arith.addf %198, %202 : vector<1x128xf32>
    %204 = vector.extract_strided_slice %187 {offsets = [3, 0], sizes = [1, 128], strides = [1, 1]} : vector<16x128xf32> to vector<1x128xf32>
    %c3 = arith.constant 3 : index
    %c0_102 = arith.constant 0 : index
    %c0_103 = arith.constant 0 : index
    %205 = vector.load %arg17[%c3, %c0_102, %c0_103] : memref<16x128x128xf32, #tpu.memory_space<vmem>>, vector<1x128x128xf32>
    %206 = vector.shape_cast %205 : vector<1x128x128xf32> to vector<128x128xf32>
    %cst_104 = arith.constant dense<0.000000e+00> : vector<1x128xf32>
    %207 = tpu.matmul %204, %206, %cst_104 {dimension_numbers = #tpu.dot_dimension_numbers<[1], [0], [0], [1], [0, 0, 1, 1], [], []>} : vector<1x128xf32>, vector<128x128xf32>, vector<1x128xf32> -> vector<1x128xf32>
    %208 = arith.addf %203, %207 : vector<1x128xf32>
    %209 = vector.extract_strided_slice %187 {offsets = [4, 0], sizes = [1, 128], strides = [1, 1]} : vector<16x128xf32> to vector<1x128xf32>
    %c4 = arith.constant 4 : index
    %c0_105 = arith.constant 0 : index
    %c0_106 = arith.constant 0 : index
    %210 = vector.load %arg17[%c4, %c0_105, %c0_106] : memref<16x128x128xf32, #tpu.memory_space<vmem>>, vector<1x128x128xf32>
    %211 = vector.shape_cast %210 : vector<1x128x128xf32> to vector<128x128xf32>
    %cst_107 = arith.constant dense<0.000000e+00> : vector<1x128xf32>
    %212 = tpu.matmul %209, %211, %cst_107 {dimension_numbers = #tpu.dot_dimension_numbers<[1], [0], [0], [1], [0, 0, 1, 1], [], []>} : vector<1x128xf32>, vector<128x128xf32>, vector<1x128xf32> -> vector<1x128xf32>
    %213 = arith.addf %208, %212 : vector<1x128xf32>
    %214 = vector.extract_strided_slice %187 {offsets = [5, 0], sizes = [1, 128], strides = [1, 1]} : vector<16x128xf32> to vector<1x128xf32>
    %c5 = arith.constant 5 : index
    %c0_108 = arith.constant 0 : index
    %c0_109 = arith.constant 0 : index
    %215 = vector.load %arg17[%c5, %c0_108, %c0_109] : memref<16x128x128xf32, #tpu.memory_space<vmem>>, vector<1x128x128xf32>
    %216 = vector.shape_cast %215 : vector<1x128x128xf32> to vector<128x128xf32>
    %cst_110 = arith.constant dense<0.000000e+00> : vector<1x128xf32>
    %217 = tpu.matmul %214, %216, %cst_110 {dimension_numbers = #tpu.dot_dimension_numbers<[1], [0], [0], [1], [0, 0, 1, 1], [], []>} : vector<1x128xf32>, vector<128x128xf32>, vector<1x128xf32> -> vector<1x128xf32>
    %218 = arith.addf %213, %217 : vector<1x128xf32>
    %219 = vector.extract_strided_slice %187 {offsets = [6, 0], sizes = [1, 128], strides = [1, 1]} : vector<16x128xf32> to vector<1x128xf32>
    %c6 = arith.constant 6 : index
    %c0_111 = arith.constant 0 : index
    %c0_112 = arith.constant 0 : index
    %220 = vector.load %arg17[%c6, %c0_111, %c0_112] : memref<16x128x128xf32, #tpu.memory_space<vmem>>, vector<1x128x128xf32>
    %221 = vector.shape_cast %220 : vector<1x128x128xf32> to vector<128x128xf32>
    %cst_113 = arith.constant dense<0.000000e+00> : vector<1x128xf32>
    %222 = tpu.matmul %219, %221, %cst_113 {dimension_numbers = #tpu.dot_dimension_numbers<[1], [0], [0], [1], [0, 0, 1, 1], [], []>} : vector<1x128xf32>, vector<128x128xf32>, vector<1x128xf32> -> vector<1x128xf32>
    %223 = arith.addf %218, %222 : vector<1x128xf32>
    %224 = vector.extract_strided_slice %187 {offsets = [7, 0], sizes = [1, 128], strides = [1, 1]} : vector<16x128xf32> to vector<1x128xf32>
    %c7 = arith.constant 7 : index
    %c0_114 = arith.constant 0 : index
    %c0_115 = arith.constant 0 : index
    %225 = vector.load %arg17[%c7, %c0_114, %c0_115] : memref<16x128x128xf32, #tpu.memory_space<vmem>>, vector<1x128x128xf32>
    %226 = vector.shape_cast %225 : vector<1x128x128xf32> to vector<128x128xf32>
    %cst_116 = arith.constant dense<0.000000e+00> : vector<1x128xf32>
    %227 = tpu.matmul %224, %226, %cst_116 {dimension_numbers = #tpu.dot_dimension_numbers<[1], [0], [0], [1], [0, 0, 1, 1], [], []>} : vector<1x128xf32>, vector<128x128xf32>, vector<1x128xf32> -> vector<1x128xf32>
    %228 = arith.addf %223, %227 : vector<1x128xf32>
    %229 = vector.extract_strided_slice %187 {offsets = [8, 0], sizes = [1, 128], strides = [1, 1]} : vector<16x128xf32> to vector<1x128xf32>
    %c8 = arith.constant 8 : index
    %c0_117 = arith.constant 0 : index
    %c0_118 = arith.constant 0 : index
    %230 = vector.load %arg17[%c8, %c0_117, %c0_118] : memref<16x128x128xf32, #tpu.memory_space<vmem>>, vector<1x128x128xf32>
    %231 = vector.shape_cast %230 : vector<1x128x128xf32> to vector<128x128xf32>
    %cst_119 = arith.constant dense<0.000000e+00> : vector<1x128xf32>
    %232 = tpu.matmul %229, %231, %cst_119 {dimension_numbers = #tpu.dot_dimension_numbers<[1], [0], [0], [1], [0, 0, 1, 1], [], []>} : vector<1x128xf32>, vector<128x128xf32>, vector<1x128xf32> -> vector<1x128xf32>
    %233 = arith.addf %228, %232 : vector<1x128xf32>
    %234 = vector.extract_strided_slice %187 {offsets = [9, 0], sizes = [1, 128], strides = [1, 1]} : vector<16x128xf32> to vector<1x128xf32>
    %c9 = arith.constant 9 : index
    %c0_120 = arith.constant 0 : index
    %c0_121 = arith.constant 0 : index
    %235 = vector.load %arg17[%c9, %c0_120, %c0_121] : memref<16x128x128xf32, #tpu.memory_space<vmem>>, vector<1x128x128xf32>
    %236 = vector.shape_cast %235 : vector<1x128x128xf32> to vector<128x128xf32>
    %cst_122 = arith.constant dense<0.000000e+00> : vector<1x128xf32>
    %237 = tpu.matmul %234, %236, %cst_122 {dimension_numbers = #tpu.dot_dimension_numbers<[1], [0], [0], [1], [0, 0, 1, 1], [], []>} : vector<1x128xf32>, vector<128x128xf32>, vector<1x128xf32> -> vector<1x128xf32>
    %238 = arith.addf %233, %237 : vector<1x128xf32>
    %239 = vector.extract_strided_slice %187 {offsets = [10, 0], sizes = [1, 128], strides = [1, 1]} : vector<16x128xf32> to vector<1x128xf32>
    %c10 = arith.constant 10 : index
    %c0_123 = arith.constant 0 : index
    %c0_124 = arith.constant 0 : index
    %240 = vector.load %arg17[%c10, %c0_123, %c0_124] : memref<16x128x128xf32, #tpu.memory_space<vmem>>, vector<1x128x128xf32>
    %241 = vector.shape_cast %240 : vector<1x128x128xf32> to vector<128x128xf32>
    %cst_125 = arith.constant dense<0.000000e+00> : vector<1x128xf32>
    %242 = tpu.matmul %239, %241, %cst_125 {dimension_numbers = #tpu.dot_dimension_numbers<[1], [0], [0], [1], [0, 0, 1, 1], [], []>} : vector<1x128xf32>, vector<128x128xf32>, vector<1x128xf32> -> vector<1x128xf32>
    %243 = arith.addf %238, %242 : vector<1x128xf32>
    %244 = vector.extract_strided_slice %187 {offsets = [11, 0], sizes = [1, 128], strides = [1, 1]} : vector<16x128xf32> to vector<1x128xf32>
    %c11 = arith.constant 11 : index
    %c0_126 = arith.constant 0 : index
    %c0_127 = arith.constant 0 : index
    %245 = vector.load %arg17[%c11, %c0_126, %c0_127] : memref<16x128x128xf32, #tpu.memory_space<vmem>>, vector<1x128x128xf32>
    %246 = vector.shape_cast %245 : vector<1x128x128xf32> to vector<128x128xf32>
    %cst_128 = arith.constant dense<0.000000e+00> : vector<1x128xf32>
    %247 = tpu.matmul %244, %246, %cst_128 {dimension_numbers = #tpu.dot_dimension_numbers<[1], [0], [0], [1], [0, 0, 1, 1], [], []>} : vector<1x128xf32>, vector<128x128xf32>, vector<1x128xf32> -> vector<1x128xf32>
    %248 = arith.addf %243, %247 : vector<1x128xf32>
    %249 = vector.extract_strided_slice %187 {offsets = [12, 0], sizes = [1, 128], strides = [1, 1]} : vector<16x128xf32> to vector<1x128xf32>
    %c12 = arith.constant 12 : index
    %c0_129 = arith.constant 0 : index
    %c0_130 = arith.constant 0 : index
    %250 = vector.load %arg17[%c12, %c0_129, %c0_130] : memref<16x128x128xf32, #tpu.memory_space<vmem>>, vector<1x128x128xf32>
    %251 = vector.shape_cast %250 : vector<1x128x128xf32> to vector<128x128xf32>
    %cst_131 = arith.constant dense<0.000000e+00> : vector<1x128xf32>
    %252 = tpu.matmul %249, %251, %cst_131 {dimension_numbers = #tpu.dot_dimension_numbers<[1], [0], [0], [1], [0, 0, 1, 1], [], []>} : vector<1x128xf32>, vector<128x128xf32>, vector<1x128xf32> -> vector<1x128xf32>
    %253 = arith.addf %248, %252 : vector<1x128xf32>
    %254 = vector.extract_strided_slice %187 {offsets = [13, 0], sizes = [1, 128], strides = [1, 1]} : vector<16x128xf32> to vector<1x128xf32>
    %c13 = arith.constant 13 : index
    %c0_132 = arith.constant 0 : index
    %c0_133 = arith.constant 0 : index
    %255 = vector.load %arg17[%c13, %c0_132, %c0_133] : memref<16x128x128xf32, #tpu.memory_space<vmem>>, vector<1x128x128xf32>
    %256 = vector.shape_cast %255 : vector<1x128x128xf32> to vector<128x128xf32>
    %cst_134 = arith.constant dense<0.000000e+00> : vector<1x128xf32>
    %257 = tpu.matmul %254, %256, %cst_134 {dimension_numbers = #tpu.dot_dimension_numbers<[1], [0], [0], [1], [0, 0, 1, 1], [], []>} : vector<1x128xf32>, vector<128x128xf32>, vector<1x128xf32> -> vector<1x128xf32>
    %258 = arith.addf %253, %257 : vector<1x128xf32>
    %259 = vector.extract_strided_slice %187 {offsets = [14, 0], sizes = [1, 128], strides = [1, 1]} : vector<16x128xf32> to vector<1x128xf32>
    %c14 = arith.constant 14 : index
    %c0_135 = arith.constant 0 : index
    %c0_136 = arith.constant 0 : index
    %260 = vector.load %arg17[%c14, %c0_135, %c0_136] : memref<16x128x128xf32, #tpu.memory_space<vmem>>, vector<1x128x128xf32>
    %261 = vector.shape_cast %260 : vector<1x128x128xf32> to vector<128x128xf32>
    %cst_137 = arith.constant dense<0.000000e+00> : vector<1x128xf32>
    %262 = tpu.matmul %259, %261, %cst_137 {dimension_numbers = #tpu.dot_dimension_numbers<[1], [0], [0], [1], [0, 0, 1, 1], [], []>} : vector<1x128xf32>, vector<128x128xf32>, vector<1x128xf32> -> vector<1x128xf32>
    %263 = arith.addf %258, %262 : vector<1x128xf32>
    %264 = vector.extract_strided_slice %187 {offsets = [15, 0], sizes = [1, 128], strides = [1, 1]} : vector<16x128xf32> to vector<1x128xf32>
    %c15 = arith.constant 15 : index
    %c0_138 = arith.constant 0 : index
    %c0_139 = arith.constant 0 : index
    %265 = vector.load %arg17[%c15, %c0_138, %c0_139] : memref<16x128x128xf32, #tpu.memory_space<vmem>>, vector<1x128x128xf32>
    %266 = vector.shape_cast %265 : vector<1x128x128xf32> to vector<128x128xf32>
    %cst_140 = arith.constant dense<0.000000e+00> : vector<1x128xf32>
    %267 = tpu.matmul %264, %266, %cst_140 {dimension_numbers = #tpu.dot_dimension_numbers<[1], [0], [0], [1], [0, 0, 1, 1], [], []>} : vector<1x128xf32>, vector<128x128xf32>, vector<1x128xf32> -> vector<1x128xf32>
    %268 = arith.addf %263, %267 : vector<1x128xf32>
    %c0_141 = arith.constant 0 : index
    %c0_142 = arith.constant 0 : index
    %c0_143 = arith.constant 0 : index
    %269 = vector.load %arg19[%c0_141, %c0_142, %c0_143] : memref<1x1x128xf32, #tpu.memory_space<vmem>>, vector<1x1x128xf32>
    %270 = vector.shape_cast %269 : vector<1x1x128xf32> to vector<1x128xf32>
    %271 = vector.shape_cast %268 : vector<1x128xf32> to vector<1x1x128xf32>
    tpu.vector_store %arg19[%c0_141, %c0_142, %c0_143], %271 {strides = array<i32>} : memref<1x1x128xf32, #tpu.memory_space<vmem>>, vector<1x1x128xf32>,
    return
  }
  func.func @transform_0(%arg0: i32) -> (i32, i32, i32) {
    %c0_i32 = arith.constant 0 : i32
    %c0_i32_0 = arith.constant 0 : i32
    %c0_i32_1 = arith.constant 0 : i32
    return %arg0, %c0_i32, %c0_i32_0 : i32, i32, i32
  }
  func.func @transform_1(%arg0: i32) -> (i32, i32) {
    %c0_i32 = arith.constant 0 : i32
    %c0_i32_0 = arith.constant 0 : i32
    %c0_i32_1 = arith.constant 0 : i32
    return %c0_i32, %c0_i32_0 : i32, i32
  }
  func.func @transform_2(%arg0: i32) -> (i32, i32) {
    %c0_i32 = arith.constant 0 : i32
    %c0_i32_0 = arith.constant 0 : i32
    %c0_i32_1 = arith.constant 0 : i32
    return %c0_i32, %c0_i32_0 : i32, i32
  }
  func.func @transform_3(%arg0: i32) -> (i32, i32) {
    %c0_i32 = arith.constant 0 : i32
    %c0_i32_0 = arith.constant 0 : i32
    %c0_i32_1 = arith.constant 0 : i32
    return %c0_i32, %c0_i32_0 : i32, i32
  }
  func.func @transform_4(%arg0: i32) -> (i32, i32) {
    %c0_i32 = arith.constant 0 : i32
    %c0_i32_0 = arith.constant 0 : i32
    %c0_i32_1 = arith.constant 0 : i32
    return %c0_i32, %c0_i32_0 : i32, i32
  }
  func.func @transform_5(%arg0: i32) -> (i32, i32) {
    %c0_i32 = arith.constant 0 : i32
    %c0_i32_0 = arith.constant 0 : i32
    %c0_i32_1 = arith.constant 0 : i32
    return %c0_i32, %c0_i32_0 : i32, i32
  }
  func.func @transform_6(%arg0: i32) -> (i32, i32) {
    %c0_i32 = arith.constant 0 : i32
    %c0_i32_0 = arith.constant 0 : i32
    %c0_i32_1 = arith.constant 0 : i32
    return %c0_i32, %c0_i32_0 : i32, i32
  }
  func.func @transform_7(%arg0: i32) -> (i32, i32) {
    %c0_i32 = arith.constant 0 : i32
    %c0_i32_0 = arith.constant 0 : i32
    %c0_i32_1 = arith.constant 0 : i32
    return %c0_i32, %c0_i32_0 : i32, i32
  }
  func.func @transform_8(%arg0: i32) -> (i32, i32) {
    %c0_i32 = arith.constant 0 : i32
    %c0_i32_0 = arith.constant 0 : i32
    %c0_i32_1 = arith.constant 0 : i32
    return %c0_i32, %c0_i32_0 : i32, i32
  }
  func.func @transform_9(%arg0: i32) -> (i32, i32) {
    %c0_i32 = arith.constant 0 : i32
    %c0_i32_0 = arith.constant 0 : i32
    %c0_i32_1 = arith.constant 0 : i32
    return %c0_i32, %c0_i32_0 : i32, i32
  }
  func.func @transform_10(%arg0: i32) -> (i32, i32) {
    %c0_i32 = arith.constant 0 : i32
    %c0_i32_0 = arith.constant 0 : i32
    %c0_i32_1 = arith.constant 0 : i32
    return %c0_i32, %c0_i32_0 : i32, i32
  }
  func.func @transform_11(%arg0: i32) -> (i32, i32) {
    %c0_i32 = arith.constant 0 : i32
    %c0_i32_0 = arith.constant 0 : i32
    %c0_i32_1 = arith.constant 0 : i32
    return %c0_i32, %c0_i32_0 : i32, i32
  }
  func.func @transform_12(%arg0: i32) -> (i32, i32) {
    %c0_i32 = arith.constant 0 : i32
    %c0_i32_0 = arith.constant 0 : i32
    %c0_i32_1 = arith.constant 0 : i32
    return %c0_i32, %c0_i32_0 : i32, i32
  }
  func.func @transform_13(%arg0: i32) -> (i32, i32) {
    %c0_i32 = arith.constant 0 : i32
    %c0_i32_0 = arith.constant 0 : i32
    %c0_i32_1 = arith.constant 0 : i32
    return %c0_i32, %c0_i32_0 : i32, i32
  }
  func.func @transform_14(%arg0: i32) -> (i32, i32) {
    %c0_i32 = arith.constant 0 : i32
    %c0_i32_0 = arith.constant 0 : i32
    %c0_i32_1 = arith.constant 0 : i32
    return %c0_i32, %c0_i32_0 : i32, i32
  }
  func.func @transform_15(%arg0: i32) -> (i32, i32) {
    %c0_i32 = arith.constant 0 : i32
    %c0_i32_0 = arith.constant 0 : i32
    %c0_i32_1 = arith.constant 0 : i32
    return %c0_i32, %c0_i32_0 : i32, i32
  }
  func.func @transform_16(%arg0: i32) -> (i32, i32, i32) {
    %c0_i32 = arith.constant 0 : i32
    %c0_i32_0 = arith.constant 0 : i32
    %c0_i32_1 = arith.constant 0 : i32
    %c0_i32_2 = arith.constant 0 : i32
    return %c0_i32, %c0_i32_0, %c0_i32_1 : i32, i32, i32
  }
  func.func @transform_17(%arg0: i32) -> (i32, i32) {
    %c0_i32 = arith.constant 0 : i32
    %c0_i32_0 = arith.constant 0 : i32
    %c0_i32_1 = arith.constant 0 : i32
    return %c0_i32, %c0_i32_0 : i32, i32
  }
  func.func @transform_18(%arg0: i32) -> (i32, i32, i32) {
    %c0_i32 = arith.constant 0 : i32
    %c0_i32_0 = arith.constant 0 : i32
    %c0_i32_1 = arith.constant 0 : i32
    return %arg0, %c0_i32, %c0_i32_0 : i32, i32, i32
  }
}

</mosaic_0001>

<llo_original>
// kernel: shallow_1dcnn_encoder_forward.1
$region0: #{shallow_1dcnn_encoder_forward.1}
  #allocation0 [shape = 'u32[]', space=smem, size = 0x4, offset = 0x4, fixed_abs, tag = 'smem constant byte address 0x4 - core index']
  #allocation1 [shape = 'u32[144,128]{1,0:T(1,128)}', space=vmem, size = 0x12000, scoped, tag = 'internal scratch']
  %s0 = inlined_call_operand.vmem [shape: f32[2,128,1], index: 0, kind: input, shape index: {}]
  %s1 = inlined_call_operand.vmem [shape: f32[3,32], index: 1, kind: input, shape index: {}]
  %s2 = inlined_call_operand.vmem [shape: f32[1,32], index: 2, kind: input, shape index: {}]
  %s3 = inlined_call_operand.vmem [shape: f32[1,32], index: 3, kind: input, shape index: {}]
  %s4 = inlined_call_operand.vmem [shape: f32[96,64], index: 4, kind: input, shape index: {}]
  %s5 = inlined_call_operand.vmem [shape: f32[1,64], index: 5, kind: input, shape index: {}]
  %s6 = inlined_call_operand.vmem [shape: f32[1,64], index: 6, kind: input, shape index: {}]
  %s7 = inlined_call_operand.vmem [shape: f32[192,64], index: 7, kind: input, shape index: {}]
  %s8 = inlined_call_operand.vmem [shape: f32[1,64], index: 8, kind: input, shape index: {}]
  %s9 = inlined_call_operand.vmem [shape: f32[1,64], index: 9, kind: input, shape index: {}]
  %s10 = inlined_call_operand.vmem [shape: f32[192,128], index: 10, kind: input, shape index: {}]
  %s11 = inlined_call_operand.vmem [shape: f32[1,128], index: 11, kind: input, shape index: {}]
  %s12 = inlined_call_operand.vmem [shape: f32[1,128], index: 12, kind: input, shape index: {}]
  %s13 = inlined_call_operand.vmem [shape: f32[384,128], index: 13, kind: input, shape index: {}]
  %s14 = inlined_call_operand.vmem [shape: f32[1,128], index: 14, kind: input, shape index: {}]
  %s15 = inlined_call_operand.vmem [shape: f32[1,128], index: 15, kind: input, shape index: {}]
  %s16 = inlined_call_operand.vmem [shape: f32[16,128,128], index: 16, kind: input, shape index: {}]
  %s17 = inlined_call_operand.vmem [shape: f32[1,128], index: 17, kind: input, shape index: {}]
  %s18 = inlined_call_operand.hbm [shape: f32[2,1,128], index: 18, kind: output, shape index: {}]
  %s19 = sld [smem:[#allocation0]]
  $region105: #{shallow_1dcnn_encoder_forward.1} parent=0
    _
  %s21 = ssub.s32 1, %s19
  %s22 = scalar_select 0, %s21, %s19
  $region1: #{shallow_1dcnn_encoder_forward.1} parent=0
    #allocation2 [shape = 'u8[1024]{0}', space=vmem, size = 0x400, scoped, tag = 'output window, operand 0']
    #allocation3 [shape = 's32[2]{0}', space=sflag, size = 0x8, scoped, tag = 'scoped memory for shallow_1dcnn_encoder_forward.1']
    %23 = vsyncpa [#allocation3], 0
    %s24 = scalar_lea.sflag [#allocation3], 1
    %25 = vsyncpa %s24, 0
    loop: start=0, step=1, limit=4
    $region2: #{shallow_1dcnn_encoder_forward.1} parent=1 // loop_pre_header
      _
    $region3: #{shallow_1dcnn_encoder_forward.1} parent=1 // loop_header
      %s27 = sphi 0, %s31
      %p28 = scmp.ge.s32.totalorder %s27, 4
      %s37 = sphi 0, %s39
      %s40 = sphi 0, %s37
      %s41 = sphi 0, %s40
      %s57 = sphi 0, %s41
      %s61 = sphi 0, %s61
      %s63 = sphi 0, %s61
      %s64 = sphi 0, %s63
      %s78 = sphi 0, %s64
      %s82 = sphi 0, %s82
      %s84 = sphi 0, %s82
      %s85 = sphi 0, %s84
      %s99 = sphi 0, %s85
      %s103 = sphi 0, %s103
      %s105 = sphi 0, %s103
      %s106 = sphi 0, %s105
      %s120 = sphi 0, %s106
      %s124 = sphi 0, %s124
      %s126 = sphi 0, %s124
      %s127 = sphi 0, %s126
      %s141 = sphi 0, %s127
      %s145 = sphi 0, %s145
      %s147 = sphi 0, %s145
      %s148 = sphi 0, %s147
      %s162 = sphi 0, %s148
      %s166 = sphi 0, %s166
      %s168 = sphi 0, %s166
      %s169 = sphi 0, %s168
      %s183 = sphi 0, %s169
      %s187 = sphi 0, %s187
      %s189 = sphi 0, %s187
      %s190 = sphi 0, %s189
      %s204 = sphi 0, %s190
      %s208 = sphi 0, %s208
      %s210 = sphi 0, %s208
      %s211 = sphi 0, %s210
      %s225 = sphi 0, %s211
      %s229 = sphi 0, %s229
      %s231 = sphi 0, %s229
      %s232 = sphi 0, %s231
      %s246 = sphi 0, %s232
      %s250 = sphi 0, %s250
      %s252 = sphi 0, %s250
      %s253 = sphi 0, %s252
      %s267 = sphi 0, %s253
      %s271 = sphi 0, %s271
      %s273 = sphi 0, %s271
      %s274 = sphi 0, %s273
      %s288 = sphi 0, %s274
      %s292 = sphi 0, %s292
      %s294 = sphi 0, %s292
      %s295 = sphi 0, %s294
      %s309 = sphi 0, %s295
      %s313 = sphi 0, %s313
      %s315 = sphi 0, %s313
      %s316 = sphi 0, %s315
      %s330 = sphi 0, %s316
      %s334 = sphi 0, %s334
      %s336 = sphi 0, %s334
      %s337 = sphi 0, %s336
      %s351 = sphi 0, %s337
      %s355 = sphi 0, %s355
      %s357 = sphi 0, %s355
      %s358 = sphi 0, %s357
      %s372 = sphi 0, %s358
      %s376 = sphi 0, %s376
      %s378 = sphi 0, %s376
      %s379 = sphi 0, %s378
      %s393 = sphi 0, %s379
      %s397 = sphi 0, %s397
      %s399 = sphi 0, %s397
      %s400 = sphi 0, %s399
      %s414 = sphi 0, %s400
      %s420 = sphi 0, %s422
      %s423 = sphi 0, %s420
      %s424 = sphi 0, %s423
      %s440 = sphi 0, %s424
    $region4: #{shallow_1dcnn_encoder_forward.1} parent=1 // loop_header_branch
      %30 = sbr.rel (%p28) target = $region8
    $region5: #{shallow_1dcnn_encoder_forward.1} parent=1 // loop_body
      %s32 = ssub.s32 %s27, 1
      %s33 = ssub.s32 %s27, 2
      %s34 = sadd.s32 %s27, 1
      %s35 = ssub.s32 %s27, %s34
      %p36 = scmp.eq.s32.totalorder %s35, 0
      %s38 = sadd.s32 %s37, 1
      %s39 = scalar_select %p36, %s37, %s38
      %p42 = pneg %p36
      %p43 = scmp.eq.s32.totalorder %s27, 1
      %p44 = por %p42, %p43
      %p45 = scmp.ne.s32.totalorder %s37, %s40
      %p46 = scmp.eq.s32.totalorder %s27, 0
      %p47 = por %p45, %p46
      %p48 = scmp.ne.s32.totalorder %s37, %s40
      %p49 = scmp.eq.s32.totalorder %s32, 1
      %p50 = por %p48, %p49
      %p51 = scmp.ne.s32.totalorder %s40, %s41
      %p52 = scmp.eq.s32.totalorder %s32, 0
      %p53 = por %p51, %p52
      %p54 = scmp.ne.s32.totalorder %s40, %s41
      %p55 = scmp.eq.s32.totalorder %s33, 1
      %p56 = por %p54, %p55
      %p58 = scmp.ne.s32.totalorder %s41, %s57
      %p59 = scmp.eq.s32.totalorder %s33, 0
      %p60 = por %p58, %p59
      %s62 = sadd.s32 %s61, 1
      %p65 = scmp.eq.s32.totalorder %s27, 1
      %p66 = scmp.ne.s32.totalorder %s61, %s63
      %p67 = scmp.eq.s32.totalorder %s27, 0
      %p68 = por %p66, %p67
      %p69 = scmp.ne.s32.totalorder %s61, %s63
      %p70 = scmp.eq.s32.totalorder %s32, 1
      %p71 = por %p69, %p70
      %p72 = scmp.ne.s32.totalorder %s63, %s64
      %p73 = scmp.eq.s32.totalorder %s32, 0
      %p74 = por %p72, %p73
      %p75 = scmp.ne.s32.totalorder %s63, %s64
      %p76 = scmp.eq.s32.totalorder %s33, 1
      %p77 = por %p75, %p76
      %p79 = scmp.ne.s32.totalorder %s64, %s78
      %p80 = scmp.eq.s32.totalorder %s33, 0
      %p81 = por %p79, %p80
      %s83 = sadd.s32 %s82, 1
      %p86 = scmp.eq.s32.totalorder %s27, 1
      %p87 = scmp.ne.s32.totalorder %s82, %s84
      %p88 = scmp.eq.s32.totalorder %s27, 0
      %p89 = por %p87, %p88
      %p90 = scmp.ne.s32.totalorder %s82, %s84
      %p91 = scmp.eq.s32.totalorder %s32, 1
      %p92 = por %p90, %p91
      %p93 = scmp.ne.s32.totalorder %s84, %s85
      %p94 = scmp.eq.s32.totalorder %s32, 0
      %p95 = por %p93, %p94
      %p96 = scmp.ne.s32.totalorder %s84, %s85
      %p97 = scmp.eq.s32.totalorder %s33, 1
      %p98 = por %p96, %p97
      %p100 = scmp.ne.s32.totalorder %s85, %s99
      %p101 = scmp.eq.s32.totalorder %s33, 0
      %p102 = por %p100, %p101
      %s104 = sadd.s32 %s103, 1
      %p107 = scmp.eq.s32.totalorder %s27, 1
      %p108 = scmp.ne.s32.totalorder %s103, %s105
      %p109 = scmp.eq.s32.totalorder %s27, 0
      %p110 = por %p108, %p109
      %p111 = scmp.ne.s32.totalorder %s103, %s105
      %p112 = scmp.eq.s32.totalorder %s32, 1
      %p113 = por %p111, %p112
      %p114 = scmp.ne.s32.totalorder %s105, %s106
      %p115 = scmp.eq.s32.totalorder %s32, 0
      %p116 = por %p114, %p115
      %p117 = scmp.ne.s32.totalorder %s105, %s106
      %p118 = scmp.eq.s32.totalorder %s33, 1
      %p119 = por %p117, %p118
      %p121 = scmp.ne.s32.totalorder %s106, %s120
      %p122 = scmp.eq.s32.totalorder %s33, 0
      %p123 = por %p121, %p122
      %s125 = sadd.s32 %s124, 1
      %p128 = scmp.eq.s32.totalorder %s27, 1
      %p129 = scmp.ne.s32.totalorder %s124, %s126
      %p130 = scmp.eq.s32.totalorder %s27, 0
      %p131 = por %p129, %p130
      %p132 = scmp.ne.s32.totalorder %s124, %s126
      %p133 = scmp.eq.s32.totalorder %s32, 1
      %p134 = por %p132, %p133
      %p135 = scmp.ne.s32.totalorder %s126, %s127
      %p136 = scmp.eq.s32.totalorder %s32, 0
      %p137 = por %p135, %p136
      %p138 = scmp.ne.s32.totalorder %s126, %s127
      %p139 = scmp.eq.s32.totalorder %s33, 1
      %p140 = por %p138, %p139
      %p142 = scmp.ne.s32.totalorder %s127, %s141
      %p143 = scmp.eq.s32.totalorder %s33, 0
      %p144 = por %p142, %p143
      %s146 = sadd.s32 %s145, 1
      %p149 = scmp.eq.s32.totalorder %s27, 1
      %p150 = scmp.ne.s32.totalorder %s145, %s147
      %p151 = scmp.eq.s32.totalorder %s27, 0
      %p152 = por %p150, %p151
      %p153 = scmp.ne.s32.totalorder %s145, %s147
      %p154 = scmp.eq.s32.totalorder %s32, 1
      %p155 = por %p153, %p154
      %p156 = scmp.ne.s32.totalorder %s147, %s148
      %p157 = scmp.eq.s32.totalorder %s32, 0
      %p158 = por %p156, %p157
      %p159 = scmp.ne.s32.totalorder %s147, %s148
      %p160 = scmp.eq.s32.totalorder %s33, 1
      %p161 = por %p159, %p160
      %p163 = scmp.ne.s32.totalorder %s148, %s162
      %p164 = scmp.eq.s32.totalorder %s33, 0
      %p165 = por %p163, %p164
      %s167 = sadd.s32 %s166, 1
      %p170 = scmp.eq.s32.totalorder %s27, 1
      %p171 = scmp.ne.s32.totalorder %s166, %s168
      %p172 = scmp.eq.s32.totalorder %s27, 0
      %p173 = por %p171, %p172
      %p174 = scmp.ne.s32.totalorder %s166, %s168
      %p175 = scmp.eq.s32.totalorder %s32, 1
      %p176 = por %p174, %p175
      %p177 = scmp.ne.s32.totalorder %s168, %s169
      %p178 = scmp.eq.s32.totalorder %s32, 0
      %p179 = por %p177, %p178
      %p180 = scmp.ne.s32.totalorder %s168, %s169
      %p181 = scmp.eq.s32.totalorder %s33, 1
      %p182 = por %p180, %p181
      %p184 = scmp.ne.s32.totalorder %s169, %s183
      %p185 = scmp.eq.s32.totalorder %s33, 0
      %p186 = por %p184, %p185
      %s188 = sadd.s32 %s187, 1
      %p191 = scmp.eq.s32.totalorder %s27, 1
      %p192 = scmp.ne.s32.totalorder %s187, %s189
      %p193 = scmp.eq.s32.totalorder %s27, 0
      %p194 = por %p192, %p193
      %p195 = scmp.ne.s32.totalorder %s187, %s189
      %p196 = scmp.eq.s32.totalorder %s32, 1
      %p197 = por %p195, %p196
      %p198 = scmp.ne.s32.totalorder %s189, %s190
      %p199 = scmp.eq.s32.totalorder %s32, 0
      %p200 = por %p198, %p199
      %p201 = scmp.ne.s32.totalorder %s189, %s190
      %p202 = scmp.eq.s32.totalorder %s33, 1
      %p203 = por %p201, %p202
      %p205 = scmp.ne.s32.totalorder %s190, %s204
      %p206 = scmp.eq.s32.totalorder %s33, 0
      %p207 = por %p205, %p206
      %s209 = sadd.s32 %s208, 1
      %p212 = scmp.eq.s32.totalorder %s27, 1
      %p213 = scmp.ne.s32.totalorder %s208, %s210
      %p214 = scmp.eq.s32.totalorder %s27, 0
      %p215 = por %p213, %p214
      %p216 = scmp.ne.s32.totalorder %s208, %s210
      %p217 = scmp.eq.s32.totalorder %s32, 1
      %p218 = por %p216, %p217
      %p219 = scmp.ne.s32.totalorder %s210, %s211
      %p220 = scmp.eq.s32.totalorder %s32, 0
      %p221 = por %p219, %p220
      %p222 = scmp.ne.s32.totalorder %s210, %s211
      %p223 = scmp.eq.s32.totalorder %s33, 1
      %p224 = por %p222, %p223
      %p226 = scmp.ne.s32.totalorder %s211, %s225
      %p227 = scmp.eq.s32.totalorder %s33, 0
      %p228 = por %p226, %p227
      %s230 = sadd.s32 %s229, 1
      %p233 = scmp.eq.s32.totalorder %s27, 1
      %p234 = scmp.ne.s32.totalorder %s229, %s231
      %p235 = scmp.eq.s32.totalorder %s27, 0
      %p236 = por %p234, %p235
      %p237 = scmp.ne.s32.totalorder %s229, %s231
      %p238 = scmp.eq.s32.totalorder %s32, 1
      %p239 = por %p237, %p238
      %p240 = scmp.ne.s32.totalorder %s231, %s232
      %p241 = scmp.eq.s32.totalorder %s32, 0
      %p242 = por %p240, %p241
      %p243 = scmp.ne.s32.totalorder %s231, %s232
      %p244 = scmp.eq.s32.totalorder %s33, 1
      %p245 = por %p243, %p244
      %p247 = scmp.ne.s32.totalorder %s232, %s246
      %p248 = scmp.eq.s32.totalorder %s33, 0
      %p249 = por %p247, %p248
      %s251 = sadd.s32 %s250, 1
      %p254 = scmp.eq.s32.totalorder %s27, 1
      %p255 = scmp.ne.s32.totalorder %s250, %s252
      %p256 = scmp.eq.s32.totalorder %s27, 0
      %p257 = por %p255, %p256
      %p258 = scmp.ne.s32.totalorder %s250, %s252
      %p259 = scmp.eq.s32.totalorder %s32, 1
      %p260 = por %p258, %p259
      %p261 = scmp.ne.s32.totalorder %s252, %s253
      %p262 = scmp.eq.s32.totalorder %s32, 0
      %p263 = por %p261, %p262
      %p264 = scmp.ne.s32.totalorder %s252, %s253
      %p265 = scmp.eq.s32.totalorder %s33, 1
      %p266 = por %p264, %p265
      %p268 = scmp.ne.s32.totalorder %s253, %s267
      %p269 = scmp.eq.s32.totalorder %s33, 0
      %p270 = por %p268, %p269
      %s272 = sadd.s32 %s271, 1
      %p275 = scmp.eq.s32.totalorder %s27, 1
      %p276 = scmp.ne.s32.totalorder %s271, %s273
      %p277 = scmp.eq.s32.totalorder %s27, 0
      %p278 = por %p276, %p277
      %p279 = scmp.ne.s32.totalorder %s271, %s273
      %p280 = scmp.eq.s32.totalorder %s32, 1
      %p281 = por %p279, %p280
      %p282 = scmp.ne.s32.totalorder %s273, %s274
      %p283 = scmp.eq.s32.totalorder %s32, 0
      %p284 = por %p282, %p283
      %p285 = scmp.ne.s32.totalorder %s273, %s274
      %p286 = scmp.eq.s32.totalorder %s33, 1
      %p287 = por %p285, %p286
      %p289 = scmp.ne.s32.totalorder %s274, %s288
      %p290 = scmp.eq.s32.totalorder %s33, 0
      %p291 = por %p289, %p290
      %s293 = sadd.s32 %s292, 1
      %p296 = scmp.eq.s32.totalorder %s27, 1
      %p297 = scmp.ne.s32.totalorder %s292, %s294
      %p298 = scmp.eq.s32.totalorder %s27, 0
      %p299 = por %p297, %p298
      %p300 = scmp.ne.s32.totalorder %s292, %s294
      %p301 = scmp.eq.s32.totalorder %s32, 1
      %p302 = por %p300, %p301
      %p303 = scmp.ne.s32.totalorder %s294, %s295
      %p304 = scmp.eq.s32.totalorder %s32, 0
      %p305 = por %p303, %p304
      %p306 = scmp.ne.s32.totalorder %s294, %s295
      %p307 = scmp.eq.s32.totalorder %s33, 1
      %p308 = por %p306, %p307
      %p310 = scmp.ne.s32.totalorder %s295, %s309
      %p311 = scmp.eq.s32.totalorder %s33, 0
      %p312 = por %p310, %p311
      %s314 = sadd.s32 %s313, 1
      %p317 = scmp.eq.s32.totalorder %s27, 1
      %p318 = scmp.ne.s32.totalorder %s313, %s315
      %p319 = scmp.eq.s32.totalorder %s27, 0
      %p320 = por %p318, %p319
      %p321 = scmp.ne.s32.totalorder %s313, %s315
      %p322 = scmp.eq.s32.totalorder %s32, 1
      %p323 = por %p321, %p322
      %p324 = scmp.ne.s32.totalorder %s315, %s316
      %p325 = scmp.eq.s32.totalorder %s32, 0
      %p326 = por %p324, %p325
      %p327 = scmp.ne.s32.totalorder %s315, %s316
      %p328 = scmp.eq.s32.totalorder %s33, 1
      %p329 = por %p327, %p328
      %p331 = scmp.ne.s32.totalorder %s316, %s330
      %p332 = scmp.eq.s32.totalorder %s33, 0
      %p333 = por %p331, %p332
      %s335 = sadd.s32 %s334, 1
      %p338 = scmp.eq.s32.totalorder %s27, 1
      %p339 = scmp.ne.s32.totalorder %s334, %s336
      %p340 = scmp.eq.s32.totalorder %s27, 0
      %p341 = por %p339, %p340
      %p342 = scmp.ne.s32.totalorder %s334, %s336
      %p343 = scmp.eq.s32.totalorder %s32, 1
      %p344 = por %p342, %p343
      %p345 = scmp.ne.s32.totalorder %s336, %s337
      %p346 = scmp.eq.s32.totalorder %s32, 0
      %p347 = por %p345, %p346
      %p348 = scmp.ne.s32.totalorder %s336, %s337
      %p349 = scmp.eq.s32.totalorder %s33, 1
      %p350 = por %p348, %p349
      %p352 = scmp.ne.s32.totalorder %s337, %s351
      %p353 = scmp.eq.s32.totalorder %s33, 0
      %p354 = por %p352, %p353
      %s356 = sadd.s32 %s355, 1
      %p359 = scmp.eq.s32.totalorder %s27, 1
      %p360 = scmp.ne.s32.totalorder %s355, %s357
      %p361 = scmp.eq.s32.totalorder %s27, 0
      %p362 = por %p360, %p361
      %p363 = scmp.ne.s32.totalorder %s355, %s357
      %p364 = scmp.eq.s32.totalorder %s32, 1
      %p365 = por %p363, %p364
      %p366 = scmp.ne.s32.totalorder %s357, %s358
      %p367 = scmp.eq.s32.totalorder %s32, 0
      %p368 = por %p366, %p367
      %p369 = scmp.ne.s32.totalorder %s357, %s358
      %p370 = scmp.eq.s32.totalorder %s33, 1
      %p371 = por %p369, %p370
      %p373 = scmp.ne.s32.totalorder %s358, %s372
      %p374 = scmp.eq.s32.totalorder %s33, 0
      %p375 = por %p373, %p374
      %s377 = sadd.s32 %s376, 1
      %p380 = scmp.eq.s32.totalorder %s27, 1
      %p381 = scmp.ne.s32.totalorder %s376, %s378
      %p382 = scmp.eq.s32.totalorder %s27, 0
      %p383 = por %p381, %p382
      %p384 = scmp.ne.s32.totalorder %s376, %s378
      %p385 = scmp.eq.s32.totalorder %s32, 1
      %p386 = por %p384, %p385
      %p387 = scmp.ne.s32.totalorder %s378, %s379
      %p388 = scmp.eq.s32.totalorder %s32, 0
      %p389 = por %p387, %p388
      %p390 = scmp.ne.s32.totalorder %s378, %s379
      %p391 = scmp.eq.s32.totalorder %s33, 1
      %p392 = por %p390, %p391
      %p394 = scmp.ne.s32.totalorder %s379, %s393
      %p395 = scmp.eq.s32.totalorder %s33, 0
      %p396 = por %p394, %p395
      %s398 = sadd.s32 %s397, 1
      %p401 = scmp.eq.s32.totalorder %s27, 1
      %p402 = scmp.ne.s32.totalorder %s397, %s399
      %p403 = scmp.eq.s32.totalorder %s27, 0
      %p404 = por %p402, %p403
      %p405 = scmp.ne.s32.totalorder %s397, %s399
      %p406 = scmp.eq.s32.totalorder %s32, 1
      %p407 = por %p405, %p406
      %p408 = scmp.ne.s32.totalorder %s399, %s400
      %p409 = scmp.eq.s32.totalorder %s32, 0
      %p410 = por %p408, %p409
      %p411 = scmp.ne.s32.totalorder %s399, %s400
      %p412 = scmp.eq.s32.totalorder %s33, 1
      %p413 = por %p411, %p412
      %p415 = scmp.ne.s32.totalorder %s400, %s414
      %p416 = scmp.eq.s32.totalorder %s33, 0
      %p417 = por %p415, %p416
      %s418 = ssub.s32 %s27, %s34
      %p419 = scmp.eq.s32.totalorder %s418, 0
      %s421 = sadd.s32 %s420, 1
      %s422 = scalar_select %p419, %s420, %s421
      %p425 = pneg %p419
      %p426 = scmp.eq.s32.totalorder %s27, 1
      %p427 = por %p425, %p426
      %p428 = scmp.ne.s32.totalorder %s420, %s423
      %p429 = scmp.eq.s32.totalorder %s27, 0
      %p430 = por %p428, %p429
      %p431 = scmp.ne.s32.totalorder %s420, %s423
      %p432 = scmp.eq.s32.totalorder %s32, 1
      %p433 = por %p431, %p432
      %p434 = scmp.ne.s32.totalorder %s423, %s424
      %p435 = scmp.eq.s32.totalorder %s32, 0
      %p436 = por %p434, %p435
      %p437 = scmp.ne.s32.totalorder %s423, %s424
      %p438 = scmp.eq.s32.totalorder %s33, 1
      %p439 = por %p437, %p438
      %p441 = scmp.ne.s32.totalorder %s424, %s440
      %p442 = scmp.eq.s32.totalorder %s33, 0
      %p443 = por %p441, %p442
      %p444 = scmp.le.s32.totalorder 1, %s27
      %p445 = scmp.lt.s32.totalorder %s27, 3
      %p446 = pnand %p444, %p445
      %p447 = pneg %p446
      // Predicated region
      $region9: #{shallow_1dcnn_encoder_forward.1} parent=5 // pred_check
        _
      $region10: #{shallow_1dcnn_encoder_forward.1} parent=5 // pred_check_branch
        %449 = sbr.rel (%p446) target = $region12
      $region11: #{shallow_1dcnn_encoder_forward.1} parent=5 // pred_region
        %s450 = ssub.s32 %s27, 1
        // Predicated region
        $region13: #{shallow_1dcnn_encoder_forward.1} parent=11 // pred_check
          %p451 = pneg %p74
        $region14: #{shallow_1dcnn_encoder_forward.1} parent=11 // pred_check_branch
          %453 = sbr.rel (%p451) target = $region16
        $region15: #{shallow_1dcnn_encoder_forward.1} parent=11 // pred_region
          _
        $region16: #{shallow_1dcnn_encoder_forward.1} parent=11 // pred_fallthru
          _
        // Predicated region
        $region17: #{shallow_1dcnn_encoder_forward.1} parent=11 // pred_check
          %p454 = pneg %p95
        $region18: #{shallow_1dcnn_encoder_forward.1} parent=11 // pred_check_branch
          %456 = sbr.rel (%p454) target = $region20
        $region19: #{shallow_1dcnn_encoder_forward.1} parent=11 // pred_region
          _
        $region20: #{shallow_1dcnn_encoder_forward.1} parent=11 // pred_fallthru
          _
        // Predicated region
        $region21: #{shallow_1dcnn_encoder_forward.1} parent=11 // pred_check
          %p457 = pneg %p116
        $region22: #{shallow_1dcnn_encoder_forward.1} parent=11 // pred_check_branch
          %459 = sbr.rel (%p457) target = $region24
        $region23: #{shallow_1dcnn_encoder_forward.1} parent=11 // pred_region
          _
        $region24: #{shallow_1dcnn_encoder_forward.1} parent=11 // pred_fallthru
          _
        // Predicated region
        $region25: #{shallow_1dcnn_encoder_forward.1} parent=11 // pred_check
          %p460 = pneg %p137
        $region26: #{shallow_1dcnn_encoder_forward.1} parent=11 // pred_check_branch
          %462 = sbr.rel (%p460) target = $region28
        $region27: #{shallow_1dcnn_encoder_forward.1} parent=11 // pred_region
          _
        $region28: #{shallow_1dcnn_encoder_forward.1} parent=11 // pred_fallthru
          _
        // Predicated region
        $region29: #{shallow_1dcnn_encoder_forward.1} parent=11 // pred_check
          %p463 = pneg %p158
        $region30: #{shallow_1dcnn_encoder_forward.1} parent=11 // pred_check_branch
          %465 = sbr.rel (%p463) target = $region32
        $region31: #{shallow_1dcnn_encoder_forward.1} parent=11 // pred_region
          _
        $region32: #{shallow_1dcnn_encoder_forward.1} parent=11 // pred_fallthru
          _
        // Predicated region
        $region33: #{shallow_1dcnn_encoder_forward.1} parent=11 // pred_check
          %p466 = pneg %p179
        $region34: #{shallow_1dcnn_encoder_forward.1} parent=11 // pred_check_branch
          %468 = sbr.rel (%p466) target = $region36
        $region35: #{shallow_1dcnn_encoder_forward.1} parent=11 // pred_region
          _
        $region36: #{shallow_1dcnn_encoder_forward.1} parent=11 // pred_fallthru
          _
        // Predicated region
        $region37: #{shallow_1dcnn_encoder_forward.1} parent=11 // pred_check
          %p469 = pneg %p200
        $region38: #{shallow_1dcnn_encoder_forward.1} parent=11 // pred_check_branch
          %471 = sbr.rel (%p469) target = $region40
        $region39: #{shallow_1dcnn_encoder_forward.1} parent=11 // pred_region
          _
        $region40: #{shallow_1dcnn_encoder_forward.1} parent=11 // pred_fallthru
          _
        // Predicated region
        $region41: #{shallow_1dcnn_encoder_forward.1} parent=11 // pred_check
          %p472 = pneg %p221
        $region42: #{shallow_1dcnn_encoder_forward.1} parent=11 // pred_check_branch
          %474 = sbr.rel (%p472) target = $region44
        $region43: #{shallow_1dcnn_encoder_forward.1} parent=11 // pred_region
          _
        $region44: #{shallow_1dcnn_encoder_forward.1} parent=11 // pred_fallthru
          _
        // Predicated region
        $region45: #{shallow_1dcnn_encoder_forward.1} parent=11 // pred_check
          %p475 = pneg %p242
        $region46: #{shallow_1dcnn_encoder_forward.1} parent=11 // pred_check_branch
          %477 = sbr.rel (%p475) target = $region48
        $region47: #{shallow_1dcnn_encoder_forward.1} parent=11 // pred_region
          _
        $region48: #{shallow_1dcnn_encoder_forward.1} parent=11 // pred_fallthru
          _
        // Predicated region
        $region49: #{shallow_1dcnn_encoder_forward.1} parent=11 // pred_check
          %p478 = pneg %p263
        $region50: #{shallow_1dcnn_encoder_forward.1} parent=11 // pred_check_branch
          %480 = sbr.rel (%p478) target = $region52
        $region51: #{shallow_1dcnn_encoder_forward.1} parent=11 // pred_region
          _
        $region52: #{shallow_1dcnn_encoder_forward.1} parent=11 // pred_fallthru
          _
        // Predicated region
        $region53: #{shallow_1dcnn_encoder_forward.1} parent=11 // pred_check
          %p481 = pneg %p284
        $region54: #{shallow_1dcnn_encoder_forward.1} parent=11 // pred_check_branch
          %483 = sbr.rel (%p481) target = $region56
        $region55: #{shallow_1dcnn_encoder_forward.1} parent=11 // pred_region
          _
        $region56: #{shallow_1dcnn_encoder_forward.1} parent=11 // pred_fallthru
          _
        // Predicated region
        $region57: #{shallow_1dcnn_encoder_forward.1} parent=11 // pred_check
          %p484 = pneg %p305
        $region58: #{shallow_1dcnn_encoder_forward.1} parent=11 // pred_check_branch
          %486 = sbr.rel (%p484) target = $region60
        $region59: #{shallow_1dcnn_encoder_forward.1} parent=11 // pred_region
          _
        $region60: #{shallow_1dcnn_encoder_forward.1} parent=11 // pred_fallthru
          _
        // Predicated region
        $region61: #{shallow_1dcnn_encoder_forward.1} parent=11 // pred_check
          %p487 = pneg %p326
        $region62: #{shallow_1dcnn_encoder_forward.1} parent=11 // pred_check_branch
          %489 = sbr.rel (%p487) target = $region64
        $region63: #{shallow_1dcnn_encoder_forward.1} parent=11 // pred_region
          _
        $region64: #{shallow_1dcnn_encoder_forward.1} parent=11 // pred_fallthru
          _
        // Predicated region
        $region65: #{shallow_1dcnn_encoder_forward.1} parent=11 // pred_check
          %p490 = pneg %p347
        $region66: #{shallow_1dcnn_encoder_forward.1} parent=11 // pred_check_branch
          %492 = sbr.rel (%p490) target = $region68
        $region67: #{shallow_1dcnn_encoder_forward.1} parent=11 // pred_region
          _
        $region68: #{shallow_1dcnn_encoder_forward.1} parent=11 // pred_fallthru
          _
        // Predicated region
        $region69: #{shallow_1dcnn_encoder_forward.1} parent=11 // pred_check
          %p493 = pneg %p368
        $region70: #{shallow_1dcnn_encoder_forward.1} parent=11 // pred_check_branch
          %495 = sbr.rel (%p493) target = $region72
        $region71: #{shallow_1dcnn_encoder_forward.1} parent=11 // pred_region
          _
        $region72: #{shallow_1dcnn_encoder_forward.1} parent=11 // pred_fallthru
          _
        // Predicated region
        $region73: #{shallow_1dcnn_encoder_forward.1} parent=11 // pred_check
          %p496 = pneg %p389
        $region74: #{shallow_1dcnn_encoder_forward.1} parent=11 // pred_check_branch
          %498 = sbr.rel (%p496) target = $region76
        $region75: #{shallow_1dcnn_encoder_forward.1} parent=11 // pred_region
          _
        $region76: #{shallow_1dcnn_encoder_forward.1} parent=11 // pred_fallthru
          _
        // Predicated region
        $region77: #{shallow_1dcnn_encoder_forward.1} parent=11 // pred_check
          %p499 = pneg %p410
        $region78: #{shallow_1dcnn_encoder_forward.1} parent=11 // pred_check_branch
          %501 = sbr.rel (%p499) target = $region80
        $region79: #{shallow_1dcnn_encoder_forward.1} parent=11 // pred_region
          _
        $region80: #{shallow_1dcnn_encoder_forward.1} parent=11 // pred_fallthru
          _
      $region12: #{shallow_1dcnn_encoder_forward.1} parent=5 // pred_fallthru
        _
      %p502 = scmp.lt.s32.totalorder %s27, 2
      // Predicated region
      $region81: #{shallow_1dcnn_encoder_forward.1} parent=5 // pred_check
        %p503 = pneg %p502
      $region82: #{shallow_1dcnn_encoder_forward.1} parent=5 // pred_check_branch
        %505 = sbr.rel (%p503) target = $region84
      $region83: #{shallow_1dcnn_encoder_forward.1} parent=5 // pred_region
        // Predicated region
        $region85: #{shallow_1dcnn_encoder_forward.1} parent=83 // pred_check
          %p506 = pneg %p47
        $region86: #{shallow_1dcnn_encoder_forward.1} parent=83 // pred_check_branch
          %508 = sbr.rel (%p506) target = $region88
        $region87: #{shallow_1dcnn_encoder_forward.1} parent=83 // pred_region
          %p509 = scmp.lt.s32.totalorder %s27, 1
          %s510 = scalar_select %p509, %s27, 1
          %s511 = smul.addr %s510, 16
          %s512 = smul.addr %s511, 8
          %s513 = scalar_lea.vmem %s0, %s512
        $region88: #{shallow_1dcnn_encoder_forward.1} parent=83 // pred_fallthru
          _
      $region84: #{shallow_1dcnn_encoder_forward.1} parent=5 // pred_fallthru
        _
      %p514 = scmp.le.s32.totalorder 1, %s27
      %p515 = scmp.lt.s32.totalorder %s27, 3
      %p516 = pnand %p514, %p515
      %p517 = pneg %p516
      // Predicated region
      $region89: #{shallow_1dcnn_encoder_forward.1} parent=5 // pred_check
        _
      $region90: #{shallow_1dcnn_encoder_forward.1} parent=5 // pred_check_branch
        %519 = sbr.rel (%p516) target = $region92
      $region91: #{shallow_1dcnn_encoder_forward.1} parent=5 // pred_region
        %s520 = ssub.s32 %s27, 1
        %p521 = scmp.lt.s32.totalorder %s32, 1
        %s522 = scalar_select %p521, %s32, 1
        %s523 = smul.addr %s522, 16
        %s524 = smul.addr %s523, 8
        %s525 = scalar_lea.vmem %s0, %s524
        %p526 = pneg %p53
        %p527 = pneg %p50
        %p528 = pneg %p74
        %p529 = pneg %p71
        %p530 = pneg %p95
        %p531 = pneg %p92
        %p532 = pneg %p116
        %p533 = pneg %p113
        %p534 = pneg %p137
        %p535 = pneg %p134
        %p536 = pneg %p158
        %p537 = pneg %p155
        %p538 = pneg %p179
        %p539 = pneg %p176
        %p540 = pneg %p200
        %p541 = pneg %p197
        %p542 = pneg %p221
        %p543 = pneg %p218
        %p544 = pneg %p242
        %p545 = pneg %p239
        %p546 = pneg %p263
        %p547 = pneg %p260
        %p548 = pneg %p284
        %p549 = pneg %p281
        %p550 = pneg %p305
        %p551 = pneg %p302
        %p552 = pneg %p326
        %p553 = pneg %p323
        %p554 = pneg %p347
        %p555 = pneg %p344
        %p556 = pneg %p368
        %p557 = pneg %p365
        %p558 = pneg %p389
        %p559 = pneg %p386
        %p560 = pneg %p410
        %p561 = pneg %p407
        %p562 = pneg %p436
        %p563 = pneg %p433
        %s564 = sand.u32 %s423, 1
        %s565 = scalar_lea.sflag [#allocation3], %s564
        %s566 = sand.u32 %s423, 1
        %s567 = scalar_lea.vmem [#allocation2], %s566
        %p568 = scmp.lt.s32.totalorder %s32, 1
        %s569 = scalar_select %p568, %s32, 1
        %s570 = smul.addr %s569, 16
        %s571 = smul.addr %s570, 8
        %s572 = scalar_lea.vmem %s0, %s571
        %v573 = vld [vmem:[%s572] sm:$0xff]
        %v574 = vld [vmem:[%s572 + $0x8] sm:$0xff]
        %v575 = vld [vmem:[%s572 + $0x10] sm:$0xff]
        %v576 = vld [vmem:[%s572 + $0x18] sm:$0xff]
        %v577 = vld [vmem:[%s572 + $0x20] sm:$0xff]
        %v578 = vld [vmem:[%s572 + $0x28] sm:$0xff]
        %v579 = vld [vmem:[%s572 + $0x30] sm:$0xff]
        %v580 = vld [vmem:[%s572 + $0x38] sm:$0xff]
        %v581 = vld [vmem:[%s572 + $0x40] sm:$0xff]
        %v582 = vld [vmem:[%s572 + $0x48] sm:$0xff]
        %v583 = vld [vmem:[%s572 + $0x50] sm:$0xff]
        %v584 = vld [vmem:[%s572 + $0x58] sm:$0xff]
        %v585 = vld [vmem:[%s572 + $0x60] sm:$0xff]
        %v586 = vld [vmem:[%s572 + $0x68] sm:$0xff]
        %v587 = vld [vmem:[%s572 + $0x70] sm:$0xff]
        %v588 = vld [vmem:[%s572 + $0x78] sm:$0xff]
        %v589 = vlaneseq
        %v590 = vshrl.u32 %v589, 7
        %v591 = vadd.s32 %v590, 8
        %v592 = vadd.s32 %v590, 16
        %v593 = vadd.s32 %v590, 24
        %v594 = vadd.s32 %v590, 32
        %v595 = vadd.s32 %v590, 40
        %v596 = vadd.s32 %v590, 48
        %v597 = vadd.s32 %v590, 56
        %v598 = vadd.s32 %v590, 64
        %v599 = vadd.s32 %v590, 72
        %v600 = vadd.s32 %v590, 80
        %v601 = vadd.s32 %v590, 88
        %v602 = vadd.s32 %v590, 96
        %v603 = vadd.s32 %v590, 104
        %v604 = vadd.s32 %v590, 112
        %v605 = vadd.s32 %v590, 120
        %v606 = vlaneseq
        %v607 = vand.u32 %v606, 127
        %v608 = vsub.s32 %v590, 1
        %v609 = vsub.s32 %v591, 1
        %v610 = vsub.s32 %v592, 1
        %v611 = vsub.s32 %v593, 1
        %v612 = vsub.s32 %v594, 1
        %v613 = vsub.s32 %v595, 1
        %v614 = vsub.s32 %v596, 1
        %v615 = vsub.s32 %v597, 1
        %v616 = vsub.s32 %v598, 1
        %v617 = vsub.s32 %v599, 1
        %v618 = vsub.s32 %v600, 1
        %v619 = vsub.s32 %v601, 1
        %v620 = vsub.s32 %v602, 1
        %v621 = vsub.s32 %v603, 1
        %v622 = vsub.s32 %v604, 1
        %v623 = vsub.s32 %v605, 1
        %vm624 = vcmp.eq.s32.totalorder %v607, %v608
        %vm625 = vcmp.eq.s32.totalorder %v607, %v609
        %vm626 = vcmp.eq.s32.totalorder %v607, %v610
        %vm627 = vcmp.eq.s32.totalorder %v607, %v611
        %vm628 = vcmp.eq.s32.totalorder %v607, %v612
        %vm629 = vcmp.eq.s32.totalorder %v607, %v613
        %vm630 = vcmp.eq.s32.totalorder %v607, %v614
        %vm631 = vcmp.eq.s32.totalorder %v607, %v615
        %vm632 = vcmp.eq.s32.totalorder %v607, %v616
        %vm633 = vcmp.eq.s32.totalorder %v607, %v617
        %vm634 = vcmp.eq.s32.totalorder %v607, %v618
        %vm635 = vcmp.eq.s32.totalorder %v607, %v619
        %vm636 = vcmp.eq.s32.totalorder %v607, %v620
        %vm637 = vcmp.eq.s32.totalorder %v607, %v621
        %vm638 = vcmp.eq.s32.totalorder %v607, %v622
        %vm639 = vcmp.eq.s32.totalorder %v607, %v623
        %v640 = vsel %vm624, 1, 0
        %v641 = vsel %vm625, 1, 0
        %v642 = vsel %vm626, 1, 0
        %v643 = vsel %vm627, 1, 0
        %v644 = vsel %vm628, 1, 0
        %v645 = vsel %vm629, 1, 0
        %v646 = vsel %vm630, 1, 0
        %v647 = vsel %vm631, 1, 0
        %v648 = vsel %vm632, 1, 0
        %v649 = vsel %vm633, 1, 0
        %v650 = vsel %vm634, 1, 0
        %v651 = vsel %vm635, 1, 0
        %v652 = vsel %vm636, 1, 0
        %v653 = vsel %vm637, 1, 0
        %v654 = vsel %vm638, 1, 0
        %v655 = vsel %vm639, 1, 0
        %v656 = vcvt.s32.f32 %v640
        %v657 = vcvt.s32.f32 %v641
        %v658 = vcvt.s32.f32 %v642
        %v659 = vcvt.s32.f32 %v643
        %v660 = vcvt.s32.f32 %v644
        %v661 = vcvt.s32.f32 %v645
        %v662 = vcvt.s32.f32 %v646
        %v663 = vcvt.s32.f32 %v647
        %v664 = vcvt.s32.f32 %v648
        %v665 = vcvt.s32.f32 %v649
        %v666 = vcvt.s32.f32 %v650
        %v667 = vcvt.s32.f32 %v651
        %v668 = vcvt.s32.f32 %v652
        %v669 = vcvt.s32.f32 %v653
        %v670 = vcvt.s32.f32 %v654
        %v671 = vcvt.s32.f32 %v655
        %v672 = vadd.s32 %v590, 1
        %v673 = vadd.s32 %v591, 1
        %v674 = vadd.s32 %v592, 1
        %v675 = vadd.s32 %v593, 1
        %v676 = vadd.s32 %v594, 1
        %v677 = vadd.s32 %v595, 1
        %v678 = vadd.s32 %v596, 1
        %v679 = vadd.s32 %v597, 1
        %v680 = vadd.s32 %v598, 1
        %v681 = vadd.s32 %v599, 1
        %v682 = vadd.s32 %v600, 1
        %v683 = vadd.s32 %v601, 1
        %v684 = vadd.s32 %v602, 1
        %v685 = vadd.s32 %v603, 1
        %v686 = vadd.s32 %v604, 1
        %v687 = vadd.s32 %v605, 1
        %vm688 = vcmp.eq.s32.totalorder %v607, %v672
        %vm689 = vcmp.eq.s32.totalorder %v607, %v673
        %vm690 = vcmp.eq.s32.totalorder %v607, %v674
        %vm691 = vcmp.eq.s32.totalorder %v607, %v675
        %vm692 = vcmp.eq.s32.totalorder %v607, %v676
        %vm693 = vcmp.eq.s32.totalorder %v607, %v677
        %vm694 = vcmp.eq.s32.totalorder %v607, %v678
        %vm695 = vcmp.eq.s32.totalorder %v607, %v679
        %vm696 = vcmp.eq.s32.totalorder %v607, %v680
        %vm697 = vcmp.eq.s32.totalorder %v607, %v681
        %vm698 = vcmp.eq.s32.totalorder %v607, %v682
        %vm699 = vcmp.eq.s32.totalorder %v607, %v683
        %vm700 = vcmp.eq.s32.totalorder %v607, %v684
        %vm701 = vcmp.eq.s32.totalorder %v607, %v685
        %vm702 = vcmp.eq.s32.totalorder %v607, %v686
        %vm703 = vcmp.eq.s32.totalorder %v607, %v687
        %v704 = vsel %vm688, 1, 0
        %v705 = vsel %vm689, 1, 0
        %v706 = vsel %vm690, 1, 0
        %v707 = vsel %vm691, 1, 0
        %v708 = vsel %vm692, 1, 0
        %v709 = vsel %vm693, 1, 0
        %v710 = vsel %vm694, 1, 0
        %v711 = vsel %vm695, 1, 0
        %v712 = vsel %vm696, 1, 0
        %v713 = vsel %vm697, 1, 0
        %v714 = vsel %vm698, 1, 0
        %v715 = vsel %vm699, 1, 0
        %v716 = vsel %vm700, 1, 0
        %v717 = vsel %vm701, 1, 0
        %v718 = vsel %vm702, 1, 0
        %v719 = vsel %vm703, 1, 0
        %v720 = vcvt.s32.f32 %v704
        %v721 = vcvt.s32.f32 %v705
        %v722 = vcvt.s32.f32 %v706
        %v723 = vcvt.s32.f32 %v707
        %v724 = vcvt.s32.f32 %v708
        %v725 = vcvt.s32.f32 %v709
        %v726 = vcvt.s32.f32 %v710
        %v727 = vcvt.s32.f32 %v711
        %v728 = vcvt.s32.f32 %v712
        %v729 = vcvt.s32.f32 %v713
        %v730 = vcvt.s32.f32 %v714
        %v731 = vcvt.s32.f32 %v715
        %v732 = vcvt.s32.f32 %v716
        %v733 = vcvt.s32.f32 %v717
        %v734 = vcvt.s32.f32 %v718
        %v735 = vcvt.s32.f32 %v719
        %736 = vmatprep.subr.mxu0 0.0
        %737 = vmatpush1.msra.mxu0 %v573
        %738 = vmatprep.subr.mxu0 0.0
        %739 = vmatpush1.msra.mxu0 %v574
        %740 = vmatprep.subr.mxu0 0.0
        %741 = vmatpush1.msra.mxu0 %v575
        %742 = vmatprep.subr.mxu0 0.0
        %743 = vmatpush1.msra.mxu0 %v576
        %744 = vmatprep.subr.mxu0 0.0
        %745 = vmatpush1.msra.mxu0 %v577
        %746 = vmatprep.subr.mxu0 0.0
        %747 = vmatpush1.msra.mxu0 %v578
        %748 = vmatprep.subr.mxu0 0.0
        %749 = vmatpush1.msra.mxu0 %v579
        %750 = vmatprep.subr.mxu0 0.0
        %751 = vmatpush1.msra.mxu0 %v580
        %752 = vmatprep.subr.mxu0 0.0
        %753 = vmatpush1.msra.mxu0 %v581
        %754 = vmatprep.subr.mxu0 0.0
        %755 = vmatpush1.msra.mxu0 %v582
        %756 = vmatprep.subr.mxu0 0.0
        %757 = vmatpush1.msra.mxu0 %v583
        %758 = vmatprep.subr.mxu0 0.0
        %759 = vmatpush1.msra.mxu0 %v584
        %760 = vmatprep.subr.mxu0 0.0
        %761 = vmatpush1.msra.mxu0 %v585
        %762 = vmatprep.subr.mxu0 0.0
        %763 = vmatpush1.msra.mxu0 %v586
        %764 = vmatprep.subr.mxu0 0.0
        %765 = vmatpush1.msra.mxu0 %v587
        %766 = vmatprep.subr.mxu0 0.0
        %767 = vmatpush1.msra.mxu0 %v588
        %768 = vmatprep.subr.mxu0 0.0
        %769 = vmatpush1.msra.mxu0 0.0
        %770 = vmatprep.subr.mxu0 0.0
        %771 = vmatpush1.msra.mxu0 0.0
        %772 = vmatprep.subr.mxu0 0.0
        %773 = vmatpush1.msra.mxu0 0.0
        %774 = vmatprep.subr.mxu0 0.0
        %775 = vmatpush1.msra.mxu0 0.0
        %776 = vmatprep.subr.mxu0 0.0
        %777 = vmatpush1.msra.mxu0 0.0
        %778 = vmatprep.subr.mxu0 0.0
        %779 = vmatpush1.msra.mxu0 0.0
        %780 = vmatprep.subr.mxu0 0.0
        %781 = vmatpush1.msra.mxu0 0.0
        %782 = vmatprep.subr.mxu0 0.0
        %783 = vmatpush1.msra.mxu0 0.0
        %784 = vmatprep.subr.mxu0 0.0
        %785 = vmatpush1.msra.mxu0 0.0
        %786 = vmatprep.subr.mxu0 0.0
        %787 = vmatpush1.msra.mxu0 0.0
        %788 = vmatprep.subr.mxu0 0.0
        %789 = vmatpush1.msra.mxu0 0.0
        %790 = vmatprep.subr.mxu0 0.0
        %791 = vmatpush1.msra.mxu0 0.0
        %792 = vmatprep.subr.mxu0 0.0
        %793 = vmatpush1.msra.mxu0 0.0
        %794 = vmatprep.subr.mxu0 0.0
        %795 = vmatpush1.msra.mxu0 0.0
        %796 = vmatprep.subr.mxu0 0.0
        %797 = vmatpush1.msra.mxu0 0.0
        %798 = vmatprep.subr.mxu0 0.0
        %799 = vmatpush1.msra.mxu0 0.0
        %800 = vmatprep.mubr.f32.mxu0 0.0
        %801 = vmatmul.mubr.f32.gmra.mrb[0].mxu0 %v656
        %v802 = vpop.f32.mrb[0].mxu0
        %v803 = vadd.f32 0.0, %v802
        %v804 = vpop.f32.mrb[0].mxu0
        %805 = vmatprep.mubr.f32.mxu0 0.0
        %806 = vmatmul.mubr.f32.gmra.mrb[0].mxu0 %v657
        %v807 = vpop.f32.mrb[0].mxu0
        %v808 = vadd.f32 0.0, %v807
        %v809 = vpop.f32.mrb[0].mxu0
        %810 = vmatprep.mubr.f32.mxu0 0.0
        %811 = vmatmul.mubr.f32.gmra.mrb[0].mxu0 %v658
        %v812 = vpop.f32.mrb[0].mxu0
        %v813 = vadd.f32 0.0, %v812
        %v814 = vpop.f32.mrb[0].mxu0
        %815 = vmatprep.mubr.f32.mxu0 0.0
        %816 = vmatmul.mubr.f32.gmra.mrb[0].mxu0 %v659
        %v817 = vpop.f32.mrb[0].mxu0
        %v818 = vadd.f32 0.0, %v817
        %v819 = vpop.f32.mrb[0].mxu0
        %820 = vmatprep.mubr.f32.mxu0 0.0
        %821 = vmatmul.mubr.f32.gmra.mrb[0].mxu0 %v660
        %v822 = vpop.f32.mrb[0].mxu0
        %v823 = vadd.f32 0.0, %v822
        %v824 = vpop.f32.mrb[0].mxu0
        %825 = vmatprep.mubr.f32.mxu0 0.0
        %826 = vmatmul.mubr.f32.gmra.mrb[0].mxu0 %v661
        %v827 = vpop.f32.mrb[0].mxu0
        %v828 = vadd.f32 0.0, %v827
        %v829 = vpop.f32.mrb[0].mxu0
        %830 = vmatprep.mubr.f32.mxu0 0.0
        %831 = vmatmul.mubr.f32.gmra.mrb[0].mxu0 %v662
        %v832 = vpop.f32.mrb[0].mxu0
        %v833 = vadd.f32 0.0, %v832
        %v834 = vpop.f32.mrb[0].mxu0
        %835 = vmatprep.mubr.f32.mxu0 0.0
        %836 = vmatmul.mubr.f32.gmra.mrb[0].mxu0 %v663
        %v837 = vpop.f32.mrb[0].mxu0
        %v838 = vadd.f32 0.0, %v837
        %v839 = vpop.f32.mrb[0].mxu0
        %840 = vmatprep.mubr.f32.mxu0 0.0
        %841 = vmatmul.mubr.f32.gmra.mrb[0].mxu0 %v664
        %v842 = vpop.f32.mrb[0].mxu0
        %v843 = vadd.f32 0.0, %v842
        %v844 = vpop.f32.mrb[0].mxu0
        %845 = vmatprep.mubr.f32.mxu0 0.0
        %846 = vmatmul.mubr.f32.gmra.mrb[0].mxu0 %v665
        %v847 = vpop.f32.mrb[0].mxu0
        %v848 = vadd.f32 0.0, %v847
        %v849 = vpop.f32.mrb[0].mxu0
        %850 = vmatprep.mubr.f32.mxu0 0.0
        %851 = vmatmul.mubr.f32.gmra.mrb[0].mxu0 %v666
        %v852 = vpop.f32.mrb[0].mxu0
        %v853 = vadd.f32 0.0, %v852
        %v854 = vpop.f32.mrb[0].mxu0
        %855 = vmatprep.mubr.f32.mxu0 0.0
        %856 = vmatmul.mubr.f32.gmra.mrb[0].mxu0 %v667
        %v857 = vpop.f32.mrb[0].mxu0
        %v858 = vadd.f32 0.0, %v857
        %v859 = vpop.f32.mrb[0].mxu0
        %860 = vmatprep.mubr.f32.mxu0 0.0
        %861 = vmatmul.mubr.f32.gmra.mrb[0].mxu0 %v668
        %v862 = vpop.f32.mrb[0].mxu0
        %v863 = vadd.f32 0.0, %v862
        %v864 = vpop.f32.mrb[0].mxu0
        %865 = vmatprep.mubr.f32.mxu0 0.0
        %866 = vmatmul.mubr.f32.gmra.mrb[0].mxu0 %v669
        %v867 = vpop.f32.mrb[0].mxu0
        %v868 = vadd.f32 0.0, %v867
        %v869 = vpop.f32.mrb[0].mxu0
        %870 = vmatprep.mubr.f32.mxu0 0.0
        %871 = vmatmul.mubr.f32.gmra.mrb[0].mxu0 %v670
        %v872 = vpop.f32.mrb[0].mxu0
        %v873 = vadd.f32 0.0, %v872
        %v874 = vpop.f32.mrb[0].mxu0
        %875 = vmatprep.mubr.f32.mxu0 0.0
        %876 = vmatmul.mubr.f32.gmra.mrb[0].mxu0 %v671
        %v877 = vpop.f32.mrb[0].mxu0
        %v878 = vadd.f32 0.0, %v877
        %v879 = vpop.f32.mrb[0].mxu0
        %880 = vdwg.mxu0
        %881 = vmatprep.subr.mxu0 0.0
        %882 = vmatpush1.msra.mxu0 %v573
        %883 = vmatprep.subr.mxu0 0.0
        %884 = vmatpush1.msra.mxu0 %v574
        %885 = vmatprep.subr.mxu0 0.0
        %886 = vmatpush1.msra.mxu0 %v575
        %887 = vmatprep.subr.mxu0 0.0
        %888 = vmatpush1.msra.mxu0 %v576
        %889 = vmatprep.subr.mxu0 0.0
        %890 = vmatpush1.msra.mxu0 %v577
        %891 = vmatprep.subr.mxu0 0.0
        %892 = vmatpush1.msra.mxu0 %v578
        %893 = vmatprep.subr.mxu0 0.0
        %894 = vmatpush1.msra.mxu0 %v579
        %895 = vmatprep.subr.mxu0 0.0
        %896 = vmatpush1.msra.mxu0 %v580
        %897 = vmatprep.subr.mxu0 0.0
        %898 = vmatpush1.msra.mxu0 %v581
        %899 = vmatprep.subr.mxu0 0.0
        %900 = vmatpush1.msra.mxu0 %v582
        %901 = vmatprep.subr.mxu0 0.0
        %902 = vmatpush1.msra.mxu0 %v583
        %903 = vmatprep.subr.mxu0 0.0
        %904 = vmatpush1.msra.mxu0 %v584
        %905 = vmatprep.subr.mxu0 0.0
        %906 = vmatpush1.msra.mxu0 %v585
        %907 = vmatprep.subr.mxu0 0.0
        %908 = vmatpush1.msra.mxu0 %v586
        %909 = vmatprep.subr.mxu0 0.0
        %910 = vmatpush1.msra.mxu0 %v587
        %911 = vmatprep.subr.mxu0 0.0
        %912 = vmatpush1.msra.mxu0 %v588
        %913 = vmatprep.subr.mxu0 0.0
        %914 = vmatpush1.msra.mxu0 0.0
        %915 = vmatprep.subr.mxu0 0.0
        %916 = vmatpush1.msra.mxu0 0.0
        %917 = vmatprep.subr.mxu0 0.0
        %918 = vmatpush1.msra.mxu0 0.0
        %919 = vmatprep.subr.mxu0 0.0
        %920 = vmatpush1.msra.mxu0 0.0
        %921 = vmatprep.subr.mxu0 0.0
        %922 = vmatpush1.msra.mxu0 0.0
        %923 = vmatprep.subr.mxu0 0.0
        %924 = vmatpush1.msra.mxu0 0.0
        %925 = vmatprep.subr.mxu0 0.0
        %926 = vmatpush1.msra.mxu0 0.0
        %927 = vmatprep.subr.mxu0 0.0
        %928 = vmatpush1.msra.mxu0 0.0
        %929 = vmatprep.subr.mxu0 0.0
        %930 = vmatpush1.msra.mxu0 0.0
        %931 = vmatprep.subr.mxu0 0.0
        %932 = vmatpush1.msra.mxu0 0.0
        %933 = vmatprep.subr.mxu0 0.0
        %934 = vmatpush1.msra.mxu0 0.0
        %935 = vmatprep.subr.mxu0 0.0
        %936 = vmatpush1.msra.mxu0 0.0
        %937 = vmatprep.subr.mxu0 0.0
        %938 = vmatpush1.msra.mxu0 0.0
        %939 = vmatprep.subr.mxu0 0.0
        %940 = vmatpush1.msra.mxu0 0.0
        %941 = vmatprep.subr.mxu0 0.0
        %942 = vmatpush1.msra.mxu0 0.0
        %943 = vmatprep.subr.mxu0 0.0
        %944 = vmatpush1.msra.mxu0 0.0
        %945 = vmatprep.mubr.f32.mxu0 0.0
        %946 = vmatmul.mubr.f32.gmra.mrb[0].mxu0 %v720
        %v947 = vpop.f32.mrb[0].mxu0
        %v948 = vadd.f32 0.0, %v947
        %v949 = vpop.f32.mrb[0].mxu0
        %950 = vmatprep.mubr.f32.mxu0 0.0
        %951 = vmatmul.mubr.f32.gmra.mrb[0].mxu0 %v721
        %v952 = vpop.f32.mrb[0].mxu0
        %v953 = vadd.f32 0.0, %v952
        %v954 = vpop.f32.mrb[0].mxu0
        %955 = vmatprep.mubr.f32.mxu0 0.0
        %956 = vmatmul.mubr.f32.gmra.mrb[0].mxu0 %v722
        %v957 = vpop.f32.mrb[0].mxu0
        %v958 = vadd.f32 0.0, %v957
        %v959 = vpop.f32.mrb[0].mxu0
        %960 = vmatprep.mubr.f32.mxu0 0.0
        %961 = vmatmul.mubr.f32.gmra.mrb[0].mxu0 %v723
        %v962 = vpop.f32.mrb[0].mxu0
        %v963 = vadd.f32 0.0, %v962
        %v964 = vpop.f32.mrb[0].mxu0
        %965 = vmatprep.mubr.f32.mxu0 0.0
        %966 = vmatmul.mubr.f32.gmra.mrb[0].mxu0 %v724
        %v967 = vpop.f32.mrb[0].mxu0
        %v968 = vadd.f32 0.0, %v967
        %v969 = vpop.f32.mrb[0].mxu0
        %970 = vmatprep.mubr.f32.mxu0 0.0
        %971 = vmatmul.mubr.f32.gmra.mrb[0].mxu0 %v725
        %v972 = vpop.f32.mrb[0].mxu0
        %v973 = vadd.f32 0.0, %v972
        %v974 = vpop.f32.mrb[0].mxu0
        %975 = vmatprep.mubr.f32.mxu0 0.0
        %976 = vmatmul.mubr.f32.gmra.mrb[0].mxu0 %v726
        %v977 = vpop.f32.mrb[0].mxu0
        %v978 = vadd.f32 0.0, %v977
        %v979 = vpop.f32.mrb[0].mxu0
        %980 = vmatprep.mubr.f32.mxu0 0.0
        %981 = vmatmul.mubr.f32.gmra.mrb[0].mxu0 %v727
        %v982 = vpop.f32.mrb[0].mxu0
        %v983 = vadd.f32 0.0, %v982
        %v984 = vpop.f32.mrb[0].mxu0
        %985 = vmatprep.mubr.f32.mxu0 0.0
        %986 = vmatmul.mubr.f32.gmra.mrb[0].mxu0 %v728
        %v987 = vpop.f32.mrb[0].mxu0
        %v988 = vadd.f32 0.0, %v987
        %v989 = vpop.f32.mrb[0].mxu0
        %990 = vmatprep.mubr.f32.mxu0 0.0
        %991 = vmatmul.mubr.f32.gmra.mrb[0].mxu0 %v729
        %v992 = vpop.f32.mrb[0].mxu0
        %v993 = vadd.f32 0.0, %v992
        %v994 = vpop.f32.mrb[0].mxu0
        %995 = vmatprep.mubr.f32.mxu0 0.0
        %996 = vmatmul.mubr.f32.gmra.mrb[0].mxu0 %v730
        %v997 = vpop.f32.mrb[0].mxu0
        %v998 = vadd.f32 0.0, %v997
        %v999 = vpop.f32.mrb[0].mxu0
        %1000 = vmatprep.mubr.f32.mxu0 0.0
        %1001 = vmatmul.mubr.f32.gmra.mrb[0].mxu0 %v731
        %v1002 = vpop.f32.mrb[0].mxu0
        %v1003 = vadd.f32 0.0, %v1002
        %v1004 = vpop.f32.mrb[0].mxu0
        %1005 = vmatprep.mubr.f32.mxu0 0.0
        %1006 = vmatmul.mubr.f32.gmra.mrb[0].mxu0 %v732
        %v1007 = vpop.f32.mrb[0].mxu0
        %v1008 = vadd.f32 0.0, %v1007
        %v1009 = vpop.f32.mrb[0].mxu0
        %1010 = vmatprep.mubr.f32.mxu0 0.0
        %1011 = vmatmul.mubr.f32.gmra.mrb[0].mxu0 %v733
        %v1012 = vpop.f32.mrb[0].mxu0
        %v1013 = vadd.f32 0.0, %v1012
        %v1014 = vpop.f32.mrb[0].mxu0
        %1015 = vmatprep.mubr.f32.mxu0 0.0
        %1016 = vmatmul.mubr.f32.gmra.mrb[0].mxu0 %v734
        %v1017 = vpop.f32.mrb[0].mxu0
        %v1018 = vadd.f32 0.0, %v1017
        %v1019 = vpop.f32.mrb[0].mxu0
        %1020 = vmatprep.mubr.f32.mxu0 0.0
        %1021 = vmatmul.mubr.f32.gmra.mrb[0].mxu0 %v735
        %v1022 = vpop.f32.mrb[0].mxu0
        %v1023 = vadd.f32 0.0, %v1022
        %v1024 = vpop.f32.mrb[0].mxu0
        %1025 = vdwg.mxu0
        %v1026 = vld [vmem:[%s1] sm:$0x7]
        %1028 = vset.pattern.permute.xlu0 0
        %1029 = vperm.xlu0 %1028, %v803
        %v1030 = vpop.permute.xlu0 %1029
        %1033 = vset.pattern.permute.xlu0 0
        %1034 = vperm.xlu0 %1033, %v808
        %v1035 = vpop.permute.xlu0 %1034
        %1038 = vset.pattern.permute.xlu0 0
        %1039 = vperm.xlu0 %1038, %v813
        %v1040 = vpop.permute.xlu0 %1039
        %1043 = vset.pattern.permute.xlu0 0
        %1044 = vperm.xlu0 %1043, %v818
        %v1045 = vpop.permute.xlu0 %1044
        %1048 = vset.pattern.permute.xlu0 0
        %1049 = vperm.xlu0 %1048, %v823
        %v1050 = vpop.permute.xlu0 %1049
        %1053 = vset.pattern.permute.xlu0 0
        %1054 = vperm.xlu0 %1053, %v828
        %v1055 = vpop.permute.xlu0 %1054
        %1058 = vset.pattern.permute.xlu0 0
        %1059 = vperm.xlu0 %1058, %v833
        %v1060 = vpop.permute.xlu0 %1059
        %1063 = vset.pattern.permute.xlu0 0
        %1064 = vperm.xlu0 %1063, %v838
        %v1065 = vpop.permute.xlu0 %1064
        %1068 = vset.pattern.permute.xlu0 0
        %1069 = vperm.xlu0 %1068, %v843
        %v1070 = vpop.permute.xlu0 %1069
        %1073 = vset.pattern.permute.xlu0 0
        %1074 = vperm.xlu0 %1073, %v848
        %v1075 = vpop.permute.xlu0 %1074
        %1078 = vset.pattern.permute.xlu0 0
        %1079 = vperm.xlu0 %1078, %v853
        %v1080 = vpop.permute.xlu0 %1079
        %1083 = vset.pattern.permute.xlu0 0
        %1084 = vperm.xlu0 %1083, %v858
        %v1085 = vpop.permute.xlu0 %1084
        %1088 = vset.pattern.permute.xlu0 0
        %1089 = vperm.xlu0 %1088, %v863
        %v1090 = vpop.permute.xlu0 %1089
        %1093 = vset.pattern.permute.xlu0 0
        %1094 = vperm.xlu0 %1093, %v868
        %v1095 = vpop.permute.xlu0 %1094
        %1098 = vset.pattern.permute.xlu0 0
        %1099 = vperm.xlu0 %1098, %v873
        %v1100 = vpop.permute.xlu0 %1099
        %1103 = vset.pattern.permute.xlu0 0
        %1104 = vperm.xlu0 %1103, %v878
        %v1105 = vpop.permute.xlu0 %1104
        %v1107 = vlaneseq
        %v1108 = vshrl.u32 %v1107, 7
        %v1109 = vsub.s32 0, %v1108
        %v1110 = vrot.slane %v1026, %v1109
        %v1111 = vmul.f32 %v1030, %v1110
        %v1112 = vmul.f32 %v1035, %v1110
        %v1113 = vmul.f32 %v1040, %v1110
        %v1114 = vmul.f32 %v1045, %v1110
        %v1115 = vmul.f32 %v1050, %v1110
        %v1116 = vmul.f32 %v1055, %v1110
        %v1117 = vmul.f32 %v1060, %v1110
        %v1118 = vmul.f32 %v1065, %v1110
        %v1119 = vmul.f32 %v1070, %v1110
        %v1120 = vmul.f32 %v1075, %v1110
        %v1121 = vmul.f32 %v1080, %v1110
        %v1122 = vmul.f32 %v1085, %v1110
        %v1123 = vmul.f32 %v1090, %v1110
        %v1124 = vmul.f32 %v1095, %v1110
        %v1125 = vmul.f32 %v1100, %v1110
        %v1126 = vmul.f32 %v1105, %v1110
        %1128 = vset.pattern.permute.xlu0 0
        %1129 = vperm.xlu0 %1128, %v573
        %v1130 = vpop.permute.xlu0 %1129
        %1133 = vset.pattern.permute.xlu0 0
        %1134 = vperm.xlu0 %1133, %v574
        %v1135 = vpop.permute.xlu0 %1134
        %1138 = vset.pattern.permute.xlu0 0
        %1139 = vperm.xlu0 %1138, %v575
        %v1140 = vpop.permute.xlu0 %1139
        %1143 = vset.pattern.permute.xlu0 0
        %1144 = vperm.xlu0 %1143, %v576
        %v1145 = vpop.permute.xlu0 %1144
        %1148 = vset.pattern.permute.xlu0 0
        %1149 = vperm.xlu0 %1148, %v577
        %v1150 = vpop.permute.xlu0 %1149
        %1153 = vset.pattern.permute.xlu0 0
        %1154 = vperm.xlu0 %1153, %v578
        %v1155 = vpop.permute.xlu0 %1154
        %1158 = vset.pattern.permute.xlu0 0
        %1159 = vperm.xlu0 %1158, %v579
        %v1160 = vpop.permute.xlu0 %1159
        %1163 = vset.pattern.permute.xlu0 0
        %1164 = vperm.xlu0 %1163, %v580
        %v1165 = vpop.permute.xlu0 %1164
        %1168 = vset.pattern.permute.xlu0 0
        %1169 = vperm.xlu0 %1168, %v581
        %v1170 = vpop.permute.xlu0 %1169
        %1173 = vset.pattern.permute.xlu0 0
        %1174 = vperm.xlu0 %1173, %v582
        %v1175 = vpop.permute.xlu0 %1174
        %1178 = vset.pattern.permute.xlu0 0
        %1179 = vperm.xlu0 %1178, %v583
        %v1180 = vpop.permute.xlu0 %1179
        %1183 = vset.pattern.permute.xlu0 0
        %1184 = vperm.xlu0 %1183, %v584
        %v1185 = vpop.permute.xlu0 %1184
        %1188 = vset.pattern.permute.xlu0 0
        %1189 = vperm.xlu0 %1188, %v585
        %v1190 = vpop.permute.xlu0 %1189
        %1193 = vset.pattern.permute.xlu0 0
        %1194 = vperm.xlu0 %1193, %v586
        %v1195 = vpop.permute.xlu0 %1194
        %1198 = vset.pattern.permute.xlu0 0
        %1199 = vperm.xlu0 %1198, %v587
        %v1200 = vpop.permute.xlu0 %1199
        %1203 = vset.pattern.permute.xlu0 0
        %1204 = vperm.xlu0 %1203, %v588
        %v1205 = vpop.permute.xlu0 %1204
        %v1207 = vlaneseq
        %v1208 = vshrl.u32 %v1207, 7
        %v1209 = vsub.s32 1, %v1208
        %v1210 = vrot.slane %v1026, %v1209
        %v1211 = vmul.f32 %v1130, %v1210
        %v1212 = vmul.f32 %v1135, %v1210
        %v1213 = vmul.f32 %v1140, %v1210
        %v1214 = vmul.f32 %v1145, %v1210
        %v1215 = vmul.f32 %v1150, %v1210
        %v1216 = vmul.f32 %v1155, %v1210
        %v1217 = vmul.f32 %v1160, %v1210
        %v1218 = vmul.f32 %v1165, %v1210
        %v1219 = vmul.f32 %v1170, %v1210
        %v1220 = vmul.f32 %v1175, %v1210
        %v1221 = vmul.f32 %v1180, %v1210
        %v1222 = vmul.f32 %v1185, %v1210
        %v1223 = vmul.f32 %v1190, %v1210
        %v1224 = vmul.f32 %v1195, %v1210
        %v1225 = vmul.f32 %v1200, %v1210
        %v1226 = vmul.f32 %v1205, %v1210
        %v1227 = vadd.f32 %v1111, %v1211
        %v1228 = vadd.f32 %v1112, %v1212
        %v1229 = vadd.f32 %v1113, %v1213
        %v1230 = vadd.f32 %v1114, %v1214
        %v1231 = vadd.f32 %v1115, %v1215
        %v1232 = vadd.f32 %v1116, %v1216
        %v1233 = vadd.f32 %v1117, %v1217
        %v1234 = vadd.f32 %v1118, %v1218
        %v1235 = vadd.f32 %v1119, %v1219
        %v1236 = vadd.f32 %v1120, %v1220
        %v1237 = vadd.f32 %v1121, %v1221
        %v1238 = vadd.f32 %v1122, %v1222
        %v1239 = vadd.f32 %v1123, %v1223
        %v1240 = vadd.f32 %v1124, %v1224
        %v1241 = vadd.f32 %v1125, %v1225
        %v1242 = vadd.f32 %v1126, %v1226
        %1244 = vset.pattern.permute.xlu0 0
        %1245 = vperm.xlu0 %1244, %v948
        %v1246 = vpop.permute.xlu0 %1245
        %1249 = vset.pattern.permute.xlu0 0
        %1250 = vperm.xlu0 %1249, %v953
        %v1251 = vpop.permute.xlu0 %1250
        %1254 = vset.pattern.permute.xlu0 0
        %1255 = vperm.xlu0 %1254, %v958
        %v1256 = vpop.permute.xlu0 %1255
        %1259 = vset.pattern.permute.xlu0 0
        %1260 = vperm.xlu0 %1259, %v963
        %v1261 = vpop.permute.xlu0 %1260
        %1264 = vset.pattern.permute.xlu0 0
        %1265 = vperm.xlu0 %1264, %v968
        %v1266 = vpop.permute.xlu0 %1265
        %1269 = vset.pattern.permute.xlu0 0
        %1270 = vperm.xlu0 %1269, %v973
        %v1271 = vpop.permute.xlu0 %1270
        %1274 = vset.pattern.permute.xlu0 0
        %1275 = vperm.xlu0 %1274, %v978
        %v1276 = vpop.permute.xlu0 %1275
        %1279 = vset.pattern.permute.xlu0 0
        %1280 = vperm.xlu0 %1279, %v983
        %v1281 = vpop.permute.xlu0 %1280
        %1284 = vset.pattern.permute.xlu0 0
        %1285 = vperm.xlu0 %1284, %v988
        %v1286 = vpop.permute.xlu0 %1285
        %1289 = vset.pattern.permute.xlu0 0
        %1290 = vperm.xlu0 %1289, %v993
        %v1291 = vpop.permute.xlu0 %1290
        %1294 = vset.pattern.permute.xlu0 0
        %1295 = vperm.xlu0 %1294, %v998
        %v1296 = vpop.permute.xlu0 %1295
        %1299 = vset.pattern.permute.xlu0 0
        %1300 = vperm.xlu0 %1299, %v1003
        %v1301 = vpop.permute.xlu0 %1300
        %1304 = vset.pattern.permute.xlu0 0
        %1305 = vperm.xlu0 %1304, %v1008
        %v1306 = vpop.permute.xlu0 %1305
        %1309 = vset.pattern.permute.xlu0 0
        %1310 = vperm.xlu0 %1309, %v1013
        %v1311 = vpop.permute.xlu0 %1310
        %1314 = vset.pattern.permute.xlu0 0
        %1315 = vperm.xlu0 %1314, %v1018
        %v1316 = vpop.permute.xlu0 %1315
        %1319 = vset.pattern.permute.xlu0 0
        %1320 = vperm.xlu0 %1319, %v1023
        %v1321 = vpop.permute.xlu0 %1320
        %v1323 = vlaneseq
        %v1324 = vshrl.u32 %v1323, 7
        %v1325 = vsub.s32 2, %v1324
        %v1326 = vrot.slane %v1026, %v1325
        %v1327 = vmul.f32 %v1246, %v1326
        %v1328 = vmul.f32 %v1251, %v1326
        %v1329 = vmul.f32 %v1256, %v1326
        %v1330 = vmul.f32 %v1261, %v1326
        %v1331 = vmul.f32 %v1266, %v1326
        %v1332 = vmul.f32 %v1271, %v1326
        %v1333 = vmul.f32 %v1276, %v1326
        %v1334 = vmul.f32 %v1281, %v1326
        %v1335 = vmul.f32 %v1286, %v1326
        %v1336 = vmul.f32 %v1291, %v1326
        %v1337 = vmul.f32 %v1296, %v1326
        %v1338 = vmul.f32 %v1301, %v1326
        %v1339 = vmul.f32 %v1306, %v1326
        %v1340 = vmul.f32 %v1311, %v1326
        %v1341 = vmul.f32 %v1316, %v1326
        %v1342 = vmul.f32 %v1321, %v1326
        %v1343 = vadd.f32 %v1227, %v1327
        %v1344 = vadd.f32 %v1228, %v1328
        %v1345 = vadd.f32 %v1229, %v1329
        %v1346 = vadd.f32 %v1230, %v1330
        %v1347 = vadd.f32 %v1231, %v1331
        %v1348 = vadd.f32 %v1232, %v1332
        %v1349 = vadd.f32 %v1233, %v1333
        %v1350 = vadd.f32 %v1234, %v1334
        %v1351 = vadd.f32 %v1235, %v1335
        %v1352 = vadd.f32 %v1236, %v1336
        %v1353 = vadd.f32 %v1237, %v1337
        %v1354 = vadd.f32 %v1238, %v1338
        %v1355 = vadd.f32 %v1239, %v1339
        %v1356 = vadd.f32 %v1240, %v1340
        %v1357 = vadd.f32 %v1241, %v1341
        %v1358 = vadd.f32 %v1242, %v1342
        %v1359 = vld [vmem:[%s2] sm:$0x1]
        %v1361 = vlaneseq
        %v1362 = vshrl.u32 %v1361, 7
        %v1363 = vsub.s32 0, %v1362
        %v1364 = vrot.slane %v1359, %v1363
        %v1366 = vmul.f32 %v1343, %v1364
        %v1367 = vmul.f32 %v1344, %v1364
        %v1368 = vmul.f32 %v1345, %v1364
        %v1369 = vmul.f32 %v1346, %v1364
        %v1370 = vmul.f32 %v1347, %v1364
        %v1371 = vmul.f32 %v1348, %v1364
        %v1372 = vmul.f32 %v1349, %v1364
        %v1373 = vmul.f32 %v1350, %v1364
        %v1374 = vmul.f32 %v1351, %v1364
        %v1375 = vmul.f32 %v1352, %v1364
        %v1376 = vmul.f32 %v1353, %v1364
        %v1377 = vmul.f32 %v1354, %v1364
        %v1378 = vmul.f32 %v1355, %v1364
        %v1379 = vmul.f32 %v1356, %v1364
        %v1380 = vmul.f32 %v1357, %v1364
        %v1381 = vmul.f32 %v1358, %v1364
        %v1382 = vld [vmem:[%s3] sm:$0x1]
        %v1384 = vlaneseq
        %v1385 = vshrl.u32 %v1384, 7
        %v1386 = vsub.s32 0, %v1385
        %v1387 = vrot.slane %v1382, %v1386
        %v1389 = vadd.f32 %v1366, %v1387
        %v1390 = vadd.f32 %v1367, %v1387
        %v1391 = vadd.f32 %v1368, %v1387
        %v1392 = vadd.f32 %v1369, %v1387
        %v1393 = vadd.f32 %v1370, %v1387
        %v1394 = vadd.f32 %v1371, %v1387
        %v1395 = vadd.f32 %v1372, %v1387
        %v1396 = vadd.f32 %v1373, %v1387
        %v1397 = vadd.f32 %v1374, %v1387
        %v1398 = vadd.f32 %v1375, %v1387
        %v1399 = vadd.f32 %v1376, %v1387
        %v1400 = vadd.f32 %v1377, %v1387
        %v1401 = vadd.f32 %v1378, %v1387
        %v1402 = vadd.f32 %v1379, %v1387
        %v1403 = vadd.f32 %v1380, %v1387
        %v1404 = vadd.f32 %v1381, %v1387
        %v1405 = vmax.f32 %v1389, 0.0
        %v1406 = vmax.f32 %v1390, 0.0
        %v1407 = vmax.f32 %v1391, 0.0
        %v1408 = vmax.f32 %v1392, 0.0
        %v1409 = vmax.f32 %v1393, 0.0
        %v1410 = vmax.f32 %v1394, 0.0
        %v1411 = vmax.f32 %v1395, 0.0
        %v1412 = vmax.f32 %v1396, 0.0
        %v1413 = vmax.f32 %v1397, 0.0
        %v1414 = vmax.f32 %v1398, 0.0
        %v1415 = vmax.f32 %v1399, 0.0
        %v1416 = vmax.f32 %v1400, 0.0
        %v1417 = vmax.f32 %v1401, 0.0
        %v1418 = vmax.f32 %v1402, 0.0
        %v1419 = vmax.f32 %v1403, 0.0
        %v1420 = vmax.f32 %v1404, 0.0
        %v1421 = vmul.u32 %v590, 2
        %v1422 = vmul.u32 %v591, 2
        %v1423 = vmul.u32 %v592, 2
        %v1424 = vmul.u32 %v593, 2
        %v1425 = vmul.u32 %v594, 2
        %v1426 = vmul.u32 %v595, 2
        %v1427 = vmul.u32 %v596, 2
        %v1428 = vmul.u32 %v597, 2
        %vm1429 = vcmp.eq.s32.totalorder %v607, %v1421
        %vm1430 = vcmp.eq.s32.totalorder %v607, %v1422
        %vm1431 = vcmp.eq.s32.totalorder %v607, %v1423
        %vm1432 = vcmp.eq.s32.totalorder %v607, %v1424
        %vm1433 = vcmp.eq.s32.totalorder %v607, %v1425
        %vm1434 = vcmp.eq.s32.totalorder %v607, %v1426
        %vm1435 = vcmp.eq.s32.totalorder %v607, %v1427
        %vm1436 = vcmp.eq.s32.totalorder %v607, %v1428
        %v1437 = vsel %vm1429, 1, 0
        %v1438 = vsel %vm1430, 1, 0
        %v1439 = vsel %vm1431, 1, 0
        %v1440 = vsel %vm1432, 1, 0
        %v1441 = vsel %vm1433, 1, 0
        %v1442 = vsel %vm1434, 1, 0
        %v1443 = vsel %vm1435, 1, 0
        %v1444 = vsel %vm1436, 1, 0
        %v1445 = vcvt.s32.f32 %v1437
        %v1446 = vcvt.s32.f32 %v1438
        %v1447 = vcvt.s32.f32 %v1439
        %v1448 = vcvt.s32.f32 %v1440
        %v1449 = vcvt.s32.f32 %v1441
        %v1450 = vcvt.s32.f32 %v1442
        %v1451 = vcvt.s32.f32 %v1443
        %v1452 = vcvt.s32.f32 %v1444
        %v1453 = vadd.s32 %v1421, 1
        %v1454 = vadd.s32 %v1422, 1
        %v1455 = vadd.s32 %v1423, 1
        %v1456 = vadd.s32 %v1424, 1
        %v1457 = vadd.s32 %v1425, 1
        %v1458 = vadd.s32 %v1426, 1
        %v1459 = vadd.s32 %v1427, 1
        %v1460 = vadd.s32 %v1428, 1
        %vm1461 = vcmp.eq.s32.totalorder %v607, %v1453
        %vm1462 = vcmp.eq.s32.totalorder %v607, %v1454
        %vm1463 = vcmp.eq.s32.totalorder %v607, %v1455
        %vm1464 = vcmp.eq.s32.totalorder %v607, %v1456
        %vm1465 = vcmp.eq.s32.totalorder %v607, %v1457
        %vm1466 = vcmp.eq.s32.totalorder %v607, %v1458
        %vm1467 = vcmp.eq.s32.totalorder %v607, %v1459
        %vm1468 = vcmp.eq.s32.totalorder %v607, %v1460
        %v1469 = vsel %vm1461, 1, 0
        %v1470 = vsel %vm1462, 1, 0
        %v1471 = vsel %vm1463, 1, 0
        %v1472 = vsel %vm1464, 1, 0
        %v1473 = vsel %vm1465, 1, 0
        %v1474 = vsel %vm1466, 1, 0
        %v1475 = vsel %vm1467, 1, 0
        %v1476 = vsel %vm1468, 1, 0
        %v1477 = vcvt.s32.f32 %v1469
        %v1478 = vcvt.s32.f32 %v1470
        %v1479 = vcvt.s32.f32 %v1471
        %v1480 = vcvt.s32.f32 %v1472
        %v1481 = vcvt.s32.f32 %v1473
        %v1482 = vcvt.s32.f32 %v1474
        %v1483 = vcvt.s32.f32 %v1475
        %v1484 = vcvt.s32.f32 %v1476
        %1485 = vmatprep.subr.mxu0 0.0
        %1486 = vmatpush1.msra.mxu0 %v1405
        %1487 = vmatprep.subr.mxu0 0.0
        %1488 = vmatpush1.msra.mxu0 %v1406
        %1489 = vmatprep.subr.mxu0 0.0
        %1490 = vmatpush1.msra.mxu0 %v1407
        %1491 = vmatprep.subr.mxu0 0.0
        %1492 = vmatpush1.msra.mxu0 %v1408
        %1493 = vmatprep.subr.mxu0 0.0
        %1494 = vmatpush1.msra.mxu0 %v1409
        %1495 = vmatprep.subr.mxu0 0.0
        %1496 = vmatpush1.msra.mxu0 %v1410
        %1497 = vmatprep.subr.mxu0 0.0
        %1498 = vmatpush1.msra.mxu0 %v1411
        %1499 = vmatprep.subr.mxu0 0.0
        %1500 = vmatpush1.msra.mxu0 %v1412
        %1501 = vmatprep.subr.mxu0 0.0
        %1502 = vmatpush1.msra.mxu0 %v1413
        %1503 = vmatprep.subr.mxu0 0.0
        %1504 = vmatpush1.msra.mxu0 %v1414
        %1505 = vmatprep.subr.mxu0 0.0
        %1506 = vmatpush1.msra.mxu0 %v1415
        %1507 = vmatprep.subr.mxu0 0.0
        %1508 = vmatpush1.msra.mxu0 %v1416
        %1509 = vmatprep.subr.mxu0 0.0
        %1510 = vmatpush1.msra.mxu0 %v1417
        %1511 = vmatprep.subr.mxu0 0.0
        %1512 = vmatpush1.msra.mxu0 %v1418
        %1513 = vmatprep.subr.mxu0 0.0
        %1514 = vmatpush1.msra.mxu0 %v1419
        %1515 = vmatprep.subr.mxu0 0.0
        %1516 = vmatpush1.msra.mxu0 %v1420
        %1517 = vmatprep.subr.mxu0 0.0
        %1518 = vmatpush1.msra.mxu0 0.0
        %1519 = vmatprep.subr.mxu0 0.0
        %1520 = vmatpush1.msra.mxu0 0.0
        %1521 = vmatprep.subr.mxu0 0.0
        %1522 = vmatpush1.msra.mxu0 0.0
        %1523 = vmatprep.subr.mxu0 0.0
        %1524 = vmatpush1.msra.mxu0 0.0
        %1525 = vmatprep.subr.mxu0 0.0
        %1526 = vmatpush1.msra.mxu0 0.0
        %1527 = vmatprep.subr.mxu0 0.0
        %1528 = vmatpush1.msra.mxu0 0.0
        %1529 = vmatprep.subr.mxu0 0.0
        %1530 = vmatpush1.msra.mxu0 0.0
        %1531 = vmatprep.subr.mxu0 0.0
        %1532 = vmatpush1.msra.mxu0 0.0
        %1533 = vmatprep.subr.mxu0 0.0
        %1534 = vmatpush1.msra.mxu0 0.0
        %1535 = vmatprep.subr.mxu0 0.0
        %1536 = vmatpush1.msra.mxu0 0.0
        %1537 = vmatprep.subr.mxu0 0.0
        %1538 = vmatpush1.msra.mxu0 0.0
        %1539 = vmatprep.subr.mxu0 0.0
        %1540 = vmatpush1.msra.mxu0 0.0
        %1541 = vmatprep.subr.mxu0 0.0
        %1542 = vmatpush1.msra.mxu0 0.0
        %1543 = vmatprep.subr.mxu0 0.0
        %1544 = vmatpush1.msra.mxu0 0.0
        %1545 = vmatprep.subr.mxu0 0.0
        %1546 = vmatpush1.msra.mxu0 0.0
        %1547 = vmatprep.subr.mxu0 0.0
        %1548 = vmatpush1.msra.mxu0 0.0
        %1549 = vmatprep.mubr.f32.mxu0 0.0
        %1550 = vmatmul.mubr.f32.gmra.mrb[0].mxu0 %v1445
        %v1551 = vpop.f32.mrb[0].mxu0
        %v1552 = vadd.f32 0.0, %v1551
        %v1553 = vpop.f32.mrb[0].mxu0
        %1554 = vmatprep.mubr.f32.mxu0 0.0
        %1555 = vmatmul.mubr.f32.gmra.mrb[0].mxu0 %v1446
        %v1556 = vpop.f32.mrb[0].mxu0
        %v1557 = vadd.f32 0.0, %v1556
        %v1558 = vpop.f32.mrb[0].mxu0
        %1559 = vmatprep.mubr.f32.mxu0 0.0
        %1560 = vmatmul.mubr.f32.gmra.mrb[0].mxu0 %v1447
        %v1561 = vpop.f32.mrb[0].mxu0
        %v1562 = vadd.f32 0.0, %v1561
        %v1563 = vpop.f32.mrb[0].mxu0
        %1564 = vmatprep.mubr.f32.mxu0 0.0
        %1565 = vmatmul.mubr.f32.gmra.mrb[0].mxu0 %v1448
        %v1566 = vpop.f32.mrb[0].mxu0
        %v1567 = vadd.f32 0.0, %v1566
        %v1568 = vpop.f32.mrb[0].mxu0
        %1569 = vmatprep.mubr.f32.mxu0 0.0
        %1570 = vmatmul.mubr.f32.gmra.mrb[0].mxu0 %v1449
        %v1571 = vpop.f32.mrb[0].mxu0
        %v1572 = vadd.f32 0.0, %v1571
        %v1573 = vpop.f32.mrb[0].mxu0
        %1574 = vmatprep.mubr.f32.mxu0 0.0
        %1575 = vmatmul.mubr.f32.gmra.mrb[0].mxu0 %v1450
        %v1576 = vpop.f32.mrb[0].mxu0
        %v1577 = vadd.f32 0.0, %v1576
        %v1578 = vpop.f32.mrb[0].mxu0
        %1579 = vmatprep.mubr.f32.mxu0 0.0
        %1580 = vmatmul.mubr.f32.gmra.mrb[0].mxu0 %v1451
        %v1581 = vpop.f32.mrb[0].mxu0
        %v1582 = vadd.f32 0.0, %v1581
        %v1583 = vpop.f32.mrb[0].mxu0
        %1584 = vmatprep.mubr.f32.mxu0 0.0
        %1585 = vmatmul.mubr.f32.gmra.mrb[0].mxu0 %v1452
        %v1586 = vpop.f32.mrb[0].mxu0
        %v1587 = vadd.f32 0.0, %v1586
        %v1588 = vpop.f32.mrb[0].mxu0
        %1589 = vdwg.mxu0
        %1590 = vmatprep.subr.mxu0 0.0
        %1591 = vmatpush1.msra.mxu0 %v1405
        %1592 = vmatprep.subr.mxu0 0.0
        %1593 = vmatpush1.msra.mxu0 %v1406
        %1594 = vmatprep.subr.mxu0 0.0
        %1595 = vmatpush1.msra.mxu0 %v1407
        %1596 = vmatprep.subr.mxu0 0.0
        %1597 = vmatpush1.msra.mxu0 %v1408
        %1598 = vmatprep.subr.mxu0 0.0
        %1599 = vmatpush1.msra.mxu0 %v1409
        %1600 = vmatprep.subr.mxu0 0.0
        %1601 = vmatpush1.msra.mxu0 %v1410
        %1602 = vmatprep.subr.mxu0 0.0
        %1603 = vmatpush1.msra.mxu0 %v1411
        %1604 = vmatprep.subr.mxu0 0.0
        %1605 = vmatpush1.msra.mxu0 %v1412
        %1606 = vmatprep.subr.mxu0 0.0
        %1607 = vmatpush1.msra.mxu0 %v1413
        %1608 = vmatprep.subr.mxu0 0.0
        %1609 = vmatpush1.msra.mxu0 %v1414
        %1610 = vmatprep.subr.mxu0 0.0
        %1611 = vmatpush1.msra.mxu0 %v1415
        %1612 = vmatprep.subr.mxu0 0.0
        %1613 = vmatpush1.msra.mxu0 %v1416
        %1614 = vmatprep.subr.mxu0 0.0
        %1615 = vmatpush1.msra.mxu0 %v1417
        %1616 = vmatprep.subr.mxu0 0.0
        %1617 = vmatpush1.msra.mxu0 %v1418
        %1618 = vmatprep.subr.mxu0 0.0
        %1619 = vmatpush1.msra.mxu0 %v1419
        %1620 = vmatprep.subr.mxu0 0.0
        %1621 = vmatpush1.msra.mxu0 %v1420
        %1622 = vmatprep.subr.mxu0 0.0
        %1623 = vmatpush1.msra.mxu0 0.0
        %1624 = vmatprep.subr.mxu0 0.0
        %1625 = vmatpush1.msra.mxu0 0.0
        %1626 = vmatprep.subr.mxu0 0.0
        %1627 = vmatpush1.msra.mxu0 0.0
        %1628 = vmatprep.subr.mxu0 0.0
        %1629 = vmatpush1.msra.mxu0 0.0
        %1630 = vmatprep.subr.mxu0 0.0
        %1631 = vmatpush1.msra.mxu0 0.0
        %1632 = vmatprep.subr.mxu0 0.0
        %1633 = vmatpush1.msra.mxu0 0.0
        %1634 = vmatprep.subr.mxu0 0.0
        %1635 = vmatpush1.msra.mxu0 0.0
        %1636 = vmatprep.subr.mxu0 0.0
        %1637 = vmatpush1.msra.mxu0 0.0
        %1638 = vmatprep.subr.mxu0 0.0
        %1639 = vmatpush1.msra.mxu0 0.0
        %1640 = vmatprep.subr.mxu0 0.0
        %1641 = vmatpush1.msra.mxu0 0.0
        %1642 = vmatprep.subr.mxu0 0.0
        %1643 = vmatpush1.msra.mxu0 0.0
        %1644 = vmatprep.subr.mxu0 0.0
        %1645 = vmatpush1.msra.mxu0 0.0
        %1646 = vmatprep.subr.mxu0 0.0
        %1647 = vmatpush1.msra.mxu0 0.0
        %1648 = vmatprep.subr.mxu0 0.0
        %1649 = vmatpush1.msra.mxu0 0.0
        %1650 = vmatprep.subr.mxu0 0.0
        %1651 = vmatpush1.msra.mxu0 0.0
        %1652 = vmatprep.subr.mxu0 0.0
        %1653 = vmatpush1.msra.mxu0 0.0
        %1654 = vmatprep.mubr.f32.mxu0 0.0
        %1655 = vmatmul.mubr.f32.gmra.mrb[0].mxu0 %v1477
        %v1656 = vpop.f32.mrb[0].mxu0
        %v1657 = vadd.f32 0.0, %v1656
        %v1658 = vpop.f32.mrb[0].mxu0
        %1659 = vmatprep.mubr.f32.mxu0 0.0
        %1660 = vmatmul.mubr.f32.gmra.mrb[0].mxu0 %v1478
        %v1661 = vpop.f32.mrb[0].mxu0
        %v1662 = vadd.f32 0.0, %v1661
        %v1663 = vpop.f32.mrb[0].mxu0
        %1664 = vmatprep.mubr.f32.mxu0 0.0
        %1665 = vmatmul.mubr.f32.gmra.mrb[0].mxu0 %v1479
        %v1666 = vpop.f32.mrb[0].mxu0
        %v1667 = vadd.f32 0.0, %v1666
        %v1668 = vpop.f32.mrb[0].mxu0
        %1669 = vmatprep.mubr.f32.mxu0 0.0
        %1670 = vmatmul.mubr.f32.gmra.mrb[0].mxu0 %v1480
        %v1671 = vpop.f32.mrb[0].mxu0
        %v1672 = vadd.f32 0.0, %v1671
        %v1673 = vpop.f32.mrb[0].mxu0
        %1674 = vmatprep.mubr.f32.mxu0 0.0
        %1675 = vmatmul.mubr.f32.gmra.mrb[0].mxu0 %v1481
        %v1676 = vpop.f32.mrb[0].mxu0
        %v1677 = vadd.f32 0.0, %v1676
        %v1678 = vpop.f32.mrb[0].mxu0
        %1679 = vmatprep.mubr.f32.mxu0 0.0
        %1680 = vmatmul.mubr.f32.gmra.mrb[0].mxu0 %v1482
        %v1681 = vpop.f32.mrb[0].mxu0
        %v1682 = vadd.f32 0.0, %v1681
        %v1683 = vpop.f32.mrb[0].mxu0
        %1684 = vmatprep.mubr.f32.mxu0 0.0
        %1685 = vmatmul.mubr.f32.gmra.mrb[0].mxu0 %v1483
        %v1686 = vpop.f32.mrb[0].mxu0
        %v1687 = vadd.f32 0.0, %v1686
        %v1688 = vpop.f32.mrb[0].mxu0
        %1689 = vmatprep.mubr.f32.mxu0 0.0
        %1690 = vmatmul.mubr.f32.gmra.mrb[0].mxu0 %v1484
        %v1691 = vpop.f32.mrb[0].mxu0
        %v1692 = vadd.f32 0.0, %v1691
        %v1693 = vpop.f32.mrb[0].mxu0
        %1694 = vdwg.mxu0
        %v1695 = vmax.f32 %v1552, %v1657
        %v1696 = vmax.f32 %v1557, %v1662
        %v1697 = vmax.f32 %v1562, %v1667
        %v1698 = vmax.f32 %v1567, %v1672
        %v1699 = vmax.f32 %v1572, %v1677
        %v1700 = vmax.f32 %v1577, %v1682
        %v1701 = vmax.f32 %v1582, %v1687
        %v1702 = vmax.f32 %v1587, %v1692
        %v1703 = vld [vmem:[%s5] sm:$0x1]
        %v1704 = vld [vmem:[%s6] sm:$0x1]
        %vm1705 = vcmask 523264
        %v1707 = vsel %vm1705, %v656, 0
        %v1710 = vsel %vm1705, %v657, 0
        %v1713 = vsel %vm1705, %v658, 0
        %v1716 = vsel %vm1705, %v659, 0
        %v1719 = vsel %vm1705, %v660, 0
        %v1722 = vsel %vm1705, %v661, 0
        %v1725 = vsel %vm1705, %v662, 0
        %v1728 = vsel %vm1705, %v663, 0
        %1730 = vmatprep.subr.mxu0 0.0
        %1731 = vmatpush1.msra.mxu0 %v1695
        %1732 = vmatprep.subr.mxu0 0.0
        %1733 = vmatpush1.msra.mxu0 %v1696
        %1734 = vmatprep.subr.mxu0 0.0
        %1735 = vmatpush1.msra.mxu0 %v1697
        %1736 = vmatprep.subr.mxu0 0.0
        %1737 = vmatpush1.msra.mxu0 %v1698
        %1738 = vmatprep.subr.mxu0 0.0
        %1739 = vmatpush1.msra.mxu0 %v1699
        %1740 = vmatprep.subr.mxu0 0.0
        %1741 = vmatpush1.msra.mxu0 %v1700
        %1742 = vmatprep.subr.mxu0 0.0
        %1743 = vmatpush1.msra.mxu0 %v1701
        %1744 = vmatprep.subr.mxu0 0.0
        %1745 = vmatpush1.msra.mxu0 %v1702
        %1746 = vmatprep.subr.mxu0 0.0
        %1747 = vmatpush1.msra.mxu0 0.0
        %1748 = vmatprep.subr.mxu0 0.0
        %1749 = vmatpush1.msra.mxu0 0.0
        %1750 = vmatprep.subr.mxu0 0.0
        %1751 = vmatpush1.msra.mxu0 0.0
        %1752 = vmatprep.subr.mxu0 0.0
        %1753 = vmatpush1.msra.mxu0 0.0
        %1754 = vmatprep.subr.mxu0 0.0
        %1755 = vmatpush1.msra.mxu0 0.0
        %1756 = vmatprep.subr.mxu0 0.0
        %1757 = vmatpush1.msra.mxu0 0.0
        %1758 = vmatprep.subr.mxu0 0.0
        %1759 = vmatpush1.msra.mxu0 0.0
        %1760 = vmatprep.subr.mxu0 0.0
        %1761 = vmatpush1.msra.mxu0 0.0
        %1762 = vmatprep.subr.mxu0 0.0
        %1763 = vmatpush1.msra.mxu0 0.0
        %1764 = vmatprep.subr.mxu0 0.0
        %1765 = vmatpush1.msra.mxu0 0.0
        %1766 = vmatprep.subr.mxu0 0.0
        %1767 = vmatpush1.msra.mxu0 0.0
        %1768 = vmatprep.subr.mxu0 0.0
        %1769 = vmatpush1.msra.mxu0 0.0
        %1770 = vmatprep.subr.mxu0 0.0
        %1771 = vmatpush1.msra.mxu0 0.0
        %1772 = vmatprep.subr.mxu0 0.0
        %1773 = vmatpush1.msra.mxu0 0.0
        %1774 = vmatprep.subr.mxu0 0.0
        %1775 = vmatpush1.msra.mxu0 0.0
        %1776 = vmatprep.subr.mxu0 0.0
        %1777 = vmatpush1.msra.mxu0 0.0
        %1778 = vmatprep.subr.mxu0 0.0
        %1779 = vmatpush1.msra.mxu0 0.0
        %1780 = vmatprep.subr.mxu0 0.0
        %1781 = vmatpush1.msra.mxu0 0.0
        %1782 = vmatprep.subr.mxu0 0.0
        %1783 = vmatpush1.msra.mxu0 0.0
        %1784 = vmatprep.subr.mxu0 0.0
        %1785 = vmatpush1.msra.mxu0 0.0
        %1786 = vmatprep.subr.mxu0 0.0
        %1787 = vmatpush1.msra.mxu0 0.0
        %1788 = vmatprep.subr.mxu0 0.0
        %1789 = vmatpush1.msra.mxu0 0.0
        %1790 = vmatprep.subr.mxu0 0.0
        %1791 = vmatpush1.msra.mxu0 0.0
        %1792 = vmatprep.subr.mxu0 0.0
        %1793 = vmatpush1.msra.mxu0 0.0
        %1794 = vmatprep.mubr.f32.mxu0 0.0
        %1795 = vmatmul.mubr.f32.gmra.mrb[0].mxu0 %v1707
        %v1796 = vpop.f32.mrb[0].mxu0
        %v1797 = vadd.f32 0.0, %v1796
        %v1798 = vpop.f32.mrb[0].mxu0
        %1799 = vmatprep.mubr.f32.mxu0 0.0
        %1800 = vmatmul.mubr.f32.gmra.mrb[0].mxu0 %v1710
        %v1801 = vpop.f32.mrb[0].mxu0
        %v1802 = vadd.f32 0.0, %v1801
        %v1803 = vpop.f32.mrb[0].mxu0
        %1804 = vmatprep.mubr.f32.mxu0 0.0
        %1805 = vmatmul.mubr.f32.gmra.mrb[0].mxu0 %v1713
        %v1806 = vpop.f32.mrb[0].mxu0
        %v1807 = vadd.f32 0.0, %v1806
        %v1808 = vpop.f32.mrb[0].mxu0
        %1809 = vmatprep.mubr.f32.mxu0 0.0
        %1810 = vmatmul.mubr.f32.gmra.mrb[0].mxu0 %v1716
        %v1811 = vpop.f32.mrb[0].mxu0
        %v1812 = vadd.f32 0.0, %v1811
        %v1813 = vpop.f32.mrb[0].mxu0
        %1814 = vmatprep.mubr.f32.mxu0 0.0
        %1815 = vmatmul.mubr.f32.gmra.mrb[0].mxu0 %v1719
        %v1816 = vpop.f32.mrb[0].mxu0
        %v1817 = vadd.f32 0.0, %v1816
        %v1818 = vpop.f32.mrb[0].mxu0
        %1819 = vmatprep.mubr.f32.mxu0 0.0
        %1820 = vmatmul.mubr.f32.gmra.mrb[0].mxu0 %v1722
        %v1821 = vpop.f32.mrb[0].mxu0
        %v1822 = vadd.f32 0.0, %v1821
        %v1823 = vpop.f32.mrb[0].mxu0
        %1824 = vmatprep.mubr.f32.mxu0 0.0
        %1825 = vmatmul.mubr.f32.gmra.mrb[0].mxu0 %v1725
        %v1826 = vpop.f32.mrb[0].mxu0
        %v1827 = vadd.f32 0.0, %v1826
        %v1828 = vpop.f32.mrb[0].mxu0
        %1829 = vmatprep.mubr.f32.mxu0 0.0
        %1830 = vmatmul.mubr.f32.gmra.mrb[0].mxu0 %v1728
        %v1831 = vpop.f32.mrb[0].mxu0
        %v1832 = vadd.f32 0.0, %v1831
        %v1833 = vpop.f32.mrb[0].mxu0
        %1834 = vdwg.mxu0
        %v1836 = vsel %vm1705, %v720, 0
        %v1839 = vsel %vm1705, %v721, 0
        %v1842 = vsel %vm1705, %v722, 0
        %v1845 = vsel %vm1705, %v723, 0
        %v1848 = vsel %vm1705, %v724, 0
        %v1851 = vsel %vm1705, %v725, 0
        %v1854 = vsel %vm1705, %v726, 0
        %v1857 = vsel %vm1705, %v727, 0
        %1859 = vmatprep.subr.mxu0 0.0
        %1860 = vmatpush1.msra.mxu0 %v1695
        %1861 = vmatprep.subr.mxu0 0.0
        %1862 = vmatpush1.msra.mxu0 %v1696
        %1863 = vmatprep.subr.mxu0 0.0
        %1864 = vmatpush1.msra.mxu0 %v1697
        %1865 = vmatprep.subr.mxu0 0.0
        %1866 = vmatpush1.msra.mxu0 %v1698
        %1867 = vmatprep.subr.mxu0 0.0
        %1868 = vmatpush1.msra.mxu0 %v1699
        %1869 = vmatprep.subr.mxu0 0.0
        %1870 = vmatpush1.msra.mxu0 %v1700
        %1871 = vmatprep.subr.mxu0 0.0
        %1872 = vmatpush1.msra.mxu0 %v1701
        %1873 = vmatprep.subr.mxu0 0.0
        %1874 = vmatpush1.msra.mxu0 %v1702
        %1875 = vmatprep.subr.mxu0 0.0
        %1876 = vmatpush1.msra.mxu0 0.0
        %1877 = vmatprep.subr.mxu0 0.0
        %1878 = vmatpush1.msra.mxu0 0.0
        %1879 = vmatprep.subr.mxu0 0.0
        %1880 = vmatpush1.msra.mxu0 0.0
        %1881 = vmatprep.subr.mxu0 0.0
        %1882 = vmatpush1.msra.mxu0 0.0
        %1883 = vmatprep.subr.mxu0 0.0
        %1884 = vmatpush1.msra.mxu0 0.0
        %1885 = vmatprep.subr.mxu0 0.0
        %1886 = vmatpush1.msra.mxu0 0.0
        %1887 = vmatprep.subr.mxu0 0.0
        %1888 = vmatpush1.msra.mxu0 0.0
        %1889 = vmatprep.subr.mxu0 0.0
        %1890 = vmatpush1.msra.mxu0 0.0
        %1891 = vmatprep.subr.mxu0 0.0
        %1892 = vmatpush1.msra.mxu0 0.0
        %1893 = vmatprep.subr.mxu0 0.0
        %1894 = vmatpush1.msra.mxu0 0.0
        %1895 = vmatprep.subr.mxu0 0.0
        %1896 = vmatpush1.msra.mxu0 0.0
        %1897 = vmatprep.subr.mxu0 0.0
        %1898 = vmatpush1.msra.mxu0 0.0
        %1899 = vmatprep.subr.mxu0 0.0
        %1900 = vmatpush1.msra.mxu0 0.0
        %1901 = vmatprep.subr.mxu0 0.0
        %1902 = vmatpush1.msra.mxu0 0.0
        %1903 = vmatprep.subr.mxu0 0.0
        %1904 = vmatpush1.msra.mxu0 0.0
        %1905 = vmatprep.subr.mxu0 0.0
        %1906 = vmatpush1.msra.mxu0 0.0
        %1907 = vmatprep.subr.mxu0 0.0
        %1908 = vmatpush1.msra.mxu0 0.0
        %1909 = vmatprep.subr.mxu0 0.0
        %1910 = vmatpush1.msra.mxu0 0.0
        %1911 = vmatprep.subr.mxu0 0.0
        %1912 = vmatpush1.msra.mxu0 0.0
        %1913 = vmatprep.subr.mxu0 0.0
        %1914 = vmatpush1.msra.mxu0 0.0
        %1915 = vmatprep.subr.mxu0 0.0
        %1916 = vmatpush1.msra.mxu0 0.0
        %1917 = vmatprep.subr.mxu0 0.0
        %1918 = vmatpush1.msra.mxu0 0.0
        %1919 = vmatprep.subr.mxu0 0.0
        %1920 = vmatpush1.msra.mxu0 0.0
        %1921 = vmatprep.subr.mxu0 0.0
        %1922 = vmatpush1.msra.mxu0 0.0
        %1923 = vmatprep.mubr.f32.mxu0 0.0
        %1924 = vmatmul.mubr.f32.gmra.mrb[0].mxu0 %v1836
        %v1925 = vpop.f32.mrb[0].mxu0
        %v1926 = vadd.f32 0.0, %v1925
        %v1927 = vpop.f32.mrb[0].mxu0
        %1928 = vmatprep.mubr.f32.mxu0 0.0
        %1929 = vmatmul.mubr.f32.gmra.mrb[0].mxu0 %v1839
        %v1930 = vpop.f32.mrb[0].mxu0
        %v1931 = vadd.f32 0.0, %v1930
        %v1932 = vpop.f32.mrb[0].mxu0
        %1933 = vmatprep.mubr.f32.mxu0 0.0
        %1934 = vmatmul.mubr.f32.gmra.mrb[0].mxu0 %v1842
        %v1935 = vpop.f32.mrb[0].mxu0
        %v1936 = vadd.f32 0.0, %v1935
        %v1937 = vpop.f32.mrb[0].mxu0
        %1938 = vmatprep.mubr.f32.mxu0 0.0
        %1939 = vmatmul.mubr.f32.gmra.mrb[0].mxu0 %v1845
        %v1940 = vpop.f32.mrb[0].mxu0
        %v1941 = vadd.f32 0.0, %v1940
        %v1942 = vpop.f32.mrb[0].mxu0
        %1943 = vmatprep.mubr.f32.mxu0 0.0
        %1944 = vmatmul.mubr.f32.gmra.mrb[0].mxu0 %v1848
        %v1945 = vpop.f32.mrb[0].mxu0
        %v1946 = vadd.f32 0.0, %v1945
        %v1947 = vpop.f32.mrb[0].mxu0
        %1948 = vmatprep.mubr.f32.mxu0 0.0
        %1949 = vmatmul.mubr.f32.gmra.mrb[0].mxu0 %v1851
        %v1950 = vpop.f32.mrb[0].mxu0
        %v1951 = vadd.f32 0.0, %v1950
        %v1952 = vpop.f32.mrb[0].mxu0
        %1953 = vmatprep.mubr.f32.mxu0 0.0
        %1954 = vmatmul.mubr.f32.gmra.mrb[0].mxu0 %v1854
        %v1955 = vpop.f32.mrb[0].mxu0
        %v1956 = vadd.f32 0.0, %v1955
        %v1957 = vpop.f32.mrb[0].mxu0
        %1958 = vmatprep.mubr.f32.mxu0 0.0
        %1959 = vmatmul.mubr.f32.gmra.mrb[0].mxu0 %v1857
        %v1960 = vpop.f32.mrb[0].mxu0
        %v1961 = vadd.f32 0.0, %v1960
        %v1962 = vpop.f32.mrb[0].mxu0
        %1963 = vdwg.mxu0
        %v1964 = vld [vmem:[%s4] sm:$0xff]
        %v1965 = vld [vmem:[%s4 + $0x8] sm:$0xff]
        %v1966 = vld [vmem:[%s4 + $0x10] sm:$0xff]
        %v1967 = vld [vmem:[%s4 + $0x18] sm:$0xff]
        %v1968 = vld [vmem:[%s4 + $0x20] sm:$0xff]
        %v1969 = vld [vmem:[%s4 + $0x28] sm:$0xff]
        %v1970 = vld [vmem:[%s4 + $0x30] sm:$0xff]
        %v1971 = vld [vmem:[%s4 + $0x38] sm:$0xff]
        %vm1972 = vcmask 261120
        %v1974 = vsel %vm1972, %v1695, 0
        %v1977 = vsel %vm1972, %v1696, 0
        %v1980 = vsel %vm1972, %v1697, 0
        %v1983 = vsel %vm1972, %v1698, 0
        %v1986 = vsel %vm1972, %v1699, 0
        %v1989 = vsel %vm1972, %v1700, 0
        %v1992 = vsel %vm1972, %v1701, 0
        %v1995 = vsel %vm1972, %v1702, 0
        %1997 = vmatprep.subr.mxu0 0.0
        %1998 = vmatpush1.msra.mxu0 %v1968
        %1999 = vmatprep.subr.mxu0 0.0
        %2000 = vmatpush1.msra.mxu0 %v1969
        %2001 = vmatprep.subr.mxu0 0.0
        %2002 = vmatpush1.msra.mxu0 %v1970
        %2003 = vmatprep.subr.mxu0 0.0
        %2004 = vmatpush1.msra.mxu0 %v1971
        %2005 = vmatprep.subr.mxu0 0.0
        %2006 = vmatpush1.msra.mxu0 0.0
        %2007 = vmatprep.subr.mxu0 0.0
        %2008 = vmatpush1.msra.mxu0 0.0
        %2009 = vmatprep.subr.mxu0 0.0
        %2010 = vmatpush1.msra.mxu0 0.0
        %2011 = vmatprep.subr.mxu0 0.0
        %2012 = vmatpush1.msra.mxu0 0.0
        %2013 = vmatprep.subr.mxu0 0.0
        %2014 = vmatpush1.msra.mxu0 0.0
        %2015 = vmatprep.subr.mxu0 0.0
        %2016 = vmatpush1.msra.mxu0 0.0
        %2017 = vmatprep.subr.mxu0 0.0
        %2018 = vmatpush1.msra.mxu0 0.0
        %2019 = vmatprep.subr.mxu0 0.0
        %2020 = vmatpush1.msra.mxu0 0.0
        %2021 = vmatprep.subr.mxu0 0.0
        %2022 = vmatpush1.msra.mxu0 0.0
        %2023 = vmatprep.subr.mxu0 0.0
        %2024 = vmatpush1.msra.mxu0 0.0
        %2025 = vmatprep.subr.mxu0 0.0
        %2026 = vmatpush1.msra.mxu0 0.0
        %2027 = vmatprep.subr.mxu0 0.0
        %2028 = vmatpush1.msra.mxu0 0.0
        %2029 = vmatprep.subr.mxu0 0.0
        %2030 = vmatpush1.msra.mxu0 0.0
        %2031 = vmatprep.subr.mxu0 0.0
        %2032 = vmatpush1.msra.mxu0 0.0
        %2033 = vmatprep.subr.mxu0 0.0
        %2034 = vmatpush1.msra.mxu0 0.0
        %2035 = vmatprep.subr.mxu0 0.0
        %2036 = vmatpush1.msra.mxu0 0.0
        %2037 = vmatprep.subr.mxu0 0.0
        %2038 = vmatpush1.msra.mxu0 0.0
        %2039 = vmatprep.subr.mxu0 0.0
        %2040 = vmatpush1.msra.mxu0 0.0
        %2041 = vmatprep.subr.mxu0 0.0
        %2042 = vmatpush1.msra.mxu0 0.0
        %2043 = vmatprep.subr.mxu0 0.0
        %2044 = vmatpush1.msra.mxu0 0.0
        %2045 = vmatprep.subr.mxu0 0.0
        %2046 = vmatpush1.msra.mxu0 0.0
        %2047 = vmatprep.subr.mxu0 0.0
        %2048 = vmatpush1.msra.mxu0 0.0
        %2049 = vmatprep.subr.mxu0 0.0
        %2050 = vmatpush1.msra.mxu0 0.0
        %2051 = vmatprep.subr.mxu0 0.0
        %2052 = vmatpush1.msra.mxu0 0.0
        %2053 = vmatprep.subr.mxu0 0.0
        %2054 = vmatpush1.msra.mxu0 0.0
        %2055 = vmatprep.subr.mxu0 0.0
        %2056 = vmatpush1.msra.mxu0 0.0
        %2057 = vmatprep.subr.mxu0 0.0
        %2058 = vmatpush1.msra.mxu0 0.0
        %2059 = vmatprep.subr.mxu0 0.0
        %2060 = vmatpush1.msra.mxu0 0.0
        %2061 = vmatprep.mubr.f32.mxu0 0.0
        %2062 = vmatmul.mubr.f32.gmra.mrb[0].mxu0 %v1974
        %v2063 = vpop.f32.mrb[0].mxu0
        %v2064 = vadd.f32 0.0, %v2063
        %v2065 = vpop.f32.mrb[0].mxu0
        %2066 = vmatprep.mubr.f32.mxu0 0.0
        %2067 = vmatmul.mubr.f32.gmra.mrb[0].mxu0 %v1977
        %v2068 = vpop.f32.mrb[0].mxu0
        %v2069 = vadd.f32 0.0, %v2068
        %v2070 = vpop.f32.mrb[0].mxu0
        %2071 = vmatprep.mubr.f32.mxu0 0.0
        %2072 = vmatmul.mubr.f32.gmra.mrb[0].mxu0 %v1980
        %v2073 = vpop.f32.mrb[0].mxu0
        %v2074 = vadd.f32 0.0, %v2073
        %v2075 = vpop.f32.mrb[0].mxu0
        %2076 = vmatprep.mubr.f32.mxu0 0.0
        %2077 = vmatmul.mubr.f32.gmra.mrb[0].mxu0 %v1983
        %v2078 = vpop.f32.mrb[0].mxu0
        %v2079 = vadd.f32 0.0, %v2078
        %v2080 = vpop.f32.mrb[0].mxu0
        %2081 = vmatprep.mubr.f32.mxu0 0.0
        %2082 = vmatmul.mubr.f32.gmra.mrb[0].mxu0 %v1986
        %v2083 = vpop.f32.mrb[0].mxu0
        %v2084 = vadd.f32 0.0, %v2083
        %v2085 = vpop.f32.mrb[0].mxu0
        %2086 = vmatprep.mubr.f32.mxu0 0.0
        %2087 = vmatmul.mubr.f32.gmra.mrb[0].mxu0 %v1989
        %v2088 = vpop.f32.mrb[0].mxu0
        %v2089 = vadd.f32 0.0, %v2088
        %v2090 = vpop.f32.mrb[0].mxu0
        %2091 = vmatprep.mubr.f32.mxu0 0.0
        %2092 = vmatmul.mubr.f32.gmra.mrb[0].mxu0 %v1992
        %v2093 = vpop.f32.mrb[0].mxu0
        %v2094 = vadd.f32 0.0, %v2093
        %v2095 = vpop.f32.mrb[0].mxu0
        %2096 = vmatprep.mubr.f32.mxu0 0.0
        %2097 = vmatmul.mubr.f32.gmra.mrb[0].mxu0 %v1995
        %v2098 = vpop.f32.mrb[0].mxu0
        %v2099 = vadd.f32 0.0, %v2098
        %v2100 = vpop.f32.mrb[0].mxu0
        %2101 = vdwg.mxu0
        %v2103 = vsel %vm1972, %v1797, 0
        %v2106 = vsel %vm1972, %v1802, 0
        %v2109 = vsel %vm1972, %v1807, 0
        %v2112 = vsel %vm1972, %v1812, 0
        %v2115 = vsel %vm1972, %v1817, 0
        %v2118 = vsel %vm1972, %v1822, 0
        %v2121 = vsel %vm1972, %v1827, 0
        %v2124 = vsel %vm1972, %v1832, 0
        %2126 = vmatprep.subr.mxu0 0.0
        %2127 = vmatpush1.msra.mxu0 %v1964
        %2128 = vmatprep.subr.mxu0 0.0
        %2129 = vmatpush1.msra.mxu0 %v1965
        %2130 = vmatprep.subr.mxu0 0.0
        %2131 = vmatpush1.msra.mxu0 %v1966
        %2132 = vmatprep.subr.mxu0 0.0
        %2133 = vmatpush1.msra.mxu0 %v1967
        %2134 = vmatprep.subr.mxu0 0.0
        %2135 = vmatpush1.msra.mxu0 0.0
        %2136 = vmatprep.subr.mxu0 0.0
        %2137 = vmatpush1.msra.mxu0 0.0
        %2138 = vmatprep.subr.mxu0 0.0
        %2139 = vmatpush1.msra.mxu0 0.0
        %2140 = vmatprep.subr.mxu0 0.0
        %2141 = vmatpush1.msra.mxu0 0.0
        %2142 = vmatprep.subr.mxu0 0.0
        %2143 = vmatpush1.msra.mxu0 0.0
        %2144 = vmatprep.subr.mxu0 0.0
        %2145 = vmatpush1.msra.mxu0 0.0
        %2146 = vmatprep.subr.mxu0 0.0
        %2147 = vmatpush1.msra.mxu0 0.0
        %2148 = vmatprep.subr.mxu0 0.0
        %2149 = vmatpush1.msra.mxu0 0.0
        %2150 = vmatprep.subr.mxu0 0.0
        %2151 = vmatpush1.msra.mxu0 0.0
        %2152 = vmatprep.subr.mxu0 0.0
        %2153 = vmatpush1.msra.mxu0 0.0
        %2154 = vmatprep.subr.mxu0 0.0
        %2155 = vmatpush1.msra.mxu0 0.0
        %2156 = vmatprep.subr.mxu0 0.0
        %2157 = vmatpush1.msra.mxu0 0.0
        %2158 = vmatprep.subr.mxu0 0.0
        %2159 = vmatpush1.msra.mxu0 0.0
        %2160 = vmatprep.subr.mxu0 0.0
        %2161 = vmatpush1.msra.mxu0 0.0
        %2162 = vmatprep.subr.mxu0 0.0
        %2163 = vmatpush1.msra.mxu0 0.0
        %2164 = vmatprep.subr.mxu0 0.0
        %2165 = vmatpush1.msra.mxu0 0.0
        %2166 = vmatprep.subr.mxu0 0.0
        %2167 = vmatpush1.msra.mxu0 0.0
        %2168 = vmatprep.subr.mxu0 0.0
        %2169 = vmatpush1.msra.mxu0 0.0
        %2170 = vmatprep.subr.mxu0 0.0
        %2171 = vmatpush1.msra.mxu0 0.0
        %2172 = vmatprep.subr.mxu0 0.0
        %2173 = vmatpush1.msra.mxu0 0.0
        %2174 = vmatprep.subr.mxu0 0.0
        %2175 = vmatpush1.msra.mxu0 0.0
        %2176 = vmatprep.subr.mxu0 0.0
        %2177 = vmatpush1.msra.mxu0 0.0
        %2178 = vmatprep.subr.mxu0 0.0
        %2179 = vmatpush1.msra.mxu0 0.0
        %2180 = vmatprep.subr.mxu0 0.0
        %2181 = vmatpush1.msra.mxu0 0.0
        %2182 = vmatprep.subr.mxu0 0.0
        %2183 = vmatpush1.msra.mxu0 0.0
        %2184 = vmatprep.subr.mxu0 0.0
        %2185 = vmatpush1.msra.mxu0 0.0
        %2186 = vmatprep.subr.mxu0 0.0
        %2187 = vmatpush1.msra.mxu0 0.0
        %2188 = vmatprep.subr.mxu0 0.0
        %2189 = vmatpush1.msra.mxu0 0.0
        %2190 = vmatprep.mubr.f32.mxu0 0.0
        %2191 = vmatmul.mubr.f32.gmra.mrb[0].mxu0 %v2103
        %v2192 = vpop.f32.mrb[0].mxu0
        %v2193 = vadd.f32 %v2064, %v2192
        %v2194 = vpop.f32.mrb[0].mxu0
        %2195 = vmatprep.mubr.f32.mxu0 0.0
        %2196 = vmatmul.mubr.f32.gmra.mrb[0].mxu0 %v2106
        %v2197 = vpop.f32.mrb[0].mxu0
        %v2198 = vadd.f32 %v2069, %v2197
        %v2199 = vpop.f32.mrb[0].mxu0
        %2200 = vmatprep.mubr.f32.mxu0 0.0
        %2201 = vmatmul.mubr.f32.gmra.mrb[0].mxu0 %v2109
        %v2202 = vpop.f32.mrb[0].mxu0
        %v2203 = vadd.f32 %v2074, %v2202
        %v2204 = vpop.f32.mrb[0].mxu0
        %2205 = vmatprep.mubr.f32.mxu0 0.0
        %2206 = vmatmul.mubr.f32.gmra.mrb[0].mxu0 %v2112
        %v2207 = vpop.f32.mrb[0].mxu0
        %v2208 = vadd.f32 %v2079, %v2207
        %v2209 = vpop.f32.mrb[0].mxu0
        %2210 = vmatprep.mubr.f32.mxu0 0.0
        %2211 = vmatmul.mubr.f32.gmra.mrb[0].mxu0 %v2115
        %v2212 = vpop.f32.mrb[0].mxu0
        %v2213 = vadd.f32 %v2084, %v2212
        %v2214 = vpop.f32.mrb[0].mxu0
        %2215 = vmatprep.mubr.f32.mxu0 0.0
        %2216 = vmatmul.mubr.f32.gmra.mrb[0].mxu0 %v2118
        %v2217 = vpop.f32.mrb[0].mxu0
        %v2218 = vadd.f32 %v2089, %v2217
        %v2219 = vpop.f32.mrb[0].mxu0
        %2220 = vmatprep.mubr.f32.mxu0 0.0
        %2221 = vmatmul.mubr.f32.gmra.mrb[0].mxu0 %v2121
        %v2222 = vpop.f32.mrb[0].mxu0
        %v2223 = vadd.f32 %v2094, %v2222
        %v2224 = vpop.f32.mrb[0].mxu0
        %2225 = vmatprep.mubr.f32.mxu0 0.0
        %2226 = vmatmul.mubr.f32.gmra.mrb[0].mxu0 %v2124
        %v2227 = vpop.f32.mrb[0].mxu0
        %v2228 = vadd.f32 %v2099, %v2227
        %v2229 = vpop.f32.mrb[0].mxu0
        %2230 = vdwg.mxu0
        %v2231 = vld [vmem:[%s4 + $0x40] sm:$0xff]
        %v2232 = vld [vmem:[%s4 + $0x48] sm:$0xff]
        %v2233 = vld [vmem:[%s4 + $0x50] sm:$0xff]
        %v2234 = vld [vmem:[%s4 + $0x58] sm:$0xff]
        %v2236 = vsel %vm1972, %v1926, 0
        %v2239 = vsel %vm1972, %v1931, 0
        %v2242 = vsel %vm1972, %v1936, 0
        %v2245 = vsel %vm1972, %v1941, 0
        %v2248 = vsel %vm1972, %v1946, 0
        %v2251 = vsel %vm1972, %v1951, 0
        %v2254 = vsel %vm1972, %v1956, 0
        %v2257 = vsel %vm1972, %v1961, 0
        %2259 = vmatprep.subr.mxu0 0.0
        %2260 = vmatpush1.msra.mxu0 %v2231
        %2261 = vmatprep.subr.mxu0 0.0
        %2262 = vmatpush1.msra.mxu0 %v2232
        %2263 = vmatprep.subr.mxu0 0.0
        %2264 = vmatpush1.msra.mxu0 %v2233
        %2265 = vmatprep.subr.mxu0 0.0
        %2266 = vmatpush1.msra.mxu0 %v2234
        %2267 = vmatprep.subr.mxu0 0.0
        %2268 = vmatpush1.msra.mxu0 0.0
        %2269 = vmatprep.subr.mxu0 0.0
        %2270 = vmatpush1.msra.mxu0 0.0
        %2271 = vmatprep.subr.mxu0 0.0
        %2272 = vmatpush1.msra.mxu0 0.0
        %2273 = vmatprep.subr.mxu0 0.0
        %2274 = vmatpush1.msra.mxu0 0.0
        %2275 = vmatprep.subr.mxu0 0.0
        %2276 = vmatpush1.msra.mxu0 0.0
        %2277 = vmatprep.subr.mxu0 0.0
        %2278 = vmatpush1.msra.mxu0 0.0
        %2279 = vmatprep.subr.mxu0 0.0
        %2280 = vmatpush1.msra.mxu0 0.0
        %2281 = vmatprep.subr.mxu0 0.0
        %2282 = vmatpush1.msra.mxu0 0.0
        %2283 = vmatprep.subr.mxu0 0.0
        %2284 = vmatpush1.msra.mxu0 0.0
        %2285 = vmatprep.subr.mxu0 0.0
        %2286 = vmatpush1.msra.mxu0 0.0
        %2287 = vmatprep.subr.mxu0 0.0
        %2288 = vmatpush1.msra.mxu0 0.0
        %2289 = vmatprep.subr.mxu0 0.0
        %2290 = vmatpush1.msra.mxu0 0.0
        %2291 = vmatprep.subr.mxu0 0.0
        %2292 = vmatpush1.msra.mxu0 0.0
        %2293 = vmatprep.subr.mxu0 0.0
        %2294 = vmatpush1.msra.mxu0 0.0
        %2295 = vmatprep.subr.mxu0 0.0
        %2296 = vmatpush1.msra.mxu0 0.0
        %2297 = vmatprep.subr.mxu0 0.0
        %2298 = vmatpush1.msra.mxu0 0.0
        %2299 = vmatprep.subr.mxu0 0.0
        %2300 = vmatpush1.msra.mxu0 0.0
        %2301 = vmatprep.subr.mxu0 0.0
        %2302 = vmatpush1.msra.mxu0 0.0
        %2303 = vmatprep.subr.mxu0 0.0
        %2304 = vmatpush1.msra.mxu0 0.0
        %2305 = vmatprep.subr.mxu0 0.0
        %2306 = vmatpush1.msra.mxu0 0.0
        %2307 = vmatprep.subr.mxu0 0.0
        %2308 = vmatpush1.msra.mxu0 0.0
        %2309 = vmatprep.subr.mxu0 0.0
        %2310 = vmatpush1.msra.mxu0 0.0
        %2311 = vmatprep.subr.mxu0 0.0
        %2312 = vmatpush1.msra.mxu0 0.0
        %2313 = vmatprep.subr.mxu0 0.0
        %2314 = vmatpush1.msra.mxu0 0.0
        %2315 = vmatprep.subr.mxu0 0.0
        %2316 = vmatpush1.msra.mxu0 0.0
        %2317 = vmatprep.subr.mxu0 0.0
        %2318 = vmatpush1.msra.mxu0 0.0
        %2319 = vmatprep.subr.mxu0 0.0
        %2320 = vmatpush1.msra.mxu0 0.0
        %2321 = vmatprep.subr.mxu0 0.0
        %2322 = vmatpush1.msra.mxu0 0.0
        %2323 = vmatprep.mubr.f32.mxu0 0.0
        %2324 = vmatmul.mubr.f32.gmra.mrb[0].mxu0 %v2236
        %v2325 = vpop.f32.mrb[0].mxu0
        %v2326 = vadd.f32 0.0, %v2325
        %v2327 = vpop.f32.mrb[0].mxu0
        %2328 = vmatprep.mubr.f32.mxu0 0.0
        %2329 = vmatmul.mubr.f32.gmra.mrb[0].mxu0 %v2239
        %v2330 = vpop.f32.mrb[0].mxu0
        %v2331 = vadd.f32 0.0, %v2330
        %v2332 = vpop.f32.mrb[0].mxu0
        %2333 = vmatprep.mubr.f32.mxu0 0.0
        %2334 = vmatmul.mubr.f32.gmra.mrb[0].mxu0 %v2242
        %v2335 = vpop.f32.mrb[0].mxu0
        %v2336 = vadd.f32 0.0, %v2335
        %v2337 = vpop.f32.mrb[0].mxu0
        %2338 = vmatprep.mubr.f32.mxu0 0.0
        %2339 = vmatmul.mubr.f32.gmra.mrb[0].mxu0 %v2245
        %v2340 = vpop.f32.mrb[0].mxu0
        %v2341 = vadd.f32 0.0, %v2340
        %v2342 = vpop.f32.mrb[0].mxu0
        %2343 = vmatprep.mubr.f32.mxu0 0.0
        %2344 = vmatmul.mubr.f32.gmra.mrb[0].mxu0 %v2248
        %v2345 = vpop.f32.mrb[0].mxu0
        %v2346 = vadd.f32 0.0, %v2345
        %v2347 = vpop.f32.mrb[0].mxu0
        %2348 = vmatprep.mubr.f32.mxu0 0.0
        %2349 = vmatmul.mubr.f32.gmra.mrb[0].mxu0 %v2251
        %v2350 = vpop.f32.mrb[0].mxu0
        %v2351 = vadd.f32 0.0, %v2350
        %v2352 = vpop.f32.mrb[0].mxu0
        %2353 = vmatprep.mubr.f32.mxu0 0.0
        %2354 = vmatmul.mubr.f32.gmra.mrb[0].mxu0 %v2254
        %v2355 = vpop.f32.mrb[0].mxu0
        %v2356 = vadd.f32 0.0, %v2355
        %v2357 = vpop.f32.mrb[0].mxu0
        %2358 = vmatprep.mubr.f32.mxu0 0.0
        %2359 = vmatmul.mubr.f32.gmra.mrb[0].mxu0 %v2257
        %v2360 = vpop.f32.mrb[0].mxu0
        %v2361 = vadd.f32 0.0, %v2360
        %v2362 = vpop.f32.mrb[0].mxu0
        %2363 = vdwg.mxu0
        %v2364 = vadd.f32 %v2193, %v2326
        %v2365 = vadd.f32 %v2198, %v2331
        %v2366 = vadd.f32 %v2203, %v2336
        %v2367 = vadd.f32 %v2208, %v2341
        %v2368 = vadd.f32 %v2213, %v2346
        %v2369 = vadd.f32 %v2218, %v2351
        %v2370 = vadd.f32 %v2223, %v2356
        %v2371 = vadd.f32 %v2228, %v2361
        %v2373 = vlaneseq
        %v2374 = vshrl.u32 %v2373, 7
        %v2375 = vsub.s32 0, %v2374
        %v2376 = vrot.slane %v1703, %v2375
        %v2378 = vmul.f32 %v2364, %v2376
        %v2379 = vmul.f32 %v2365, %v2376
        %v2380 = vmul.f32 %v2366, %v2376
        %v2381 = vmul.f32 %v2367, %v2376
        %v2382 = vmul.f32 %v2368, %v2376
        %v2383 = vmul.f32 %v2369, %v2376
        %v2384 = vmul.f32 %v2370, %v2376
        %v2385 = vmul.f32 %v2371, %v2376
        %v2387 = vlaneseq
        %v2388 = vshrl.u32 %v2387, 7
        %v2389 = vsub.s32 0, %v2388
        %v2390 = vrot.slane %v1704, %v2389
        %v2392 = vadd.f32 %v2378, %v2390
        %v2393 = vadd.f32 %v2379, %v2390
        %v2394 = vadd.f32 %v2380, %v2390
        %v2395 = vadd.f32 %v2381, %v2390
        %v2396 = vadd.f32 %v2382, %v2390
        %v2397 = vadd.f32 %v2383, %v2390
        %v2398 = vadd.f32 %v2384, %v2390
        %v2399 = vadd.f32 %v2385, %v2390
        %v2400 = vmax.f32 %v2392, 0.0
        %v2401 = vmax.f32 %v2393, 0.0
        %v2402 = vmax.f32 %v2394, 0.0
        %v2403 = vmax.f32 %v2395, 0.0
        %v2404 = vmax.f32 %v2396, 0.0
        %v2405 = vmax.f32 %v2397, 0.0
        %v2406 = vmax.f32 %v2398, 0.0
        %v2407 = vmax.f32 %v2399, 0.0
        %v2408 = vld [vmem:[%s8] sm:$0x1]
        %v2409 = vld [vmem:[%s9] sm:$0x1]
        %2410 = vmatprep.subr.mxu0 0.0
        %2411 = vmatpush1.msra.mxu0 %v2400
        %2412 = vmatprep.subr.mxu0 0.0
        %2413 = vmatpush1.msra.mxu0 %v2401
        %2414 = vmatprep.subr.mxu0 0.0
        %2415 = vmatpush1.msra.mxu0 %v2402
        %2416 = vmatprep.subr.mxu0 0.0
        %2417 = vmatpush1.msra.mxu0 %v2403
        %2418 = vmatprep.subr.mxu0 0.0
        %2419 = vmatpush1.msra.mxu0 %v2404
        %2420 = vmatprep.subr.mxu0 0.0
        %2421 = vmatpush1.msra.mxu0 %v2405
        %2422 = vmatprep.subr.mxu0 0.0
        %2423 = vmatpush1.msra.mxu0 %v2406
        %2424 = vmatprep.subr.mxu0 0.0
        %2425 = vmatpush1.msra.mxu0 %v2407
        %2426 = vmatprep.subr.mxu0 0.0
        %2427 = vmatpush1.msra.mxu0 0.0
        %2428 = vmatprep.subr.mxu0 0.0
        %2429 = vmatpush1.msra.mxu0 0.0
        %2430 = vmatprep.subr.mxu0 0.0
        %2431 = vmatpush1.msra.mxu0 0.0
        %2432 = vmatprep.subr.mxu0 0.0
        %2433 = vmatpush1.msra.mxu0 0.0
        %2434 = vmatprep.subr.mxu0 0.0
        %2435 = vmatpush1.msra.mxu0 0.0
        %2436 = vmatprep.subr.mxu0 0.0
        %2437 = vmatpush1.msra.mxu0 0.0
        %2438 = vmatprep.subr.mxu0 0.0
        %2439 = vmatpush1.msra.mxu0 0.0
        %2440 = vmatprep.subr.mxu0 0.0
        %2441 = vmatpush1.msra.mxu0 0.0
        %2442 = vmatprep.subr.mxu0 0.0
        %2443 = vmatpush1.msra.mxu0 0.0
        %2444 = vmatprep.subr.mxu0 0.0
        %2445 = vmatpush1.msra.mxu0 0.0
        %2446 = vmatprep.subr.mxu0 0.0
        %2447 = vmatpush1.msra.mxu0 0.0
        %2448 = vmatprep.subr.mxu0 0.0
        %2449 = vmatpush1.msra.mxu0 0.0
        %2450 = vmatprep.subr.mxu0 0.0
        %2451 = vmatpush1.msra.mxu0 0.0
        %2452 = vmatprep.subr.mxu0 0.0
        %2453 = vmatpush1.msra.mxu0 0.0
        %2454 = vmatprep.subr.mxu0 0.0
        %2455 = vmatpush1.msra.mxu0 0.0
        %2456 = vmatprep.subr.mxu0 0.0
        %2457 = vmatpush1.msra.mxu0 0.0
        %2458 = vmatprep.subr.mxu0 0.0
        %2459 = vmatpush1.msra.mxu0 0.0
        %2460 = vmatprep.subr.mxu0 0.0
        %2461 = vmatpush1.msra.mxu0 0.0
        %2462 = vmatprep.subr.mxu0 0.0
        %2463 = vmatpush1.msra.mxu0 0.0
        %2464 = vmatprep.subr.mxu0 0.0
        %2465 = vmatpush1.msra.mxu0 0.0
        %2466 = vmatprep.subr.mxu0 0.0
        %2467 = vmatpush1.msra.mxu0 0.0
        %2468 = vmatprep.subr.mxu0 0.0
        %2469 = vmatpush1.msra.mxu0 0.0
        %2470 = vmatprep.subr.mxu0 0.0
        %2471 = vmatpush1.msra.mxu0 0.0
        %2472 = vmatprep.subr.mxu0 0.0
        %2473 = vmatpush1.msra.mxu0 0.0
        %2474 = vmatprep.mubr.f32.mxu0 0.0
        %2475 = vmatmul.mubr.f32.gmra.mrb[0].mxu0 %v1707
        %v2476 = vpop.f32.mrb[0].mxu0
        %v2477 = vadd.f32 0.0, %v2476
        %v2478 = vpop.f32.mrb[0].mxu0
        %2479 = vmatprep.mubr.f32.mxu0 0.0
        %2480 = vmatmul.mubr.f32.gmra.mrb[0].mxu0 %v1710
        %v2481 = vpop.f32.mrb[0].mxu0
        %v2482 = vadd.f32 0.0, %v2481
        %v2483 = vpop.f32.mrb[0].mxu0
        %2484 = vmatprep.mubr.f32.mxu0 0.0
        %2485 = vmatmul.mubr.f32.gmra.mrb[0].mxu0 %v1713
        %v2486 = vpop.f32.mrb[0].mxu0
        %v2487 = vadd.f32 0.0, %v2486
        %v2488 = vpop.f32.mrb[0].mxu0
        %2489 = vmatprep.mubr.f32.mxu0 0.0
        %2490 = vmatmul.mubr.f32.gmra.mrb[0].mxu0 %v1716
        %v2491 = vpop.f32.mrb[0].mxu0
        %v2492 = vadd.f32 0.0, %v2491
        %v2493 = vpop.f32.mrb[0].mxu0
        %2494 = vmatprep.mubr.f32.mxu0 0.0
        %2495 = vmatmul.mubr.f32.gmra.mrb[0].mxu0 %v1719
        %v2496 = vpop.f32.mrb[0].mxu0
        %v2497 = vadd.f32 0.0, %v2496
        %v2498 = vpop.f32.mrb[0].mxu0
        %2499 = vmatprep.mubr.f32.mxu0 0.0
        %2500 = vmatmul.mubr.f32.gmra.mrb[0].mxu0 %v1722
        %v2501 = vpop.f32.mrb[0].mxu0
        %v2502 = vadd.f32 0.0, %v2501
        %v2503 = vpop.f32.mrb[0].mxu0
        %2504 = vmatprep.mubr.f32.mxu0 0.0
        %2505 = vmatmul.mubr.f32.gmra.mrb[0].mxu0 %v1725
        %v2506 = vpop.f32.mrb[0].mxu0
        %v2507 = vadd.f32 0.0, %v2506
        %v2508 = vpop.f32.mrb[0].mxu0
        %2509 = vmatprep.mubr.f32.mxu0 0.0
        %2510 = vmatmul.mubr.f32.gmra.mrb[0].mxu0 %v1728
        %v2511 = vpop.f32.mrb[0].mxu0
        %v2512 = vadd.f32 0.0, %v2511
        %v2513 = vpop.f32.mrb[0].mxu0
        %2514 = vdwg.mxu0
        %2515 = vmatprep.subr.mxu0 0.0
        %2516 = vmatpush1.msra.mxu0 %v2400
        %2517 = vmatprep.subr.mxu0 0.0
        %2518 = vmatpush1.msra.mxu0 %v2401
        %2519 = vmatprep.subr.mxu0 0.0
        %2520 = vmatpush1.msra.mxu0 %v2402
        %2521 = vmatprep.subr.mxu0 0.0
        %2522 = vmatpush1.msra.mxu0 %v2403
        %2523 = vmatprep.subr.mxu0 0.0
        %2524 = vmatpush1.msra.mxu0 %v2404
        %2525 = vmatprep.subr.mxu0 0.0
        %2526 = vmatpush1.msra.mxu0 %v2405
        %2527 = vmatprep.subr.mxu0 0.0
        %2528 = vmatpush1.msra.mxu0 %v2406
        %2529 = vmatprep.subr.mxu0 0.0
        %2530 = vmatpush1.msra.mxu0 %v2407
        %2531 = vmatprep.subr.mxu0 0.0
        %2532 = vmatpush1.msra.mxu0 0.0
        %2533 = vmatprep.subr.mxu0 0.0
        %2534 = vmatpush1.msra.mxu0 0.0
        %2535 = vmatprep.subr.mxu0 0.0
        %2536 = vmatpush1.msra.mxu0 0.0
        %2537 = vmatprep.subr.mxu0 0.0
        %2538 = vmatpush1.msra.mxu0 0.0
        %2539 = vmatprep.subr.mxu0 0.0
        %2540 = vmatpush1.msra.mxu0 0.0
        %2541 = vmatprep.subr.mxu0 0.0
        %2542 = vmatpush1.msra.mxu0 0.0
        %2543 = vmatprep.subr.mxu0 0.0
        %2544 = vmatpush1.msra.mxu0 0.0
        %2545 = vmatprep.subr.mxu0 0.0
        %2546 = vmatpush1.msra.mxu0 0.0
        %2547 = vmatprep.subr.mxu0 0.0
        %2548 = vmatpush1.msra.mxu0 0.0
        %2549 = vmatprep.subr.mxu0 0.0
        %2550 = vmatpush1.msra.mxu0 0.0
        %2551 = vmatprep.subr.mxu0 0.0
        %2552 = vmatpush1.msra.mxu0 0.0
        %2553 = vmatprep.subr.mxu0 0.0
        %2554 = vmatpush1.msra.mxu0 0.0
        %2555 = vmatprep.subr.mxu0 0.0
        %2556 = vmatpush1.msra.mxu0 0.0
        %2557 = vmatprep.subr.mxu0 0.0
        %2558 = vmatpush1.msra.mxu0 0.0
        %2559 = vmatprep.subr.mxu0 0.0
        %2560 = vmatpush1.msra.mxu0 0.0
        %2561 = vmatprep.subr.mxu0 0.0
        %2562 = vmatpush1.msra.mxu0 0.0
        %2563 = vmatprep.subr.mxu0 0.0
        %2564 = vmatpush1.msra.mxu0 0.0
        %2565 = vmatprep.subr.mxu0 0.0
        %2566 = vmatpush1.msra.mxu0 0.0
        %2567 = vmatprep.subr.mxu0 0.0
        %2568 = vmatpush1.msra.mxu0 0.0
        %2569 = vmatprep.subr.mxu0 0.0
        %2570 = vmatpush1.msra.mxu0 0.0
        %2571 = vmatprep.subr.mxu0 0.0
        %2572 = vmatpush1.msra.mxu0 0.0
        %2573 = vmatprep.subr.mxu0 0.0
        %2574 = vmatpush1.msra.mxu0 0.0
        %2575 = vmatprep.subr.mxu0 0.0
        %2576 = vmatpush1.msra.mxu0 0.0
        %2577 = vmatprep.subr.mxu0 0.0
        %2578 = vmatpush1.msra.mxu0 0.0
        %2579 = vmatprep.mubr.f32.mxu0 0.0
        %2580 = vmatmul.mubr.f32.gmra.mrb[0].mxu0 %v1836
        %v2581 = vpop.f32.mrb[0].mxu0
        %v2582 = vadd.f32 0.0, %v2581
        %v2583 = vpop.f32.mrb[0].mxu0
        %2584 = vmatprep.mubr.f32.mxu0 0.0
        %2585 = vmatmul.mubr.f32.gmra.mrb[0].mxu0 %v1839
        %v2586 = vpop.f32.mrb[0].mxu0
        %v2587 = vadd.f32 0.0, %v2586
        %v2588 = vpop.f32.mrb[0].mxu0
        %2589 = vmatprep.mubr.f32.mxu0 0.0
        %2590 = vmatmul.mubr.f32.gmra.mrb[0].mxu0 %v1842
        %v2591 = vpop.f32.mrb[0].mxu0
        %v2592 = vadd.f32 0.0, %v2591
        %v2593 = vpop.f32.mrb[0].mxu0
        %2594 = vmatprep.mubr.f32.mxu0 0.0
        %2595 = vmatmul.mubr.f32.gmra.mrb[0].mxu0 %v1845
        %v2596 = vpop.f32.mrb[0].mxu0
        %v2597 = vadd.f32 0.0, %v2596
        %v2598 = vpop.f32.mrb[0].mxu0
        %2599 = vmatprep.mubr.f32.mxu0 0.0
        %2600 = vmatmul.mubr.f32.gmra.mrb[0].mxu0 %v1848
        %v2601 = vpop.f32.mrb[0].mxu0
        %v2602 = vadd.f32 0.0, %v2601
        %v2603 = vpop.f32.mrb[0].mxu0
        %2604 = vmatprep.mubr.f32.mxu0 0.0
        %2605 = vmatmul.mubr.f32.gmra.mrb[0].mxu0 %v1851
        %v2606 = vpop.f32.mrb[0].mxu0
        %v2607 = vadd.f32 0.0, %v2606
        %v2608 = vpop.f32.mrb[0].mxu0
        %2609 = vmatprep.mubr.f32.mxu0 0.0
        %2610 = vmatmul.mubr.f32.gmra.mrb[0].mxu0 %v1854
        %v2611 = vpop.f32.mrb[0].mxu0
        %v2612 = vadd.f32 0.0, %v2611
        %v2613 = vpop.f32.mrb[0].mxu0
        %2614 = vmatprep.mubr.f32.mxu0 0.0
        %2615 = vmatmul.mubr.f32.gmra.mrb[0].mxu0 %v1857
        %v2616 = vpop.f32.mrb[0].mxu0
        %v2617 = vadd.f32 0.0, %v2616
        %v2618 = vpop.f32.mrb[0].mxu0
        %2619 = vdwg.mxu0
        %v2620 = vld [vmem:[%s7] sm:$0xff]
        %v2621 = vld [vmem:[%s7 + $0x8] sm:$0xff]
        %v2622 = vld [vmem:[%s7 + $0x10] sm:$0xff]
        %v2623 = vld [vmem:[%s7 + $0x18] sm:$0xff]
        %v2624 = vld [vmem:[%s7 + $0x20] sm:$0xff]
        %v2625 = vld [vmem:[%s7 + $0x28] sm:$0xff]
        %v2626 = vld [vmem:[%s7 + $0x30] sm:$0xff]
        %v2627 = vld [vmem:[%s7 + $0x38] sm:$0xff]
        %v2628 = vld [vmem:[%s7 + $0x40] sm:$0xff]
        %v2629 = vld [vmem:[%s7 + $0x48] sm:$0xff]
        %v2630 = vld [vmem:[%s7 + $0x50] sm:$0xff]
        %v2631 = vld [vmem:[%s7 + $0x58] sm:$0xff]
        %v2632 = vld [vmem:[%s7 + $0x60] sm:$0xff]
        %v2633 = vld [vmem:[%s7 + $0x68] sm:$0xff]
        %v2634 = vld [vmem:[%s7 + $0x70] sm:$0xff]
        %v2635 = vld [vmem:[%s7 + $0x78] sm:$0xff]
        %v2637 = vsel %vm1705, %v2400, 0
        %v2640 = vsel %vm1705, %v2401, 0
        %v2643 = vsel %vm1705, %v2402, 0
        %v2646 = vsel %vm1705, %v2403, 0
        %v2649 = vsel %vm1705, %v2404, 0
        %v2652 = vsel %vm1705, %v2405, 0
        %v2655 = vsel %vm1705, %v2406, 0
        %v2658 = vsel %vm1705, %v2407, 0
        %2660 = vmatprep.subr.mxu0 0.0
        %2661 = vmatpush1.msra.mxu0 %v2628
        %2662 = vmatprep.subr.mxu0 0.0
        %2663 = vmatpush1.msra.mxu0 %v2629
        %2664 = vmatprep.subr.mxu0 0.0
        %2665 = vmatpush1.msra.mxu0 %v2630
        %2666 = vmatprep.subr.mxu0 0.0
        %2667 = vmatpush1.msra.mxu0 %v2631
        %2668 = vmatprep.subr.mxu0 0.0
        %2669 = vmatpush1.msra.mxu0 %v2632
        %2670 = vmatprep.subr.mxu0 0.0
        %2671 = vmatpush1.msra.mxu0 %v2633
        %2672 = vmatprep.subr.mxu0 0.0
        %2673 = vmatpush1.msra.mxu0 %v2634
        %2674 = vmatprep.subr.mxu0 0.0
        %2675 = vmatpush1.msra.mxu0 %v2635
        %2676 = vmatprep.subr.mxu0 0.0
        %2677 = vmatpush1.msra.mxu0 0.0
        %2678 = vmatprep.subr.mxu0 0.0
        %2679 = vmatpush1.msra.mxu0 0.0
        %2680 = vmatprep.subr.mxu0 0.0
        %2681 = vmatpush1.msra.mxu0 0.0
        %2682 = vmatprep.subr.mxu0 0.0
        %2683 = vmatpush1.msra.mxu0 0.0
        %2684 = vmatprep.subr.mxu0 0.0
        %2685 = vmatpush1.msra.mxu0 0.0
        %2686 = vmatprep.subr.mxu0 0.0
        %2687 = vmatpush1.msra.mxu0 0.0
        %2688 = vmatprep.subr.mxu0 0.0
        %2689 = vmatpush1.msra.mxu0 0.0
        %2690 = vmatprep.subr.mxu0 0.0
        %2691 = vmatpush1.msra.mxu0 0.0
        %2692 = vmatprep.subr.mxu0 0.0
        %2693 = vmatpush1.msra.mxu0 0.0
        %2694 = vmatprep.subr.mxu0 0.0
        %2695 = vmatpush1.msra.mxu0 0.0
        %2696 = vmatprep.subr.mxu0 0.0
        %2697 = vmatpush1.msra.mxu0 0.0
        %2698 = vmatprep.subr.mxu0 0.0
        %2699 = vmatpush1.msra.mxu0 0.0
        %2700 = vmatprep.subr.mxu0 0.0
        %2701 = vmatpush1.msra.mxu0 0.0
        %2702 = vmatprep.subr.mxu0 0.0
        %2703 = vmatpush1.msra.mxu0 0.0
        %2704 = vmatprep.subr.mxu0 0.0
        %2705 = vmatpush1.msra.mxu0 0.0
        %2706 = vmatprep.subr.mxu0 0.0
        %2707 = vmatpush1.msra.mxu0 0.0
        %2708 = vmatprep.subr.mxu0 0.0
        %2709 = vmatpush1.msra.mxu0 0.0
        %2710 = vmatprep.subr.mxu0 0.0
        %2711 = vmatpush1.msra.mxu0 0.0
        %2712 = vmatprep.subr.mxu0 0.0
        %2713 = vmatpush1.msra.mxu0 0.0
        %2714 = vmatprep.subr.mxu0 0.0
        %2715 = vmatpush1.msra.mxu0 0.0
        %2716 = vmatprep.subr.mxu0 0.0
        %2717 = vmatpush1.msra.mxu0 0.0
        %2718 = vmatprep.subr.mxu0 0.0
        %2719 = vmatpush1.msra.mxu0 0.0
        %2720 = vmatprep.subr.mxu0 0.0
        %2721 = vmatpush1.msra.mxu0 0.0
        %2722 = vmatprep.subr.mxu0 0.0
        %2723 = vmatpush1.msra.mxu0 0.0
        %2724 = vmatprep.mubr.f32.mxu0 0.0
        %2725 = vmatmul.mubr.f32.gmra.mrb[0].mxu0 %v2637
        %v2726 = vpop.f32.mrb[0].mxu0
        %v2727 = vadd.f32 0.0, %v2726
        %v2728 = vpop.f32.mrb[0].mxu0
        %2729 = vmatprep.mubr.f32.mxu0 0.0
        %2730 = vmatmul.mubr.f32.gmra.mrb[0].mxu0 %v2640
        %v2731 = vpop.f32.mrb[0].mxu0
        %v2732 = vadd.f32 0.0, %v2731
        %v2733 = vpop.f32.mrb[0].mxu0
        %2734 = vmatprep.mubr.f32.mxu0 0.0
        %2735 = vmatmul.mubr.f32.gmra.mrb[0].mxu0 %v2643
        %v2736 = vpop.f32.mrb[0].mxu0
        %v2737 = vadd.f32 0.0, %v2736
        %v2738 = vpop.f32.mrb[0].mxu0
        %2739 = vmatprep.mubr.f32.mxu0 0.0
        %2740 = vmatmul.mubr.f32.gmra.mrb[0].mxu0 %v2646
        %v2741 = vpop.f32.mrb[0].mxu0
        %v2742 = vadd.f32 0.0, %v2741
        %v2743 = vpop.f32.mrb[0].mxu0
        %2744 = vmatprep.mubr.f32.mxu0 0.0
        %2745 = vmatmul.mubr.f32.gmra.mrb[0].mxu0 %v2649
        %v2746 = vpop.f32.mrb[0].mxu0
        %v2747 = vadd.f32 0.0, %v2746
        %v2748 = vpop.f32.mrb[0].mxu0
        %2749 = vmatprep.mubr.f32.mxu0 0.0
        %2750 = vmatmul.mubr.f32.gmra.mrb[0].mxu0 %v2652
        %v2751 = vpop.f32.mrb[0].mxu0
        %v2752 = vadd.f32 0.0, %v2751
        %v2753 = vpop.f32.mrb[0].mxu0
        %2754 = vmatprep.mubr.f32.mxu0 0.0
        %2755 = vmatmul.mubr.f32.gmra.mrb[0].mxu0 %v2655
        %v2756 = vpop.f32.mrb[0].mxu0
        %v2757 = vadd.f32 0.0, %v2756
        %v2758 = vpop.f32.mrb[0].mxu0
        %2759 = vmatprep.mubr.f32.mxu0 0.0
        %2760 = vmatmul.mubr.f32.gmra.mrb[0].mxu0 %v2658
        %v2761 = vpop.f32.mrb[0].mxu0
        %v2762 = vadd.f32 0.0, %v2761
        %v2763 = vpop.f32.mrb[0].mxu0
        %2764 = vdwg.mxu0
        %v2766 = vsel %vm1705, %v2477, 0
        %v2769 = vsel %vm1705, %v2482, 0
        %v2772 = vsel %vm1705, %v2487, 0
        %v2775 = vsel %vm1705, %v2492, 0
        %v2778 = vsel %vm1705, %v2497, 0
        %v2781 = vsel %vm1705, %v2502, 0
        %v2784 = vsel %vm1705, %v2507, 0
        %v2787 = vsel %vm1705, %v2512, 0
        %2789 = vmatprep.subr.mxu0 0.0
        %2790 = vmatpush1.msra.mxu0 %v2620
        %2791 = vmatprep.subr.mxu0 0.0
        %2792 = vmatpush1.msra.mxu0 %v2621
        %2793 = vmatprep.subr.mxu0 0.0
        %2794 = vmatpush1.msra.mxu0 %v2622
        %2795 = vmatprep.subr.mxu0 0.0
        %2796 = vmatpush1.msra.mxu0 %v2623
        %2797 = vmatprep.subr.mxu0 0.0
        %2798 = vmatpush1.msra.mxu0 %v2624
        %2799 = vmatprep.subr.mxu0 0.0
        %2800 = vmatpush1.msra.mxu0 %v2625
        %2801 = vmatprep.subr.mxu0 0.0
        %2802 = vmatpush1.msra.mxu0 %v2626
        %2803 = vmatprep.subr.mxu0 0.0
        %2804 = vmatpush1.msra.mxu0 %v2627
        %2805 = vmatprep.subr.mxu0 0.0
        %2806 = vmatpush1.msra.mxu0 0.0
        %2807 = vmatprep.subr.mxu0 0.0
        %2808 = vmatpush1.msra.mxu0 0.0
        %2809 = vmatprep.subr.mxu0 0.0
        %2810 = vmatpush1.msra.mxu0 0.0
        %2811 = vmatprep.subr.mxu0 0.0
        %2812 = vmatpush1.msra.mxu0 0.0
        %2813 = vmatprep.subr.mxu0 0.0
        %2814 = vmatpush1.msra.mxu0 0.0
        %2815 = vmatprep.subr.mxu0 0.0
        %2816 = vmatpush1.msra.mxu0 0.0
        %2817 = vmatprep.subr.mxu0 0.0
        %2818 = vmatpush1.msra.mxu0 0.0
        %2819 = vmatprep.subr.mxu0 0.0
        %2820 = vmatpush1.msra.mxu0 0.0
        %2821 = vmatprep.subr.mxu0 0.0
        %2822 = vmatpush1.msra.mxu0 0.0
        %2823 = vmatprep.subr.mxu0 0.0
        %2824 = vmatpush1.msra.mxu0 0.0
        %2825 = vmatprep.subr.mxu0 0.0
        %2826 = vmatpush1.msra.mxu0 0.0
        %2827 = vmatprep.subr.mxu0 0.0
        %2828 = vmatpush1.msra.mxu0 0.0
        %2829 = vmatprep.subr.mxu0 0.0
        %2830 = vmatpush1.msra.mxu0 0.0
        %2831 = vmatprep.subr.mxu0 0.0
        %2832 = vmatpush1.msra.mxu0 0.0
        %2833 = vmatprep.subr.mxu0 0.0
        %2834 = vmatpush1.msra.mxu0 0.0
        %2835 = vmatprep.subr.mxu0 0.0
        %2836 = vmatpush1.msra.mxu0 0.0
        %2837 = vmatprep.subr.mxu0 0.0
        %2838 = vmatpush1.msra.mxu0 0.0
        %2839 = vmatprep.subr.mxu0 0.0
        %2840 = vmatpush1.msra.mxu0 0.0
        %2841 = vmatprep.subr.mxu0 0.0
        %2842 = vmatpush1.msra.mxu0 0.0
        %2843 = vmatprep.subr.mxu0 0.0
        %2844 = vmatpush1.msra.mxu0 0.0
        %2845 = vmatprep.subr.mxu0 0.0
        %2846 = vmatpush1.msra.mxu0 0.0
        %2847 = vmatprep.subr.mxu0 0.0
        %2848 = vmatpush1.msra.mxu0 0.0
        %2849 = vmatprep.subr.mxu0 0.0
        %2850 = vmatpush1.msra.mxu0 0.0
        %2851 = vmatprep.subr.mxu0 0.0
        %2852 = vmatpush1.msra.mxu0 0.0
        %2853 = vmatprep.mubr.f32.mxu0 0.0
        %2854 = vmatmul.mubr.f32.gmra.mrb[0].mxu0 %v2766
        %v2855 = vpop.f32.mrb[0].mxu0
        %v2856 = vadd.f32 %v2727, %v2855
        %v2857 = vpop.f32.mrb[0].mxu0
        %2858 = vmatprep.mubr.f32.mxu0 0.0
        %2859 = vmatmul.mubr.f32.gmra.mrb[0].mxu0 %v2769
        %v2860 = vpop.f32.mrb[0].mxu0
        %v2861 = vadd.f32 %v2732, %v2860
        %v2862 = vpop.f32.mrb[0].mxu0
        %2863 = vmatprep.mubr.f32.mxu0 0.0
        %2864 = vmatmul.mubr.f32.gmra.mrb[0].mxu0 %v2772
        %v2865 = vpop.f32.mrb[0].mxu0
        %v2866 = vadd.f32 %v2737, %v2865
        %v2867 = vpop.f32.mrb[0].mxu0
        %2868 = vmatprep.mubr.f32.mxu0 0.0
        %2869 = vmatmul.mubr.f32.gmra.mrb[0].mxu0 %v2775
        %v2870 = vpop.f32.mrb[0].mxu0
        %v2871 = vadd.f32 %v2742, %v2870
        %v2872 = vpop.f32.mrb[0].mxu0
        %2873 = vmatprep.mubr.f32.mxu0 0.0
        %2874 = vmatmul.mubr.f32.gmra.mrb[0].mxu0 %v2778
        %v2875 = vpop.f32.mrb[0].mxu0
        %v2876 = vadd.f32 %v2747, %v2875
        %v2877 = vpop.f32.mrb[0].mxu0
        %2878 = vmatprep.mubr.f32.mxu0 0.0
        %2879 = vmatmul.mubr.f32.gmra.mrb[0].mxu0 %v2781
        %v2880 = vpop.f32.mrb[0].mxu0
        %v2881 = vadd.f32 %v2752, %v2880
        %v2882 = vpop.f32.mrb[0].mxu0
        %2883 = vmatprep.mubr.f32.mxu0 0.0
        %2884 = vmatmul.mubr.f32.gmra.mrb[0].mxu0 %v2784
        %v2885 = vpop.f32.mrb[0].mxu0
        %v2886 = vadd.f32 %v2757, %v2885
        %v2887 = vpop.f32.mrb[0].mxu0
        %2888 = vmatprep.mubr.f32.mxu0 0.0
        %2889 = vmatmul.mubr.f32.gmra.mrb[0].mxu0 %v2787
        %v2890 = vpop.f32.mrb[0].mxu0
        %v2891 = vadd.f32 %v2762, %v2890
        %v2892 = vpop.f32.mrb[0].mxu0
        %2893 = vdwg.mxu0
        %v2894 = vld [vmem:[%s7 + $0x80] sm:$0xff]
        %v2895 = vld [vmem:[%s7 + $0x88] sm:$0xff]
        %v2896 = vld [vmem:[%s7 + $0x90] sm:$0xff]
        %v2897 = vld [vmem:[%s7 + $0x98] sm:$0xff]
        %v2898 = vld [vmem:[%s7 + $0xa0] sm:$0xff]
        %v2899 = vld [vmem:[%s7 + $0xa8] sm:$0xff]
        %v2900 = vld [vmem:[%s7 + $0xb0] sm:$0xff]
        %v2901 = vld [vmem:[%s7 + $0xb8] sm:$0xff]
        %v2903 = vsel %vm1705, %v2582, 0
        %v2906 = vsel %vm1705, %v2587, 0
        %v2909 = vsel %vm1705, %v2592, 0
        %v2912 = vsel %vm1705, %v2597, 0
        %v2915 = vsel %vm1705, %v2602, 0
        %v2918 = vsel %vm1705, %v2607, 0
        %v2921 = vsel %vm1705, %v2612, 0
        %v2924 = vsel %vm1705, %v2617, 0
        %2926 = vmatprep.subr.mxu0 0.0
        %2927 = vmatpush1.msra.mxu0 %v2894
        %2928 = vmatprep.subr.mxu0 0.0
        %2929 = vmatpush1.msra.mxu0 %v2895
        %2930 = vmatprep.subr.mxu0 0.0
        %2931 = vmatpush1.msra.mxu0 %v2896
        %2932 = vmatprep.subr.mxu0 0.0
        %2933 = vmatpush1.msra.mxu0 %v2897
        %2934 = vmatprep.subr.mxu0 0.0
        %2935 = vmatpush1.msra.mxu0 %v2898
        %2936 = vmatprep.subr.mxu0 0.0
        %2937 = vmatpush1.msra.mxu0 %v2899
        %2938 = vmatprep.subr.mxu0 0.0
        %2939 = vmatpush1.msra.mxu0 %v2900
        %2940 = vmatprep.subr.mxu0 0.0
        %2941 = vmatpush1.msra.mxu0 %v2901
        %2942 = vmatprep.subr.mxu0 0.0
        %2943 = vmatpush1.msra.mxu0 0.0
        %2944 = vmatprep.subr.mxu0 0.0
        %2945 = vmatpush1.msra.mxu0 0.0
        %2946 = vmatprep.subr.mxu0 0.0
        %2947 = vmatpush1.msra.mxu0 0.0
        %2948 = vmatprep.subr.mxu0 0.0
        %2949 = vmatpush1.msra.mxu0 0.0
        %2950 = vmatprep.subr.mxu0 0.0
        %2951 = vmatpush1.msra.mxu0 0.0
        %2952 = vmatprep.subr.mxu0 0.0
        %2953 = vmatpush1.msra.mxu0 0.0
        %2954 = vmatprep.subr.mxu0 0.0
        %2955 = vmatpush1.msra.mxu0 0.0
        %2956 = vmatprep.subr.mxu0 0.0
        %2957 = vmatpush1.msra.mxu0 0.0
        %2958 = vmatprep.subr.mxu0 0.0
        %2959 = vmatpush1.msra.mxu0 0.0
        %2960 = vmatprep.subr.mxu0 0.0
        %2961 = vmatpush1.msra.mxu0 0.0
        %2962 = vmatprep.subr.mxu0 0.0
        %2963 = vmatpush1.msra.mxu0 0.0
        %2964 = vmatprep.subr.mxu0 0.0
        %2965 = vmatpush1.msra.mxu0 0.0
        %2966 = vmatprep.subr.mxu0 0.0
        %2967 = vmatpush1.msra.mxu0 0.0
        %2968 = vmatprep.subr.mxu0 0.0
        %2969 = vmatpush1.msra.mxu0 0.0
        %2970 = vmatprep.subr.mxu0 0.0
        %2971 = vmatpush1.msra.mxu0 0.0
        %2972 = vmatprep.subr.mxu0 0.0
        %2973 = vmatpush1.msra.mxu0 0.0
        %2974 = vmatprep.subr.mxu0 0.0
        %2975 = vmatpush1.msra.mxu0 0.0
        %2976 = vmatprep.subr.mxu0 0.0
        %2977 = vmatpush1.msra.mxu0 0.0
        %2978 = vmatprep.subr.mxu0 0.0
        %2979 = vmatpush1.msra.mxu0 0.0
        %2980 = vmatprep.subr.mxu0 0.0
        %2981 = vmatpush1.msra.mxu0 0.0
        %2982 = vmatprep.subr.mxu0 0.0
        %2983 = vmatpush1.msra.mxu0 0.0
        %2984 = vmatprep.subr.mxu0 0.0
        %2985 = vmatpush1.msra.mxu0 0.0
        %2986 = vmatprep.subr.mxu0 0.0
        %2987 = vmatpush1.msra.mxu0 0.0
        %2988 = vmatprep.subr.mxu0 0.0
        %2989 = vmatpush1.msra.mxu0 0.0
        %2990 = vmatprep.mubr.f32.mxu0 0.0
        %2991 = vmatmul.mubr.f32.gmra.mrb[0].mxu0 %v2903
        %v2992 = vpop.f32.mrb[0].mxu0
        %v2993 = vadd.f32 0.0, %v2992
        %v2994 = vpop.f32.mrb[0].mxu0
        %2995 = vmatprep.mubr.f32.mxu0 0.0
        %2996 = vmatmul.mubr.f32.gmra.mrb[0].mxu0 %v2906
        %v2997 = vpop.f32.mrb[0].mxu0
        %v2998 = vadd.f32 0.0, %v2997
        %v2999 = vpop.f32.mrb[0].mxu0
        %3000 = vmatprep.mubr.f32.mxu0 0.0
        %3001 = vmatmul.mubr.f32.gmra.mrb[0].mxu0 %v2909
        %v3002 = vpop.f32.mrb[0].mxu0
        %v3003 = vadd.f32 0.0, %v3002
        %v3004 = vpop.f32.mrb[0].mxu0
        %3005 = vmatprep.mubr.f32.mxu0 0.0
        %3006 = vmatmul.mubr.f32.gmra.mrb[0].mxu0 %v2912
        %v3007 = vpop.f32.mrb[0].mxu0
        %v3008 = vadd.f32 0.0, %v3007
        %v3009 = vpop.f32.mrb[0].mxu0
        %3010 = vmatprep.mubr.f32.mxu0 0.0
        %3011 = vmatmul.mubr.f32.gmra.mrb[0].mxu0 %v2915
        %v3012 = vpop.f32.mrb[0].mxu0
        %v3013 = vadd.f32 0.0, %v3012
        %v3014 = vpop.f32.mrb[0].mxu0
        %3015 = vmatprep.mubr.f32.mxu0 0.0
        %3016 = vmatmul.mubr.f32.gmra.mrb[0].mxu0 %v2918
        %v3017 = vpop.f32.mrb[0].mxu0
        %v3018 = vadd.f32 0.0, %v3017
        %v3019 = vpop.f32.mrb[0].mxu0
        %3020 = vmatprep.mubr.f32.mxu0 0.0
        %3021 = vmatmul.mubr.f32.gmra.mrb[0].mxu0 %v2921
        %v3022 = vpop.f32.mrb[0].mxu0
        %v3023 = vadd.f32 0.0, %v3022
        %v3024 = vpop.f32.mrb[0].mxu0
        %3025 = vmatprep.mubr.f32.mxu0 0.0
        %3026 = vmatmul.mubr.f32.gmra.mrb[0].mxu0 %v2924
        %v3027 = vpop.f32.mrb[0].mxu0
        %v3028 = vadd.f32 0.0, %v3027
        %v3029 = vpop.f32.mrb[0].mxu0
        %3030 = vdwg.mxu0
        %v3031 = vadd.f32 %v2856, %v2993
        %v3032 = vadd.f32 %v2861, %v2998
        %v3033 = vadd.f32 %v2866, %v3003
        %v3034 = vadd.f32 %v2871, %v3008
        %v3035 = vadd.f32 %v2876, %v3013
        %v3036 = vadd.f32 %v2881, %v3018
        %v3037 = vadd.f32 %v2886, %v3023
        %v3038 = vadd.f32 %v2891, %v3028
        %v3040 = vlaneseq
        %v3041 = vshrl.u32 %v3040, 7
        %v3042 = vsub.s32 0, %v3041
        %v3043 = vrot.slane %v2408, %v3042
        %v3045 = vmul.f32 %v3031, %v3043
        %v3046 = vmul.f32 %v3032, %v3043
        %v3047 = vmul.f32 %v3033, %v3043
        %v3048 = vmul.f32 %v3034, %v3043
        %v3049 = vmul.f32 %v3035, %v3043
        %v3050 = vmul.f32 %v3036, %v3043
        %v3051 = vmul.f32 %v3037, %v3043
        %v3052 = vmul.f32 %v3038, %v3043
        %v3054 = vlaneseq
        %v3055 = vshrl.u32 %v3054, 7
        %v3056 = vsub.s32 0, %v3055
        %v3057 = vrot.slane %v2409, %v3056
        %v3059 = vadd.f32 %v3045, %v3057
        %v3060 = vadd.f32 %v3046, %v3057
        %v3061 = vadd.f32 %v3047, %v3057
        %v3062 = vadd.f32 %v3048, %v3057
        %v3063 = vadd.f32 %v3049, %v3057
        %v3064 = vadd.f32 %v3050, %v3057
        %v3065 = vadd.f32 %v3051, %v3057
        %v3066 = vadd.f32 %v3052, %v3057
        %v3067 = vmax.f32 %v3059, 0.0
        %v3068 = vmax.f32 %v3060, 0.0
        %v3069 = vmax.f32 %v3061, 0.0
        %v3070 = vmax.f32 %v3062, 0.0
        %v3071 = vmax.f32 %v3063, 0.0
        %v3072 = vmax.f32 %v3064, 0.0
        %v3073 = vmax.f32 %v3065, 0.0
        %v3074 = vmax.f32 %v3066, 0.0
        %v3076 = vsel %vm1705, %v1445, 0
        %v3079 = vsel %vm1705, %v1446, 0
        %v3082 = vsel %vm1705, %v1447, 0
        %v3085 = vsel %vm1705, %v1448, 0
        %3087 = vmatprep.subr.mxu0 0.0
        %3088 = vmatpush1.msra.mxu0 %v3067
        %3089 = vmatprep.subr.mxu0 0.0
        %3090 = vmatpush1.msra.mxu0 %v3068
        %3091 = vmatprep.subr.mxu0 0.0
        %3092 = vmatpush1.msra.mxu0 %v3069
        %3093 = vmatprep.subr.mxu0 0.0
        %3094 = vmatpush1.msra.mxu0 %v3070
        %3095 = vmatprep.subr.mxu0 0.0
        %3096 = vmatpush1.msra.mxu0 %v3071
        %3097 = vmatprep.subr.mxu0 0.0
        %3098 = vmatpush1.msra.mxu0 %v3072
        %3099 = vmatprep.subr.mxu0 0.0
        %3100 = vmatpush1.msra.mxu0 %v3073
        %3101 = vmatprep.subr.mxu0 0.0
        %3102 = vmatpush1.msra.mxu0 %v3074
        %3103 = vmatprep.subr.mxu0 0.0
        %3104 = vmatpush1.msra.mxu0 0.0
        %3105 = vmatprep.subr.mxu0 0.0
        %3106 = vmatpush1.msra.mxu0 0.0
        %3107 = vmatprep.subr.mxu0 0.0
        %3108 = vmatpush1.msra.mxu0 0.0
        %3109 = vmatprep.subr.mxu0 0.0
        %3110 = vmatpush1.msra.mxu0 0.0
        %3111 = vmatprep.subr.mxu0 0.0
        %3112 = vmatpush1.msra.mxu0 0.0
        %3113 = vmatprep.subr.mxu0 0.0
        %3114 = vmatpush1.msra.mxu0 0.0
        %3115 = vmatprep.subr.mxu0 0.0
        %3116 = vmatpush1.msra.mxu0 0.0
        %3117 = vmatprep.subr.mxu0 0.0
        %3118 = vmatpush1.msra.mxu0 0.0
        %3119 = vmatprep.subr.mxu0 0.0
        %3120 = vmatpush1.msra.mxu0 0.0
        %3121 = vmatprep.subr.mxu0 0.0
        %3122 = vmatpush1.msra.mxu0 0.0
        %3123 = vmatprep.subr.mxu0 0.0
        %3124 = vmatpush1.msra.mxu0 0.0
        %3125 = vmatprep.subr.mxu0 0.0
        %3126 = vmatpush1.msra.mxu0 0.0
        %3127 = vmatprep.subr.mxu0 0.0
        %3128 = vmatpush1.msra.mxu0 0.0
        %3129 = vmatprep.subr.mxu0 0.0
        %3130 = vmatpush1.msra.mxu0 0.0
        %3131 = vmatprep.subr.mxu0 0.0
        %3132 = vmatpush1.msra.mxu0 0.0
        %3133 = vmatprep.subr.mxu0 0.0
        %3134 = vmatpush1.msra.mxu0 0.0
        %3135 = vmatprep.subr.mxu0 0.0
        %3136 = vmatpush1.msra.mxu0 0.0
        %3137 = vmatprep.subr.mxu0 0.0
        %3138 = vmatpush1.msra.mxu0 0.0
        %3139 = vmatprep.subr.mxu0 0.0
        %3140 = vmatpush1.msra.mxu0 0.0
        %3141 = vmatprep.subr.mxu0 0.0
        %3142 = vmatpush1.msra.mxu0 0.0
        %3143 = vmatprep.subr.mxu0 0.0
        %3144 = vmatpush1.msra.mxu0 0.0
        %3145 = vmatprep.subr.mxu0 0.0
        %3146 = vmatpush1.msra.mxu0 0.0
        %3147 = vmatprep.subr.mxu0 0.0
        %3148 = vmatpush1.msra.mxu0 0.0
        %3149 = vmatprep.subr.mxu0 0.0
        %3150 = vmatpush1.msra.mxu0 0.0
        %3151 = vmatprep.mubr.f32.mxu0 0.0
        %3152 = vmatmul.mubr.f32.gmra.mrb[0].mxu0 %v3076
        %v3153 = vpop.f32.mrb[0].mxu0
        %v3154 = vadd.f32 0.0, %v3153
        %v3155 = vpop.f32.mrb[0].mxu0
        %3156 = vmatprep.mubr.f32.mxu0 0.0
        %3157 = vmatmul.mubr.f32.gmra.mrb[0].mxu0 %v3079
        %v3158 = vpop.f32.mrb[0].mxu0
        %v3159 = vadd.f32 0.0, %v3158
        %v3160 = vpop.f32.mrb[0].mxu0
        %3161 = vmatprep.mubr.f32.mxu0 0.0
        %3162 = vmatmul.mubr.f32.gmra.mrb[0].mxu0 %v3082
        %v3163 = vpop.f32.mrb[0].mxu0
        %v3164 = vadd.f32 0.0, %v3163
        %v3165 = vpop.f32.mrb[0].mxu0
        %3166 = vmatprep.mubr.f32.mxu0 0.0
        %3167 = vmatmul.mubr.f32.gmra.mrb[0].mxu0 %v3085
        %v3168 = vpop.f32.mrb[0].mxu0
        %v3169 = vadd.f32 0.0, %v3168
        %v3170 = vpop.f32.mrb[0].mxu0
        %3171 = vdwg.mxu0
        %v3173 = vsel %vm1705, %v1477, 0
        %v3176 = vsel %vm1705, %v1478, 0
        %v3179 = vsel %vm1705, %v1479, 0
        %v3182 = vsel %vm1705, %v1480, 0
        %3184 = vmatprep.subr.mxu0 0.0
        %3185 = vmatpush1.msra.mxu0 %v3067
        %3186 = vmatprep.subr.mxu0 0.0
        %3187 = vmatpush1.msra.mxu0 %v3068
        %3188 = vmatprep.subr.mxu0 0.0
        %3189 = vmatpush1.msra.mxu0 %v3069
        %3190 = vmatprep.subr.mxu0 0.0
        %3191 = vmatpush1.msra.mxu0 %v3070
        %3192 = vmatprep.subr.mxu0 0.0
        %3193 = vmatpush1.msra.mxu0 %v3071
        %3194 = vmatprep.subr.mxu0 0.0
        %3195 = vmatpush1.msra.mxu0 %v3072
        %3196 = vmatprep.subr.mxu0 0.0
        %3197 = vmatpush1.msra.mxu0 %v3073
        %3198 = vmatprep.subr.mxu0 0.0
        %3199 = vmatpush1.msra.mxu0 %v3074
        %3200 = vmatprep.subr.mxu0 0.0
        %3201 = vmatpush1.msra.mxu0 0.0
        %3202 = vmatprep.subr.mxu0 0.0
        %3203 = vmatpush1.msra.mxu0 0.0
        %3204 = vmatprep.subr.mxu0 0.0
        %3205 = vmatpush1.msra.mxu0 0.0
        %3206 = vmatprep.subr.mxu0 0.0
        %3207 = vmatpush1.msra.mxu0 0.0
        %3208 = vmatprep.subr.mxu0 0.0
        %3209 = vmatpush1.msra.mxu0 0.0
        %3210 = vmatprep.subr.mxu0 0.0
        %3211 = vmatpush1.msra.mxu0 0.0
        %3212 = vmatprep.subr.mxu0 0.0
        %3213 = vmatpush1.msra.mxu0 0.0
        %3214 = vmatprep.subr.mxu0 0.0
        %3215 = vmatpush1.msra.mxu0 0.0
        %3216 = vmatprep.subr.mxu0 0.0
        %3217 = vmatpush1.msra.mxu0 0.0
        %3218 = vmatprep.subr.mxu0 0.0
        %3219 = vmatpush1.msra.mxu0 0.0
        %3220 = vmatprep.subr.mxu0 0.0
        %3221 = vmatpush1.msra.mxu0 0.0
        %3222 = vmatprep.subr.mxu0 0.0
        %3223 = vmatpush1.msra.mxu0 0.0
        %3224 = vmatprep.subr.mxu0 0.0
        %3225 = vmatpush1.msra.mxu0 0.0
        %3226 = vmatprep.subr.mxu0 0.0
        %3227 = vmatpush1.msra.mxu0 0.0
        %3228 = vmatprep.subr.mxu0 0.0
        %3229 = vmatpush1.msra.mxu0 0.0
        %3230 = vmatprep.subr.mxu0 0.0
        %3231 = vmatpush1.msra.mxu0 0.0
        %3232 = vmatprep.subr.mxu0 0.0
        %3233 = vmatpush1.msra.mxu0 0.0
        %3234 = vmatprep.subr.mxu0 0.0
        %3235 = vmatpush1.msra.mxu0 0.0
        %3236 = vmatprep.subr.mxu0 0.0
        %3237 = vmatpush1.msra.mxu0 0.0
        %3238 = vmatprep.subr.mxu0 0.0
        %3239 = vmatpush1.msra.mxu0 0.0
        %3240 = vmatprep.subr.mxu0 0.0
        %3241 = vmatpush1.msra.mxu0 0.0
        %3242 = vmatprep.subr.mxu0 0.0
        %3243 = vmatpush1.msra.mxu0 0.0
        %3244 = vmatprep.subr.mxu0 0.0
        %3245 = vmatpush1.msra.mxu0 0.0
        %3246 = vmatprep.subr.mxu0 0.0
        %3247 = vmatpush1.msra.mxu0 0.0
        %3248 = vmatprep.mubr.f32.mxu0 0.0
        %3249 = vmatmul.mubr.f32.gmra.mrb[0].mxu0 %v3173
        %v3250 = vpop.f32.mrb[0].mxu0
        %v3251 = vadd.f32 0.0, %v3250
        %v3252 = vpop.f32.mrb[0].mxu0
        %3253 = vmatprep.mubr.f32.mxu0 0.0
        %3254 = vmatmul.mubr.f32.gmra.mrb[0].mxu0 %v3176
        %v3255 = vpop.f32.mrb[0].mxu0
        %v3256 = vadd.f32 0.0, %v3255
        %v3257 = vpop.f32.mrb[0].mxu0
        %3258 = vmatprep.mubr.f32.mxu0 0.0
        %3259 = vmatmul.mubr.f32.gmra.mrb[0].mxu0 %v3179
        %v3260 = vpop.f32.mrb[0].mxu0
        %v3261 = vadd.f32 0.0, %v3260
        %v3262 = vpop.f32.mrb[0].mxu0
        %3263 = vmatprep.mubr.f32.mxu0 0.0
        %3264 = vmatmul.mubr.f32.gmra.mrb[0].mxu0 %v3182
        %v3265 = vpop.f32.mrb[0].mxu0
        %v3266 = vadd.f32 0.0, %v3265
        %v3267 = vpop.f32.mrb[0].mxu0
        %3268 = vdwg.mxu0
        %v3269 = vmax.f32 %v3154, %v3251
        %v3270 = vmax.f32 %v3159, %v3256
        %v3271 = vmax.f32 %v3164, %v3261
        %v3272 = vmax.f32 %v3169, %v3266
        %v3273 = vld [vmem:[%s11] sm:$0x1]
        %v3274 = vld [vmem:[%s12] sm:$0x1]
        %v3275 = vsel %vm1972, %v656, 0
        %v3277 = vsel %vm1972, %v657, 0
        %v3279 = vsel %vm1972, %v658, 0
        %v3281 = vsel %vm1972, %v659, 0
        %3283 = vmatprep.subr.mxu0 0.0
        %3284 = vmatpush1.msra.mxu0 %v3269
        %3285 = vmatprep.subr.mxu0 0.0
        %3286 = vmatpush1.msra.mxu0 %v3270
        %3287 = vmatprep.subr.mxu0 0.0
        %3288 = vmatpush1.msra.mxu0 %v3271
        %3289 = vmatprep.subr.mxu0 0.0
        %3290 = vmatpush1.msra.mxu0 %v3272
        %3291 = vmatprep.subr.mxu0 0.0
        %3292 = vmatpush1.msra.mxu0 0.0
        %3293 = vmatprep.subr.mxu0 0.0
        %3294 = vmatpush1.msra.mxu0 0.0
        %3295 = vmatprep.subr.mxu0 0.0
        %3296 = vmatpush1.msra.mxu0 0.0
        %3297 = vmatprep.subr.mxu0 0.0
        %3298 = vmatpush1.msra.mxu0 0.0
        %3299 = vmatprep.subr.mxu0 0.0
        %3300 = vmatpush1.msra.mxu0 0.0
        %3301 = vmatprep.subr.mxu0 0.0
        %3302 = vmatpush1.msra.mxu0 0.0
        %3303 = vmatprep.subr.mxu0 0.0
        %3304 = vmatpush1.msra.mxu0 0.0
        %3305 = vmatprep.subr.mxu0 0.0
        %3306 = vmatpush1.msra.mxu0 0.0
        %3307 = vmatprep.subr.mxu0 0.0
        %3308 = vmatpush1.msra.mxu0 0.0
        %3309 = vmatprep.subr.mxu0 0.0
        %3310 = vmatpush1.msra.mxu0 0.0
        %3311 = vmatprep.subr.mxu0 0.0
        %3312 = vmatpush1.msra.mxu0 0.0
        %3313 = vmatprep.subr.mxu0 0.0
        %3314 = vmatpush1.msra.mxu0 0.0
        %3315 = vmatprep.subr.mxu0 0.0
        %3316 = vmatpush1.msra.mxu0 0.0
        %3317 = vmatprep.subr.mxu0 0.0
        %3318 = vmatpush1.msra.mxu0 0.0
        %3319 = vmatprep.subr.mxu0 0.0
        %3320 = vmatpush1.msra.mxu0 0.0
        %3321 = vmatprep.subr.mxu0 0.0
        %3322 = vmatpush1.msra.mxu0 0.0
        %3323 = vmatprep.subr.mxu0 0.0
        %3324 = vmatpush1.msra.mxu0 0.0
        %3325 = vmatprep.subr.mxu0 0.0
        %3326 = vmatpush1.msra.mxu0 0.0
        %3327 = vmatprep.subr.mxu0 0.0
        %3328 = vmatpush1.msra.mxu0 0.0
        %3329 = vmatprep.subr.mxu0 0.0
        %3330 = vmatpush1.msra.mxu0 0.0
        %3331 = vmatprep.subr.mxu0 0.0
        %3332 = vmatpush1.msra.mxu0 0.0
        %3333 = vmatprep.subr.mxu0 0.0
        %3334 = vmatpush1.msra.mxu0 0.0
        %3335 = vmatprep.subr.mxu0 0.0
        %3336 = vmatpush1.msra.mxu0 0.0
        %3337 = vmatprep.subr.mxu0 0.0
        %3338 = vmatpush1.msra.mxu0 0.0
        %3339 = vmatprep.subr.mxu0 0.0
        %3340 = vmatpush1.msra.mxu0 0.0
        %3341 = vmatprep.subr.mxu0 0.0
        %3342 = vmatpush1.msra.mxu0 0.0
        %3343 = vmatprep.subr.mxu0 0.0
        %3344 = vmatpush1.msra.mxu0 0.0
        %3345 = vmatprep.subr.mxu0 0.0
        %3346 = vmatpush1.msra.mxu0 0.0
        %3347 = vmatprep.mubr.f32.mxu0 0.0
        %3348 = vmatmul.mubr.f32.gmra.mrb[0].mxu0 %v3275
        %v3349 = vpop.f32.mrb[0].mxu0
        %v3350 = vadd.f32 0.0, %v3349
        %v3351 = vpop.f32.mrb[0].mxu0
        %3352 = vmatprep.mubr.f32.mxu0 0.0
        %3353 = vmatmul.mubr.f32.gmra.mrb[0].mxu0 %v3277
        %v3354 = vpop.f32.mrb[0].mxu0
        %v3355 = vadd.f32 0.0, %v3354
        %v3356 = vpop.f32.mrb[0].mxu0
        %3357 = vmatprep.mubr.f32.mxu0 0.0
        %3358 = vmatmul.mubr.f32.gmra.mrb[0].mxu0 %v3279
        %v3359 = vpop.f32.mrb[0].mxu0
        %v3360 = vadd.f32 0.0, %v3359
        %v3361 = vpop.f32.mrb[0].mxu0
        %3362 = vmatprep.mubr.f32.mxu0 0.0
        %3363 = vmatmul.mubr.f32.gmra.mrb[0].mxu0 %v3281
        %v3364 = vpop.f32.mrb[0].mxu0
        %v3365 = vadd.f32 0.0, %v3364
        %v3366 = vpop.f32.mrb[0].mxu0
        %3367 = vdwg.mxu0
        %v3368 = vsel %vm1972, %v720, 0
        %v3370 = vsel %vm1972, %v721, 0
        %v3372 = vsel %vm1972, %v722, 0
        %v3374 = vsel %vm1972, %v723, 0
        %3376 = vmatprep.subr.mxu0 0.0
        %3377 = vmatpush1.msra.mxu0 %v3269
        %3378 = vmatprep.subr.mxu0 0.0
        %3379 = vmatpush1.msra.mxu0 %v3270
        %3380 = vmatprep.subr.mxu0 0.0
        %3381 = vmatpush1.msra.mxu0 %v3271
        %3382 = vmatprep.subr.mxu0 0.0
        %3383 = vmatpush1.msra.mxu0 %v3272
        %3384 = vmatprep.subr.mxu0 0.0
        %3385 = vmatpush1.msra.mxu0 0.0
        %3386 = vmatprep.subr.mxu0 0.0
        %3387 = vmatpush1.msra.mxu0 0.0
        %3388 = vmatprep.subr.mxu0 0.0
        %3389 = vmatpush1.msra.mxu0 0.0
        %3390 = vmatprep.subr.mxu0 0.0
        %3391 = vmatpush1.msra.mxu0 0.0
        %3392 = vmatprep.subr.mxu0 0.0
        %3393 = vmatpush1.msra.mxu0 0.0
        %3394 = vmatprep.subr.mxu0 0.0
        %3395 = vmatpush1.msra.mxu0 0.0
        %3396 = vmatprep.subr.mxu0 0.0
        %3397 = vmatpush1.msra.mxu0 0.0
        %3398 = vmatprep.subr.mxu0 0.0
        %3399 = vmatpush1.msra.mxu0 0.0
        %3400 = vmatprep.subr.mxu0 0.0
        %3401 = vmatpush1.msra.mxu0 0.0
        %3402 = vmatprep.subr.mxu0 0.0
        %3403 = vmatpush1.msra.mxu0 0.0
        %3404 = vmatprep.subr.mxu0 0.0
        %3405 = vmatpush1.msra.mxu0 0.0
        %3406 = vmatprep.subr.mxu0 0.0
        %3407 = vmatpush1.msra.mxu0 0.0
        %3408 = vmatprep.subr.mxu0 0.0
        %3409 = vmatpush1.msra.mxu0 0.0
        %3410 = vmatprep.subr.mxu0 0.0
        %3411 = vmatpush1.msra.mxu0 0.0
        %3412 = vmatprep.subr.mxu0 0.0
        %3413 = vmatpush1.msra.mxu0 0.0
        %3414 = vmatprep.subr.mxu0 0.0
        %3415 = vmatpush1.msra.mxu0 0.0
        %3416 = vmatprep.subr.mxu0 0.0
        %3417 = vmatpush1.msra.mxu0 0.0
        %3418 = vmatprep.subr.mxu0 0.0
        %3419 = vmatpush1.msra.mxu0 0.0
        %3420 = vmatprep.subr.mxu0 0.0
        %3421 = vmatpush1.msra.mxu0 0.0
        %3422 = vmatprep.subr.mxu0 0.0
        %3423 = vmatpush1.msra.mxu0 0.0
        %3424 = vmatprep.subr.mxu0 0.0
        %3425 = vmatpush1.msra.mxu0 0.0
        %3426 = vmatprep.subr.mxu0 0.0
        %3427 = vmatpush1.msra.mxu0 0.0
        %3428 = vmatprep.subr.mxu0 0.0
        %3429 = vmatpush1.msra.mxu0 0.0
        %3430 = vmatprep.subr.mxu0 0.0
        %3431 = vmatpush1.msra.mxu0 0.0
        %3432 = vmatprep.subr.mxu0 0.0
        %3433 = vmatpush1.msra.mxu0 0.0
        %3434 = vmatprep.subr.mxu0 0.0
        %3435 = vmatpush1.msra.mxu0 0.0
        %3436 = vmatprep.subr.mxu0 0.0
        %3437 = vmatpush1.msra.mxu0 0.0
        %3438 = vmatprep.subr.mxu0 0.0
        %3439 = vmatpush1.msra.mxu0 0.0
        %3440 = vmatprep.mubr.f32.mxu0 0.0
        %3441 = vmatmul.mubr.f32.gmra.mrb[0].mxu0 %v3368
        %v3442 = vpop.f32.mrb[0].mxu0
        %v3443 = vadd.f32 0.0, %v3442
        %v3444 = vpop.f32.mrb[0].mxu0
        %3445 = vmatprep.mubr.f32.mxu0 0.0
        %3446 = vmatmul.mubr.f32.gmra.mrb[0].mxu0 %v3370
        %v3447 = vpop.f32.mrb[0].mxu0
        %v3448 = vadd.f32 0.0, %v3447
        %v3449 = vpop.f32.mrb[0].mxu0
        %3450 = vmatprep.mubr.f32.mxu0 0.0
        %3451 = vmatmul.mubr.f32.gmra.mrb[0].mxu0 %v3372
        %v3452 = vpop.f32.mrb[0].mxu0
        %v3453 = vadd.f32 0.0, %v3452
        %v3454 = vpop.f32.mrb[0].mxu0
        %3455 = vmatprep.mubr.f32.mxu0 0.0
        %3456 = vmatmul.mubr.f32.gmra.mrb[0].mxu0 %v3374
        %v3457 = vpop.f32.mrb[0].mxu0
        %v3458 = vadd.f32 0.0, %v3457
        %v3459 = vpop.f32.mrb[0].mxu0
        %3460 = vdwg.mxu0
        %v3461 = vld [vmem:[%s10] sm:$0xff]
        %v3462 = vld [vmem:[%s10 + $0x8] sm:$0xff]
        %v3463 = vld [vmem:[%s10 + $0x10] sm:$0xff]
        %v3464 = vld [vmem:[%s10 + $0x18] sm:$0xff]
        %v3465 = vld [vmem:[%s10 + $0x20] sm:$0xff]
        %v3466 = vld [vmem:[%s10 + $0x28] sm:$0xff]
        %v3467 = vld [vmem:[%s10 + $0x30] sm:$0xff]
        %v3468 = vld [vmem:[%s10 + $0x38] sm:$0xff]
        %v3469 = vld [vmem:[%s10 + $0x40] sm:$0xff]
        %v3470 = vld [vmem:[%s10 + $0x48] sm:$0xff]
        %v3471 = vld [vmem:[%s10 + $0x50] sm:$0xff]
        %v3472 = vld [vmem:[%s10 + $0x58] sm:$0xff]
        %v3473 = vld [vmem:[%s10 + $0x60] sm:$0xff]
        %v3474 = vld [vmem:[%s10 + $0x68] sm:$0xff]
        %v3475 = vld [vmem:[%s10 + $0x70] sm:$0xff]
        %v3476 = vld [vmem:[%s10 + $0x78] sm:$0xff]
        %v3478 = vsel %vm1705, %v3269, 0
        %v3481 = vsel %vm1705, %v3270, 0
        %v3484 = vsel %vm1705, %v3271, 0
        %v3487 = vsel %vm1705, %v3272, 0
        %3489 = vmatprep.subr.mxu0 0.0
        %3490 = vmatpush1.msra.mxu0 %v3469
        %3491 = vmatprep.subr.mxu0 0.0
        %3492 = vmatpush1.msra.mxu0 %v3470
        %3493 = vmatprep.subr.mxu0 0.0
        %3494 = vmatpush1.msra.mxu0 %v3471
        %3495 = vmatprep.subr.mxu0 0.0
        %3496 = vmatpush1.msra.mxu0 %v3472
        %3497 = vmatprep.subr.mxu0 0.0
        %3498 = vmatpush1.msra.mxu0 %v3473
        %3499 = vmatprep.subr.mxu0 0.0
        %3500 = vmatpush1.msra.mxu0 %v3474
        %3501 = vmatprep.subr.mxu0 0.0
        %3502 = vmatpush1.msra.mxu0 %v3475
        %3503 = vmatprep.subr.mxu0 0.0
        %3504 = vmatpush1.msra.mxu0 %v3476
        %3505 = vmatprep.subr.mxu0 0.0
        %3506 = vmatpush1.msra.mxu0 0.0
        %3507 = vmatprep.subr.mxu0 0.0
        %3508 = vmatpush1.msra.mxu0 0.0
        %3509 = vmatprep.subr.mxu0 0.0
        %3510 = vmatpush1.msra.mxu0 0.0
        %3511 = vmatprep.subr.mxu0 0.0
        %3512 = vmatpush1.msra.mxu0 0.0
        %3513 = vmatprep.subr.mxu0 0.0
        %3514 = vmatpush1.msra.mxu0 0.0
        %3515 = vmatprep.subr.mxu0 0.0
        %3516 = vmatpush1.msra.mxu0 0.0
        %3517 = vmatprep.subr.mxu0 0.0
        %3518 = vmatpush1.msra.mxu0 0.0
        %3519 = vmatprep.subr.mxu0 0.0
        %3520 = vmatpush1.msra.mxu0 0.0
        %3521 = vmatprep.subr.mxu0 0.0
        %3522 = vmatpush1.msra.mxu0 0.0
        %3523 = vmatprep.subr.mxu0 0.0
        %3524 = vmatpush1.msra.mxu0 0.0
        %3525 = vmatprep.subr.mxu0 0.0
        %3526 = vmatpush1.msra.mxu0 0.0
        %3527 = vmatprep.subr.mxu0 0.0
        %3528 = vmatpush1.msra.mxu0 0.0
        %3529 = vmatprep.subr.mxu0 0.0
        %3530 = vmatpush1.msra.mxu0 0.0
        %3531 = vmatprep.subr.mxu0 0.0
        %3532 = vmatpush1.msra.mxu0 0.0
        %3533 = vmatprep.subr.mxu0 0.0
        %3534 = vmatpush1.msra.mxu0 0.0
        %3535 = vmatprep.subr.mxu0 0.0
        %3536 = vmatpush1.msra.mxu0 0.0
        %3537 = vmatprep.subr.mxu0 0.0
        %3538 = vmatpush1.msra.mxu0 0.0
        %3539 = vmatprep.subr.mxu0 0.0
        %3540 = vmatpush1.msra.mxu0 0.0
        %3541 = vmatprep.subr.mxu0 0.0
        %3542 = vmatpush1.msra.mxu0 0.0
        %3543 = vmatprep.subr.mxu0 0.0
        %3544 = vmatpush1.msra.mxu0 0.0
        %3545 = vmatprep.subr.mxu0 0.0
        %3546 = vmatpush1.msra.mxu0 0.0
        %3547 = vmatprep.subr.mxu0 0.0
        %3548 = vmatpush1.msra.mxu0 0.0
        %3549 = vmatprep.subr.mxu0 0.0
        %3550 = vmatpush1.msra.mxu0 0.0
        %3551 = vmatprep.subr.mxu0 0.0
        %3552 = vmatpush1.msra.mxu0 0.0
        %3553 = vmatprep.mubr.f32.mxu0 0.0
        %3554 = vmatmul.mubr.f32.gmra.mrb[0].mxu0 %v3478
        %v3555 = vpop.f32.mrb[0].mxu0
        %v3556 = vadd.f32 0.0, %v3555
        %v3557 = vpop.f32.mrb[0].mxu0
        %3558 = vmatprep.mubr.f32.mxu0 0.0
        %3559 = vmatmul.mubr.f32.gmra.mrb[0].mxu0 %v3481
        %v3560 = vpop.f32.mrb[0].mxu0
        %v3561 = vadd.f32 0.0, %v3560
        %v3562 = vpop.f32.mrb[0].mxu0
        %3563 = vmatprep.mubr.f32.mxu0 0.0
        %3564 = vmatmul.mubr.f32.gmra.mrb[0].mxu0 %v3484
        %v3565 = vpop.f32.mrb[0].mxu0
        %v3566 = vadd.f32 0.0, %v3565
        %v3567 = vpop.f32.mrb[0].mxu0
        %3568 = vmatprep.mubr.f32.mxu0 0.0
        %3569 = vmatmul.mubr.f32.gmra.mrb[0].mxu0 %v3487
        %v3570 = vpop.f32.mrb[0].mxu0
        %v3571 = vadd.f32 0.0, %v3570
        %v3572 = vpop.f32.mrb[0].mxu0
        %3573 = vdwg.mxu0
        %v3575 = vsel %vm1705, %v3350, 0
        %v3578 = vsel %vm1705, %v3355, 0
        %v3581 = vsel %vm1705, %v3360, 0
        %v3584 = vsel %vm1705, %v3365, 0
        %3586 = vmatprep.subr.mxu0 0.0
        %3587 = vmatpush1.msra.mxu0 %v3461
        %3588 = vmatprep.subr.mxu0 0.0
        %3589 = vmatpush1.msra.mxu0 %v3462
        %3590 = vmatprep.subr.mxu0 0.0
        %3591 = vmatpush1.msra.mxu0 %v3463
        %3592 = vmatprep.subr.mxu0 0.0
        %3593 = vmatpush1.msra.mxu0 %v3464
        %3594 = vmatprep.subr.mxu0 0.0
        %3595 = vmatpush1.msra.mxu0 %v3465
        %3596 = vmatprep.subr.mxu0 0.0
        %3597 = vmatpush1.msra.mxu0 %v3466
        %3598 = vmatprep.subr.mxu0 0.0
        %3599 = vmatpush1.msra.mxu0 %v3467
        %3600 = vmatprep.subr.mxu0 0.0
        %3601 = vmatpush1.msra.mxu0 %v3468
        %3602 = vmatprep.subr.mxu0 0.0
        %3603 = vmatpush1.msra.mxu0 0.0
        %3604 = vmatprep.subr.mxu0 0.0
        %3605 = vmatpush1.msra.mxu0 0.0
        %3606 = vmatprep.subr.mxu0 0.0
        %3607 = vmatpush1.msra.mxu0 0.0
        %3608 = vmatprep.subr.mxu0 0.0
        %3609 = vmatpush1.msra.mxu0 0.0
        %3610 = vmatprep.subr.mxu0 0.0
        %3611 = vmatpush1.msra.mxu0 0.0
        %3612 = vmatprep.subr.mxu0 0.0
        %3613 = vmatpush1.msra.mxu0 0.0
        %3614 = vmatprep.subr.mxu0 0.0
        %3615 = vmatpush1.msra.mxu0 0.0
        %3616 = vmatprep.subr.mxu0 0.0
        %3617 = vmatpush1.msra.mxu0 0.0
        %3618 = vmatprep.subr.mxu0 0.0
        %3619 = vmatpush1.msra.mxu0 0.0
        %3620 = vmatprep.subr.mxu0 0.0
        %3621 = vmatpush1.msra.mxu0 0.0
        %3622 = vmatprep.subr.mxu0 0.0
        %3623 = vmatpush1.msra.mxu0 0.0
        %3624 = vmatprep.subr.mxu0 0.0
        %3625 = vmatpush1.msra.mxu0 0.0
        %3626 = vmatprep.subr.mxu0 0.0
        %3627 = vmatpush1.msra.mxu0 0.0
        %3628 = vmatprep.subr.mxu0 0.0
        %3629 = vmatpush1.msra.mxu0 0.0
        %3630 = vmatprep.subr.mxu0 0.0
        %3631 = vmatpush1.msra.mxu0 0.0
        %3632 = vmatprep.subr.mxu0 0.0
        %3633 = vmatpush1.msra.mxu0 0.0
        %3634 = vmatprep.subr.mxu0 0.0
        %3635 = vmatpush1.msra.mxu0 0.0
        %3636 = vmatprep.subr.mxu0 0.0
        %3637 = vmatpush1.msra.mxu0 0.0
        %3638 = vmatprep.subr.mxu0 0.0
        %3639 = vmatpush1.msra.mxu0 0.0
        %3640 = vmatprep.subr.mxu0 0.0
        %3641 = vmatpush1.msra.mxu0 0.0
        %3642 = vmatprep.subr.mxu0 0.0
        %3643 = vmatpush1.msra.mxu0 0.0
        %3644 = vmatprep.subr.mxu0 0.0
        %3645 = vmatpush1.msra.mxu0 0.0
        %3646 = vmatprep.subr.mxu0 0.0
        %3647 = vmatpush1.msra.mxu0 0.0
        %3648 = vmatprep.subr.mxu0 0.0
        %3649 = vmatpush1.msra.mxu0 0.0
        %3650 = vmatprep.mubr.f32.mxu0 0.0
        %3651 = vmatmul.mubr.f32.gmra.mrb[0].mxu0 %v3575
        %v3652 = vpop.f32.mrb[0].mxu0
        %v3653 = vadd.f32 %v3556, %v3652
        %v3654 = vpop.f32.mrb[0].mxu0
        %3655 = vmatprep.mubr.f32.mxu0 0.0
        %3656 = vmatmul.mubr.f32.gmra.mrb[0].mxu0 %v3578
        %v3657 = vpop.f32.mrb[0].mxu0
        %v3658 = vadd.f32 %v3561, %v3657
        %v3659 = vpop.f32.mrb[0].mxu0
        %3660 = vmatprep.mubr.f32.mxu0 0.0
        %3661 = vmatmul.mubr.f32.gmra.mrb[0].mxu0 %v3581
        %v3662 = vpop.f32.mrb[0].mxu0
        %v3663 = vadd.f32 %v3566, %v3662
        %v3664 = vpop.f32.mrb[0].mxu0
        %3665 = vmatprep.mubr.f32.mxu0 0.0
        %3666 = vmatmul.mubr.f32.gmra.mrb[0].mxu0 %v3584
        %v3667 = vpop.f32.mrb[0].mxu0
        %v3668 = vadd.f32 %v3571, %v3667
        %v3669 = vpop.f32.mrb[0].mxu0
        %3670 = vdwg.mxu0
        %v3671 = vld [vmem:[%s10 + $0x80] sm:$0xff]
        %v3672 = vld [vmem:[%s10 + $0x88] sm:$0xff]
        %v3673 = vld [vmem:[%s10 + $0x90] sm:$0xff]
        %v3674 = vld [vmem:[%s10 + $0x98] sm:$0xff]
        %v3675 = vld [vmem:[%s10 + $0xa0] sm:$0xff]
        %v3676 = vld [vmem:[%s10 + $0xa8] sm:$0xff]
        %v3677 = vld [vmem:[%s10 + $0xb0] sm:$0xff]
        %v3678 = vld [vmem:[%s10 + $0xb8] sm:$0xff]
        %v3680 = vsel %vm1705, %v3443, 0
        %v3683 = vsel %vm1705, %v3448, 0
        %v3686 = vsel %vm1705, %v3453, 0
        %v3689 = vsel %vm1705, %v3458, 0
        %3691 = vmatprep.subr.mxu0 0.0
        %3692 = vmatpush1.msra.mxu0 %v3671
        %3693 = vmatprep.subr.mxu0 0.0
        %3694 = vmatpush1.msra.mxu0 %v3672
        %3695 = vmatprep.subr.mxu0 0.0
        %3696 = vmatpush1.msra.mxu0 %v3673
        %3697 = vmatprep.subr.mxu0 0.0
        %3698 = vmatpush1.msra.mxu0 %v3674
        %3699 = vmatprep.subr.mxu0 0.0
        %3700 = vmatpush1.msra.mxu0 %v3675
        %3701 = vmatprep.subr.mxu0 0.0
        %3702 = vmatpush1.msra.mxu0 %v3676
        %3703 = vmatprep.subr.mxu0 0.0
        %3704 = vmatpush1.msra.mxu0 %v3677
        %3705 = vmatprep.subr.mxu0 0.0
        %3706 = vmatpush1.msra.mxu0 %v3678
        %3707 = vmatprep.subr.mxu0 0.0
        %3708 = vmatpush1.msra.mxu0 0.0
        %3709 = vmatprep.subr.mxu0 0.0
        %3710 = vmatpush1.msra.mxu0 0.0
        %3711 = vmatprep.subr.mxu0 0.0
        %3712 = vmatpush1.msra.mxu0 0.0
        %3713 = vmatprep.subr.mxu0 0.0
        %3714 = vmatpush1.msra.mxu0 0.0
        %3715 = vmatprep.subr.mxu0 0.0
        %3716 = vmatpush1.msra.mxu0 0.0
        %3717 = vmatprep.subr.mxu0 0.0
        %3718 = vmatpush1.msra.mxu0 0.0
        %3719 = vmatprep.subr.mxu0 0.0
        %3720 = vmatpush1.msra.mxu0 0.0
        %3721 = vmatprep.subr.mxu0 0.0
        %3722 = vmatpush1.msra.mxu0 0.0
        %3723 = vmatprep.subr.mxu0 0.0
        %3724 = vmatpush1.msra.mxu0 0.0
        %3725 = vmatprep.subr.mxu0 0.0
        %3726 = vmatpush1.msra.mxu0 0.0
        %3727 = vmatprep.subr.mxu0 0.0
        %3728 = vmatpush1.msra.mxu0 0.0
        %3729 = vmatprep.subr.mxu0 0.0
        %3730 = vmatpush1.msra.mxu0 0.0
        %3731 = vmatprep.subr.mxu0 0.0
        %3732 = vmatpush1.msra.mxu0 0.0
        %3733 = vmatprep.subr.mxu0 0.0
        %3734 = vmatpush1.msra.mxu0 0.0
        %3735 = vmatprep.subr.mxu0 0.0
        %3736 = vmatpush1.msra.mxu0 0.0
        %3737 = vmatprep.subr.mxu0 0.0
        %3738 = vmatpush1.msra.mxu0 0.0
        %3739 = vmatprep.subr.mxu0 0.0
        %3740 = vmatpush1.msra.mxu0 0.0
        %3741 = vmatprep.subr.mxu0 0.0
        %3742 = vmatpush1.msra.mxu0 0.0
        %3743 = vmatprep.subr.mxu0 0.0
        %3744 = vmatpush1.msra.mxu0 0.0
        %3745 = vmatprep.subr.mxu0 0.0
        %3746 = vmatpush1.msra.mxu0 0.0
        %3747 = vmatprep.subr.mxu0 0.0
        %3748 = vmatpush1.msra.mxu0 0.0
        %3749 = vmatprep.subr.mxu0 0.0
        %3750 = vmatpush1.msra.mxu0 0.0
        %3751 = vmatprep.subr.mxu0 0.0
        %3752 = vmatpush1.msra.mxu0 0.0
        %3753 = vmatprep.subr.mxu0 0.0
        %3754 = vmatpush1.msra.mxu0 0.0
        %3755 = vmatprep.mubr.f32.mxu0 0.0
        %3756 = vmatmul.mubr.f32.gmra.mrb[0].mxu0 %v3680
        %v3757 = vpop.f32.mrb[0].mxu0
        %v3758 = vadd.f32 0.0, %v3757
        %v3759 = vpop.f32.mrb[0].mxu0
        %3760 = vmatprep.mubr.f32.mxu0 0.0
        %3761 = vmatmul.mubr.f32.gmra.mrb[0].mxu0 %v3683
        %v3762 = vpop.f32.mrb[0].mxu0
        %v3763 = vadd.f32 0.0, %v3762
        %v3764 = vpop.f32.mrb[0].mxu0
        %3765 = vmatprep.mubr.f32.mxu0 0.0
        %3766 = vmatmul.mubr.f32.gmra.mrb[0].mxu0 %v3686
        %v3767 = vpop.f32.mrb[0].mxu0
        %v3768 = vadd.f32 0.0, %v3767
        %v3769 = vpop.f32.mrb[0].mxu0
        %3770 = vmatprep.mubr.f32.mxu0 0.0
        %3771 = vmatmul.mubr.f32.gmra.mrb[0].mxu0 %v3689
        %v3772 = vpop.f32.mrb[0].mxu0
        %v3773 = vadd.f32 0.0, %v3772
        %v3774 = vpop.f32.mrb[0].mxu0
        %3775 = vdwg.mxu0
        %v3776 = vadd.f32 %v3653, %v3758
        %v3777 = vadd.f32 %v3658, %v3763
        %v3778 = vadd.f32 %v3663, %v3768
        %v3779 = vadd.f32 %v3668, %v3773
        %v3781 = vlaneseq
        %v3782 = vshrl.u32 %v3781, 7
        %v3783 = vsub.s32 0, %v3782
        %v3784 = vrot.slane %v3273, %v3783
        %v3786 = vmul.f32 %v3776, %v3784
        %v3787 = vmul.f32 %v3777, %v3784
        %v3788 = vmul.f32 %v3778, %v3784
        %v3789 = vmul.f32 %v3779, %v3784
        %v3791 = vlaneseq
        %v3792 = vshrl.u32 %v3791, 7
        %v3793 = vsub.s32 0, %v3792
        %v3794 = vrot.slane %v3274, %v3793
        %v3796 = vadd.f32 %v3786, %v3794
        %v3797 = vadd.f32 %v3787, %v3794
        %v3798 = vadd.f32 %v3788, %v3794
        %v3799 = vadd.f32 %v3789, %v3794
        %v3800 = vmax.f32 %v3796, 0.0
        %v3801 = vmax.f32 %v3797, 0.0
        %v3802 = vmax.f32 %v3798, 0.0
        %v3803 = vmax.f32 %v3799, 0.0
        %v3804 = vld [vmem:[%s14] sm:$0x1]
        %v3805 = vld [vmem:[%s15] sm:$0x1]
        %3806 = vmatprep.subr.mxu0 0.0
        %3807 = vmatpush1.msra.mxu0 %v3800
        %3808 = vmatprep.subr.mxu0 0.0
        %3809 = vmatpush1.msra.mxu0 %v3801
        %3810 = vmatprep.subr.mxu0 0.0
        %3811 = vmatpush1.msra.mxu0 %v3802
        %3812 = vmatprep.subr.mxu0 0.0
        %3813 = vmatpush1.msra.mxu0 %v3803
        %3814 = vmatprep.subr.mxu0 0.0
        %3815 = vmatpush1.msra.mxu0 0.0
        %3816 = vmatprep.subr.mxu0 0.0
        %3817 = vmatpush1.msra.mxu0 0.0
        %3818 = vmatprep.subr.mxu0 0.0
        %3819 = vmatpush1.msra.mxu0 0.0
        %3820 = vmatprep.subr.mxu0 0.0
        %3821 = vmatpush1.msra.mxu0 0.0
        %3822 = vmatprep.subr.mxu0 0.0
        %3823 = vmatpush1.msra.mxu0 0.0
        %3824 = vmatprep.subr.mxu0 0.0
        %3825 = vmatpush1.msra.mxu0 0.0
        %3826 = vmatprep.subr.mxu0 0.0
        %3827 = vmatpush1.msra.mxu0 0.0
        %3828 = vmatprep.subr.mxu0 0.0
        %3829 = vmatpush1.msra.mxu0 0.0
        %3830 = vmatprep.subr.mxu0 0.0
        %3831 = vmatpush1.msra.mxu0 0.0
        %3832 = vmatprep.subr.mxu0 0.0
        %3833 = vmatpush1.msra.mxu0 0.0
        %3834 = vmatprep.subr.mxu0 0.0
        %3835 = vmatpush1.msra.mxu0 0.0
        %3836 = vmatprep.subr.mxu0 0.0
        %3837 = vmatpush1.msra.mxu0 0.0
        %3838 = vmatprep.subr.mxu0 0.0
        %3839 = vmatpush1.msra.mxu0 0.0
        %3840 = vmatprep.subr.mxu0 0.0
        %3841 = vmatpush1.msra.mxu0 0.0
        %3842 = vmatprep.subr.mxu0 0.0
        %3843 = vmatpush1.msra.mxu0 0.0
        %3844 = vmatprep.subr.mxu0 0.0
        %3845 = vmatpush1.msra.mxu0 0.0
        %3846 = vmatprep.subr.mxu0 0.0
        %3847 = vmatpush1.msra.mxu0 0.0
        %3848 = vmatprep.subr.mxu0 0.0
        %3849 = vmatpush1.msra.mxu0 0.0
        %3850 = vmatprep.subr.mxu0 0.0
        %3851 = vmatpush1.msra.mxu0 0.0
        %3852 = vmatprep.subr.mxu0 0.0
        %3853 = vmatpush1.msra.mxu0 0.0
        %3854 = vmatprep.subr.mxu0 0.0
        %3855 = vmatpush1.msra.mxu0 0.0
        %3856 = vmatprep.subr.mxu0 0.0
        %3857 = vmatpush1.msra.mxu0 0.0
        %3858 = vmatprep.subr.mxu0 0.0
        %3859 = vmatpush1.msra.mxu0 0.0
        %3860 = vmatprep.subr.mxu0 0.0
        %3861 = vmatpush1.msra.mxu0 0.0
        %3862 = vmatprep.subr.mxu0 0.0
        %3863 = vmatpush1.msra.mxu0 0.0
        %3864 = vmatprep.subr.mxu0 0.0
        %3865 = vmatpush1.msra.mxu0 0.0
        %3866 = vmatprep.subr.mxu0 0.0
        %3867 = vmatpush1.msra.mxu0 0.0
        %3868 = vmatprep.subr.mxu0 0.0
        %3869 = vmatpush1.msra.mxu0 0.0
        %3870 = vmatprep.mubr.f32.mxu0 0.0
        %3871 = vmatmul.mubr.f32.gmra.mrb[0].mxu0 %v3275
        %v3872 = vpop.f32.mrb[0].mxu0
        %v3873 = vadd.f32 0.0, %v3872
        %v3874 = vpop.f32.mrb[0].mxu0
        %3875 = vmatprep.mubr.f32.mxu0 0.0
        %3876 = vmatmul.mubr.f32.gmra.mrb[0].mxu0 %v3277
        %v3877 = vpop.f32.mrb[0].mxu0
        %v3878 = vadd.f32 0.0, %v3877
        %v3879 = vpop.f32.mrb[0].mxu0
        %3880 = vmatprep.mubr.f32.mxu0 0.0
        %3881 = vmatmul.mubr.f32.gmra.mrb[0].mxu0 %v3279
        %v3882 = vpop.f32.mrb[0].mxu0
        %v3883 = vadd.f32 0.0, %v3882
        %v3884 = vpop.f32.mrb[0].mxu0
        %3885 = vmatprep.mubr.f32.mxu0 0.0
        %3886 = vmatmul.mubr.f32.gmra.mrb[0].mxu0 %v3281
        %v3887 = vpop.f32.mrb[0].mxu0
        %v3888 = vadd.f32 0.0, %v3887
        %v3889 = vpop.f32.mrb[0].mxu0
        %3890 = vdwg.mxu0
        %3891 = vmatprep.subr.mxu0 0.0
        %3892 = vmatpush1.msra.mxu0 %v3800
        %3893 = vmatprep.subr.mxu0 0.0
        %3894 = vmatpush1.msra.mxu0 %v3801
        %3895 = vmatprep.subr.mxu0 0.0
        %3896 = vmatpush1.msra.mxu0 %v3802
        %3897 = vmatprep.subr.mxu0 0.0
        %3898 = vmatpush1.msra.mxu0 %v3803
        %3899 = vmatprep.subr.mxu0 0.0
        %3900 = vmatpush1.msra.mxu0 0.0
        %3901 = vmatprep.subr.mxu0 0.0
        %3902 = vmatpush1.msra.mxu0 0.0
        %3903 = vmatprep.subr.mxu0 0.0
        %3904 = vmatpush1.msra.mxu0 0.0
        %3905 = vmatprep.subr.mxu0 0.0
        %3906 = vmatpush1.msra.mxu0 0.0
        %3907 = vmatprep.subr.mxu0 0.0
        %3908 = vmatpush1.msra.mxu0 0.0
        %3909 = vmatprep.subr.mxu0 0.0
        %3910 = vmatpush1.msra.mxu0 0.0
        %3911 = vmatprep.subr.mxu0 0.0
        %3912 = vmatpush1.msra.mxu0 0.0
        %3913 = vmatprep.subr.mxu0 0.0
        %3914 = vmatpush1.msra.mxu0 0.0
        %3915 = vmatprep.subr.mxu0 0.0
        %3916 = vmatpush1.msra.mxu0 0.0
        %3917 = vmatprep.subr.mxu0 0.0
        %3918 = vmatpush1.msra.mxu0 0.0
        %3919 = vmatprep.subr.mxu0 0.0
        %3920 = vmatpush1.msra.mxu0 0.0
        %3921 = vmatprep.subr.mxu0 0.0
        %3922 = vmatpush1.msra.mxu0 0.0
        %3923 = vmatprep.subr.mxu0 0.0
        %3924 = vmatpush1.msra.mxu0 0.0
        %3925 = vmatprep.subr.mxu0 0.0
        %3926 = vmatpush1.msra.mxu0 0.0
        %3927 = vmatprep.subr.mxu0 0.0
        %3928 = vmatpush1.msra.mxu0 0.0
        %3929 = vmatprep.subr.mxu0 0.0
        %3930 = vmatpush1.msra.mxu0 0.0
        %3931 = vmatprep.subr.mxu0 0.0
        %3932 = vmatpush1.msra.mxu0 0.0
        %3933 = vmatprep.subr.mxu0 0.0
        %3934 = vmatpush1.msra.mxu0 0.0
        %3935 = vmatprep.subr.mxu0 0.0
        %3936 = vmatpush1.msra.mxu0 0.0
        %3937 = vmatprep.subr.mxu0 0.0
        %3938 = vmatpush1.msra.mxu0 0.0
        %3939 = vmatprep.subr.mxu0 0.0
        %3940 = vmatpush1.msra.mxu0 0.0
        %3941 = vmatprep.subr.mxu0 0.0
        %3942 = vmatpush1.msra.mxu0 0.0
        %3943 = vmatprep.subr.mxu0 0.0
        %3944 = vmatpush1.msra.mxu0 0.0
        %3945 = vmatprep.subr.mxu0 0.0
        %3946 = vmatpush1.msra.mxu0 0.0
        %3947 = vmatprep.subr.mxu0 0.0
        %3948 = vmatpush1.msra.mxu0 0.0
        %3949 = vmatprep.subr.mxu0 0.0
        %3950 = vmatpush1.msra.mxu0 0.0
        %3951 = vmatprep.subr.mxu0 0.0
        %3952 = vmatpush1.msra.mxu0 0.0
        %3953 = vmatprep.subr.mxu0 0.0
        %3954 = vmatpush1.msra.mxu0 0.0
        %3955 = vmatprep.mubr.f32.mxu0 0.0
        %3956 = vmatmul.mubr.f32.gmra.mrb[0].mxu0 %v3368
        %v3957 = vpop.f32.mrb[0].mxu0
        %v3958 = vadd.f32 0.0, %v3957
        %v3959 = vpop.f32.mrb[0].mxu0
        %3960 = vmatprep.mubr.f32.mxu0 0.0
        %3961 = vmatmul.mubr.f32.gmra.mrb[0].mxu0 %v3370
        %v3962 = vpop.f32.mrb[0].mxu0
        %v3963 = vadd.f32 0.0, %v3962
        %v3964 = vpop.f32.mrb[0].mxu0
        %3965 = vmatprep.mubr.f32.mxu0 0.0
        %3966 = vmatmul.mubr.f32.gmra.mrb[0].mxu0 %v3372
        %v3967 = vpop.f32.mrb[0].mxu0
        %v3968 = vadd.f32 0.0, %v3967
        %v3969 = vpop.f32.mrb[0].mxu0
        %3970 = vmatprep.mubr.f32.mxu0 0.0
        %3971 = vmatmul.mubr.f32.gmra.mrb[0].mxu0 %v3374
        %v3972 = vpop.f32.mrb[0].mxu0
        %v3973 = vadd.f32 0.0, %v3972
        %v3974 = vpop.f32.mrb[0].mxu0
        %3975 = vdwg.mxu0
        %v3976 = vld [vmem:[%s13] sm:$0xff]
        %v3977 = vld [vmem:[%s13 + $0x8] sm:$0xff]
        %v3978 = vld [vmem:[%s13 + $0x10] sm:$0xff]
        %v3979 = vld [vmem:[%s13 + $0x18] sm:$0xff]
        %v3980 = vld [vmem:[%s13 + $0x20] sm:$0xff]
        %v3981 = vld [vmem:[%s13 + $0x28] sm:$0xff]
        %v3982 = vld [vmem:[%s13 + $0x30] sm:$0xff]
        %v3983 = vld [vmem:[%s13 + $0x38] sm:$0xff]
        %v3984 = vld [vmem:[%s13 + $0x40] sm:$0xff]
        %v3985 = vld [vmem:[%s13 + $0x48] sm:$0xff]
        %v3986 = vld [vmem:[%s13 + $0x50] sm:$0xff]
        %v3987 = vld [vmem:[%s13 + $0x58] sm:$0xff]
        %v3988 = vld [vmem:[%s13 + $0x60] sm:$0xff]
        %v3989 = vld [vmem:[%s13 + $0x68] sm:$0xff]
        %v3990 = vld [vmem:[%s13 + $0x70] sm:$0xff]
        %v3991 = vld [vmem:[%s13 + $0x78] sm:$0xff]
        %v3992 = vld [vmem:[%s13 + $0x80] sm:$0xff]
        %v3993 = vld [vmem:[%s13 + $0x88] sm:$0xff]
        %v3994 = vld [vmem:[%s13 + $0x90] sm:$0xff]
        %v3995 = vld [vmem:[%s13 + $0x98] sm:$0xff]
        %v3996 = vld [vmem:[%s13 + $0xa0] sm:$0xff]
        %v3997 = vld [vmem:[%s13 + $0xa8] sm:$0xff]
        %v3998 = vld [vmem:[%s13 + $0xb0] sm:$0xff]
        %v3999 = vld [vmem:[%s13 + $0xb8] sm:$0xff]
        %v4000 = vld [vmem:[%s13 + $0xc0] sm:$0xff]
        %v4001 = vld [vmem:[%s13 + $0xc8] sm:$0xff]
        %v4002 = vld [vmem:[%s13 + $0xd0] sm:$0xff]
        %v4003 = vld [vmem:[%s13 + $0xd8] sm:$0xff]
        %v4004 = vld [vmem:[%s13 + $0xe0] sm:$0xff]
        %v4005 = vld [vmem:[%s13 + $0xe8] sm:$0xff]
        %v4006 = vld [vmem:[%s13 + $0xf0] sm:$0xff]
        %v4007 = vld [vmem:[%s13 + $0xf8] sm:$0xff]
        %4008 = vmatprep.subr.mxu0 0.0
        %4009 = vmatpush1.msra.mxu0 %v3992
        %4010 = vmatprep.subr.mxu0 0.0
        %4011 = vmatpush1.msra.mxu0 %v3993
        %4012 = vmatprep.subr.mxu0 0.0
        %4013 = vmatpush1.msra.mxu0 %v3994
        %4014 = vmatprep.subr.mxu0 0.0
        %4015 = vmatpush1.msra.mxu0 %v3995
        %4016 = vmatprep.subr.mxu0 0.0
        %4017 = vmatpush1.msra.mxu0 %v3996
        %4018 = vmatprep.subr.mxu0 0.0
        %4019 = vmatpush1.msra.mxu0 %v3997
        %4020 = vmatprep.subr.mxu0 0.0
        %4021 = vmatpush1.msra.mxu0 %v3998
        %4022 = vmatprep.subr.mxu0 0.0
        %4023 = vmatpush1.msra.mxu0 %v3999
        %4024 = vmatprep.subr.mxu0 0.0
        %4025 = vmatpush1.msra.mxu0 %v4000
        %4026 = vmatprep.subr.mxu0 0.0
        %4027 = vmatpush1.msra.mxu0 %v4001
        %4028 = vmatprep.subr.mxu0 0.0
        %4029 = vmatpush1.msra.mxu0 %v4002
        %4030 = vmatprep.subr.mxu0 0.0
        %4031 = vmatpush1.msra.mxu0 %v4003
        %4032 = vmatprep.subr.mxu0 0.0
        %4033 = vmatpush1.msra.mxu0 %v4004
        %4034 = vmatprep.subr.mxu0 0.0
        %4035 = vmatpush1.msra.mxu0 %v4005
        %4036 = vmatprep.subr.mxu0 0.0
        %4037 = vmatpush1.msra.mxu0 %v4006
        %4038 = vmatprep.subr.mxu0 0.0
        %4039 = vmatpush1.msra.mxu0 %v4007
        %4040 = vmatprep.subr.mxu0 0.0
        %4041 = vmatpush1.msra.mxu0 0.0
        %4042 = vmatprep.subr.mxu0 0.0
        %4043 = vmatpush1.msra.mxu0 0.0
        %4044 = vmatprep.subr.mxu0 0.0
        %4045 = vmatpush1.msra.mxu0 0.0
        %4046 = vmatprep.subr.mxu0 0.0
        %4047 = vmatpush1.msra.mxu0 0.0
        %4048 = vmatprep.subr.mxu0 0.0
        %4049 = vmatpush1.msra.mxu0 0.0
        %4050 = vmatprep.subr.mxu0 0.0
        %4051 = vmatpush1.msra.mxu0 0.0
        %4052 = vmatprep.subr.mxu0 0.0
        %4053 = vmatpush1.msra.mxu0 0.0
        %4054 = vmatprep.subr.mxu0 0.0
        %4055 = vmatpush1.msra.mxu0 0.0
        %4056 = vmatprep.subr.mxu0 0.0
        %4057 = vmatpush1.msra.mxu0 0.0
        %4058 = vmatprep.subr.mxu0 0.0
        %4059 = vmatpush1.msra.mxu0 0.0
        %4060 = vmatprep.subr.mxu0 0.0
        %4061 = vmatpush1.msra.mxu0 0.0
        %4062 = vmatprep.subr.mxu0 0.0
        %4063 = vmatpush1.msra.mxu0 0.0
        %4064 = vmatprep.subr.mxu0 0.0
        %4065 = vmatpush1.msra.mxu0 0.0
        %4066 = vmatprep.subr.mxu0 0.0
        %4067 = vmatpush1.msra.mxu0 0.0
        %4068 = vmatprep.subr.mxu0 0.0
        %4069 = vmatpush1.msra.mxu0 0.0
        %4070 = vmatprep.subr.mxu0 0.0
        %4071 = vmatpush1.msra.mxu0 0.0
        %4072 = vmatprep.mubr.f32.mxu0 0.0
        %4073 = vmatmul.mubr.f32.gmra.mrb[0].mxu0 %v3800
        %v4074 = vpop.f32.mrb[0].mxu0
        %v4075 = vadd.f32 0.0, %v4074
        %v4076 = vpop.f32.mrb[0].mxu0
        %4077 = vmatprep.mubr.f32.mxu0 0.0
        %4078 = vmatmul.mubr.f32.gmra.mrb[0].mxu0 %v3801
        %v4079 = vpop.f32.mrb[0].mxu0
        %v4080 = vadd.f32 0.0, %v4079
        %v4081 = vpop.f32.mrb[0].mxu0
        %4082 = vmatprep.mubr.f32.mxu0 0.0
        %4083 = vmatmul.mubr.f32.gmra.mrb[0].mxu0 %v3802
        %v4084 = vpop.f32.mrb[0].mxu0
        %v4085 = vadd.f32 0.0, %v4084
        %v4086 = vpop.f32.mrb[0].mxu0
        %4087 = vmatprep.mubr.f32.mxu0 0.0
        %4088 = vmatmul.mubr.f32.gmra.mrb[0].mxu0 %v3803
        %v4089 = vpop.f32.mrb[0].mxu0
        %v4090 = vadd.f32 0.0, %v4089
        %v4091 = vpop.f32.mrb[0].mxu0
        %4092 = vdwg.mxu0
        %4093 = vmatprep.subr.mxu0 0.0
        %4094 = vmatpush1.msra.mxu0 %v3976
        %4095 = vmatprep.subr.mxu0 0.0
        %4096 = vmatpush1.msra.mxu0 %v3977
        %4097 = vmatprep.subr.mxu0 0.0
        %4098 = vmatpush1.msra.mxu0 %v3978
        %4099 = vmatprep.subr.mxu0 0.0
        %4100 = vmatpush1.msra.mxu0 %v3979
        %4101 = vmatprep.subr.mxu0 0.0
        %4102 = vmatpush1.msra.mxu0 %v3980
        %4103 = vmatprep.subr.mxu0 0.0
        %4104 = vmatpush1.msra.mxu0 %v3981
        %4105 = vmatprep.subr.mxu0 0.0
        %4106 = vmatpush1.msra.mxu0 %v3982
        %4107 = vmatprep.subr.mxu0 0.0
        %4108 = vmatpush1.msra.mxu0 %v3983
        %4109 = vmatprep.subr.mxu0 0.0
        %4110 = vmatpush1.msra.mxu0 %v3984
        %4111 = vmatprep.subr.mxu0 0.0
        %4112 = vmatpush1.msra.mxu0 %v3985
        %4113 = vmatprep.subr.mxu0 0.0
        %4114 = vmatpush1.msra.mxu0 %v3986
        %4115 = vmatprep.subr.mxu0 0.0
        %4116 = vmatpush1.msra.mxu0 %v3987
        %4117 = vmatprep.subr.mxu0 0.0
        %4118 = vmatpush1.msra.mxu0 %v3988
        %4119 = vmatprep.subr.mxu0 0.0
        %4120 = vmatpush1.msra.mxu0 %v3989
        %4121 = vmatprep.subr.mxu0 0.0
        %4122 = vmatpush1.msra.mxu0 %v3990
        %4123 = vmatprep.subr.mxu0 0.0
        %4124 = vmatpush1.msra.mxu0 %v3991
        %4125 = vmatprep.subr.mxu0 0.0
        %4126 = vmatpush1.msra.mxu0 0.0
        %4127 = vmatprep.subr.mxu0 0.0
        %4128 = vmatpush1.msra.mxu0 0.0
        %4129 = vmatprep.subr.mxu0 0.0
        %4130 = vmatpush1.msra.mxu0 0.0
        %4131 = vmatprep.subr.mxu0 0.0
        %4132 = vmatpush1.msra.mxu0 0.0
        %4133 = vmatprep.subr.mxu0 0.0
        %4134 = vmatpush1.msra.mxu0 0.0
        %4135 = vmatprep.subr.mxu0 0.0
        %4136 = vmatpush1.msra.mxu0 0.0
        %4137 = vmatprep.subr.mxu0 0.0
        %4138 = vmatpush1.msra.mxu0 0.0
        %4139 = vmatprep.subr.mxu0 0.0
        %4140 = vmatpush1.msra.mxu0 0.0
        %4141 = vmatprep.subr.mxu0 0.0
        %4142 = vmatpush1.msra.mxu0 0.0
        %4143 = vmatprep.subr.mxu0 0.0
        %4144 = vmatpush1.msra.mxu0 0.0
        %4145 = vmatprep.subr.mxu0 0.0
        %4146 = vmatpush1.msra.mxu0 0.0
        %4147 = vmatprep.subr.mxu0 0.0
        %4148 = vmatpush1.msra.mxu0 0.0
        %4149 = vmatprep.subr.mxu0 0.0
        %4150 = vmatpush1.msra.mxu0 0.0
        %4151 = vmatprep.subr.mxu0 0.0
        %4152 = vmatpush1.msra.mxu0 0.0
        %4153 = vmatprep.subr.mxu0 0.0
        %4154 = vmatpush1.msra.mxu0 0.0
        %4155 = vmatprep.subr.mxu0 0.0
        %4156 = vmatpush1.msra.mxu0 0.0
        %4157 = vmatprep.mubr.f32.mxu0 0.0
        %4158 = vmatmul.mubr.f32.gmra.mrb[0].mxu0 %v3873
        %v4159 = vpop.f32.mrb[0].mxu0
        %v4160 = vadd.f32 %v4075, %v4159
        %v4161 = vpop.f32.mrb[0].mxu0
        %4162 = vmatprep.mubr.f32.mxu0 0.0
        %4163 = vmatmul.mubr.f32.gmra.mrb[0].mxu0 %v3878
        %v4164 = vpop.f32.mrb[0].mxu0
        %v4165 = vadd.f32 %v4080, %v4164
        %v4166 = vpop.f32.mrb[0].mxu0
        %4167 = vmatprep.mubr.f32.mxu0 0.0
        %4168 = vmatmul.mubr.f32.gmra.mrb[0].mxu0 %v3883
        %v4169 = vpop.f32.mrb[0].mxu0
        %v4170 = vadd.f32 %v4085, %v4169
        %v4171 = vpop.f32.mrb[0].mxu0
        %4172 = vmatprep.mubr.f32.mxu0 0.0
        %4173 = vmatmul.mubr.f32.gmra.mrb[0].mxu0 %v3888
        %v4174 = vpop.f32.mrb[0].mxu0
        %v4175 = vadd.f32 %v4090, %v4174
        %v4176 = vpop.f32.mrb[0].mxu0
        %4177 = vdwg.mxu0
        %v4178 = vld [vmem:[%s13 + $0x100] sm:$0xff]
        %v4179 = vld [vmem:[%s13 + $0x108] sm:$0xff]
        %v4180 = vld [vmem:[%s13 + $0x110] sm:$0xff]
        %v4181 = vld [vmem:[%s13 + $0x118] sm:$0xff]
        %v4182 = vld [vmem:[%s13 + $0x120] sm:$0xff]
        %v4183 = vld [vmem:[%s13 + $0x128] sm:$0xff]
        %v4184 = vld [vmem:[%s13 + $0x130] sm:$0xff]
        %v4185 = vld [vmem:[%s13 + $0x138] sm:$0xff]
        %v4186 = vld [vmem:[%s13 + $0x140] sm:$0xff]
        %v4187 = vld [vmem:[%s13 + $0x148] sm:$0xff]
        %v4188 = vld [vmem:[%s13 + $0x150] sm:$0xff]
        %v4189 = vld [vmem:[%s13 + $0x158] sm:$0xff]
        %v4190 = vld [vmem:[%s13 + $0x160] sm:$0xff]
        %v4191 = vld [vmem:[%s13 + $0x168] sm:$0xff]
        %v4192 = vld [vmem:[%s13 + $0x170] sm:$0xff]
        %v4193 = vld [vmem:[%s13 + $0x178] sm:$0xff]
        %4194 = vmatprep.subr.mxu0 0.0
        %4195 = vmatpush1.msra.mxu0 %v4178
        %4196 = vmatprep.subr.mxu0 0.0
        %4197 = vmatpush1.msra.mxu0 %v4179
        %4198 = vmatprep.subr.mxu0 0.0
        %4199 = vmatpush1.msra.mxu0 %v4180
        %4200 = vmatprep.subr.mxu0 0.0
        %4201 = vmatpush1.msra.mxu0 %v4181
        %4202 = vmatprep.subr.mxu0 0.0
        %4203 = vmatpush1.msra.mxu0 %v4182
        %4204 = vmatprep.subr.mxu0 0.0
        %4205 = vmatpush1.msra.mxu0 %v4183
        %4206 = vmatprep.subr.mxu0 0.0
        %4207 = vmatpush1.msra.mxu0 %v4184
        %4208 = vmatprep.subr.mxu0 0.0
        %4209 = vmatpush1.msra.mxu0 %v4185
        %4210 = vmatprep.subr.mxu0 0.0
        %4211 = vmatpush1.msra.mxu0 %v4186
        %4212 = vmatprep.subr.mxu0 0.0
        %4213 = vmatpush1.msra.mxu0 %v4187
        %4214 = vmatprep.subr.mxu0 0.0
        %4215 = vmatpush1.msra.mxu0 %v4188
        %4216 = vmatprep.subr.mxu0 0.0
        %4217 = vmatpush1.msra.mxu0 %v4189
        %4218 = vmatprep.subr.mxu0 0.0
        %4219 = vmatpush1.msra.mxu0 %v4190
        %4220 = vmatprep.subr.mxu0 0.0
        %4221 = vmatpush1.msra.mxu0 %v4191
        %4222 = vmatprep.subr.mxu0 0.0
        %4223 = vmatpush1.msra.mxu0 %v4192
        %4224 = vmatprep.subr.mxu0 0.0
        %4225 = vmatpush1.msra.mxu0 %v4193
        %4226 = vmatprep.subr.mxu0 0.0
        %4227 = vmatpush1.msra.mxu0 0.0
        %4228 = vmatprep.subr.mxu0 0.0
        %4229 = vmatpush1.msra.mxu0 0.0
        %4230 = vmatprep.subr.mxu0 0.0
        %4231 = vmatpush1.msra.mxu0 0.0
        %4232 = vmatprep.subr.mxu0 0.0
        %4233 = vmatpush1.msra.mxu0 0.0
        %4234 = vmatprep.subr.mxu0 0.0
        %4235 = vmatpush1.msra.mxu0 0.0
        %4236 = vmatprep.subr.mxu0 0.0
        %4237 = vmatpush1.msra.mxu0 0.0
        %4238 = vmatprep.subr.mxu0 0.0
        %4239 = vmatpush1.msra.mxu0 0.0
        %4240 = vmatprep.subr.mxu0 0.0
        %4241 = vmatpush1.msra.mxu0 0.0
        %4242 = vmatprep.subr.mxu0 0.0
        %4243 = vmatpush1.msra.mxu0 0.0
        %4244 = vmatprep.subr.mxu0 0.0
        %4245 = vmatpush1.msra.mxu0 0.0
        %4246 = vmatprep.subr.mxu0 0.0
        %4247 = vmatpush1.msra.mxu0 0.0
        %4248 = vmatprep.subr.mxu0 0.0
        %4249 = vmatpush1.msra.mxu0 0.0
        %4250 = vmatprep.subr.mxu0 0.0
        %4251 = vmatpush1.msra.mxu0 0.0
        %4252 = vmatprep.subr.mxu0 0.0
        %4253 = vmatpush1.msra.mxu0 0.0
        %4254 = vmatprep.subr.mxu0 0.0
        %4255 = vmatpush1.msra.mxu0 0.0
        %4256 = vmatprep.subr.mxu0 0.0
        %4257 = vmatpush1.msra.mxu0 0.0
        %4258 = vmatprep.mubr.f32.mxu0 0.0
        %4259 = vmatmul.mubr.f32.gmra.mrb[0].mxu0 %v3958
        %v4260 = vpop.f32.mrb[0].mxu0
        %v4261 = vadd.f32 0.0, %v4260
        %v4262 = vpop.f32.mrb[0].mxu0
        %4263 = vmatprep.mubr.f32.mxu0 0.0
        %4264 = vmatmul.mubr.f32.gmra.mrb[0].mxu0 %v3963
        %v4265 = vpop.f32.mrb[0].mxu0
        %v4266 = vadd.f32 0.0, %v4265
        %v4267 = vpop.f32.mrb[0].mxu0
        %4268 = vmatprep.mubr.f32.mxu0 0.0
        %4269 = vmatmul.mubr.f32.gmra.mrb[0].mxu0 %v3968
        %v4270 = vpop.f32.mrb[0].mxu0
        %v4271 = vadd.f32 0.0, %v4270
        %v4272 = vpop.f32.mrb[0].mxu0
        %4273 = vmatprep.mubr.f32.mxu0 0.0
        %4274 = vmatmul.mubr.f32.gmra.mrb[0].mxu0 %v3973
        %v4275 = vpop.f32.mrb[0].mxu0
        %v4276 = vadd.f32 0.0, %v4275
        %v4277 = vpop.f32.mrb[0].mxu0
        %4278 = vdwg.mxu0
        %v4279 = vadd.f32 %v4160, %v4261
        %v4280 = vadd.f32 %v4165, %v4266
        %v4281 = vadd.f32 %v4170, %v4271
        %v4282 = vadd.f32 %v4175, %v4276
        %v4284 = vlaneseq
        %v4285 = vshrl.u32 %v4284, 7
        %v4286 = vsub.s32 0, %v4285
        %v4287 = vrot.slane %v3804, %v4286
        %v4289 = vmul.f32 %v4279, %v4287
        %v4290 = vmul.f32 %v4280, %v4287
        %v4291 = vmul.f32 %v4281, %v4287
        %v4292 = vmul.f32 %v4282, %v4287
        %v4294 = vlaneseq
        %v4295 = vshrl.u32 %v4294, 7
        %v4296 = vsub.s32 0, %v4295
        %v4297 = vrot.slane %v3805, %v4296
        %v4299 = vadd.f32 %v4289, %v4297
        %v4300 = vadd.f32 %v4290, %v4297
        %v4301 = vadd.f32 %v4291, %v4297
        %v4302 = vadd.f32 %v4292, %v4297
        %v4303 = vmax.f32 %v4299, 0.0
        %v4304 = vmax.f32 %v4300, 0.0
        %v4305 = vmax.f32 %v4301, 0.0
        %v4306 = vmax.f32 %v4302, 0.0
        %v4307 = vsel %vm1972, %v1477, 0
        %v4309 = vsel %vm1972, %v1478, 0
        %4311 = vmatprep.subr.mxu0 0.0
        %4312 = vmatpush1.msra.mxu0 %v4303
        %4313 = vmatprep.subr.mxu0 0.0
        %4314 = vmatpush1.msra.mxu0 %v4304
        %4315 = vmatprep.subr.mxu0 0.0
        %4316 = vmatpush1.msra.mxu0 %v4305
        %4317 = vmatprep.subr.mxu0 0.0
        %4318 = vmatpush1.msra.mxu0 %v4306
        %4319 = vmatprep.subr.mxu0 0.0
        %4320 = vmatpush1.msra.mxu0 0.0
        %4321 = vmatprep.subr.mxu0 0.0
        %4322 = vmatpush1.msra.mxu0 0.0
        %4323 = vmatprep.subr.mxu0 0.0
        %4324 = vmatpush1.msra.mxu0 0.0
        %4325 = vmatprep.subr.mxu0 0.0
        %4326 = vmatpush1.msra.mxu0 0.0
        %4327 = vmatprep.subr.mxu0 0.0
        %4328 = vmatpush1.msra.mxu0 0.0
        %4329 = vmatprep.subr.mxu0 0.0
        %4330 = vmatpush1.msra.mxu0 0.0
        %4331 = vmatprep.subr.mxu0 0.0
        %4332 = vmatpush1.msra.mxu0 0.0
        %4333 = vmatprep.subr.mxu0 0.0
        %4334 = vmatpush1.msra.mxu0 0.0
        %4335 = vmatprep.subr.mxu0 0.0
        %4336 = vmatpush1.msra.mxu0 0.0
        %4337 = vmatprep.subr.mxu0 0.0
        %4338 = vmatpush1.msra.mxu0 0.0
        %4339 = vmatprep.subr.mxu0 0.0
        %4340 = vmatpush1.msra.mxu0 0.0
        %4341 = vmatprep.subr.mxu0 0.0
        %4342 = vmatpush1.msra.mxu0 0.0
        %4343 = vmatprep.subr.mxu0 0.0
        %4344 = vmatpush1.msra.mxu0 0.0
        %4345 = vmatprep.subr.mxu0 0.0
        %4346 = vmatpush1.msra.mxu0 0.0
        %4347 = vmatprep.subr.mxu0 0.0
        %4348 = vmatpush1.msra.mxu0 0.0
        %4349 = vmatprep.subr.mxu0 0.0
        %4350 = vmatpush1.msra.mxu0 0.0
        %4351 = vmatprep.subr.mxu0 0.0
        %4352 = vmatpush1.msra.mxu0 0.0
        %4353 = vmatprep.subr.mxu0 0.0
        %4354 = vmatpush1.msra.mxu0 0.0
        %4355 = vmatprep.subr.mxu0 0.0
        %4356 = vmatpush1.msra.mxu0 0.0
        %4357 = vmatprep.subr.mxu0 0.0
        %4358 = vmatpush1.msra.mxu0 0.0
        %4359 = vmatprep.subr.mxu0 0.0
        %4360 = vmatpush1.msra.mxu0 0.0
        %4361 = vmatprep.subr.mxu0 0.0
        %4362 = vmatpush1.msra.mxu0 0.0
        %4363 = vmatprep.subr.mxu0 0.0
        %4364 = vmatpush1.msra.mxu0 0.0
        %4365 = vmatprep.subr.mxu0 0.0
        %4366 = vmatpush1.msra.mxu0 0.0
        %4367 = vmatprep.subr.mxu0 0.0
        %4368 = vmatpush1.msra.mxu0 0.0
        %4369 = vmatprep.subr.mxu0 0.0
        %4370 = vmatpush1.msra.mxu0 0.0
        %4371 = vmatprep.subr.mxu0 0.0
        %4372 = vmatpush1.msra.mxu0 0.0
        %4373 = vmatprep.subr.mxu0 0.0
        %4374 = vmatpush1.msra.mxu0 0.0
        %4375 = vmatprep.mubr.f32.mxu0 0.0
        %4376 = vmatmul.mubr.f32.gmra.mrb[0].mxu0 %v4307
        %v4377 = vpop.f32.mrb[0].mxu0
        %v4378 = vadd.f32 0.0, %v4377
        %v4379 = vpop.f32.mrb[0].mxu0
        %4380 = vmatprep.mubr.f32.mxu0 0.0
        %4381 = vmatmul.mubr.f32.gmra.mrb[0].mxu0 %v4309
        %v4382 = vpop.f32.mrb[0].mxu0
        %v4383 = vadd.f32 0.0, %v4382
        %v4384 = vpop.f32.mrb[0].mxu0
        %4385 = vdwg.mxu0
        %v4386 = vsel %vm1972, %v1445, 0
        %v4388 = vsel %vm1972, %v1446, 0
        %4390 = vmatprep.subr.mxu0 0.0
        %4391 = vmatpush1.msra.mxu0 %v4303
        %4392 = vmatprep.subr.mxu0 0.0
        %4393 = vmatpush1.msra.mxu0 %v4304
        %4394 = vmatprep.subr.mxu0 0.0
        %4395 = vmatpush1.msra.mxu0 %v4305
        %4396 = vmatprep.subr.mxu0 0.0
        %4397 = vmatpush1.msra.mxu0 %v4306
        %4398 = vmatprep.subr.mxu0 0.0
        %4399 = vmatpush1.msra.mxu0 0.0
        %4400 = vmatprep.subr.mxu0 0.0
        %4401 = vmatpush1.msra.mxu0 0.0
        %4402 = vmatprep.subr.mxu0 0.0
        %4403 = vmatpush1.msra.mxu0 0.0
        %4404 = vmatprep.subr.mxu0 0.0
        %4405 = vmatpush1.msra.mxu0 0.0
        %4406 = vmatprep.subr.mxu0 0.0
        %4407 = vmatpush1.msra.mxu0 0.0
        %4408 = vmatprep.subr.mxu0 0.0
        %4409 = vmatpush1.msra.mxu0 0.0
        %4410 = vmatprep.subr.mxu0 0.0
        %4411 = vmatpush1.msra.mxu0 0.0
        %4412 = vmatprep.subr.mxu0 0.0
        %4413 = vmatpush1.msra.mxu0 0.0
        %4414 = vmatprep.subr.mxu0 0.0
        %4415 = vmatpush1.msra.mxu0 0.0
        %4416 = vmatprep.subr.mxu0 0.0
        %4417 = vmatpush1.msra.mxu0 0.0
        %4418 = vmatprep.subr.mxu0 0.0
        %4419 = vmatpush1.msra.mxu0 0.0
        %4420 = vmatprep.subr.mxu0 0.0
        %4421 = vmatpush1.msra.mxu0 0.0
        %4422 = vmatprep.subr.mxu0 0.0
        %4423 = vmatpush1.msra.mxu0 0.0
        %4424 = vmatprep.subr.mxu0 0.0
        %4425 = vmatpush1.msra.mxu0 0.0
        %4426 = vmatprep.subr.mxu0 0.0
        %4427 = vmatpush1.msra.mxu0 0.0
        %4428 = vmatprep.subr.mxu0 0.0
        %4429 = vmatpush1.msra.mxu0 0.0
        %4430 = vmatprep.subr.mxu0 0.0
        %4431 = vmatpush1.msra.mxu0 0.0
        %4432 = vmatprep.subr.mxu0 0.0
        %4433 = vmatpush1.msra.mxu0 0.0
        %4434 = vmatprep.subr.mxu0 0.0
        %4435 = vmatpush1.msra.mxu0 0.0
        %4436 = vmatprep.subr.mxu0 0.0
        %4437 = vmatpush1.msra.mxu0 0.0
        %4438 = vmatprep.subr.mxu0 0.0
        %4439 = vmatpush1.msra.mxu0 0.0
        %4440 = vmatprep.subr.mxu0 0.0
        %4441 = vmatpush1.msra.mxu0 0.0
        %4442 = vmatprep.subr.mxu0 0.0
        %4443 = vmatpush1.msra.mxu0 0.0
        %4444 = vmatprep.subr.mxu0 0.0
        %4445 = vmatpush1.msra.mxu0 0.0
        %4446 = vmatprep.subr.mxu0 0.0
        %4447 = vmatpush1.msra.mxu0 0.0
        %4448 = vmatprep.subr.mxu0 0.0
        %4449 = vmatpush1.msra.mxu0 0.0
        %4450 = vmatprep.subr.mxu0 0.0
        %4451 = vmatpush1.msra.mxu0 0.0
        %4452 = vmatprep.subr.mxu0 0.0
        %4453 = vmatpush1.msra.mxu0 0.0
        %4454 = vmatprep.mubr.f32.mxu0 0.0
        %4455 = vmatmul.mubr.f32.gmra.mrb[0].mxu0 %v4386
        %v4456 = vpop.f32.mrb[0].mxu0
        %v4457 = vadd.f32 %v4378, %v4456
        %v4458 = vpop.f32.mrb[0].mxu0
        %4459 = vmatprep.mubr.f32.mxu0 0.0
        %4460 = vmatmul.mubr.f32.gmra.mrb[0].mxu0 %v4388
        %v4461 = vpop.f32.mrb[0].mxu0
        %v4462 = vadd.f32 %v4383, %v4461
        %v4463 = vpop.f32.mrb[0].mxu0
        %4464 = vdwg.mxu0
        %v4465 = vmul.f32 %v4457, 0.5
        %v4466 = vmul.f32 %v4462, 0.5
        %v4467 = vld [vmem:[%s17] sm:$0x1]
        %v4468 = vld [vmem:[%s16] sm:$0xff]
        %v4469 = vld [vmem:[%s16 + $0x8] sm:$0xff]
        %v4470 = vld [vmem:[%s16 + $0x10] sm:$0xff]
        %v4471 = vld [vmem:[%s16 + $0x18] sm:$0xff]
        %v4472 = vld [vmem:[%s16 + $0x20] sm:$0xff]
        %v4473 = vld [vmem:[%s16 + $0x28] sm:$0xff]
        %v4474 = vld [vmem:[%s16 + $0x30] sm:$0xff]
        %v4475 = vld [vmem:[%s16 + $0x38] sm:$0xff]
        %v4476 = vld [vmem:[%s16 + $0x40] sm:$0xff]
        %v4477 = vld [vmem:[%s16 + $0x48] sm:$0xff]
        %v4478 = vld [vmem:[%s16 + $0x50] sm:$0xff]
        %v4479 = vld [vmem:[%s16 + $0x58] sm:$0xff]
        %v4480 = vld [vmem:[%s16 + $0x60] sm:$0xff]
        %v4481 = vld [vmem:[%s16 + $0x68] sm:$0xff]
        %v4482 = vld [vmem:[%s16 + $0x70] sm:$0xff]
        %v4483 = vld [vmem:[%s16 + $0x78] sm:$0xff]
        %4484 = vmatprep.subr.mxu0 0.0
        %4485 = vmatpush1.msra.mxu0 %v4468
        %4486 = vmatprep.subr.mxu0 0.0
        %4487 = vmatpush1.msra.mxu0 %v4469
        %4488 = vmatprep.subr.mxu0 0.0
        %4489 = vmatpush1.msra.mxu0 %v4470
        %4490 = vmatprep.subr.mxu0 0.0
        %4491 = vmatpush1.msra.mxu0 %v4471
        %4492 = vmatprep.subr.mxu0 0.0
        %4493 = vmatpush1.msra.mxu0 %v4472
        %4494 = vmatprep.subr.mxu0 0.0
        %4495 = vmatpush1.msra.mxu0 %v4473
        %4496 = vmatprep.subr.mxu0 0.0
        %4497 = vmatpush1.msra.mxu0 %v4474
        %4498 = vmatprep.subr.mxu0 0.0
        %4499 = vmatpush1.msra.mxu0 %v4475
        %4500 = vmatprep.subr.mxu0 0.0
        %4501 = vmatpush1.msra.mxu0 %v4476
        %4502 = vmatprep.subr.mxu0 0.0
        %4503 = vmatpush1.msra.mxu0 %v4477
        %4504 = vmatprep.subr.mxu0 0.0
        %4505 = vmatpush1.msra.mxu0 %v4478
        %4506 = vmatprep.subr.mxu0 0.0
        %4507 = vmatpush1.msra.mxu0 %v4479
        %4508 = vmatprep.subr.mxu0 0.0
        %4509 = vmatpush1.msra.mxu0 %v4480
        %4510 = vmatprep.subr.mxu0 0.0
        %4511 = vmatpush1.msra.mxu0 %v4481
        %4512 = vmatprep.subr.mxu0 0.0
        %4513 = vmatpush1.msra.mxu0 %v4482
        %4514 = vmatprep.subr.mxu0 0.0
        %4515 = vmatpush1.msra.mxu0 %v4483
        %4516 = vmatprep.subr.mxu0 0.0
        %4517 = vmatpush1.msra.mxu0 0.0
        %4518 = vmatprep.subr.mxu0 0.0
        %4519 = vmatpush1.msra.mxu0 0.0
        %4520 = vmatprep.subr.mxu0 0.0
        %4521 = vmatpush1.msra.mxu0 0.0
        %4522 = vmatprep.subr.mxu0 0.0
        %4523 = vmatpush1.msra.mxu0 0.0
        %4524 = vmatprep.subr.mxu0 0.0
        %4525 = vmatpush1.msra.mxu0 0.0
        %4526 = vmatprep.subr.mxu0 0.0
        %4527 = vmatpush1.msra.mxu0 0.0
        %4528 = vmatprep.subr.mxu0 0.0
        %4529 = vmatpush1.msra.mxu0 0.0
        %4530 = vmatprep.subr.mxu0 0.0
        %4531 = vmatpush1.msra.mxu0 0.0
        %4532 = vmatprep.subr.mxu0 0.0
        %4533 = vmatpush1.msra.mxu0 0.0
        %4534 = vmatprep.subr.mxu0 0.0
        %4535 = vmatpush1.msra.mxu0 0.0
        %4536 = vmatprep.subr.mxu0 0.0
        %4537 = vmatpush1.msra.mxu0 0.0
        %4538 = vmatprep.subr.mxu0 0.0
        %4539 = vmatpush1.msra.mxu0 0.0
        %4540 = vmatprep.subr.mxu0 0.0
        %4541 = vmatpush1.msra.mxu0 0.0
        %4542 = vmatprep.subr.mxu0 0.0
        %4543 = vmatpush1.msra.mxu0 0.0
        %4544 = vmatprep.subr.mxu0 0.0
        %4545 = vmatpush1.msra.mxu0 0.0
        %4546 = vmatprep.subr.mxu0 0.0
        %4547 = vmatpush1.msra.mxu0 0.0
        %4548 = vmatprep.mubr.f32.mxu0 0.0
        %4549 = vmatmul.mubr.f32.gmra.mrb[0].mxu0 %v4465
        %v4550 = vpop.f32.mrb[0].mxu0
        %v4551 = vadd.f32 0.0, %v4550
        %v4552 = vpop.f32.mrb[0].mxu0
        %4553 = vdwg.mxu0
        %v4554 = vadd.f32 %v4467, %v4551
        %s4555 = scalar_lea.vmem %s16, 128
        %v4556 = vld [vmem:[%s4555] sm:$0xff]
        %v4557 = vld [vmem:[%s4555 + $0x8] sm:$0xff]
        %v4558 = vld [vmem:[%s4555 + $0x10] sm:$0xff]
        %v4559 = vld [vmem:[%s4555 + $0x18] sm:$0xff]
        %v4560 = vld [vmem:[%s4555 + $0x20] sm:$0xff]
        %v4561 = vld [vmem:[%s4555 + $0x28] sm:$0xff]
        %v4562 = vld [vmem:[%s4555 + $0x30] sm:$0xff]
        %v4563 = vld [vmem:[%s4555 + $0x38] sm:$0xff]
        %v4564 = vld [vmem:[%s4555 + $0x40] sm:$0xff]
        %v4565 = vld [vmem:[%s4555 + $0x48] sm:$0xff]
        %v4566 = vld [vmem:[%s4555 + $0x50] sm:$0xff]
        %v4567 = vld [vmem:[%s4555 + $0x58] sm:$0xff]
        %v4568 = vld [vmem:[%s4555 + $0x60] sm:$0xff]
        %v4569 = vld [vmem:[%s4555 + $0x68] sm:$0xff]
        %v4570 = vld [vmem:[%s4555 + $0x70] sm:$0xff]
        %v4571 = vld [vmem:[%s4555 + $0x78] sm:$0xff]
        %v4573 = vrot.slane %v4465, 1
        %4575 = vmatprep.subr.mxu0 0.0
        %4576 = vmatpush1.msra.mxu0 %v4556
        %4577 = vmatprep.subr.mxu0 0.0
        %4578 = vmatpush1.msra.mxu0 %v4557
        %4579 = vmatprep.subr.mxu0 0.0
        %4580 = vmatpush1.msra.mxu0 %v4558
        %4581 = vmatprep.subr.mxu0 0.0
        %4582 = vmatpush1.msra.mxu0 %v4559
        %4583 = vmatprep.subr.mxu0 0.0
        %4584 = vmatpush1.msra.mxu0 %v4560
        %4585 = vmatprep.subr.mxu0 0.0
        %4586 = vmatpush1.msra.mxu0 %v4561
        %4587 = vmatprep.subr.mxu0 0.0
        %4588 = vmatpush1.msra.mxu0 %v4562
        %4589 = vmatprep.subr.mxu0 0.0
        %4590 = vmatpush1.msra.mxu0 %v4563
        %4591 = vmatprep.subr.mxu0 0.0
        %4592 = vmatpush1.msra.mxu0 %v4564
        %4593 = vmatprep.subr.mxu0 0.0
        %4594 = vmatpush1.msra.mxu0 %v4565
        %4595 = vmatprep.subr.mxu0 0.0
        %4596 = vmatpush1.msra.mxu0 %v4566
        %4597 = vmatprep.subr.mxu0 0.0
        %4598 = vmatpush1.msra.mxu0 %v4567
        %4599 = vmatprep.subr.mxu0 0.0
        %4600 = vmatpush1.msra.mxu0 %v4568
        %4601 = vmatprep.subr.mxu0 0.0
        %4602 = vmatpush1.msra.mxu0 %v4569
        %4603 = vmatprep.subr.mxu0 0.0
        %4604 = vmatpush1.msra.mxu0 %v4570
        %4605 = vmatprep.subr.mxu0 0.0
        %4606 = vmatpush1.msra.mxu0 %v4571
        %4607 = vmatprep.subr.mxu0 0.0
        %4608 = vmatpush1.msra.mxu0 0.0
        %4609 = vmatprep.subr.mxu0 0.0
        %4610 = vmatpush1.msra.mxu0 0.0
        %4611 = vmatprep.subr.mxu0 0.0
        %4612 = vmatpush1.msra.mxu0 0.0
        %4613 = vmatprep.subr.mxu0 0.0
        %4614 = vmatpush1.msra.mxu0 0.0
        %4615 = vmatprep.subr.mxu0 0.0
        %4616 = vmatpush1.msra.mxu0 0.0
        %4617 = vmatprep.subr.mxu0 0.0
        %4618 = vmatpush1.msra.mxu0 0.0
        %4619 = vmatprep.subr.mxu0 0.0
        %4620 = vmatpush1.msra.mxu0 0.0
        %4621 = vmatprep.subr.mxu0 0.0
        %4622 = vmatpush1.msra.mxu0 0.0
        %4623 = vmatprep.subr.mxu0 0.0
        %4624 = vmatpush1.msra.mxu0 0.0
        %4625 = vmatprep.subr.mxu0 0.0
        %4626 = vmatpush1.msra.mxu0 0.0
        %4627 = vmatprep.subr.mxu0 0.0
        %4628 = vmatpush1.msra.mxu0 0.0
        %4629 = vmatprep.subr.mxu0 0.0
        %4630 = vmatpush1.msra.mxu0 0.0
        %4631 = vmatprep.subr.mxu0 0.0
        %4632 = vmatpush1.msra.mxu0 0.0
        %4633 = vmatprep.subr.mxu0 0.0
        %4634 = vmatpush1.msra.mxu0 0.0
        %4635 = vmatprep.subr.mxu0 0.0
        %4636 = vmatpush1.msra.mxu0 0.0
        %4637 = vmatprep.subr.mxu0 0.0
        %4638 = vmatpush1.msra.mxu0 0.0
        %4639 = vmatprep.mubr.f32.mxu0 0.0
        %4640 = vmatmul.mubr.f32.gmra.mrb[0].mxu0 %v4573
        %v4641 = vpop.f32.mrb[0].mxu0
        %v4642 = vadd.f32 0.0, %v4641
        %v4643 = vpop.f32.mrb[0].mxu0
        %4644 = vdwg.mxu0
        %v4645 = vadd.f32 %v4554, %v4642
        %s4646 = scalar_lea.vmem %s16, 256
        %v4647 = vld [vmem:[%s4646] sm:$0xff]
        %v4648 = vld [vmem:[%s4646 + $0x8] sm:$0xff]
        %v4649 = vld [vmem:[%s4646 + $0x10] sm:$0xff]
        %v4650 = vld [vmem:[%s4646 + $0x18] sm:$0xff]
        %v4651 = vld [vmem:[%s4646 + $0x20] sm:$0xff]
        %v4652 = vld [vmem:[%s4646 + $0x28] sm:$0xff]
        %v4653 = vld [vmem:[%s4646 + $0x30] sm:$0xff]
        %v4654 = vld [vmem:[%s4646 + $0x38] sm:$0xff]
        %v4655 = vld [vmem:[%s4646 + $0x40] sm:$0xff]
        %v4656 = vld [vmem:[%s4646 + $0x48] sm:$0xff]
        %v4657 = vld [vmem:[%s4646 + $0x50] sm:$0xff]
        %v4658 = vld [vmem:[%s4646 + $0x58] sm:$0xff]
        %v4659 = vld [vmem:[%s4646 + $0x60] sm:$0xff]
        %v4660 = vld [vmem:[%s4646 + $0x68] sm:$0xff]
        %v4661 = vld [vmem:[%s4646 + $0x70] sm:$0xff]
        %v4662 = vld [vmem:[%s4646 + $0x78] sm:$0xff]
        %v4663 = vrot.slane %v4465, 2
        %4665 = vmatprep.subr.mxu0 0.0
        %4666 = vmatpush1.msra.mxu0 %v4647
        %4667 = vmatprep.subr.mxu0 0.0
        %4668 = vmatpush1.msra.mxu0 %v4648
        %4669 = vmatprep.subr.mxu0 0.0
        %4670 = vmatpush1.msra.mxu0 %v4649
        %4671 = vmatprep.subr.mxu0 0.0
        %4672 = vmatpush1.msra.mxu0 %v4650
        %4673 = vmatprep.subr.mxu0 0.0
        %4674 = vmatpush1.msra.mxu0 %v4651
        %4675 = vmatprep.subr.mxu0 0.0
        %4676 = vmatpush1.msra.mxu0 %v4652
        %4677 = vmatprep.subr.mxu0 0.0
        %4678 = vmatpush1.msra.mxu0 %v4653
        %4679 = vmatprep.subr.mxu0 0.0
        %4680 = vmatpush1.msra.mxu0 %v4654
        %4681 = vmatprep.subr.mxu0 0.0
        %4682 = vmatpush1.msra.mxu0 %v4655
        %4683 = vmatprep.subr.mxu0 0.0
        %4684 = vmatpush1.msra.mxu0 %v4656
        %4685 = vmatprep.subr.mxu0 0.0
        %4686 = vmatpush1.msra.mxu0 %v4657
        %4687 = vmatprep.subr.mxu0 0.0
        %4688 = vmatpush1.msra.mxu0 %v4658
        %4689 = vmatprep.subr.mxu0 0.0
        %4690 = vmatpush1.msra.mxu0 %v4659
        %4691 = vmatprep.subr.mxu0 0.0
        %4692 = vmatpush1.msra.mxu0 %v4660
        %4693 = vmatprep.subr.mxu0 0.0
        %4694 = vmatpush1.msra.mxu0 %v4661
        %4695 = vmatprep.subr.mxu0 0.0
        %4696 = vmatpush1.msra.mxu0 %v4662
        %4697 = vmatprep.subr.mxu0 0.0
        %4698 = vmatpush1.msra.mxu0 0.0
        %4699 = vmatprep.subr.mxu0 0.0
        %4700 = vmatpush1.msra.mxu0 0.0
        %4701 = vmatprep.subr.mxu0 0.0
        %4702 = vmatpush1.msra.mxu0 0.0
        %4703 = vmatprep.subr.mxu0 0.0
        %4704 = vmatpush1.msra.mxu0 0.0
        %4705 = vmatprep.subr.mxu0 0.0
        %4706 = vmatpush1.msra.mxu0 0.0
        %4707 = vmatprep.subr.mxu0 0.0
        %4708 = vmatpush1.msra.mxu0 0.0
        %4709 = vmatprep.subr.mxu0 0.0
        %4710 = vmatpush1.msra.mxu0 0.0
        %4711 = vmatprep.subr.mxu0 0.0
        %4712 = vmatpush1.msra.mxu0 0.0
        %4713 = vmatprep.subr.mxu0 0.0
        %4714 = vmatpush1.msra.mxu0 0.0
        %4715 = vmatprep.subr.mxu0 0.0
        %4716 = vmatpush1.msra.mxu0 0.0
        %4717 = vmatprep.subr.mxu0 0.0
        %4718 = vmatpush1.msra.mxu0 0.0
        %4719 = vmatprep.subr.mxu0 0.0
        %4720 = vmatpush1.msra.mxu0 0.0
        %4721 = vmatprep.subr.mxu0 0.0
        %4722 = vmatpush1.msra.mxu0 0.0
        %4723 = vmatprep.subr.mxu0 0.0
        %4724 = vmatpush1.msra.mxu0 0.0
        %4725 = vmatprep.subr.mxu0 0.0
        %4726 = vmatpush1.msra.mxu0 0.0
        %4727 = vmatprep.subr.mxu0 0.0
        %4728 = vmatpush1.msra.mxu0 0.0
        %4729 = vmatprep.mubr.f32.mxu0 0.0
        %4730 = vmatmul.mubr.f32.gmra.mrb[0].mxu0 %v4663
        %v4731 = vpop.f32.mrb[0].mxu0
        %v4732 = vadd.f32 0.0, %v4731
        %v4733 = vpop.f32.mrb[0].mxu0
        %4734 = vdwg.mxu0
        %v4735 = vadd.f32 %v4645, %v4732
        %s4736 = scalar_lea.vmem %s16, 384
        %v4737 = vld [vmem:[%s4736] sm:$0xff]
        %v4738 = vld [vmem:[%s4736 + $0x8] sm:$0xff]
        %v4739 = vld [vmem:[%s4736 + $0x10] sm:$0xff]
        %v4740 = vld [vmem:[%s4736 + $0x18] sm:$0xff]
        %v4741 = vld [vmem:[%s4736 + $0x20] sm:$0xff]
        %v4742 = vld [vmem:[%s4736 + $0x28] sm:$0xff]
        %v4743 = vld [vmem:[%s4736 + $0x30] sm:$0xff]
        %v4744 = vld [vmem:[%s4736 + $0x38] sm:$0xff]
        %v4745 = vld [vmem:[%s4736 + $0x40] sm:$0xff]
        %v4746 = vld [vmem:[%s4736 + $0x48] sm:$0xff]
        %v4747 = vld [vmem:[%s4736 + $0x50] sm:$0xff]
        %v4748 = vld [vmem:[%s4736 + $0x58] sm:$0xff]
        %v4749 = vld [vmem:[%s4736 + $0x60] sm:$0xff]
        %v4750 = vld [vmem:[%s4736 + $0x68] sm:$0xff]
        %v4751 = vld [vmem:[%s4736 + $0x70] sm:$0xff]
        %v4752 = vld [vmem:[%s4736 + $0x78] sm:$0xff]
        %v4753 = vrot.slane %v4465, 3
        %4755 = vmatprep.subr.mxu0 0.0
        %4756 = vmatpush1.msra.mxu0 %v4737
        %4757 = vmatprep.subr.mxu0 0.0
        %4758 = vmatpush1.msra.mxu0 %v4738
        %4759 = vmatprep.subr.mxu0 0.0
        %4760 = vmatpush1.msra.mxu0 %v4739
        %4761 = vmatprep.subr.mxu0 0.0
        %4762 = vmatpush1.msra.mxu0 %v4740
        %4763 = vmatprep.subr.mxu0 0.0
        %4764 = vmatpush1.msra.mxu0 %v4741
        %4765 = vmatprep.subr.mxu0 0.0
        %4766 = vmatpush1.msra.mxu0 %v4742
        %4767 = vmatprep.subr.mxu0 0.0
        %4768 = vmatpush1.msra.mxu0 %v4743
        %4769 = vmatprep.subr.mxu0 0.0
        %4770 = vmatpush1.msra.mxu0 %v4744
        %4771 = vmatprep.subr.mxu0 0.0
        %4772 = vmatpush1.msra.mxu0 %v4745
        %4773 = vmatprep.subr.mxu0 0.0
        %4774 = vmatpush1.msra.mxu0 %v4746
        %4775 = vmatprep.subr.mxu0 0.0
        %4776 = vmatpush1.msra.mxu0 %v4747
        %4777 = vmatprep.subr.mxu0 0.0
        %4778 = vmatpush1.msra.mxu0 %v4748
        %4779 = vmatprep.subr.mxu0 0.0
        %4780 = vmatpush1.msra.mxu0 %v4749
        %4781 = vmatprep.subr.mxu0 0.0
        %4782 = vmatpush1.msra.mxu0 %v4750
        %4783 = vmatprep.subr.mxu0 0.0
        %4784 = vmatpush1.msra.mxu0 %v4751
        %4785 = vmatprep.subr.mxu0 0.0
        %4786 = vmatpush1.msra.mxu0 %v4752
        %4787 = vmatprep.subr.mxu0 0.0
        %4788 = vmatpush1.msra.mxu0 0.0
        %4789 = vmatprep.subr.mxu0 0.0
        %4790 = vmatpush1.msra.mxu0 0.0
        %4791 = vmatprep.subr.mxu0 0.0
        %4792 = vmatpush1.msra.mxu0 0.0
        %4793 = vmatprep.subr.mxu0 0.0
        %4794 = vmatpush1.msra.mxu0 0.0
        %4795 = vmatprep.subr.mxu0 0.0
        %4796 = vmatpush1.msra.mxu0 0.0
        %4797 = vmatprep.subr.mxu0 0.0
        %4798 = vmatpush1.msra.mxu0 0.0
        %4799 = vmatprep.subr.mxu0 0.0
        %4800 = vmatpush1.msra.mxu0 0.0
        %4801 = vmatprep.subr.mxu0 0.0
        %4802 = vmatpush1.msra.mxu0 0.0
        %4803 = vmatprep.subr.mxu0 0.0
        %4804 = vmatpush1.msra.mxu0 0.0
        %4805 = vmatprep.subr.mxu0 0.0
        %4806 = vmatpush1.msra.mxu0 0.0
        %4807 = vmatprep.subr.mxu0 0.0
        %4808 = vmatpush1.msra.mxu0 0.0
        %4809 = vmatprep.subr.mxu0 0.0
        %4810 = vmatpush1.msra.mxu0 0.0
        %4811 = vmatprep.subr.mxu0 0.0
        %4812 = vmatpush1.msra.mxu0 0.0
        %4813 = vmatprep.subr.mxu0 0.0
        %4814 = vmatpush1.msra.mxu0 0.0
        %4815 = vmatprep.subr.mxu0 0.0
        %4816 = vmatpush1.msra.mxu0 0.0
        %4817 = vmatprep.subr.mxu0 0.0
        %4818 = vmatpush1.msra.mxu0 0.0
        %4819 = vmatprep.mubr.f32.mxu0 0.0
        %4820 = vmatmul.mubr.f32.gmra.mrb[0].mxu0 %v4753
        %v4821 = vpop.f32.mrb[0].mxu0
        %v4822 = vadd.f32 0.0, %v4821
        %v4823 = vpop.f32.mrb[0].mxu0
        %4824 = vdwg.mxu0
        %v4825 = vadd.f32 %v4735, %v4822
        %s4826 = scalar_lea.vmem %s16, 512
        %v4827 = vld [vmem:[%s4826] sm:$0xff]
        %v4828 = vld [vmem:[%s4826 + $0x8] sm:$0xff]
        %v4829 = vld [vmem:[%s4826 + $0x10] sm:$0xff]
        %v4830 = vld [vmem:[%s4826 + $0x18] sm:$0xff]
        %v4831 = vld [vmem:[%s4826 + $0x20] sm:$0xff]
        %v4832 = vld [vmem:[%s4826 + $0x28] sm:$0xff]
        %v4833 = vld [vmem:[%s4826 + $0x30] sm:$0xff]
        %v4834 = vld [vmem:[%s4826 + $0x38] sm:$0xff]
        %v4835 = vld [vmem:[%s4826 + $0x40] sm:$0xff]
        %v4836 = vld [vmem:[%s4826 + $0x48] sm:$0xff]
        %v4837 = vld [vmem:[%s4826 + $0x50] sm:$0xff]
        %v4838 = vld [vmem:[%s4826 + $0x58] sm:$0xff]
        %v4839 = vld [vmem:[%s4826 + $0x60] sm:$0xff]
        %v4840 = vld [vmem:[%s4826 + $0x68] sm:$0xff]
        %v4841 = vld [vmem:[%s4826 + $0x70] sm:$0xff]
        %v4842 = vld [vmem:[%s4826 + $0x78] sm:$0xff]
        %v4843 = vrot.slane %v4465, 4
        %4845 = vmatprep.subr.mxu0 0.0
        %4846 = vmatpush1.msra.mxu0 %v4827
        %4847 = vmatprep.subr.mxu0 0.0
        %4848 = vmatpush1.msra.mxu0 %v4828
        %4849 = vmatprep.subr.mxu0 0.0
        %4850 = vmatpush1.msra.mxu0 %v4829
        %4851 = vmatprep.subr.mxu0 0.0
        %4852 = vmatpush1.msra.mxu0 %v4830
        %4853 = vmatprep.subr.mxu0 0.0
        %4854 = vmatpush1.msra.mxu0 %v4831
        %4855 = vmatprep.subr.mxu0 0.0
        %4856 = vmatpush1.msra.mxu0 %v4832
        %4857 = vmatprep.subr.mxu0 0.0
        %4858 = vmatpush1.msra.mxu0 %v4833
        %4859 = vmatprep.subr.mxu0 0.0
        %4860 = vmatpush1.msra.mxu0 %v4834
        %4861 = vmatprep.subr.mxu0 0.0
        %4862 = vmatpush1.msra.mxu0 %v4835
        %4863 = vmatprep.subr.mxu0 0.0
        %4864 = vmatpush1.msra.mxu0 %v4836
        %4865 = vmatprep.subr.mxu0 0.0
        %4866 = vmatpush1.msra.mxu0 %v4837
        %4867 = vmatprep.subr.mxu0 0.0
        %4868 = vmatpush1.msra.mxu0 %v4838
        %4869 = vmatprep.subr.mxu0 0.0
        %4870 = vmatpush1.msra.mxu0 %v4839
        %4871 = vmatprep.subr.mxu0 0.0
        %4872 = vmatpush1.msra.mxu0 %v4840
        %4873 = vmatprep.subr.mxu0 0.0
        %4874 = vmatpush1.msra.mxu0 %v4841
        %4875 = vmatprep.subr.mxu0 0.0
        %4876 = vmatpush1.msra.mxu0 %v4842
        %4877 = vmatprep.subr.mxu0 0.0
        %4878 = vmatpush1.msra.mxu0 0.0
        %4879 = vmatprep.subr.mxu0 0.0
        %4880 = vmatpush1.msra.mxu0 0.0
        %4881 = vmatprep.subr.mxu0 0.0
        %4882 = vmatpush1.msra.mxu0 0.0
        %4883 = vmatprep.subr.mxu0 0.0
        %4884 = vmatpush1.msra.mxu0 0.0
        %4885 = vmatprep.subr.mxu0 0.0
        %4886 = vmatpush1.msra.mxu0 0.0
        %4887 = vmatprep.subr.mxu0 0.0
        %4888 = vmatpush1.msra.mxu0 0.0
        %4889 = vmatprep.subr.mxu0 0.0
        %4890 = vmatpush1.msra.mxu0 0.0
        %4891 = vmatprep.subr.mxu0 0.0
        %4892 = vmatpush1.msra.mxu0 0.0
        %4893 = vmatprep.subr.mxu0 0.0
        %4894 = vmatpush1.msra.mxu0 0.0
        %4895 = vmatprep.subr.mxu0 0.0
        %4896 = vmatpush1.msra.mxu0 0.0
        %4897 = vmatprep.subr.mxu0 0.0
        %4898 = vmatpush1.msra.mxu0 0.0
        %4899 = vmatprep.subr.mxu0 0.0
        %4900 = vmatpush1.msra.mxu0 0.0
        %4901 = vmatprep.subr.mxu0 0.0
        %4902 = vmatpush1.msra.mxu0 0.0
        %4903 = vmatprep.subr.mxu0 0.0
        %4904 = vmatpush1.msra.mxu0 0.0
        %4905 = vmatprep.subr.mxu0 0.0
        %4906 = vmatpush1.msra.mxu0 0.0
        %4907 = vmatprep.subr.mxu0 0.0
        %4908 = vmatpush1.msra.mxu0 0.0
        %4909 = vmatprep.mubr.f32.mxu0 0.0
        %4910 = vmatmul.mubr.f32.gmra.mrb[0].mxu0 %v4843
        %v4911 = vpop.f32.mrb[0].mxu0
        %v4912 = vadd.f32 0.0, %v4911
        %v4913 = vpop.f32.mrb[0].mxu0
        %4914 = vdwg.mxu0
        %v4915 = vadd.f32 %v4825, %v4912
        %s4916 = scalar_lea.vmem %s16, 640
        %v4917 = vld [vmem:[%s4916] sm:$0xff]
        %v4918 = vld [vmem:[%s4916 + $0x8] sm:$0xff]
        %v4919 = vld [vmem:[%s4916 + $0x10] sm:$0xff]
        %v4920 = vld [vmem:[%s4916 + $0x18] sm:$0xff]
        %v4921 = vld [vmem:[%s4916 + $0x20] sm:$0xff]
        %v4922 = vld [vmem:[%s4916 + $0x28] sm:$0xff]
        %v4923 = vld [vmem:[%s4916 + $0x30] sm:$0xff]
        %v4924 = vld [vmem:[%s4916 + $0x38] sm:$0xff]
        %v4925 = vld [vmem:[%s4916 + $0x40] sm:$0xff]
        %v4926 = vld [vmem:[%s4916 + $0x48] sm:$0xff]
        %v4927 = vld [vmem:[%s4916 + $0x50] sm:$0xff]
        %v4928 = vld [vmem:[%s4916 + $0x58] sm:$0xff]
        %v4929 = vld [vmem:[%s4916 + $0x60] sm:$0xff]
        %v4930 = vld [vmem:[%s4916 + $0x68] sm:$0xff]
        %v4931 = vld [vmem:[%s4916 + $0x70] sm:$0xff]
        %v4932 = vld [vmem:[%s4916 + $0x78] sm:$0xff]
        %v4933 = vrot.slane %v4465, 5
        %4935 = vmatprep.subr.mxu0 0.0
        %4936 = vmatpush1.msra.mxu0 %v4917
        %4937 = vmatprep.subr.mxu0 0.0
        %4938 = vmatpush1.msra.mxu0 %v4918
        %4939 = vmatprep.subr.mxu0 0.0
        %4940 = vmatpush1.msra.mxu0 %v4919
        %4941 = vmatprep.subr.mxu0 0.0
        %4942 = vmatpush1.msra.mxu0 %v4920
        %4943 = vmatprep.subr.mxu0 0.0
        %4944 = vmatpush1.msra.mxu0 %v4921
        %4945 = vmatprep.subr.mxu0 0.0
        %4946 = vmatpush1.msra.mxu0 %v4922
        %4947 = vmatprep.subr.mxu0 0.0
        %4948 = vmatpush1.msra.mxu0 %v4923
        %4949 = vmatprep.subr.mxu0 0.0
        %4950 = vmatpush1.msra.mxu0 %v4924
        %4951 = vmatprep.subr.mxu0 0.0
        %4952 = vmatpush1.msra.mxu0 %v4925
        %4953 = vmatprep.subr.mxu0 0.0
        %4954 = vmatpush1.msra.mxu0 %v4926
        %4955 = vmatprep.subr.mxu0 0.0
        %4956 = vmatpush1.msra.mxu0 %v4927
        %4957 = vmatprep.subr.mxu0 0.0
        %4958 = vmatpush1.msra.mxu0 %v4928
        %4959 = vmatprep.subr.mxu0 0.0
        %4960 = vmatpush1.msra.mxu0 %v4929
        %4961 = vmatprep.subr.mxu0 0.0
        %4962 = vmatpush1.msra.mxu0 %v4930
        %4963 = vmatprep.subr.mxu0 0.0
        %4964 = vmatpush1.msra.mxu0 %v4931
        %4965 = vmatprep.subr.mxu0 0.0
        %4966 = vmatpush1.msra.mxu0 %v4932
        %4967 = vmatprep.subr.mxu0 0.0
        %4968 = vmatpush1.msra.mxu0 0.0
        %4969 = vmatprep.subr.mxu0 0.0
        %4970 = vmatpush1.msra.mxu0 0.0
        %4971 = vmatprep.subr.mxu0 0.0
        %4972 = vmatpush1.msra.mxu0 0.0
        %4973 = vmatprep.subr.mxu0 0.0
        %4974 = vmatpush1.msra.mxu0 0.0
        %4975 = vmatprep.subr.mxu0 0.0
        %4976 = vmatpush1.msra.mxu0 0.0
        %4977 = vmatprep.subr.mxu0 0.0
        %4978 = vmatpush1.msra.mxu0 0.0
        %4979 = vmatprep.subr.mxu0 0.0
        %4980 = vmatpush1.msra.mxu0 0.0
        %4981 = vmatprep.subr.mxu0 0.0
        %4982 = vmatpush1.msra.mxu0 0.0
        %4983 = vmatprep.subr.mxu0 0.0
        %4984 = vmatpush1.msra.mxu0 0.0
        %4985 = vmatprep.subr.mxu0 0.0
        %4986 = vmatpush1.msra.mxu0 0.0
        %4987 = vmatprep.subr.mxu0 0.0
        %4988 = vmatpush1.msra.mxu0 0.0
        %4989 = vmatprep.subr.mxu0 0.0
        %4990 = vmatpush1.msra.mxu0 0.0
        %4991 = vmatprep.subr.mxu0 0.0
        %4992 = vmatpush1.msra.mxu0 0.0
        %4993 = vmatprep.subr.mxu0 0.0
        %4994 = vmatpush1.msra.mxu0 0.0
        %4995 = vmatprep.subr.mxu0 0.0
        %4996 = vmatpush1.msra.mxu0 0.0
        %4997 = vmatprep.subr.mxu0 0.0
        %4998 = vmatpush1.msra.mxu0 0.0
        %4999 = vmatprep.mubr.f32.mxu0 0.0
        %5000 = vmatmul.mubr.f32.gmra.mrb[0].mxu0 %v4933
        %v5001 = vpop.f32.mrb[0].mxu0
        %v5002 = vadd.f32 0.0, %v5001
        %v5003 = vpop.f32.mrb[0].mxu0
        %5004 = vdwg.mxu0
        %v5005 = vadd.f32 %v4915, %v5002
        %s5006 = scalar_lea.vmem %s16, 768
        %v5007 = vld [vmem:[%s5006] sm:$0xff]
        %v5008 = vld [vmem:[%s5006 + $0x8] sm:$0xff]
        %v5009 = vld [vmem:[%s5006 + $0x10] sm:$0xff]
        %v5010 = vld [vmem:[%s5006 + $0x18] sm:$0xff]
        %v5011 = vld [vmem:[%s5006 + $0x20] sm:$0xff]
        %v5012 = vld [vmem:[%s5006 + $0x28] sm:$0xff]
        %v5013 = vld [vmem:[%s5006 + $0x30] sm:$0xff]
        %v5014 = vld [vmem:[%s5006 + $0x38] sm:$0xff]
        %v5015 = vld [vmem:[%s5006 + $0x40] sm:$0xff]
        %v5016 = vld [vmem:[%s5006 + $0x48] sm:$0xff]
        %v5017 = vld [vmem:[%s5006 + $0x50] sm:$0xff]
        %v5018 = vld [vmem:[%s5006 + $0x58] sm:$0xff]
        %v5019 = vld [vmem:[%s5006 + $0x60] sm:$0xff]
        %v5020 = vld [vmem:[%s5006 + $0x68] sm:$0xff]
        %v5021 = vld [vmem:[%s5006 + $0x70] sm:$0xff]
        %v5022 = vld [vmem:[%s5006 + $0x78] sm:$0xff]
        %v5023 = vrot.slane %v4465, 6
        %5025 = vmatprep.subr.mxu0 0.0
        %5026 = vmatpush1.msra.mxu0 %v5007
        %5027 = vmatprep.subr.mxu0 0.0
        %5028 = vmatpush1.msra.mxu0 %v5008
        %5029 = vmatprep.subr.mxu0 0.0
        %5030 = vmatpush1.msra.mxu0 %v5009
        %5031 = vmatprep.subr.mxu0 0.0
        %5032 = vmatpush1.msra.mxu0 %v5010
        %5033 = vmatprep.subr.mxu0 0.0
        %5034 = vmatpush1.msra.mxu0 %v5011
        %5035 = vmatprep.subr.mxu0 0.0
        %5036 = vmatpush1.msra.mxu0 %v5012
        %5037 = vmatprep.subr.mxu0 0.0
        %5038 = vmatpush1.msra.mxu0 %v5013
        %5039 = vmatprep.subr.mxu0 0.0
        %5040 = vmatpush1.msra.mxu0 %v5014
        %5041 = vmatprep.subr.mxu0 0.0
        %5042 = vmatpush1.msra.mxu0 %v5015
        %5043 = vmatprep.subr.mxu0 0.0
        %5044 = vmatpush1.msra.mxu0 %v5016
        %5045 = vmatprep.subr.mxu0 0.0
        %5046 = vmatpush1.msra.mxu0 %v5017
        %5047 = vmatprep.subr.mxu0 0.0
        %5048 = vmatpush1.msra.mxu0 %v5018
        %5049 = vmatprep.subr.mxu0 0.0
        %5050 = vmatpush1.msra.mxu0 %v5019
        %5051 = vmatprep.subr.mxu0 0.0
        %5052 = vmatpush1.msra.mxu0 %v5020
        %5053 = vmatprep.subr.mxu0 0.0
        %5054 = vmatpush1.msra.mxu0 %v5021
        %5055 = vmatprep.subr.mxu0 0.0
        %5056 = vmatpush1.msra.mxu0 %v5022
        %5057 = vmatprep.subr.mxu0 0.0
        %5058 = vmatpush1.msra.mxu0 0.0
        %5059 = vmatprep.subr.mxu0 0.0
        %5060 = vmatpush1.msra.mxu0 0.0
        %5061 = vmatprep.subr.mxu0 0.0
        %5062 = vmatpush1.msra.mxu0 0.0
        %5063 = vmatprep.subr.mxu0 0.0
        %5064 = vmatpush1.msra.mxu0 0.0
        %5065 = vmatprep.subr.mxu0 0.0
        %5066 = vmatpush1.msra.mxu0 0.0
        %5067 = vmatprep.subr.mxu0 0.0
        %5068 = vmatpush1.msra.mxu0 0.0
        %5069 = vmatprep.subr.mxu0 0.0
        %5070 = vmatpush1.msra.mxu0 0.0
        %5071 = vmatprep.subr.mxu0 0.0
        %5072 = vmatpush1.msra.mxu0 0.0
        %5073 = vmatprep.subr.mxu0 0.0
        %5074 = vmatpush1.msra.mxu0 0.0
        %5075 = vmatprep.subr.mxu0 0.0
        %5076 = vmatpush1.msra.mxu0 0.0
        %5077 = vmatprep.subr.mxu0 0.0
        %5078 = vmatpush1.msra.mxu0 0.0
        %5079 = vmatprep.subr.mxu0 0.0
        %5080 = vmatpush1.msra.mxu0 0.0
        %5081 = vmatprep.subr.mxu0 0.0
        %5082 = vmatpush1.msra.mxu0 0.0
        %5083 = vmatprep.subr.mxu0 0.0
        %5084 = vmatpush1.msra.mxu0 0.0
        %5085 = vmatprep.subr.mxu0 0.0
        %5086 = vmatpush1.msra.mxu0 0.0
        %5087 = vmatprep.subr.mxu0 0.0
        %5088 = vmatpush1.msra.mxu0 0.0
        %5089 = vmatprep.mubr.f32.mxu0 0.0
        %5090 = vmatmul.mubr.f32.gmra.mrb[0].mxu0 %v5023
        %v5091 = vpop.f32.mrb[0].mxu0
        %v5092 = vadd.f32 0.0, %v5091
        %v5093 = vpop.f32.mrb[0].mxu0
        %5094 = vdwg.mxu0
        %v5095 = vadd.f32 %v5005, %v5092
        %s5096 = scalar_lea.vmem %s16, 896
        %v5097 = vld [vmem:[%s5096] sm:$0xff]
        %v5098 = vld [vmem:[%s5096 + $0x8] sm:$0xff]
        %v5099 = vld [vmem:[%s5096 + $0x10] sm:$0xff]
        %v5100 = vld [vmem:[%s5096 + $0x18] sm:$0xff]
        %v5101 = vld [vmem:[%s5096 + $0x20] sm:$0xff]
        %v5102 = vld [vmem:[%s5096 + $0x28] sm:$0xff]
        %v5103 = vld [vmem:[%s5096 + $0x30] sm:$0xff]
        %v5104 = vld [vmem:[%s5096 + $0x38] sm:$0xff]
        %v5105 = vld [vmem:[%s5096 + $0x40] sm:$0xff]
        %v5106 = vld [vmem:[%s5096 + $0x48] sm:$0xff]
        %v5107 = vld [vmem:[%s5096 + $0x50] sm:$0xff]
        %v5108 = vld [vmem:[%s5096 + $0x58] sm:$0xff]
        %v5109 = vld [vmem:[%s5096 + $0x60] sm:$0xff]
        %v5110 = vld [vmem:[%s5096 + $0x68] sm:$0xff]
        %v5111 = vld [vmem:[%s5096 + $0x70] sm:$0xff]
        %v5112 = vld [vmem:[%s5096 + $0x78] sm:$0xff]
        %v5113 = vrot.slane %v4465, 7
        %5115 = vmatprep.subr.mxu0 0.0
        %5116 = vmatpush1.msra.mxu0 %v5097
        %5117 = vmatprep.subr.mxu0 0.0
        %5118 = vmatpush1.msra.mxu0 %v5098
        %5119 = vmatprep.subr.mxu0 0.0
        %5120 = vmatpush1.msra.mxu0 %v5099
        %5121 = vmatprep.subr.mxu0 0.0
        %5122 = vmatpush1.msra.mxu0 %v5100
        %5123 = vmatprep.subr.mxu0 0.0
        %5124 = vmatpush1.msra.mxu0 %v5101
        %5125 = vmatprep.subr.mxu0 0.0
        %5126 = vmatpush1.msra.mxu0 %v5102
        %5127 = vmatprep.subr.mxu0 0.0
        %5128 = vmatpush1.msra.mxu0 %v5103
        %5129 = vmatprep.subr.mxu0 0.0
        %5130 = vmatpush1.msra.mxu0 %v5104
        %5131 = vmatprep.subr.mxu0 0.0
        %5132 = vmatpush1.msra.mxu0 %v5105
        %5133 = vmatprep.subr.mxu0 0.0
        %5134 = vmatpush1.msra.mxu0 %v5106
        %5135 = vmatprep.subr.mxu0 0.0
        %5136 = vmatpush1.msra.mxu0 %v5107
        %5137 = vmatprep.subr.mxu0 0.0
        %5138 = vmatpush1.msra.mxu0 %v5108
        %5139 = vmatprep.subr.mxu0 0.0
        %5140 = vmatpush1.msra.mxu0 %v5109
        %5141 = vmatprep.subr.mxu0 0.0
        %5142 = vmatpush1.msra.mxu0 %v5110
        %5143 = vmatprep.subr.mxu0 0.0
        %5144 = vmatpush1.msra.mxu0 %v5111
        %5145 = vmatprep.subr.mxu0 0.0
        %5146 = vmatpush1.msra.mxu0 %v5112
        %5147 = vmatprep.subr.mxu0 0.0
        %5148 = vmatpush1.msra.mxu0 0.0
        %5149 = vmatprep.subr.mxu0 0.0
        %5150 = vmatpush1.msra.mxu0 0.0
        %5151 = vmatprep.subr.mxu0 0.0
        %5152 = vmatpush1.msra.mxu0 0.0
        %5153 = vmatprep.subr.mxu0 0.0
        %5154 = vmatpush1.msra.mxu0 0.0
        %5155 = vmatprep.subr.mxu0 0.0
        %5156 = vmatpush1.msra.mxu0 0.0
        %5157 = vmatprep.subr.mxu0 0.0
        %5158 = vmatpush1.msra.mxu0 0.0
        %5159 = vmatprep.subr.mxu0 0.0
        %5160 = vmatpush1.msra.mxu0 0.0
        %5161 = vmatprep.subr.mxu0 0.0
        %5162 = vmatpush1.msra.mxu0 0.0
        %5163 = vmatprep.subr.mxu0 0.0
        %5164 = vmatpush1.msra.mxu0 0.0
        %5165 = vmatprep.subr.mxu0 0.0
        %5166 = vmatpush1.msra.mxu0 0.0
        %5167 = vmatprep.subr.mxu0 0.0
        %5168 = vmatpush1.msra.mxu0 0.0
        %5169 = vmatprep.subr.mxu0 0.0
        %5170 = vmatpush1.msra.mxu0 0.0
        %5171 = vmatprep.subr.mxu0 0.0
        %5172 = vmatpush1.msra.mxu0 0.0
        %5173 = vmatprep.subr.mxu0 0.0
        %5174 = vmatpush1.msra.mxu0 0.0
        %5175 = vmatprep.subr.mxu0 0.0
        %5176 = vmatpush1.msra.mxu0 0.0
        %5177 = vmatprep.subr.mxu0 0.0
        %5178 = vmatpush1.msra.mxu0 0.0
        %5179 = vmatprep.mubr.f32.mxu0 0.0
        %5180 = vmatmul.mubr.f32.gmra.mrb[0].mxu0 %v5113
        %v5181 = vpop.f32.mrb[0].mxu0
        %v5182 = vadd.f32 0.0, %v5181
        %v5183 = vpop.f32.mrb[0].mxu0
        %5184 = vdwg.mxu0
        %v5185 = vadd.f32 %v5095, %v5182
        %s5186 = scalar_lea.vmem %s16, 1024
        %v5187 = vld [vmem:[%s5186] sm:$0xff]
        %v5188 = vld [vmem:[%s5186 + $0x8] sm:$0xff]
        %v5189 = vld [vmem:[%s5186 + $0x10] sm:$0xff]
        %v5190 = vld [vmem:[%s5186 + $0x18] sm:$0xff]
        %v5191 = vld [vmem:[%s5186 + $0x20] sm:$0xff]
        %v5192 = vld [vmem:[%s5186 + $0x28] sm:$0xff]
        %v5193 = vld [vmem:[%s5186 + $0x30] sm:$0xff]
        %v5194 = vld [vmem:[%s5186 + $0x38] sm:$0xff]
        %v5195 = vld [vmem:[%s5186 + $0x40] sm:$0xff]
        %v5196 = vld [vmem:[%s5186 + $0x48] sm:$0xff]
        %v5197 = vld [vmem:[%s5186 + $0x50] sm:$0xff]
        %v5198 = vld [vmem:[%s5186 + $0x58] sm:$0xff]
        %v5199 = vld [vmem:[%s5186 + $0x60] sm:$0xff]
        %v5200 = vld [vmem:[%s5186 + $0x68] sm:$0xff]
        %v5201 = vld [vmem:[%s5186 + $0x70] sm:$0xff]
        %v5202 = vld [vmem:[%s5186 + $0x78] sm:$0xff]
        %5203 = vmatprep.subr.mxu0 0.0
        %5204 = vmatpush1.msra.mxu0 %v5187
        %5205 = vmatprep.subr.mxu0 0.0
        %5206 = vmatpush1.msra.mxu0 %v5188
        %5207 = vmatprep.subr.mxu0 0.0
        %5208 = vmatpush1.msra.mxu0 %v5189
        %5209 = vmatprep.subr.mxu0 0.0
        %5210 = vmatpush1.msra.mxu0 %v5190
        %5211 = vmatprep.subr.mxu0 0.0
        %5212 = vmatpush1.msra.mxu0 %v5191
        %5213 = vmatprep.subr.mxu0 0.0
        %5214 = vmatpush1.msra.mxu0 %v5192
        %5215 = vmatprep.subr.mxu0 0.0
        %5216 = vmatpush1.msra.mxu0 %v5193
        %5217 = vmatprep.subr.mxu0 0.0
        %5218 = vmatpush1.msra.mxu0 %v5194
        %5219 = vmatprep.subr.mxu0 0.0
        %5220 = vmatpush1.msra.mxu0 %v5195
        %5221 = vmatprep.subr.mxu0 0.0
        %5222 = vmatpush1.msra.mxu0 %v5196
        %5223 = vmatprep.subr.mxu0 0.0
        %5224 = vmatpush1.msra.mxu0 %v5197
        %5225 = vmatprep.subr.mxu0 0.0
        %5226 = vmatpush1.msra.mxu0 %v5198
        %5227 = vmatprep.subr.mxu0 0.0
        %5228 = vmatpush1.msra.mxu0 %v5199
        %5229 = vmatprep.subr.mxu0 0.0
        %5230 = vmatpush1.msra.mxu0 %v5200
        %5231 = vmatprep.subr.mxu0 0.0
        %5232 = vmatpush1.msra.mxu0 %v5201
        %5233 = vmatprep.subr.mxu0 0.0
        %5234 = vmatpush1.msra.mxu0 %v5202
        %5235 = vmatprep.subr.mxu0 0.0
        %5236 = vmatpush1.msra.mxu0 0.0
        %5237 = vmatprep.subr.mxu0 0.0
        %5238 = vmatpush1.msra.mxu0 0.0
        %5239 = vmatprep.subr.mxu0 0.0
        %5240 = vmatpush1.msra.mxu0 0.0
        %5241 = vmatprep.subr.mxu0 0.0
        %5242 = vmatpush1.msra.mxu0 0.0
        %5243 = vmatprep.subr.mxu0 0.0
        %5244 = vmatpush1.msra.mxu0 0.0
        %5245 = vmatprep.subr.mxu0 0.0
        %5246 = vmatpush1.msra.mxu0 0.0
        %5247 = vmatprep.subr.mxu0 0.0
        %5248 = vmatpush1.msra.mxu0 0.0
        %5249 = vmatprep.subr.mxu0 0.0
        %5250 = vmatpush1.msra.mxu0 0.0
        %5251 = vmatprep.subr.mxu0 0.0
        %5252 = vmatpush1.msra.mxu0 0.0
        %5253 = vmatprep.subr.mxu0 0.0
        %5254 = vmatpush1.msra.mxu0 0.0
        %5255 = vmatprep.subr.mxu0 0.0
        %5256 = vmatpush1.msra.mxu0 0.0
        %5257 = vmatprep.subr.mxu0 0.0
        %5258 = vmatpush1.msra.mxu0 0.0
        %5259 = vmatprep.subr.mxu0 0.0
        %5260 = vmatpush1.msra.mxu0 0.0
        %5261 = vmatprep.subr.mxu0 0.0
        %5262 = vmatpush1.msra.mxu0 0.0
        %5263 = vmatprep.subr.mxu0 0.0
        %5264 = vmatpush1.msra.mxu0 0.0
        %5265 = vmatprep.subr.mxu0 0.0
        %5266 = vmatpush1.msra.mxu0 0.0
        %5267 = vmatprep.mubr.f32.mxu0 0.0
        %5268 = vmatmul.mubr.f32.gmra.mrb[0].mxu0 %v4466
        %v5269 = vpop.f32.mrb[0].mxu0
        %v5270 = vadd.f32 0.0, %v5269
        %v5271 = vpop.f32.mrb[0].mxu0
        %5272 = vdwg.mxu0
        %v5273 = vadd.f32 %v5185, %v5270
        %s5274 = scalar_lea.vmem %s16, 1152
        %v5275 = vld [vmem:[%s5274] sm:$0xff]
        %v5276 = vld [vmem:[%s5274 + $0x8] sm:$0xff]
        %v5277 = vld [vmem:[%s5274 + $0x10] sm:$0xff]
        %v5278 = vld [vmem:[%s5274 + $0x18] sm:$0xff]
        %v5279 = vld [vmem:[%s5274 + $0x20] sm:$0xff]
        %v5280 = vld [vmem:[%s5274 + $0x28] sm:$0xff]
        %v5281 = vld [vmem:[%s5274 + $0x30] sm:$0xff]
        %v5282 = vld [vmem:[%s5274 + $0x38] sm:$0xff]
        %v5283 = vld [vmem:[%s5274 + $0x40] sm:$0xff]
        %v5284 = vld [vmem:[%s5274 + $0x48] sm:$0xff]
        %v5285 = vld [vmem:[%s5274 + $0x50] sm:$0xff]
        %v5286 = vld [vmem:[%s5274 + $0x58] sm:$0xff]
        %v5287 = vld [vmem:[%s5274 + $0x60] sm:$0xff]
        %v5288 = vld [vmem:[%s5274 + $0x68] sm:$0xff]
        %v5289 = vld [vmem:[%s5274 + $0x70] sm:$0xff]
        %v5290 = vld [vmem:[%s5274 + $0x78] sm:$0xff]
        %v5292 = vrot.slane %v4466, 1
        %5294 = vmatprep.subr.mxu0 0.0
        %5295 = vmatpush1.msra.mxu0 %v5275
        %5296 = vmatprep.subr.mxu0 0.0
        %5297 = vmatpush1.msra.mxu0 %v5276
        %5298 = vmatprep.subr.mxu0 0.0
        %5299 = vmatpush1.msra.mxu0 %v5277
        %5300 = vmatprep.subr.mxu0 0.0
        %5301 = vmatpush1.msra.mxu0 %v5278
        %5302 = vmatprep.subr.mxu0 0.0
        %5303 = vmatpush1.msra.mxu0 %v5279
        %5304 = vmatprep.subr.mxu0 0.0
        %5305 = vmatpush1.msra.mxu0 %v5280
        %5306 = vmatprep.subr.mxu0 0.0
        %5307 = vmatpush1.msra.mxu0 %v5281
        %5308 = vmatprep.subr.mxu0 0.0
        %5309 = vmatpush1.msra.mxu0 %v5282
        %5310 = vmatprep.subr.mxu0 0.0
        %5311 = vmatpush1.msra.mxu0 %v5283
        %5312 = vmatprep.subr.mxu0 0.0
        %5313 = vmatpush1.msra.mxu0 %v5284
        %5314 = vmatprep.subr.mxu0 0.0
        %5315 = vmatpush1.msra.mxu0 %v5285
        %5316 = vmatprep.subr.mxu0 0.0
        %5317 = vmatpush1.msra.mxu0 %v5286
        %5318 = vmatprep.subr.mxu0 0.0
        %5319 = vmatpush1.msra.mxu0 %v5287
        %5320 = vmatprep.subr.mxu0 0.0
        %5321 = vmatpush1.msra.mxu0 %v5288
        %5322 = vmatprep.subr.mxu0 0.0
        %5323 = vmatpush1.msra.mxu0 %v5289
        %5324 = vmatprep.subr.mxu0 0.0
        %5325 = vmatpush1.msra.mxu0 %v5290
        %5326 = vmatprep.subr.mxu0 0.0
        %5327 = vmatpush1.msra.mxu0 0.0
        %5328 = vmatprep.subr.mxu0 0.0
        %5329 = vmatpush1.msra.mxu0 0.0
        %5330 = vmatprep.subr.mxu0 0.0
        %5331 = vmatpush1.msra.mxu0 0.0
        %5332 = vmatprep.subr.mxu0 0.0
        %5333 = vmatpush1.msra.mxu0 0.0
        %5334 = vmatprep.subr.mxu0 0.0
        %5335 = vmatpush1.msra.mxu0 0.0
        %5336 = vmatprep.subr.mxu0 0.0
        %5337 = vmatpush1.msra.mxu0 0.0
        %5338 = vmatprep.subr.mxu0 0.0
        %5339 = vmatpush1.msra.mxu0 0.0
        %5340 = vmatprep.subr.mxu0 0.0
        %5341 = vmatpush1.msra.mxu0 0.0
        %5342 = vmatprep.subr.mxu0 0.0
        %5343 = vmatpush1.msra.mxu0 0.0
        %5344 = vmatprep.subr.mxu0 0.0
        %5345 = vmatpush1.msra.mxu0 0.0
        %5346 = vmatprep.subr.mxu0 0.0
        %5347 = vmatpush1.msra.mxu0 0.0
        %5348 = vmatprep.subr.mxu0 0.0
        %5349 = vmatpush1.msra.mxu0 0.0
        %5350 = vmatprep.subr.mxu0 0.0
        %5351 = vmatpush1.msra.mxu0 0.0
        %5352 = vmatprep.subr.mxu0 0.0
        %5353 = vmatpush1.msra.mxu0 0.0
        %5354 = vmatprep.subr.mxu0 0.0
        %5355 = vmatpush1.msra.mxu0 0.0
        %5356 = vmatprep.subr.mxu0 0.0
        %5357 = vmatpush1.msra.mxu0 0.0
        %5358 = vmatprep.mubr.f32.mxu0 0.0
        %5359 = vmatmul.mubr.f32.gmra.mrb[0].mxu0 %v5292
        %v5360 = vpop.f32.mrb[0].mxu0
        %v5361 = vadd.f32 0.0, %v5360
        %v5362 = vpop.f32.mrb[0].mxu0
        %5363 = vdwg.mxu0
        %v5364 = vadd.f32 %v5273, %v5361
        %s5365 = scalar_lea.vmem %s16, 1280
        %v5366 = vld [vmem:[%s5365] sm:$0xff]
        %v5367 = vld [vmem:[%s5365 + $0x8] sm:$0xff]
        %v5368 = vld [vmem:[%s5365 + $0x10] sm:$0xff]
        %v5369 = vld [vmem:[%s5365 + $0x18] sm:$0xff]
        %v5370 = vld [vmem:[%s5365 + $0x20] sm:$0xff]
        %v5371 = vld [vmem:[%s5365 + $0x28] sm:$0xff]
        %v5372 = vld [vmem:[%s5365 + $0x30] sm:$0xff]
        %v5373 = vld [vmem:[%s5365 + $0x38] sm:$0xff]
        %v5374 = vld [vmem:[%s5365 + $0x40] sm:$0xff]
        %v5375 = vld [vmem:[%s5365 + $0x48] sm:$0xff]
        %v5376 = vld [vmem:[%s5365 + $0x50] sm:$0xff]
        %v5377 = vld [vmem:[%s5365 + $0x58] sm:$0xff]
        %v5378 = vld [vmem:[%s5365 + $0x60] sm:$0xff]
        %v5379 = vld [vmem:[%s5365 + $0x68] sm:$0xff]
        %v5380 = vld [vmem:[%s5365 + $0x70] sm:$0xff]
        %v5381 = vld [vmem:[%s5365 + $0x78] sm:$0xff]
        %v5382 = vrot.slane %v4466, 2
        %5384 = vmatprep.subr.mxu0 0.0
        %5385 = vmatpush1.msra.mxu0 %v5366
        %5386 = vmatprep.subr.mxu0 0.0
        %5387 = vmatpush1.msra.mxu0 %v5367
        %5388 = vmatprep.subr.mxu0 0.0
        %5389 = vmatpush1.msra.mxu0 %v5368
        %5390 = vmatprep.subr.mxu0 0.0
        %5391 = vmatpush1.msra.mxu0 %v5369
        %5392 = vmatprep.subr.mxu0 0.0
        %5393 = vmatpush1.msra.mxu0 %v5370
        %5394 = vmatprep.subr.mxu0 0.0
        %5395 = vmatpush1.msra.mxu0 %v5371
        %5396 = vmatprep.subr.mxu0 0.0
        %5397 = vmatpush1.msra.mxu0 %v5372
        %5398 = vmatprep.subr.mxu0 0.0
        %5399 = vmatpush1.msra.mxu0 %v5373
        %5400 = vmatprep.subr.mxu0 0.0
        %5401 = vmatpush1.msra.mxu0 %v5374
        %5402 = vmatprep.subr.mxu0 0.0
        %5403 = vmatpush1.msra.mxu0 %v5375
        %5404 = vmatprep.subr.mxu0 0.0
        %5405 = vmatpush1.msra.mxu0 %v5376
        %5406 = vmatprep.subr.mxu0 0.0
        %5407 = vmatpush1.msra.mxu0 %v5377
        %5408 = vmatprep.subr.mxu0 0.0
        %5409 = vmatpush1.msra.mxu0 %v5378
        %5410 = vmatprep.subr.mxu0 0.0
        %5411 = vmatpush1.msra.mxu0 %v5379
        %5412 = vmatprep.subr.mxu0 0.0
        %5413 = vmatpush1.msra.mxu0 %v5380
        %5414 = vmatprep.subr.mxu0 0.0
        %5415 = vmatpush1.msra.mxu0 %v5381
        %5416 = vmatprep.subr.mxu0 0.0
        %5417 = vmatpush1.msra.mxu0 0.0
        %5418 = vmatprep.subr.mxu0 0.0
        %5419 = vmatpush1.msra.mxu0 0.0
        %5420 = vmatprep.subr.mxu0 0.0
        %5421 = vmatpush1.msra.mxu0 0.0
        %5422 = vmatprep.subr.mxu0 0.0
        %5423 = vmatpush1.msra.mxu0 0.0
        %5424 = vmatprep.subr.mxu0 0.0
        %5425 = vmatpush1.msra.mxu0 0.0
        %5426 = vmatprep.subr.mxu0 0.0
        %5427 = vmatpush1.msra.mxu0 0.0
        %5428 = vmatprep.subr.mxu0 0.0
        %5429 = vmatpush1.msra.mxu0 0.0
        %5430 = vmatprep.subr.mxu0 0.0
        %5431 = vmatpush1.msra.mxu0 0.0
        %5432 = vmatprep.subr.mxu0 0.0
        %5433 = vmatpush1.msra.mxu0 0.0
        %5434 = vmatprep.subr.mxu0 0.0
        %5435 = vmatpush1.msra.mxu0 0.0
        %5436 = vmatprep.subr.mxu0 0.0
        %5437 = vmatpush1.msra.mxu0 0.0
        %5438 = vmatprep.subr.mxu0 0.0
        %5439 = vmatpush1.msra.mxu0 0.0
        %5440 = vmatprep.subr.mxu0 0.0
        %5441 = vmatpush1.msra.mxu0 0.0
        %5442 = vmatprep.subr.mxu0 0.0
        %5443 = vmatpush1.msra.mxu0 0.0
        %5444 = vmatprep.subr.mxu0 0.0
        %5445 = vmatpush1.msra.mxu0 0.0
        %5446 = vmatprep.subr.mxu0 0.0
        %5447 = vmatpush1.msra.mxu0 0.0
        %5448 = vmatprep.mubr.f32.mxu0 0.0
        %5449 = vmatmul.mubr.f32.gmra.mrb[0].mxu0 %v5382
        %v5450 = vpop.f32.mrb[0].mxu0
        %v5451 = vadd.f32 0.0, %v5450
        %v5452 = vpop.f32.mrb[0].mxu0
        %5453 = vdwg.mxu0
        %v5454 = vadd.f32 %v5364, %v5451
        %s5455 = scalar_lea.vmem %s16, 1408
        %v5456 = vld [vmem:[%s5455] sm:$0xff]
        %v5457 = vld [vmem:[%s5455 + $0x8] sm:$0xff]
        %v5458 = vld [vmem:[%s5455 + $0x10] sm:$0xff]
        %v5459 = vld [vmem:[%s5455 + $0x18] sm:$0xff]
        %v5460 = vld [vmem:[%s5455 + $0x20] sm:$0xff]
        %v5461 = vld [vmem:[%s5455 + $0x28] sm:$0xff]
        %v5462 = vld [vmem:[%s5455 + $0x30] sm:$0xff]
        %v5463 = vld [vmem:[%s5455 + $0x38] sm:$0xff]
        %v5464 = vld [vmem:[%s5455 + $0x40] sm:$0xff]
        %v5465 = vld [vmem:[%s5455 + $0x48] sm:$0xff]
        %v5466 = vld [vmem:[%s5455 + $0x50] sm:$0xff]
        %v5467 = vld [vmem:[%s5455 + $0x58] sm:$0xff]
        %v5468 = vld [vmem:[%s5455 + $0x60] sm:$0xff]
        %v5469 = vld [vmem:[%s5455 + $0x68] sm:$0xff]
        %v5470 = vld [vmem:[%s5455 + $0x70] sm:$0xff]
        %v5471 = vld [vmem:[%s5455 + $0x78] sm:$0xff]
        %v5472 = vrot.slane %v4466, 3
        %5474 = vmatprep.subr.mxu0 0.0
        %5475 = vmatpush1.msra.mxu0 %v5456
        %5476 = vmatprep.subr.mxu0 0.0
        %5477 = vmatpush1.msra.mxu0 %v5457
        %5478 = vmatprep.subr.mxu0 0.0
        %5479 = vmatpush1.msra.mxu0 %v5458
        %5480 = vmatprep.subr.mxu0 0.0
        %5481 = vmatpush1.msra.mxu0 %v5459
        %5482 = vmatprep.subr.mxu0 0.0
        %5483 = vmatpush1.msra.mxu0 %v5460
        %5484 = vmatprep.subr.mxu0 0.0
        %5485 = vmatpush1.msra.mxu0 %v5461
        %5486 = vmatprep.subr.mxu0 0.0
        %5487 = vmatpush1.msra.mxu0 %v5462
        %5488 = vmatprep.subr.mxu0 0.0
        %5489 = vmatpush1.msra.mxu0 %v5463
        %5490 = vmatprep.subr.mxu0 0.0
        %5491 = vmatpush1.msra.mxu0 %v5464
        %5492 = vmatprep.subr.mxu0 0.0
        %5493 = vmatpush1.msra.mxu0 %v5465
        %5494 = vmatprep.subr.mxu0 0.0
        %5495 = vmatpush1.msra.mxu0 %v5466
        %5496 = vmatprep.subr.mxu0 0.0
        %5497 = vmatpush1.msra.mxu0 %v5467
        %5498 = vmatprep.subr.mxu0 0.0
        %5499 = vmatpush1.msra.mxu0 %v5468
        %5500 = vmatprep.subr.mxu0 0.0
        %5501 = vmatpush1.msra.mxu0 %v5469
        %5502 = vmatprep.subr.mxu0 0.0
        %5503 = vmatpush1.msra.mxu0 %v5470
        %5504 = vmatprep.subr.mxu0 0.0
        %5505 = vmatpush1.msra.mxu0 %v5471
        %5506 = vmatprep.subr.mxu0 0.0
        %5507 = vmatpush1.msra.mxu0 0.0
        %5508 = vmatprep.subr.mxu0 0.0
        %5509 = vmatpush1.msra.mxu0 0.0
        %5510 = vmatprep.subr.mxu0 0.0
        %5511 = vmatpush1.msra.mxu0 0.0
        %5512 = vmatprep.subr.mxu0 0.0
        %5513 = vmatpush1.msra.mxu0 0.0
        %5514 = vmatprep.subr.mxu0 0.0
        %5515 = vmatpush1.msra.mxu0 0.0
        %5516 = vmatprep.subr.mxu0 0.0
        %5517 = vmatpush1.msra.mxu0 0.0
        %5518 = vmatprep.subr.mxu0 0.0
        %5519 = vmatpush1.msra.mxu0 0.0
        %5520 = vmatprep.subr.mxu0 0.0
        %5521 = vmatpush1.msra.mxu0 0.0
        %5522 = vmatprep.subr.mxu0 0.0
        %5523 = vmatpush1.msra.mxu0 0.0
        %5524 = vmatprep.subr.mxu0 0.0
        %5525 = vmatpush1.msra.mxu0 0.0
        %5526 = vmatprep.subr.mxu0 0.0
        %5527 = vmatpush1.msra.mxu0 0.0
        %5528 = vmatprep.subr.mxu0 0.0
        %5529 = vmatpush1.msra.mxu0 0.0
        %5530 = vmatprep.subr.mxu0 0.0
        %5531 = vmatpush1.msra.mxu0 0.0
        %5532 = vmatprep.subr.mxu0 0.0
        %5533 = vmatpush1.msra.mxu0 0.0
        %5534 = vmatprep.subr.mxu0 0.0
        %5535 = vmatpush1.msra.mxu0 0.0
        %5536 = vmatprep.subr.mxu0 0.0
        %5537 = vmatpush1.msra.mxu0 0.0
        %5538 = vmatprep.mubr.f32.mxu0 0.0
        %5539 = vmatmul.mubr.f32.gmra.mrb[0].mxu0 %v5472
        %v5540 = vpop.f32.mrb[0].mxu0
        %v5541 = vadd.f32 0.0, %v5540
        %v5542 = vpop.f32.mrb[0].mxu0
        %5543 = vdwg.mxu0
        %v5544 = vadd.f32 %v5454, %v5541
        %s5545 = scalar_lea.vmem %s16, 1536
        %v5546 = vld [vmem:[%s5545] sm:$0xff]
        %v5547 = vld [vmem:[%s5545 + $0x8] sm:$0xff]
        %v5548 = vld [vmem:[%s5545 + $0x10] sm:$0xff]
        %v5549 = vld [vmem:[%s5545 + $0x18] sm:$0xff]
        %v5550 = vld [vmem:[%s5545 + $0x20] sm:$0xff]
        %v5551 = vld [vmem:[%s5545 + $0x28] sm:$0xff]
        %v5552 = vld [vmem:[%s5545 + $0x30] sm:$0xff]
        %v5553 = vld [vmem:[%s5545 + $0x38] sm:$0xff]
        %v5554 = vld [vmem:[%s5545 + $0x40] sm:$0xff]
        %v5555 = vld [vmem:[%s5545 + $0x48] sm:$0xff]
        %v5556 = vld [vmem:[%s5545 + $0x50] sm:$0xff]
        %v5557 = vld [vmem:[%s5545 + $0x58] sm:$0xff]
        %v5558 = vld [vmem:[%s5545 + $0x60] sm:$0xff]
        %v5559 = vld [vmem:[%s5545 + $0x68] sm:$0xff]
        %v5560 = vld [vmem:[%s5545 + $0x70] sm:$0xff]
        %v5561 = vld [vmem:[%s5545 + $0x78] sm:$0xff]
        %v5562 = vrot.slane %v4466, 4
        %5564 = vmatprep.subr.mxu0 0.0
        %5565 = vmatpush1.msra.mxu0 %v5546
        %5566 = vmatprep.subr.mxu0 0.0
        %5567 = vmatpush1.msra.mxu0 %v5547
        %5568 = vmatprep.subr.mxu0 0.0
        %5569 = vmatpush1.msra.mxu0 %v5548
        %5570 = vmatprep.subr.mxu0 0.0
        %5571 = vmatpush1.msra.mxu0 %v5549
        %5572 = vmatprep.subr.mxu0 0.0
        %5573 = vmatpush1.msra.mxu0 %v5550
        %5574 = vmatprep.subr.mxu0 0.0
        %5575 = vmatpush1.msra.mxu0 %v5551
        %5576 = vmatprep.subr.mxu0 0.0
        %5577 = vmatpush1.msra.mxu0 %v5552
        %5578 = vmatprep.subr.mxu0 0.0
        %5579 = vmatpush1.msra.mxu0 %v5553
        %5580 = vmatprep.subr.mxu0 0.0
        %5581 = vmatpush1.msra.mxu0 %v5554
        %5582 = vmatprep.subr.mxu0 0.0
        %5583 = vmatpush1.msra.mxu0 %v5555
        %5584 = vmatprep.subr.mxu0 0.0
        %5585 = vmatpush1.msra.mxu0 %v5556
        %5586 = vmatprep.subr.mxu0 0.0
        %5587 = vmatpush1.msra.mxu0 %v5557
        %5588 = vmatprep.subr.mxu0 0.0
        %5589 = vmatpush1.msra.mxu0 %v5558
        %5590 = vmatprep.subr.mxu0 0.0
        %5591 = vmatpush1.msra.mxu0 %v5559
        %5592 = vmatprep.subr.mxu0 0.0
        %5593 = vmatpush1.msra.mxu0 %v5560
        %5594 = vmatprep.subr.mxu0 0.0
        %5595 = vmatpush1.msra.mxu0 %v5561
        %5596 = vmatprep.subr.mxu0 0.0
        %5597 = vmatpush1.msra.mxu0 0.0
        %5598 = vmatprep.subr.mxu0 0.0
        %5599 = vmatpush1.msra.mxu0 0.0
        %5600 = vmatprep.subr.mxu0 0.0
        %5601 = vmatpush1.msra.mxu0 0.0
        %5602 = vmatprep.subr.mxu0 0.0
        %5603 = vmatpush1.msra.mxu0 0.0
        %5604 = vmatprep.subr.mxu0 0.0
        %5605 = vmatpush1.msra.mxu0 0.0
        %5606 = vmatprep.subr.mxu0 0.0
        %5607 = vmatpush1.msra.mxu0 0.0
        %5608 = vmatprep.subr.mxu0 0.0
        %5609 = vmatpush1.msra.mxu0 0.0
        %5610 = vmatprep.subr.mxu0 0.0
        %5611 = vmatpush1.msra.mxu0 0.0
        %5612 = vmatprep.subr.mxu0 0.0
        %5613 = vmatpush1.msra.mxu0 0.0
        %5614 = vmatprep.subr.mxu0 0.0
        %5615 = vmatpush1.msra.mxu0 0.0
        %5616 = vmatprep.subr.mxu0 0.0
        %5617 = vmatpush1.msra.mxu0 0.0
        %5618 = vmatprep.subr.mxu0 0.0
        %5619 = vmatpush1.msra.mxu0 0.0
        %5620 = vmatprep.subr.mxu0 0.0
        %5621 = vmatpush1.msra.mxu0 0.0
        %5622 = vmatprep.subr.mxu0 0.0
        %5623 = vmatpush1.msra.mxu0 0.0
        %5624 = vmatprep.subr.mxu0 0.0
        %5625 = vmatpush1.msra.mxu0 0.0
        %5626 = vmatprep.subr.mxu0 0.0
        %5627 = vmatpush1.msra.mxu0 0.0
        %5628 = vmatprep.mubr.f32.mxu0 0.0
        %5629 = vmatmul.mubr.f32.gmra.mrb[0].mxu0 %v5562
        %v5630 = vpop.f32.mrb[0].mxu0
        %v5631 = vadd.f32 0.0, %v5630
        %v5632 = vpop.f32.mrb[0].mxu0
        %5633 = vdwg.mxu0
        %v5634 = vadd.f32 %v5544, %v5631
        %s5635 = scalar_lea.vmem %s16, 1664
        %v5636 = vld [vmem:[%s5635] sm:$0xff]
        %v5637 = vld [vmem:[%s5635 + $0x8] sm:$0xff]
        %v5638 = vld [vmem:[%s5635 + $0x10] sm:$0xff]
        %v5639 = vld [vmem:[%s5635 + $0x18] sm:$0xff]
        %v5640 = vld [vmem:[%s5635 + $0x20] sm:$0xff]
        %v5641 = vld [vmem:[%s5635 + $0x28] sm:$0xff]
        %v5642 = vld [vmem:[%s5635 + $0x30] sm:$0xff]
        %v5643 = vld [vmem:[%s5635 + $0x38] sm:$0xff]
        %v5644 = vld [vmem:[%s5635 + $0x40] sm:$0xff]
        %v5645 = vld [vmem:[%s5635 + $0x48] sm:$0xff]
        %v5646 = vld [vmem:[%s5635 + $0x50] sm:$0xff]
        %v5647 = vld [vmem:[%s5635 + $0x58] sm:$0xff]
        %v5648 = vld [vmem:[%s5635 + $0x60] sm:$0xff]
        %v5649 = vld [vmem:[%s5635 + $0x68] sm:$0xff]
        %v5650 = vld [vmem:[%s5635 + $0x70] sm:$0xff]
        %v5651 = vld [vmem:[%s5635 + $0x78] sm:$0xff]
        %v5652 = vrot.slane %v4466, 5
        %5654 = vmatprep.subr.mxu0 0.0
        %5655 = vmatpush1.msra.mxu0 %v5636
        %5656 = vmatprep.subr.mxu0 0.0
        %5657 = vmatpush1.msra.mxu0 %v5637
        %5658 = vmatprep.subr.mxu0 0.0
        %5659 = vmatpush1.msra.mxu0 %v5638
        %5660 = vmatprep.subr.mxu0 0.0
        %5661 = vmatpush1.msra.mxu0 %v5639
        %5662 = vmatprep.subr.mxu0 0.0
        %5663 = vmatpush1.msra.mxu0 %v5640
        %5664 = vmatprep.subr.mxu0 0.0
        %5665 = vmatpush1.msra.mxu0 %v5641
        %5666 = vmatprep.subr.mxu0 0.0
        %5667 = vmatpush1.msra.mxu0 %v5642
        %5668 = vmatprep.subr.mxu0 0.0
        %5669 = vmatpush1.msra.mxu0 %v5643
        %5670 = vmatprep.subr.mxu0 0.0
        %5671 = vmatpush1.msra.mxu0 %v5644
        %5672 = vmatprep.subr.mxu0 0.0
        %5673 = vmatpush1.msra.mxu0 %v5645
        %5674 = vmatprep.subr.mxu0 0.0
        %5675 = vmatpush1.msra.mxu0 %v5646
        %5676 = vmatprep.subr.mxu0 0.0
        %5677 = vmatpush1.msra.mxu0 %v5647
        %5678 = vmatprep.subr.mxu0 0.0
        %5679 = vmatpush1.msra.mxu0 %v5648
        %5680 = vmatprep.subr.mxu0 0.0
        %5681 = vmatpush1.msra.mxu0 %v5649
        %5682 = vmatprep.subr.mxu0 0.0
        %5683 = vmatpush1.msra.mxu0 %v5650
        %5684 = vmatprep.subr.mxu0 0.0
        %5685 = vmatpush1.msra.mxu0 %v5651
        %5686 = vmatprep.subr.mxu0 0.0
        %5687 = vmatpush1.msra.mxu0 0.0
        %5688 = vmatprep.subr.mxu0 0.0
        %5689 = vmatpush1.msra.mxu0 0.0
        %5690 = vmatprep.subr.mxu0 0.0
        %5691 = vmatpush1.msra.mxu0 0.0
        %5692 = vmatprep.subr.mxu0 0.0
        %5693 = vmatpush1.msra.mxu0 0.0
        %5694 = vmatprep.subr.mxu0 0.0
        %5695 = vmatpush1.msra.mxu0 0.0
        %5696 = vmatprep.subr.mxu0 0.0
        %5697 = vmatpush1.msra.mxu0 0.0
        %5698 = vmatprep.subr.mxu0 0.0
        %5699 = vmatpush1.msra.mxu0 0.0
        %5700 = vmatprep.subr.mxu0 0.0
        %5701 = vmatpush1.msra.mxu0 0.0
        %5702 = vmatprep.subr.mxu0 0.0
        %5703 = vmatpush1.msra.mxu0 0.0
        %5704 = vmatprep.subr.mxu0 0.0
        %5705 = vmatpush1.msra.mxu0 0.0
        %5706 = vmatprep.subr.mxu0 0.0
        %5707 = vmatpush1.msra.mxu0 0.0
        %5708 = vmatprep.subr.mxu0 0.0
        %5709 = vmatpush1.msra.mxu0 0.0
        %5710 = vmatprep.subr.mxu0 0.0
        %5711 = vmatpush1.msra.mxu0 0.0
        %5712 = vmatprep.subr.mxu0 0.0
        %5713 = vmatpush1.msra.mxu0 0.0
        %5714 = vmatprep.subr.mxu0 0.0
        %5715 = vmatpush1.msra.mxu0 0.0
        %5716 = vmatprep.subr.mxu0 0.0
        %5717 = vmatpush1.msra.mxu0 0.0
        %5718 = vmatprep.mubr.f32.mxu0 0.0
        %5719 = vmatmul.mubr.f32.gmra.mrb[0].mxu0 %v5652
        %v5720 = vpop.f32.mrb[0].mxu0
        %v5721 = vadd.f32 0.0, %v5720
        %v5722 = vpop.f32.mrb[0].mxu0
        %5723 = vdwg.mxu0
        %v5724 = vadd.f32 %v5634, %v5721
        %s5725 = scalar_lea.vmem %s16, 1792
        %v5726 = vld [vmem:[%s5725] sm:$0xff]
        %v5727 = vld [vmem:[%s5725 + $0x8] sm:$0xff]
        %v5728 = vld [vmem:[%s5725 + $0x10] sm:$0xff]
        %v5729 = vld [vmem:[%s5725 + $0x18] sm:$0xff]
        %v5730 = vld [vmem:[%s5725 + $0x20] sm:$0xff]
        %v5731 = vld [vmem:[%s5725 + $0x28] sm:$0xff]
        %v5732 = vld [vmem:[%s5725 + $0x30] sm:$0xff]
        %v5733 = vld [vmem:[%s5725 + $0x38] sm:$0xff]
        %v5734 = vld [vmem:[%s5725 + $0x40] sm:$0xff]
        %v5735 = vld [vmem:[%s5725 + $0x48] sm:$0xff]
        %v5736 = vld [vmem:[%s5725 + $0x50] sm:$0xff]
        %v5737 = vld [vmem:[%s5725 + $0x58] sm:$0xff]
        %v5738 = vld [vmem:[%s5725 + $0x60] sm:$0xff]
        %v5739 = vld [vmem:[%s5725 + $0x68] sm:$0xff]
        %v5740 = vld [vmem:[%s5725 + $0x70] sm:$0xff]
        %v5741 = vld [vmem:[%s5725 + $0x78] sm:$0xff]
        %v5742 = vrot.slane %v4466, 6
        %5744 = vmatprep.subr.mxu0 0.0
        %5745 = vmatpush1.msra.mxu0 %v5726
        %5746 = vmatprep.subr.mxu0 0.0
        %5747 = vmatpush1.msra.mxu0 %v5727
        %5748 = vmatprep.subr.mxu0 0.0
        %5749 = vmatpush1.msra.mxu0 %v5728
        %5750 = vmatprep.subr.mxu0 0.0
        %5751 = vmatpush1.msra.mxu0 %v5729
        %5752 = vmatprep.subr.mxu0 0.0
        %5753 = vmatpush1.msra.mxu0 %v5730
        %5754 = vmatprep.subr.mxu0 0.0
        %5755 = vmatpush1.msra.mxu0 %v5731
        %5756 = vmatprep.subr.mxu0 0.0
        %5757 = vmatpush1.msra.mxu0 %v5732
        %5758 = vmatprep.subr.mxu0 0.0
        %5759 = vmatpush1.msra.mxu0 %v5733
        %5760 = vmatprep.subr.mxu0 0.0
        %5761 = vmatpush1.msra.mxu0 %v5734
        %5762 = vmatprep.subr.mxu0 0.0
        %5763 = vmatpush1.msra.mxu0 %v5735
        %5764 = vmatprep.subr.mxu0 0.0
        %5765 = vmatpush1.msra.mxu0 %v5736
        %5766 = vmatprep.subr.mxu0 0.0
        %5767 = vmatpush1.msra.mxu0 %v5737
        %5768 = vmatprep.subr.mxu0 0.0
        %5769 = vmatpush1.msra.mxu0 %v5738
        %5770 = vmatprep.subr.mxu0 0.0
        %5771 = vmatpush1.msra.mxu0 %v5739
        %5772 = vmatprep.subr.mxu0 0.0
        %5773 = vmatpush1.msra.mxu0 %v5740
        %5774 = vmatprep.subr.mxu0 0.0
        %5775 = vmatpush1.msra.mxu0 %v5741
        %5776 = vmatprep.subr.mxu0 0.0
        %5777 = vmatpush1.msra.mxu0 0.0
        %5778 = vmatprep.subr.mxu0 0.0
        %5779 = vmatpush1.msra.mxu0 0.0
        %5780 = vmatprep.subr.mxu0 0.0
        %5781 = vmatpush1.msra.mxu0 0.0
        %5782 = vmatprep.subr.mxu0 0.0
        %5783 = vmatpush1.msra.mxu0 0.0
        %5784 = vmatprep.subr.mxu0 0.0
        %5785 = vmatpush1.msra.mxu0 0.0
        %5786 = vmatprep.subr.mxu0 0.0
        %5787 = vmatpush1.msra.mxu0 0.0
        %5788 = vmatprep.subr.mxu0 0.0
        %5789 = vmatpush1.msra.mxu0 0.0
        %5790 = vmatprep.subr.mxu0 0.0
        %5791 = vmatpush1.msra.mxu0 0.0
        %5792 = vmatprep.subr.mxu0 0.0
        %5793 = vmatpush1.msra.mxu0 0.0
        %5794 = vmatprep.subr.mxu0 0.0
        %5795 = vmatpush1.msra.mxu0 0.0
        %5796 = vmatprep.subr.mxu0 0.0
        %5797 = vmatpush1.msra.mxu0 0.0
        %5798 = vmatprep.subr.mxu0 0.0
        %5799 = vmatpush1.msra.mxu0 0.0
        %5800 = vmatprep.subr.mxu0 0.0
        %5801 = vmatpush1.msra.mxu0 0.0
        %5802 = vmatprep.subr.mxu0 0.0
        %5803 = vmatpush1.msra.mxu0 0.0
        %5804 = vmatprep.subr.mxu0 0.0
        %5805 = vmatpush1.msra.mxu0 0.0
        %5806 = vmatprep.subr.mxu0 0.0
        %5807 = vmatpush1.msra.mxu0 0.0
        %5808 = vmatprep.mubr.f32.mxu0 0.0
        %5809 = vmatmul.mubr.f32.gmra.mrb[0].mxu0 %v5742
        %v5810 = vpop.f32.mrb[0].mxu0
        %v5811 = vadd.f32 0.0, %v5810
        %v5812 = vpop.f32.mrb[0].mxu0
        %5813 = vdwg.mxu0
        %v5814 = vadd.f32 %v5724, %v5811
        %s5815 = scalar_lea.vmem %s16, 1920
        %v5816 = vld [vmem:[%s5815] sm:$0xff]
        %v5817 = vld [vmem:[%s5815 + $0x8] sm:$0xff]
        %v5818 = vld [vmem:[%s5815 + $0x10] sm:$0xff]
        %v5819 = vld [vmem:[%s5815 + $0x18] sm:$0xff]
        %v5820 = vld [vmem:[%s5815 + $0x20] sm:$0xff]
        %v5821 = vld [vmem:[%s5815 + $0x28] sm:$0xff]
        %v5822 = vld [vmem:[%s5815 + $0x30] sm:$0xff]
        %v5823 = vld [vmem:[%s5815 + $0x38] sm:$0xff]
        %v5824 = vld [vmem:[%s5815 + $0x40] sm:$0xff]
        %v5825 = vld [vmem:[%s5815 + $0x48] sm:$0xff]
        %v5826 = vld [vmem:[%s5815 + $0x50] sm:$0xff]
        %v5827 = vld [vmem:[%s5815 + $0x58] sm:$0xff]
        %v5828 = vld [vmem:[%s5815 + $0x60] sm:$0xff]
        %v5829 = vld [vmem:[%s5815 + $0x68] sm:$0xff]
        %v5830 = vld [vmem:[%s5815 + $0x70] sm:$0xff]
        %v5831 = vld [vmem:[%s5815 + $0x78] sm:$0xff]
        %v5832 = vrot.slane %v4466, 7
        %5834 = vmatprep.subr.mxu0 0.0
        %5835 = vmatpush1.msra.mxu0 %v5816
        %5836 = vmatprep.subr.mxu0 0.0
        %5837 = vmatpush1.msra.mxu0 %v5817
        %5838 = vmatprep.subr.mxu0 0.0
        %5839 = vmatpush1.msra.mxu0 %v5818
        %5840 = vmatprep.subr.mxu0 0.0
        %5841 = vmatpush1.msra.mxu0 %v5819
        %5842 = vmatprep.subr.mxu0 0.0
        %5843 = vmatpush1.msra.mxu0 %v5820
        %5844 = vmatprep.subr.mxu0 0.0
        %5845 = vmatpush1.msra.mxu0 %v5821
        %5846 = vmatprep.subr.mxu0 0.0
        %5847 = vmatpush1.msra.mxu0 %v5822
        %5848 = vmatprep.subr.mxu0 0.0
        %5849 = vmatpush1.msra.mxu0 %v5823
        %5850 = vmatprep.subr.mxu0 0.0
        %5851 = vmatpush1.msra.mxu0 %v5824
        %5852 = vmatprep.subr.mxu0 0.0
        %5853 = vmatpush1.msra.mxu0 %v5825
        %5854 = vmatprep.subr.mxu0 0.0
        %5855 = vmatpush1.msra.mxu0 %v5826
        %5856 = vmatprep.subr.mxu0 0.0
        %5857 = vmatpush1.msra.mxu0 %v5827
        %5858 = vmatprep.subr.mxu0 0.0
        %5859 = vmatpush1.msra.mxu0 %v5828
        %5860 = vmatprep.subr.mxu0 0.0
        %5861 = vmatpush1.msra.mxu0 %v5829
        %5862 = vmatprep.subr.mxu0 0.0
        %5863 = vmatpush1.msra.mxu0 %v5830
        %5864 = vmatprep.subr.mxu0 0.0
        %5865 = vmatpush1.msra.mxu0 %v5831
        %5866 = vmatprep.subr.mxu0 0.0
        %5867 = vmatpush1.msra.mxu0 0.0
        %5868 = vmatprep.subr.mxu0 0.0
        %5869 = vmatpush1.msra.mxu0 0.0
        %5870 = vmatprep.subr.mxu0 0.0
        %5871 = vmatpush1.msra.mxu0 0.0
        %5872 = vmatprep.subr.mxu0 0.0
        %5873 = vmatpush1.msra.mxu0 0.0
        %5874 = vmatprep.subr.mxu0 0.0
        %5875 = vmatpush1.msra.mxu0 0.0
        %5876 = vmatprep.subr.mxu0 0.0
        %5877 = vmatpush1.msra.mxu0 0.0
        %5878 = vmatprep.subr.mxu0 0.0
        %5879 = vmatpush1.msra.mxu0 0.0
        %5880 = vmatprep.subr.mxu0 0.0
        %5881 = vmatpush1.msra.mxu0 0.0
        %5882 = vmatprep.subr.mxu0 0.0
        %5883 = vmatpush1.msra.mxu0 0.0
        %5884 = vmatprep.subr.mxu0 0.0
        %5885 = vmatpush1.msra.mxu0 0.0
        %5886 = vmatprep.subr.mxu0 0.0
        %5887 = vmatpush1.msra.mxu0 0.0
        %5888 = vmatprep.subr.mxu0 0.0
        %5889 = vmatpush1.msra.mxu0 0.0
        %5890 = vmatprep.subr.mxu0 0.0
        %5891 = vmatpush1.msra.mxu0 0.0
        %5892 = vmatprep.subr.mxu0 0.0
        %5893 = vmatpush1.msra.mxu0 0.0
        %5894 = vmatprep.subr.mxu0 0.0
        %5895 = vmatpush1.msra.mxu0 0.0
        %5896 = vmatprep.subr.mxu0 0.0
        %5897 = vmatpush1.msra.mxu0 0.0
        %5898 = vmatprep.mubr.f32.mxu0 0.0
        %5899 = vmatmul.mubr.f32.gmra.mrb[0].mxu0 %v5832
        %v5900 = vpop.f32.mrb[0].mxu0
        %v5901 = vadd.f32 0.0, %v5900
        %v5902 = vpop.f32.mrb[0].mxu0
        %5903 = vdwg.mxu0
        %v5904 = vadd.f32 %v5814, %v5901
        %5905 = vst [vmem:[%s567] sm:$0x1] %v5904
        %s5906 = sand.u32 %s423, 1
        %s5907 = scalar_lea.sflag [#allocation3], %s5906
        %s5908 = sand.u32 %s423, 1
        %s5909 = scalar_lea.vmem [#allocation2], %s5908
        // Predicated region
        $region93: #{shallow_1dcnn_encoder_forward.1} parent=91 // pred_check
          %p5910 = pneg %p433
        $region94: #{shallow_1dcnn_encoder_forward.1} parent=91 // pred_check_branch
          %5912 = sbr.rel (%p5910) target = $region96
        $region95: #{shallow_1dcnn_encoder_forward.1} parent=91 // pred_region
          %s5914 = ssub.s32 16, 16
          %5915 = vsyncadd %s5907, %s5914
          %s5916 = smul.addr %s32, 16
          %s5917 = scalar_lea.hbm %s18, %s5916
          %s5919 = sshll.u32 %s5909, 4
          %s5920 = int_to_ptr.vmem [resolvable:$true] %s5919
          %5922 = dma.vmem_to_hbm [thread:$0]  %s5920, 16, %s5917, %s5907
        $region96: #{shallow_1dcnn_encoder_forward.1} parent=91 // pred_fallthru
          _
      $region92: #{shallow_1dcnn_encoder_forward.1} parent=5 // pred_fallthru
        _
      %p5923 = scmp.le.s32.totalorder 2, %s27
      // Predicated region
      $region97: #{shallow_1dcnn_encoder_forward.1} parent=5 // pred_check
        %p5924 = pneg %p5923
      $region98: #{shallow_1dcnn_encoder_forward.1} parent=5 // pred_check_branch
        %5926 = sbr.rel (%p5924) target = $region100
      $region99: #{shallow_1dcnn_encoder_forward.1} parent=5 // pred_region
        %s5927 = ssub.s32 %s27, 2
        // Predicated region
        $region101: #{shallow_1dcnn_encoder_forward.1} parent=99 // pred_check
          %p5928 = pneg %p439
        $region102: #{shallow_1dcnn_encoder_forward.1} parent=99 // pred_check_branch
          %5930 = sbr.rel (%p5928) target = $region104
        $region103: #{shallow_1dcnn_encoder_forward.1} parent=99 // pred_region
          %s5931 = sand.u32 %s424, 1
          %s5932 = scalar_lea.sflag [#allocation3], %s5931
          %s5933 = sand.u32 %s424, 1
          %s5934 = scalar_lea.vmem [#allocation2], %s5933
          %5935 = dma.done %s5932, 16
        $region104: #{shallow_1dcnn_encoder_forward.1} parent=99 // pred_fallthru
          _
      $region100: #{shallow_1dcnn_encoder_forward.1} parent=5 // pred_fallthru
        _
    $region6: #{shallow_1dcnn_encoder_forward.1} parent=1 // loop_footer
      %s31 = sadd.s32 1, %s27
    $region7: #{shallow_1dcnn_encoder_forward.1} parent=1 // loop_footer_branch
      %26 = sbr.rel target = $region3
    $region8: #{shallow_1dcnn_encoder_forward.1} parent=1 // loop_exit
      _
    %5936 = vsyncpa [#allocation3], 1
    %s5937 = scalar_lea.sflag [#allocation3], 1
    %5938 = vsyncpa %s5937, 1

</llo_original>
